<compile_context>
chip_gen: v5e
topology: v5e:2x2
jax: 0.10.0
libtpu: 0.0.40
codegen_flags: <defaults>
</compile_context>

<pallas_src>
import math

import jax
import jax.numpy as jnp
import numpy as np
from jax.experimental import pallas as pl
from jax.experimental.pallas import tpu as pltpu

# ---------------------------------------------------------------------------
# Static EEGNet geometry (PyTorch defaults; Linear(768,1) pins n_chans=8,
# n_time_samples=100).
# ---------------------------------------------------------------------------
N_CHANS = 8
N_TIME = 100
F1 = 16
D = 4
F2 = F1 * D                               # 64
K1 = 50                                   # round(100 / 2)
PAD1 = 23                                 # round((50 - 1) / 2) - 1
K3 = 12                                   # round(100 / 8)
PAD3 = 6                                  # round((12 - 1) / 2)
W_CONV1 = N_TIME + 2 * PAD1 - K1 + 1      # 97
W_POOL1 = W_CONV1 // 2                    # 48   (AvgPool2d((1,2)), floor)
W_CONV_USED = 2 * W_POOL1                 # 96   (97th column never used)
W_SEP = W_POOL1 + 2 * PAD3 - K3 + 1       # 49
W_PAD3 = W_POOL1 + 2 * PAD3               # 60   per-sample padded pooled length
W_POOL2 = W_SEP // 4                      # 12   (AvgPool2d((1,4)), floor)
EMB = F2 * W_POOL2                        # 768
BN_EPS = 1e-5

B_PER_STEP = 8                            # samples stacked on the lane axis per grid step
LANE_PAD = 32                             # extra zero lanes so tap slices never go OOB (>= K3-1)
W_SLAB_P1 = B_PER_STEP * W_PAD3 + LANE_PAD   # 512  (pool1 output width)
W_SLAB_Z = B_PER_STEP * W_PAD3               # 480  (sep-conv output width)


# ---------------------------------------------------------------------------
# Pallas kernel: B_PER_STEP samples per grid step, channels on sublanes,
# per-sample timelines concatenated on lanes.
# ---------------------------------------------------------------------------
def eegnet_kernel(u_ref, wcomb_ref, bcomb_ref, p1_ref, ws_ref, wp3_ref, b3_ref,
                  p2_ref, emb_ref):
    B = B_PER_STEP
    u = u_ref[0]                                              # (400, B*96) bf16

    # Fused conv1 + BN1 + depthwise conv + BN2 as one MXU matmul.
    y = jnp.dot(wcomb_ref[...], u,
                preferred_element_type=jnp.float32)           # (64, B*96) f32
    y = y + bcomb_ref[...]

    # ELU
    y = jnp.where(y > 0, y, jnp.exp(jnp.minimum(y, 0.0)) - 1.0)

    # AvgPool2d((1,2)) + PAD3 zero padding folded into one block-diagonal
    # pooling matrix (B*96 -> B*60 + LANE_PAD zero lanes).
    yp = jnp.dot(y.astype(jnp.bfloat16), p1_ref[...],
                 preferred_element_type=jnp.float32)          # (64, 512) f32

    # Dropout2d -> identity in inference.
    # TODO(synk): training-mode stochastic channel dropout not implemented.

    # separable_conv_depth: 12-tap depthwise (channel-specific) conv on the VPU.
    # Each per-sample block is 60 lanes wide, so a single global lane slice per
    # tap is exact for the 49 valid outputs; lanes [49,60) of each sample are
    # garbage and are never read by the pool2 matrix.
    ws = ws_ref[...]                                          # (64, 12) f32
    zd = ws[:, 0:1] * yp[:, 0:W_SLAB_Z]
    for k in range(1, K3):
        zd = zd + ws[:, k:k + 1] * yp[:, k:k + W_SLAB_Z]      # (64, 480) f32

    # separable_conv_point + BN3 folded into one matmul + bias.
    z = jnp.dot(wp3_ref[...], zd.astype(jnp.bfloat16),
                preferred_element_type=jnp.float32) + b3_ref[...]   # (64, 480)

    # ELU
    z = jnp.where(z > 0, z, jnp.exp(jnp.minimum(z, 0.0)) - 1.0)

    # AvgPool2d((1,4)) as a block-diagonal matmul (uses only the 48 valid
    # lanes per sample) -> lane-dense (64, B*12) embedding slab.
    emb_ref[0] = jnp.dot(z.astype(jnp.bfloat16), p2_ref[...],
                         preferred_element_type=jnp.float32)  # (64, B*12)


# ---------------------------------------------------------------------------
# Host wrapper.
# ---------------------------------------------------------------------------
def _const_spec(shape):
    zeros = (0,) * len(shape)
    return pl.BlockSpec(shape, lambda i, _z=zeros: _z)


def eegnet_pallas(x, p):
    n = x.shape[0]
    B = B_PER_STEP
    g = -(-n // B)                      # cdiv
    n_pad = g * B

    # ---- host glue: pad batch, zero-pad time, im2col, pack B samples/lane ----
    xsq = x[:, 0, :, :]                                            # (n, 8, 100)
    if n_pad > n:
        xsq = jnp.concatenate(
            [xsq, jnp.zeros((n_pad - n, N_CHANS, N_TIME), xsq.dtype)], axis=0)
    xpad = jnp.pad(xsq, ((0, 0), (0, 0), (PAD1, PAD1)))            # (n_pad, 8, 146)
    taps = [xpad[:, :, k:k + W_CONV_USED] for k in range(K1)]      # 50 x (n_pad, 8, 96)
    u = jnp.stack(taps, axis=2)                                    # (n_pad, 8, 50, 96)
    u = u.reshape(n_pad, N_CHANS * K1, W_CONV_USED)                # (n_pad, 400, 96)
    u = u.reshape(g, B, N_CHANS * K1, W_CONV_USED)
    u = u.transpose(0, 2, 1, 3).reshape(g, N_CHANS * K1, B * W_CONV_USED)
    u = u.astype(jnp.bfloat16)                                     # (g, 400, B*96)

    ins = (u, p["wcomb"], p["bcomb"], p["p1"], p["ws"], p["wp3"], p["b3"],
           p["p2"])
    in_specs = [pl.BlockSpec((1, N_CHANS * K1, B * W_CONV_USED),
                             lambda i: (i, 0, 0))]
    in_specs += [_const_spec(a.shape) for a in ins[1:]]

    out_specs = pl.BlockSpec((1, F2, B * W_POOL2), lambda i: (i, 0, 0))
    out_shape = jax.ShapeDtypeStruct((g, F2, B * W_POOL2), jnp.float32)

    emb_blocks = pl.pallas_call(
        eegnet_kernel,
        grid=(g,),
        in_specs=in_specs,
        out_specs=out_specs,
        out_shape=out_shape,
        compiler_params=pltpu.CompilerParams(
            dimension_semantics=("parallel",)),
    )(*ins)

    # (g, 64, B*12) -> (n, 768) in torch NCHW flatten order (c*12 + w).
    emb = emb_blocks.reshape(g, F2, B, W_POOL2).transpose(0, 2, 1, 3)
    emb = emb.reshape(n_pad, EMB)[:n]

    # dense: Linear(768, 1) is a trivial GEMV; do it on the host.
    logits = jnp.dot(emb, p["wf"].T,
                     precision=jax.lax.Precision.HIGHEST) + p["bf"].reshape(1, 1)
    return emb, logits


# ---------------------------------------------------------------------------
# Deterministic parameter initialization (synthetic weights, PyTorch shapes)
# plus all kernel-side folded / derived tensors.
# ---------------------------------------------------------------------------
def init_params(key):
    ks = jax.random.split(key, 24)
    u = lambda k, shape, b: jax.random.uniform(k, shape, jnp.float32, -b, b)

    def bn_fold(kg, kb, km, kv, c):
        gamma = jax.random.uniform(kg, (c, 1), jnp.float32, 0.5, 1.5)
        beta = jax.random.uniform(kb, (c, 1), jnp.float32, -0.3, 0.3)
        mean = jax.random.uniform(km, (c, 1), jnp.float32, -0.1, 0.1)
        var = jax.random.uniform(kv, (c, 1), jnp.float32, 0.8, 1.2)
        s = gamma / jnp.sqrt(var + BN_EPS)
        t = beta - mean * s
        return s, t

    # conv1: torch weight (F1,1,1,50), bias (F1,)
    w1 = u(ks[0], (F1, K1), 1.0 / math.sqrt(K1))
    b1 = u(ks[1], (F1, 1), 1.0 / math.sqrt(K1))
    s1, t1 = bn_fold(ks[2], ks[3], ks[4], ks[5], F1)
    # depthwise: torch weight (F2,1,8,1), bias (F2,)
    wd = u(ks[6], (F2, N_CHANS), 1.0 / math.sqrt(N_CHANS))
    bd = u(ks[7], (F2, 1), 1.0 / math.sqrt(N_CHANS))
    s2, t2 = bn_fold(ks[8], ks[9], ks[10], ks[11], F2)
    # separable depthwise: torch weight (F2,1,1,12), bias (F2,)
    ws = u(ks[12], (F2, K3), 1.0 / math.sqrt(K3))
    bs = u(ks[13], (F2, 1), 1.0 / math.sqrt(K3))
    # separable pointwise: torch weight (F2,F2,1,1), bias (F2,)
    wp = u(ks[14], (F2, F2), 1.0 / math.sqrt(F2))
    bp = u(ks[15], (F2, 1), 1.0 / math.sqrt(F2))
    s3, t3 = bn_fold(ks[16], ks[17], ks[18], ks[19], F2)
    # dense: torch weight (1,768), bias (1,)
    wf = u(ks[20], (1, EMB), 1.0 / math.sqrt(EMB))
    bf = u(ks[21], (1, 1), 1.0 / math.sqrt(EMB))

    # --- kernel-side derived / folded tensors ------------------------------
    B = B_PER_STEP
    g_idx = jnp.arange(F2) // D                       # group of each output chan
    w1g = w1[g_idx]                                   # (64, 50)
    s1g = s1[g_idx]                                   # (64, 1)
    b1g = b1[g_idx]
    t1g = t1[g_idx]

    # Fused conv1+BN1+depthwise+BN2 weight/bias (fold in f32, cast once).
    wcomb = (s2 * wd)[:, :, None] * (s1g * w1g)[:, None, :]       # (64, 8, 50)
    wcomb = wcomb.reshape(F2, N_CHANS * K1).astype(jnp.bfloat16)  # (64, 400)
    bcomb = s2 * (bd + (s1g * b1g + t1g) * jnp.sum(wd, axis=1, keepdims=True)) + t2

    # Pool1 (avg-by-2, floor) + PAD3 zero padding, block-diagonal over B samples.
    p1s = jnp.zeros((W_CONV_USED, W_PAD3), jnp.float32)
    rows = jnp.arange(W_CONV_USED)
    p1s = p1s.at[rows, PAD3 + rows // 2].set(0.5)                 # (96, 60)
    p1 = jnp.kron(jnp.eye(B, dtype=jnp.float32), p1s)             # (768, 480)
    p1 = jnp.pad(p1, ((0, 0), (0, LANE_PAD))).astype(jnp.bfloat16)  # (768, 512)

    # Pool2 (avg-by-4, floor), block-diagonal; zero rows for the unused /
    # garbage lanes of each per-sample block.
    p2s = jnp.zeros((W_PAD3, W_POOL2), jnp.float32)
    r2 = jnp.arange(4 * W_POOL2)
    p2s = p2s.at[r2, r2 // 4].set(0.25)                           # (60, 12)
    p2 = jnp.kron(jnp.eye(B, dtype=jnp.float32), p2s).astype(jnp.bfloat16)  # (480, 96)

    # separable pointwise + BN3 folded (separable-depthwise bias bs folded in too).
    wp3 = (s3 * wp).astype(jnp.bfloat16)                          # (64, 64)
    b3 = s3 * (bp + jnp.dot(wp, bs)) + t3                         # (64, 1)

    return dict(w1=w1, b1=b1, s1=s1, t1=t1, wd=wd, bd=bd, s2=s2, t2=t2,
                ws=ws, bs=bs, wp=wp, bp=bp, s3=s3, t3=t3, wf=wf, bf=bf,
                wcomb=wcomb, bcomb=bcomb, p1=p1, p2=p2, wp3=wp3, b3=b3)


# ---------------------------------------------------------------------------
# Pure-JAX reference (lax convolutions) for correctness checking.
# ---------------------------------------------------------------------------
def eegnet_reference(x, p):
    hp = jax.lax.Precision.HIGHEST
    dn = ("NCHW", "OIHW", "NCHW")
    n = x.shape[0]

    def bn(y, s, t):
        return y * s.reshape(1, -1, 1, 1) + t.reshape(1, -1, 1, 1)

    def elu(y):
        return jnp.where(y > 0, y, jnp.exp(jnp.minimum(y, 0.0)) - 1.0)

    y = jax.lax.conv_general_dilated(
        x, p["w1"].reshape(F1, 1, 1, K1), (1, 1), [(0, 0), (PAD1, PAD1)],
        dimension_numbers=dn, precision=hp) + p["b1"].reshape(1, F1, 1, 1)
    y = bn(y, p["s1"], p["t1"])
    y = jax.lax.conv_general_dilated(
        y, p["wd"].reshape(F2, 1, N_CHANS, 1), (1, 1), [(0, 0), (0, 0)],
        dimension_numbers=dn, feature_group_count=F1,
        precision=hp) + p["bd"].reshape(1, F2, 1, 1)
    y = bn(y, p["s2"], p["t2"])
    y = elu(y)
    y = y[..., :2 * W_POOL1].reshape(n, F2, 1, W_POOL1, 2).mean(axis=-1)
    y = jax.lax.conv_general_dilated(
        y, p["ws"].reshape(F2, 1, 1, K3), (1, 1), [(0, 0), (PAD3, PAD3)],
        dimension_numbers=dn, feature_group_count=F2,
        precision=hp) + p["bs"].reshape(1, F2, 1, 1)
    y = jax.lax.conv_general_dilated(
        y, p["wp"].reshape(F2, F2, 1, 1), (1, 1), [(0, 0), (0, 0)],
        dimension_numbers=dn, precision=hp) + p["bp"].reshape(1, F2, 1, 1)
    y = bn(y, p["s3"], p["t3"])
    y = elu(y)
    y = y[..., :4 * W_POOL2].reshape(n, F2, 1, W_POOL2, 4).mean(axis=-1)
    emb = y.reshape(n, EMB)
    logits = jnp.dot(emb, p["wf"].T, precision=hp) + p["bf"].reshape(1, 1)
    return emb, logits


if __name__ == "__main__":
    key = jax.random.PRNGKey(0)
    kx, kp = jax.random.split(key)
    batch = 10      # exercises >1 grid step (B=8 per step) and the batch-pad path
    x = jax.random.normal(kx, (batch, 1, N_CHANS, N_TIME), jnp.float32)
    params = init_params(kp)

    emb, logits = jax.jit(eegnet_pallas)(x, params)
    emb = jax.block_until_ready(emb)
    logits = jax.block_until_ready(logits)

    ref_emb, ref_logits = eegnet_reference(x, params)
    assert emb.shape == (batch, EMB) and logits.shape == (batch, 1)
    np.testing.assert_allclose(np.asarray(emb), np.asarray(ref_emb),
                               rtol=2e-2, atol=2e-2)
    np.testing.assert_allclose(np.asarray(logits), np.asarray(ref_logits),
                               rtol=2e-2, atol=2e-2)
    print("KERNEL_OK")
</pallas_src>

<mosaic_0001>
module attributes {stable_mosaic.version = 11 : i64} {
  func.func @eegnet_kernel(%arg0: i32, %arg1: memref<1x400x768xbf16, #tpu.memory_space<vmem>>, %arg2: memref<64x400xbf16, #tpu.memory_space<vmem>>, %arg3: memref<64x1xf32, #tpu.memory_space<vmem>>, %arg4: memref<768x512xbf16, #tpu.memory_space<vmem>>, %arg5: memref<64x12xf32, #tpu.memory_space<vmem>>, %arg6: memref<64x64xbf16, #tpu.memory_space<vmem>>, %arg7: memref<64x1xf32, #tpu.memory_space<vmem>>, %arg8: memref<480x96xbf16, #tpu.memory_space<vmem>>, %arg9: memref<1x64x96xf32, #tpu.memory_space<vmem>>) attributes {dimension_semantics = [#tpu.dimension_semantics<parallel>], iteration_bounds = array<i64: 2>, scalar_prefetch = 0 : i64, scratch_operands = 0 : i64, tpu.core_type = #tpu.core_type<tc>, window_params = [{transform_indices = @transform_0, window_bounds = array<i64: 1, 400, 768>}, {pipeline_mode = #tpu.pipeline_mode<synchronous>, transform_indices = @transform_1, window_bounds = array<i64: 64, 400>}, {pipeline_mode = #tpu.pipeline_mode<synchronous>, transform_indices = @transform_2, window_bounds = array<i64: 64, 1>}, {pipeline_mode = #tpu.pipeline_mode<synchronous>, transform_indices = @transform_3, window_bounds = array<i64: 768, 512>}, {pipeline_mode = #tpu.pipeline_mode<synchronous>, transform_indices = @transform_4, window_bounds = array<i64: 64, 12>}, {pipeline_mode = #tpu.pipeline_mode<synchronous>, transform_indices = @transform_5, window_bounds = array<i64: 64, 64>}, {pipeline_mode = #tpu.pipeline_mode<synchronous>, transform_indices = @transform_6, window_bounds = array<i64: 64, 1>}, {pipeline_mode = #tpu.pipeline_mode<synchronous>, transform_indices = @transform_7, window_bounds = array<i64: 480, 96>}, {transform_indices = @transform_8, window_bounds = array<i64: 1, 64, 96>}]} {
    %c0 = arith.constant 0 : index
    %c0_0 = arith.constant 0 : index
    %c0_1 = arith.constant 0 : index
    %0 = vector.load %arg1[%c0, %c0_0, %c0_1] : memref<1x400x768xbf16, #tpu.memory_space<vmem>>, vector<1x400x768xbf16>
    %1 = vector.shape_cast %0 : vector<1x400x768xbf16> to vector<400x768xbf16>
    %c0_2 = arith.constant 0 : index
    %c0_3 = arith.constant 0 : index
    %2 = vector.load %arg2[%c0_2, %c0_3] : memref<64x400xbf16, #tpu.memory_space<vmem>>, vector<64x400xbf16>
    %cst = arith.constant dense<0.000000e+00> : vector<64x768xf32>
    %3 = tpu.matmul %2, %1, %cst {dimension_numbers = #tpu.dot_dimension_numbers<[1], [0], [0], [1], [0, 0, 1, 1], [], []>} : vector<64x400xbf16>, vector<400x768xbf16>, vector<64x768xf32> -> vector<64x768xf32>
    %c0_4 = arith.constant 0 : index
    %c0_5 = arith.constant 0 : index
    %4 = vector.load %arg3[%c0_4, %c0_5] : memref<64x1xf32, #tpu.memory_space<vmem>>, vector<64x1xf32>
    %5 = vector.broadcast %4 : vector<64x1xf32> to vector<64x768xf32>
    %6 = arith.addf %3, %5 : vector<64x768xf32>
    %cst_6 = arith.constant 0.000000e+00 : f32
    %7 = vector.broadcast %cst_6 : f32 to vector<64x768xf32>
    %8 = arith.cmpf ogt, %6, %7 : vector<64x768xf32>
    %cst_7 = arith.constant 0.000000e+00 : f32
    %9 = vector.broadcast %cst_7 : f32 to vector<64x768xf32>
    %10 = arith.minimumf %6, %9 : vector<64x768xf32>
    %11 = math.exp %10 : vector<64x768xf32>
    %cst_8 = arith.constant 1.000000e+00 : f32
    %12 = vector.broadcast %cst_8 : f32 to vector<64x768xf32>
    %13 = arith.subf %11, %12 : vector<64x768xf32>
    %14 = arith.select %8, %6, %13 : vector<64x768xi1>, vector<64x768xf32>
    %15 = arith.truncf %14 : vector<64x768xf32> to vector<64x768xbf16>
    %c0_9 = arith.constant 0 : index
    %c0_10 = arith.constant 0 : index
    %16 = vector.load %arg4[%c0_9, %c0_10] : memref<768x512xbf16, #tpu.memory_space<vmem>>, vector<768x512xbf16>
    %cst_11 = arith.constant dense<0.000000e+00> : vector<64x512xf32>
    %17 = tpu.matmul %15, %16, %cst_11 {dimension_numbers = #tpu.dot_dimension_numbers<[1], [0], [0], [1], [0, 0, 1, 1], [], []>} : vector<64x768xbf16>, vector<768x512xbf16>, vector<64x512xf32> -> vector<64x512xf32>
    %c0_12 = arith.constant 0 : index
    %c0_13 = arith.constant 0 : index
    %18 = vector.load %arg5[%c0_12, %c0_13] : memref<64x12xf32, #tpu.memory_space<vmem>>, vector<64x12xf32>
    %19 = vector.extract_strided_slice %18 {offsets = [0, 0], sizes = [64, 1], strides = [1, 1]} : vector<64x12xf32> to vector<64x1xf32>
    %20 = vector.extract_strided_slice %17 {offsets = [0, 0], sizes = [64, 480], strides = [1, 1]} : vector<64x512xf32> to vector<64x480xf32>
    %21 = vector.broadcast %19 : vector<64x1xf32> to vector<64x480xf32>
    %22 = arith.mulf %21, %20 : vector<64x480xf32>
    %23 = vector.extract_strided_slice %18 {offsets = [0, 1], sizes = [64, 1], strides = [1, 1]} : vector<64x12xf32> to vector<64x1xf32>
    %24 = vector.extract_strided_slice %17 {offsets = [0, 1], sizes = [64, 480], strides = [1, 1]} : vector<64x512xf32> to vector<64x480xf32>
    %25 = vector.broadcast %23 : vector<64x1xf32> to vector<64x480xf32>
    %26 = arith.mulf %25, %24 : vector<64x480xf32>
    %27 = arith.addf %22, %26 : vector<64x480xf32>
    %28 = vector.extract_strided_slice %18 {offsets = [0, 2], sizes = [64, 1], strides = [1, 1]} : vector<64x12xf32> to vector<64x1xf32>
    %29 = vector.extract_strided_slice %17 {offsets = [0, 2], sizes = [64, 480], strides = [1, 1]} : vector<64x512xf32> to vector<64x480xf32>
    %30 = vector.broadcast %28 : vector<64x1xf32> to vector<64x480xf32>
    %31 = arith.mulf %30, %29 : vector<64x480xf32>
    %32 = arith.addf %27, %31 : vector<64x480xf32>
    %33 = vector.extract_strided_slice %18 {offsets = [0, 3], sizes = [64, 1], strides = [1, 1]} : vector<64x12xf32> to vector<64x1xf32>
    %34 = vector.extract_strided_slice %17 {offsets = [0, 3], sizes = [64, 480], strides = [1, 1]} : vector<64x512xf32> to vector<64x480xf32>
    %35 = vector.broadcast %33 : vector<64x1xf32> to vector<64x480xf32>
    %36 = arith.mulf %35, %34 : vector<64x480xf32>
    %37 = arith.addf %32, %36 : vector<64x480xf32>
    %38 = vector.extract_strided_slice %18 {offsets = [0, 4], sizes = [64, 1], strides = [1, 1]} : vector<64x12xf32> to vector<64x1xf32>
    %39 = vector.extract_strided_slice %17 {offsets = [0, 4], sizes = [64, 480], strides = [1, 1]} : vector<64x512xf32> to vector<64x480xf32>
    %40 = vector.broadcast %38 : vector<64x1xf32> to vector<64x480xf32>
    %41 = arith.mulf %40, %39 : vector<64x480xf32>
    %42 = arith.addf %37, %41 : vector<64x480xf32>
    %43 = vector.extract_strided_slice %18 {offsets = [0, 5], sizes = [64, 1], strides = [1, 1]} : vector<64x12xf32> to vector<64x1xf32>
    %44 = vector.extract_strided_slice %17 {offsets = [0, 5], sizes = [64, 480], strides = [1, 1]} : vector<64x512xf32> to vector<64x480xf32>
    %45 = vector.broadcast %43 : vector<64x1xf32> to vector<64x480xf32>
    %46 = arith.mulf %45, %44 : vector<64x480xf32>
    %47 = arith.addf %42, %46 : vector<64x480xf32>
    %48 = vector.extract_strided_slice %18 {offsets = [0, 6], sizes = [64, 1], strides = [1, 1]} : vector<64x12xf32> to vector<64x1xf32>
    %49 = vector.extract_strided_slice %17 {offsets = [0, 6], sizes = [64, 480], strides = [1, 1]} : vector<64x512xf32> to vector<64x480xf32>
    %50 = vector.broadcast %48 : vector<64x1xf32> to vector<64x480xf32>
    %51 = arith.mulf %50, %49 : vector<64x480xf32>
    %52 = arith.addf %47, %51 : vector<64x480xf32>
    %53 = vector.extract_strided_slice %18 {offsets = [0, 7], sizes = [64, 1], strides = [1, 1]} : vector<64x12xf32> to vector<64x1xf32>
    %54 = vector.extract_strided_slice %17 {offsets = [0, 7], sizes = [64, 480], strides = [1, 1]} : vector<64x512xf32> to vector<64x480xf32>
    %55 = vector.broadcast %53 : vector<64x1xf32> to vector<64x480xf32>
    %56 = arith.mulf %55, %54 : vector<64x480xf32>
    %57 = arith.addf %52, %56 : vector<64x480xf32>
    %58 = vector.extract_strided_slice %18 {offsets = [0, 8], sizes = [64, 1], strides = [1, 1]} : vector<64x12xf32> to vector<64x1xf32>
    %59 = vector.extract_strided_slice %17 {offsets = [0, 8], sizes = [64, 480], strides = [1, 1]} : vector<64x512xf32> to vector<64x480xf32>
    %60 = vector.broadcast %58 : vector<64x1xf32> to vector<64x480xf32>
    %61 = arith.mulf %60, %59 : vector<64x480xf32>
    %62 = arith.addf %57, %61 : vector<64x480xf32>
    %63 = vector.extract_strided_slice %18 {offsets = [0, 9], sizes = [64, 1], strides = [1, 1]} : vector<64x12xf32> to vector<64x1xf32>
    %64 = vector.extract_strided_slice %17 {offsets = [0, 9], sizes = [64, 480], strides = [1, 1]} : vector<64x512xf32> to vector<64x480xf32>
    %65 = vector.broadcast %63 : vector<64x1xf32> to vector<64x480xf32>
    %66 = arith.mulf %65, %64 : vector<64x480xf32>
    %67 = arith.addf %62, %66 : vector<64x480xf32>
    %68 = vector.extract_strided_slice %18 {offsets = [0, 10], sizes = [64, 1], strides = [1, 1]} : vector<64x12xf32> to vector<64x1xf32>
    %69 = vector.extract_strided_slice %17 {offsets = [0, 10], sizes = [64, 480], strides = [1, 1]} : vector<64x512xf32> to vector<64x480xf32>
    %70 = vector.broadcast %68 : vector<64x1xf32> to vector<64x480xf32>
    %71 = arith.mulf %70, %69 : vector<64x480xf32>
    %72 = arith.addf %67, %71 : vector<64x480xf32>
    %73 = vector.extract_strided_slice %18 {offsets = [0, 11], sizes = [64, 1], strides = [1, 1]} : vector<64x12xf32> to vector<64x1xf32>
    %74 = vector.extract_strided_slice %17 {offsets = [0, 11], sizes = [64, 480], strides = [1, 1]} : vector<64x512xf32> to vector<64x480xf32>
    %75 = vector.broadcast %73 : vector<64x1xf32> to vector<64x480xf32>
    %76 = arith.mulf %75, %74 : vector<64x480xf32>
    %77 = arith.addf %72, %76 : vector<64x480xf32>
    %c0_14 = arith.constant 0 : index
    %c0_15 = arith.constant 0 : index
    %78 = vector.load %arg6[%c0_14, %c0_15] : memref<64x64xbf16, #tpu.memory_space<vmem>>, vector<64x64xbf16>
    %79 = arith.truncf %77 : vector<64x480xf32> to vector<64x480xbf16>
    %cst_16 = arith.constant dense<0.000000e+00> : vector<64x480xf32>
    %80 = tpu.matmul %78, %79, %cst_16 {dimension_numbers = #tpu.dot_dimension_numbers<[1], [0], [0], [1], [0, 0, 1, 1], [], []>} : vector<64x64xbf16>, vector<64x480xbf16>, vector<64x480xf32> -> vector<64x480xf32>
    %c0_17 = arith.constant 0 : index
    %c0_18 = arith.constant 0 : index
    %81 = vector.load %arg7[%c0_17, %c0_18] : memref<64x1xf32, #tpu.memory_space<vmem>>, vector<64x1xf32>
    %82 = vector.broadcast %81 : vector<64x1xf32> to vector<64x480xf32>
    %83 = arith.addf %80, %82 : vector<64x480xf32>
    %cst_19 = arith.constant 0.000000e+00 : f32
    %84 = vector.broadcast %cst_19 : f32 to vector<64x480xf32>
    %85 = arith.cmpf ogt, %83, %84 : vector<64x480xf32>
    %cst_20 = arith.constant 0.000000e+00 : f32
    %86 = vector.broadcast %cst_20 : f32 to vector<64x480xf32>
    %87 = arith.minimumf %83, %86 : vector<64x480xf32>
    %88 = math.exp %87 : vector<64x480xf32>
    %cst_21 = arith.constant 1.000000e+00 : f32
    %89 = vector.broadcast %cst_21 : f32 to vector<64x480xf32>
    %90 = arith.subf %88, %89 : vector<64x480xf32>
    %91 = arith.select %85, %83, %90 : vector<64x480xi1>, vector<64x480xf32>
    %92 = arith.truncf %91 : vector<64x480xf32> to vector<64x480xbf16>
    %c0_22 = arith.constant 0 : index
    %c0_23 = arith.constant 0 : index
    %93 = vector.load %arg8[%c0_22, %c0_23] : memref<480x96xbf16, #tpu.memory_space<vmem>>, vector<480x96xbf16>
    %cst_24 = arith.constant dense<0.000000e+00> : vector<64x96xf32>
    %94 = tpu.matmul %92, %93, %cst_24 {dimension_numbers = #tpu.dot_dimension_numbers<[1], [0], [0], [1], [0, 0, 1, 1], [], []>} : vector<64x480xbf16>, vector<480x96xbf16>, vector<64x96xf32> -> vector<64x96xf32>
    %c0_25 = arith.constant 0 : index
    %c0_26 = arith.constant 0 : index
    %c0_27 = arith.constant 0 : index
    %95 = vector.load %arg9[%c0_25, %c0_26, %c0_27] : memref<1x64x96xf32, #tpu.memory_space<vmem>>, vector<1x64x96xf32>
    %96 = vector.shape_cast %95 : vector<1x64x96xf32> to vector<64x96xf32>
    %97 = vector.shape_cast %94 : vector<64x96xf32> to vector<1x64x96xf32>
    tpu.vector_store %arg9[%c0_25, %c0_26, %c0_27], %97 {strides = array<i32>} : memref<1x64x96xf32, #tpu.memory_space<vmem>>, vector<1x64x96xf32>,
    return
  }
  func.func @transform_0(%arg0: i32) -> (i32, i32, i32) {
    %c0_i32 = arith.constant 0 : i32
    %c0_i32_0 = arith.constant 0 : i32
    %c0_i32_1 = arith.constant 0 : i32
    return %arg0, %c0_i32, %c0_i32_0 : i32, i32, i32
  }
  func.func @transform_1(%arg0: i32) -> (i32, i32) {
    %c0_i32 = arith.constant 0 : i32
    %c0_i32_0 = arith.constant 0 : i32
    %c0_i32_1 = arith.constant 0 : i32
    return %c0_i32, %c0_i32_0 : i32, i32
  }
  func.func @transform_2(%arg0: i32) -> (i32, i32) {
    %c0_i32 = arith.constant 0 : i32
    %c0_i32_0 = arith.constant 0 : i32
    %c0_i32_1 = arith.constant 0 : i32
    return %c0_i32, %c0_i32_0 : i32, i32
  }
  func.func @transform_3(%arg0: i32) -> (i32, i32) {
    %c0_i32 = arith.constant 0 : i32
    %c0_i32_0 = arith.constant 0 : i32
    %c0_i32_1 = arith.constant 0 : i32
    return %c0_i32, %c0_i32_0 : i32, i32
  }
  func.func @transform_4(%arg0: i32) -> (i32, i32) {
    %c0_i32 = arith.constant 0 : i32
    %c0_i32_0 = arith.constant 0 : i32
    %c0_i32_1 = arith.constant 0 : i32
    return %c0_i32, %c0_i32_0 : i32, i32
  }
  func.func @transform_5(%arg0: i32) -> (i32, i32) {
    %c0_i32 = arith.constant 0 : i32
    %c0_i32_0 = arith.constant 0 : i32
    %c0_i32_1 = arith.constant 0 : i32
    return %c0_i32, %c0_i32_0 : i32, i32
  }
  func.func @transform_6(%arg0: i32) -> (i32, i32) {
    %c0_i32 = arith.constant 0 : i32
    %c0_i32_0 = arith.constant 0 : i32
    %c0_i32_1 = arith.constant 0 : i32
    return %c0_i32, %c0_i32_0 : i32, i32
  }
  func.func @transform_7(%arg0: i32) -> (i32, i32) {
    %c0_i32 = arith.constant 0 : i32
    %c0_i32_0 = arith.constant 0 : i32
    %c0_i32_1 = arith.constant 0 : i32
    return %c0_i32, %c0_i32_0 : i32, i32
  }
  func.func @transform_8(%arg0: i32) -> (i32, i32, i32) {
    %c0_i32 = arith.constant 0 : i32
    %c0_i32_0 = arith.constant 0 : i32
    %c0_i32_1 = arith.constant 0 : i32
    return %arg0, %c0_i32, %c0_i32_0 : i32, i32, i32
  }
}

</mosaic_0001>

<llo_original>
// kernel: eegnet_pallas.1
$region0: #{eegnet_pallas.1}
  #allocation0 [shape = 'u32[]', space=smem, size = 0x4, offset = 0x4, fixed_abs, tag = 'smem constant byte address 0x4 - core index']
  #allocation1 [shape = 'u32[72,128]{1,0:T(1,128)}', space=vmem, size = 0x9000, scoped, tag = 'internal scratch']
  %s0 = inlined_call_operand.vmem [shape: bf16[2,400,768], index: 0, kind: input, shape index: {}]
  %s1 = inlined_call_operand.vmem [shape: bf16[64,400], index: 1, kind: input, shape index: {}]
  %s2 = inlined_call_operand.vmem [shape: f32[64,1], index: 2, kind: input, shape index: {}]
  %s3 = inlined_call_operand.vmem [shape: bf16[768,512], index: 3, kind: input, shape index: {}]
  %s4 = inlined_call_operand.vmem [shape: f32[64,12], index: 4, kind: input, shape index: {}]
  %s5 = inlined_call_operand.vmem [shape: bf16[64,64], index: 5, kind: input, shape index: {}]
  %s6 = inlined_call_operand.vmem [shape: f32[64,1], index: 6, kind: input, shape index: {}]
  %s7 = inlined_call_operand.vmem [shape: bf16[480,96], index: 7, kind: input, shape index: {}]
  %s8 = inlined_call_operand.vmem [shape: f32[2,64,96], index: 8, kind: output, shape index: {}]
  %s9 = sld [smem:[#allocation0]]
  $region65: #{eegnet_pallas.1} parent=0
    _
  %s11 = ssub.s32 1, %s9
  %s12 = scalar_select 0, %s11, %s9
  loop: start=0, step=1, limit=4
  $region2: #{eegnet_pallas.1} parent=0 // loop_pre_header
    _
  $region3: #{eegnet_pallas.1} parent=0 // loop_header
    %s14 = sphi 0, %s18
    %p15 = scmp.ge.s32.totalorder %s14, 4
    %s24 = sphi 0, %s26
    %s27 = sphi 0, %s24
    %s28 = sphi 0, %s27
    %s44 = sphi 0, %s28
    %s48 = sphi 0, %s48
    %s50 = sphi 0, %s48
    %s51 = sphi 0, %s50
    %s65 = sphi 0, %s51
    %s69 = sphi 0, %s69
    %s71 = sphi 0, %s69
    %s72 = sphi 0, %s71
    %s86 = sphi 0, %s72
    %s90 = sphi 0, %s90
    %s92 = sphi 0, %s90
    %s93 = sphi 0, %s92
    %s107 = sphi 0, %s93
    %s111 = sphi 0, %s111
    %s113 = sphi 0, %s111
    %s114 = sphi 0, %s113
    %s128 = sphi 0, %s114
    %s132 = sphi 0, %s132
    %s134 = sphi 0, %s132
    %s135 = sphi 0, %s134
    %s149 = sphi 0, %s135
    %s153 = sphi 0, %s153
    %s155 = sphi 0, %s153
    %s156 = sphi 0, %s155
    %s170 = sphi 0, %s156
    %s174 = sphi 0, %s174
    %s176 = sphi 0, %s174
    %s177 = sphi 0, %s176
    %s191 = sphi 0, %s177
    %s197 = sphi 0, %s199
    %s200 = sphi 0, %s197
    %s201 = sphi 0, %s200
    %s217 = sphi 0, %s201
  $region4: #{eegnet_pallas.1} parent=0 // loop_header_branch
    %17 = sbr.rel (%p15) target = $region8
  $region5: #{eegnet_pallas.1} parent=0 // loop_body
    %s19 = ssub.s32 %s14, 1
    %s20 = ssub.s32 %s14, 2
    %s21 = sadd.s32 %s14, 1
    %s22 = ssub.s32 %s14, %s21
    %p23 = scmp.eq.s32.totalorder %s22, 0
    %s25 = sadd.s32 %s24, 1
    %s26 = scalar_select %p23, %s24, %s25
    %p29 = pneg %p23
    %p30 = scmp.eq.s32.totalorder %s14, 1
    %p31 = por %p29, %p30
    %p32 = scmp.ne.s32.totalorder %s24, %s27
    %p33 = scmp.eq.s32.totalorder %s14, 0
    %p34 = por %p32, %p33
    %p35 = scmp.ne.s32.totalorder %s24, %s27
    %p36 = scmp.eq.s32.totalorder %s19, 1
    %p37 = por %p35, %p36
    %p38 = scmp.ne.s32.totalorder %s27, %s28
    %p39 = scmp.eq.s32.totalorder %s19, 0
    %p40 = por %p38, %p39
    %p41 = scmp.ne.s32.totalorder %s27, %s28
    %p42 = scmp.eq.s32.totalorder %s20, 1
    %p43 = por %p41, %p42
    %p45 = scmp.ne.s32.totalorder %s28, %s44
    %p46 = scmp.eq.s32.totalorder %s20, 0
    %p47 = por %p45, %p46
    %s49 = sadd.s32 %s48, 1
    %p52 = scmp.eq.s32.totalorder %s14, 1
    %p53 = scmp.ne.s32.totalorder %s48, %s50
    %p54 = scmp.eq.s32.totalorder %s14, 0
    %p55 = por %p53, %p54
    %p56 = scmp.ne.s32.totalorder %s48, %s50
    %p57 = scmp.eq.s32.totalorder %s19, 1
    %p58 = por %p56, %p57
    %p59 = scmp.ne.s32.totalorder %s50, %s51
    %p60 = scmp.eq.s32.totalorder %s19, 0
    %p61 = por %p59, %p60
    %p62 = scmp.ne.s32.totalorder %s50, %s51
    %p63 = scmp.eq.s32.totalorder %s20, 1
    %p64 = por %p62, %p63
    %p66 = scmp.ne.s32.totalorder %s51, %s65
    %p67 = scmp.eq.s32.totalorder %s20, 0
    %p68 = por %p66, %p67
    %s70 = sadd.s32 %s69, 1
    %p73 = scmp.eq.s32.totalorder %s14, 1
    %p74 = scmp.ne.s32.totalorder %s69, %s71
    %p75 = scmp.eq.s32.totalorder %s14, 0
    %p76 = por %p74, %p75
    %p77 = scmp.ne.s32.totalorder %s69, %s71
    %p78 = scmp.eq.s32.totalorder %s19, 1
    %p79 = por %p77, %p78
    %p80 = scmp.ne.s32.totalorder %s71, %s72
    %p81 = scmp.eq.s32.totalorder %s19, 0
    %p82 = por %p80, %p81
    %p83 = scmp.ne.s32.totalorder %s71, %s72
    %p84 = scmp.eq.s32.totalorder %s20, 1
    %p85 = por %p83, %p84
    %p87 = scmp.ne.s32.totalorder %s72, %s86
    %p88 = scmp.eq.s32.totalorder %s20, 0
    %p89 = por %p87, %p88
    %s91 = sadd.s32 %s90, 1
    %p94 = scmp.eq.s32.totalorder %s14, 1
    %p95 = scmp.ne.s32.totalorder %s90, %s92
    %p96 = scmp.eq.s32.totalorder %s14, 0
    %p97 = por %p95, %p96
    %p98 = scmp.ne.s32.totalorder %s90, %s92
    %p99 = scmp.eq.s32.totalorder %s19, 1
    %p100 = por %p98, %p99
    %p101 = scmp.ne.s32.totalorder %s92, %s93
    %p102 = scmp.eq.s32.totalorder %s19, 0
    %p103 = por %p101, %p102
    %p104 = scmp.ne.s32.totalorder %s92, %s93
    %p105 = scmp.eq.s32.totalorder %s20, 1
    %p106 = por %p104, %p105
    %p108 = scmp.ne.s32.totalorder %s93, %s107
    %p109 = scmp.eq.s32.totalorder %s20, 0
    %p110 = por %p108, %p109
    %s112 = sadd.s32 %s111, 1
    %p115 = scmp.eq.s32.totalorder %s14, 1
    %p116 = scmp.ne.s32.totalorder %s111, %s113
    %p117 = scmp.eq.s32.totalorder %s14, 0
    %p118 = por %p116, %p117
    %p119 = scmp.ne.s32.totalorder %s111, %s113
    %p120 = scmp.eq.s32.totalorder %s19, 1
    %p121 = por %p119, %p120
    %p122 = scmp.ne.s32.totalorder %s113, %s114
    %p123 = scmp.eq.s32.totalorder %s19, 0
    %p124 = por %p122, %p123
    %p125 = scmp.ne.s32.totalorder %s113, %s114
    %p126 = scmp.eq.s32.totalorder %s20, 1
    %p127 = por %p125, %p126
    %p129 = scmp.ne.s32.totalorder %s114, %s128
    %p130 = scmp.eq.s32.totalorder %s20, 0
    %p131 = por %p129, %p130
    %s133 = sadd.s32 %s132, 1
    %p136 = scmp.eq.s32.totalorder %s14, 1
    %p137 = scmp.ne.s32.totalorder %s132, %s134
    %p138 = scmp.eq.s32.totalorder %s14, 0
    %p139 = por %p137, %p138
    %p140 = scmp.ne.s32.totalorder %s132, %s134
    %p141 = scmp.eq.s32.totalorder %s19, 1
    %p142 = por %p140, %p141
    %p143 = scmp.ne.s32.totalorder %s134, %s135
    %p144 = scmp.eq.s32.totalorder %s19, 0
    %p145 = por %p143, %p144
    %p146 = scmp.ne.s32.totalorder %s134, %s135
    %p147 = scmp.eq.s32.totalorder %s20, 1
    %p148 = por %p146, %p147
    %p150 = scmp.ne.s32.totalorder %s135, %s149
    %p151 = scmp.eq.s32.totalorder %s20, 0
    %p152 = por %p150, %p151
    %s154 = sadd.s32 %s153, 1
    %p157 = scmp.eq.s32.totalorder %s14, 1
    %p158 = scmp.ne.s32.totalorder %s153, %s155
    %p159 = scmp.eq.s32.totalorder %s14, 0
    %p160 = por %p158, %p159
    %p161 = scmp.ne.s32.totalorder %s153, %s155
    %p162 = scmp.eq.s32.totalorder %s19, 1
    %p163 = por %p161, %p162
    %p164 = scmp.ne.s32.totalorder %s155, %s156
    %p165 = scmp.eq.s32.totalorder %s19, 0
    %p166 = por %p164, %p165
    %p167 = scmp.ne.s32.totalorder %s155, %s156
    %p168 = scmp.eq.s32.totalorder %s20, 1
    %p169 = por %p167, %p168
    %p171 = scmp.ne.s32.totalorder %s156, %s170
    %p172 = scmp.eq.s32.totalorder %s20, 0
    %p173 = por %p171, %p172
    %s175 = sadd.s32 %s174, 1
    %p178 = scmp.eq.s32.totalorder %s14, 1
    %p179 = scmp.ne.s32.totalorder %s174, %s176
    %p180 = scmp.eq.s32.totalorder %s14, 0
    %p181 = por %p179, %p180
    %p182 = scmp.ne.s32.totalorder %s174, %s176
    %p183 = scmp.eq.s32.totalorder %s19, 1
    %p184 = por %p182, %p183
    %p185 = scmp.ne.s32.totalorder %s176, %s177
    %p186 = scmp.eq.s32.totalorder %s19, 0
    %p187 = por %p185, %p186
    %p188 = scmp.ne.s32.totalorder %s176, %s177
    %p189 = scmp.eq.s32.totalorder %s20, 1
    %p190 = por %p188, %p189
    %p192 = scmp.ne.s32.totalorder %s177, %s191
    %p193 = scmp.eq.s32.totalorder %s20, 0
    %p194 = por %p192, %p193
    %s195 = ssub.s32 %s14, %s21
    %p196 = scmp.eq.s32.totalorder %s195, 0
    %s198 = sadd.s32 %s197, 1
    %s199 = scalar_select %p196, %s197, %s198
    %p202 = pneg %p196
    %p203 = scmp.eq.s32.totalorder %s14, 1
    %p204 = por %p202, %p203
    %p205 = scmp.ne.s32.totalorder %s197, %s200
    %p206 = scmp.eq.s32.totalorder %s14, 0
    %p207 = por %p205, %p206
    %p208 = scmp.ne.s32.totalorder %s197, %s200
    %p209 = scmp.eq.s32.totalorder %s19, 1
    %p210 = por %p208, %p209
    %p211 = scmp.ne.s32.totalorder %s200, %s201
    %p212 = scmp.eq.s32.totalorder %s19, 0
    %p213 = por %p211, %p212
    %p214 = scmp.ne.s32.totalorder %s200, %s201
    %p215 = scmp.eq.s32.totalorder %s20, 1
    %p216 = por %p214, %p215
    %p218 = scmp.ne.s32.totalorder %s201, %s217
    %p219 = scmp.eq.s32.totalorder %s20, 0
    %p220 = por %p218, %p219
    %p221 = scmp.le.s32.totalorder 1, %s14
    %p222 = scmp.lt.s32.totalorder %s14, 3
    %p223 = pnand %p221, %p222
    %p224 = pneg %p223
    // Predicated region
    $region9: #{eegnet_pallas.1} parent=5 // pred_check
      _
    $region10: #{eegnet_pallas.1} parent=5 // pred_check_branch
      %226 = sbr.rel (%p223) target = $region12
    $region11: #{eegnet_pallas.1} parent=5 // pred_region
      %s227 = ssub.s32 %s14, 1
      // Predicated region
      $region13: #{eegnet_pallas.1} parent=11 // pred_check
        %p228 = pneg %p61
      $region14: #{eegnet_pallas.1} parent=11 // pred_check_branch
        %230 = sbr.rel (%p228) target = $region16
      $region15: #{eegnet_pallas.1} parent=11 // pred_region
        _
      $region16: #{eegnet_pallas.1} parent=11 // pred_fallthru
        _
      // Predicated region
      $region17: #{eegnet_pallas.1} parent=11 // pred_check
        %p231 = pneg %p82
      $region18: #{eegnet_pallas.1} parent=11 // pred_check_branch
        %233 = sbr.rel (%p231) target = $region20
      $region19: #{eegnet_pallas.1} parent=11 // pred_region
        _
      $region20: #{eegnet_pallas.1} parent=11 // pred_fallthru
        _
      // Predicated region
      $region21: #{eegnet_pallas.1} parent=11 // pred_check
        %p234 = pneg %p103
      $region22: #{eegnet_pallas.1} parent=11 // pred_check_branch
        %236 = sbr.rel (%p234) target = $region24
      $region23: #{eegnet_pallas.1} parent=11 // pred_region
        _
      $region24: #{eegnet_pallas.1} parent=11 // pred_fallthru
        _
      // Predicated region
      $region25: #{eegnet_pallas.1} parent=11 // pred_check
        %p237 = pneg %p124
      $region26: #{eegnet_pallas.1} parent=11 // pred_check_branch
        %239 = sbr.rel (%p237) target = $region28
      $region27: #{eegnet_pallas.1} parent=11 // pred_region
        _
      $region28: #{eegnet_pallas.1} parent=11 // pred_fallthru
        _
      // Predicated region
      $region29: #{eegnet_pallas.1} parent=11 // pred_check
        %p240 = pneg %p145
      $region30: #{eegnet_pallas.1} parent=11 // pred_check_branch
        %242 = sbr.rel (%p240) target = $region32
      $region31: #{eegnet_pallas.1} parent=11 // pred_region
        _
      $region32: #{eegnet_pallas.1} parent=11 // pred_fallthru
        _
      // Predicated region
      $region33: #{eegnet_pallas.1} parent=11 // pred_check
        %p243 = pneg %p166
      $region34: #{eegnet_pallas.1} parent=11 // pred_check_branch
        %245 = sbr.rel (%p243) target = $region36
      $region35: #{eegnet_pallas.1} parent=11 // pred_region
        _
      $region36: #{eegnet_pallas.1} parent=11 // pred_fallthru
        _
      // Predicated region
      $region37: #{eegnet_pallas.1} parent=11 // pred_check
        %p246 = pneg %p187
      $region38: #{eegnet_pallas.1} parent=11 // pred_check_branch
        %248 = sbr.rel (%p246) target = $region40
      $region39: #{eegnet_pallas.1} parent=11 // pred_region
        _
      $region40: #{eegnet_pallas.1} parent=11 // pred_fallthru
        _
    $region12: #{eegnet_pallas.1} parent=5 // pred_fallthru
      _
    %p249 = scmp.lt.s32.totalorder %s14, 2
    // Predicated region
    $region41: #{eegnet_pallas.1} parent=5 // pred_check
      %p250 = pneg %p249
    $region42: #{eegnet_pallas.1} parent=5 // pred_check_branch
      %252 = sbr.rel (%p250) target = $region44
    $region43: #{eegnet_pallas.1} parent=5 // pred_region
      // Predicated region
      $region45: #{eegnet_pallas.1} parent=43 // pred_check
        %p253 = pneg %p34
      $region46: #{eegnet_pallas.1} parent=43 // pred_check_branch
        %255 = sbr.rel (%p253) target = $region48
      $region47: #{eegnet_pallas.1} parent=43 // pred_region
        %p256 = scmp.lt.s32.totalorder %s14, 1
        %s257 = scalar_select %p256, %s14, 1
        %s258 = smul.addr %s257, 300
        %s259 = smul.addr %s258, 4
        %s260 = scalar_lea.vmem %s0, %s259
      $region48: #{eegnet_pallas.1} parent=43 // pred_fallthru
        _
    $region44: #{eegnet_pallas.1} parent=5 // pred_fallthru
      _
    %p261 = scmp.le.s32.totalorder 1, %s14
    %p262 = scmp.lt.s32.totalorder %s14, 3
    %p263 = pnand %p261, %p262
    %p264 = pneg %p263
    // Predicated region
    $region49: #{eegnet_pallas.1} parent=5 // pred_check
      _
    $region50: #{eegnet_pallas.1} parent=5 // pred_check_branch
      %266 = sbr.rel (%p263) target = $region52
    $region51: #{eegnet_pallas.1} parent=5 // pred_region
      %s267 = ssub.s32 %s14, 1
      %p268 = scmp.lt.s32.totalorder %s19, 1
      %s269 = scalar_select %p268, %s19, 1
      %s270 = smul.addr %s269, 300
      %s271 = smul.addr %s270, 4
      %s272 = scalar_lea.vmem %s0, %s271
      %p273 = pneg %p40
      %p274 = pneg %p37
      %p275 = pneg %p61
      %p276 = pneg %p58
      %p277 = pneg %p82
      %p278 = pneg %p79
      %p279 = pneg %p103
      %p280 = pneg %p100
      %p281 = pneg %p124
      %p282 = pneg %p121
      %p283 = pneg %p145
      %p284 = pneg %p142
      %p285 = pneg %p166
      %p286 = pneg %p163
      %p287 = pneg %p187
      %p288 = pneg %p184
      %p289 = pneg %p213
      %p290 = pneg %p210
      %p291 = scmp.lt.s32.totalorder %s19, 1
      %s292 = scalar_select %p291, %s19, 1
      %s293 = smul.addr %s292, 8
      %s294 = smul.addr %s293, 8
      %s295 = scalar_lea.vmem %s8, %s294
      %p296 = scmp.lt.s32.totalorder %s19, 1
      %s297 = scalar_select %p296, %s19, 1
      %s298 = smul.addr %s297, 300
      %s299 = smul.addr %s298, 4
      %s300 = scalar_lea.vmem %s0, %s299
      %p301 = scmp.lt.s32.totalorder %s19, 1
      %s302 = scalar_select %p301, %s19, 1
      %s303 = smul.addr %s302, 8
      %s304 = smul.addr %s303, 8
      %s305 = scalar_lea.vmem %s8, %s304
      %v307 = vld [vmem:[%s300] sm:$0xff]
      %v308 = vld [vmem:[%s300 + $0x8] sm:$0xff]
      %v309 = vld [vmem:[%s300 + $0x10] sm:$0xff]
      %v310 = vld [vmem:[%s300 + $0x18] sm:$0xff]
      %v311 = vld [vmem:[%s300 + $0x20] sm:$0xff]
      %v312 = vld [vmem:[%s300 + $0x28] sm:$0xff]
      %v313 = vld [vmem:[%s300 + $0x30] sm:$0xff]
      %v314 = vld [vmem:[%s300 + $0x38] sm:$0xff]
      %v315 = vld [vmem:[%s300 + $0x40] sm:$0xff]
      %v316 = vld [vmem:[%s300 + $0x48] sm:$0xff]
      %v317 = vld [vmem:[%s300 + $0x50] sm:$0xff]
      %v318 = vld [vmem:[%s300 + $0x58] sm:$0xff]
      %v319 = vld [vmem:[%s300 + $0x60] sm:$0xff]
      %v320 = vld [vmem:[%s300 + $0x68] sm:$0xff]
      %v321 = vld [vmem:[%s300 + $0x70] sm:$0xff]
      %v322 = vld [vmem:[%s300 + $0x78] sm:$0xff]
      %v323 = vld [vmem:[%s300 + $0x80] sm:$0xff]
      %v324 = vld [vmem:[%s300 + $0x88] sm:$0xff]
      %v325 = vld [vmem:[%s300 + $0x90] sm:$0xff]
      %v326 = vld [vmem:[%s300 + $0x98] sm:$0xff]
      %v327 = vld [vmem:[%s300 + $0xa0] sm:$0xff]
      %v328 = vld [vmem:[%s300 + $0xa8] sm:$0xff]
      %v329 = vld [vmem:[%s300 + $0xb0] sm:$0xff]
      %v330 = vld [vmem:[%s300 + $0xb8] sm:$0xff]
      %v331 = vld [vmem:[%s300 + $0xc0] sm:$0xff]
      %v332 = vld [vmem:[%s300 + $0xc8] sm:$0xff]
      %v333 = vld [vmem:[%s300 + $0xd0] sm:$0xff]
      %v334 = vld [vmem:[%s300 + $0xd8] sm:$0xff]
      %v335 = vld [vmem:[%s300 + $0xe0] sm:$0xff]
      %v336 = vld [vmem:[%s300 + $0xe8] sm:$0xff]
      %v337 = vld [vmem:[%s300 + $0xf0] sm:$0xff]
      %v338 = vld [vmem:[%s300 + $0xf8] sm:$0xff]
      %v339 = vld [vmem:[%s300 + $0x100] sm:$0xff]
      %v340 = vld [vmem:[%s300 + $0x108] sm:$0xff]
      %v341 = vld [vmem:[%s300 + $0x110] sm:$0xff]
      %v342 = vld [vmem:[%s300 + $0x118] sm:$0xff]
      %v343 = vld [vmem:[%s300 + $0x120] sm:$0xff]
      %v344 = vld [vmem:[%s300 + $0x128] sm:$0xff]
      %v345 = vld [vmem:[%s300 + $0x130] sm:$0xff]
      %v346 = vld [vmem:[%s300 + $0x138] sm:$0xff]
      %v347 = vld [vmem:[%s300 + $0x140] sm:$0xff]
      %v348 = vld [vmem:[%s300 + $0x148] sm:$0xff]
      %v349 = vld [vmem:[%s300 + $0x150] sm:$0xff]
      %v350 = vld [vmem:[%s300 + $0x158] sm:$0xff]
      %v351 = vld [vmem:[%s300 + $0x160] sm:$0xff]
      %v352 = vld [vmem:[%s300 + $0x168] sm:$0xff]
      %v353 = vld [vmem:[%s300 + $0x170] sm:$0xff]
      %v354 = vld [vmem:[%s300 + $0x178] sm:$0xff]
      %v355 = vld [vmem:[%s300 + $0x180] sm:$0xff]
      %v356 = vld [vmem:[%s300 + $0x188] sm:$0xff]
      %v357 = vld [vmem:[%s300 + $0x190] sm:$0xff]
      %v358 = vld [vmem:[%s300 + $0x198] sm:$0xff]
      %v359 = vld [vmem:[%s300 + $0x1a0] sm:$0xff]
      %v360 = vld [vmem:[%s300 + $0x1a8] sm:$0xff]
      %v361 = vld [vmem:[%s300 + $0x1b0] sm:$0xff]
      %v362 = vld [vmem:[%s300 + $0x1b8] sm:$0xff]
      %v363 = vld [vmem:[%s300 + $0x1c0] sm:$0xff]
      %v364 = vld [vmem:[%s300 + $0x1c8] sm:$0xff]
      %v365 = vld [vmem:[%s300 + $0x1d0] sm:$0xff]
      %v366 = vld [vmem:[%s300 + $0x1d8] sm:$0xff]
      %v367 = vld [vmem:[%s300 + $0x1e0] sm:$0xff]
      %v368 = vld [vmem:[%s300 + $0x1e8] sm:$0xff]
      %v369 = vld [vmem:[%s300 + $0x1f0] sm:$0xff]
      %v370 = vld [vmem:[%s300 + $0x1f8] sm:$0xff]
      %v371 = vld [vmem:[%s300 + $0x200] sm:$0xff]
      %v372 = vld [vmem:[%s300 + $0x208] sm:$0xff]
      %v373 = vld [vmem:[%s300 + $0x210] sm:$0xff]
      %v374 = vld [vmem:[%s300 + $0x218] sm:$0xff]
      %v375 = vld [vmem:[%s300 + $0x220] sm:$0xff]
      %v376 = vld [vmem:[%s300 + $0x228] sm:$0xff]
      %v377 = vld [vmem:[%s300 + $0x230] sm:$0xff]
      %v378 = vld [vmem:[%s300 + $0x238] sm:$0xff]
      %v379 = vld [vmem:[%s300 + $0x240] sm:$0xff]
      %v380 = vld [vmem:[%s300 + $0x248] sm:$0xff]
      %v381 = vld [vmem:[%s300 + $0x250] sm:$0xff]
      %v382 = vld [vmem:[%s300 + $0x258] sm:$0xff]
      %v383 = vld [vmem:[%s300 + $0x260] sm:$0xff]
      %v384 = vld [vmem:[%s300 + $0x268] sm:$0xff]
      %v385 = vld [vmem:[%s300 + $0x270] sm:$0xff]
      %v386 = vld [vmem:[%s300 + $0x278] sm:$0xff]
      %v387 = vld [vmem:[%s300 + $0x280] sm:$0xff]
      %v388 = vld [vmem:[%s300 + $0x288] sm:$0xff]
      %v389 = vld [vmem:[%s300 + $0x290] sm:$0xff]
      %v390 = vld [vmem:[%s300 + $0x298] sm:$0xff]
      %v391 = vld [vmem:[%s300 + $0x2a0] sm:$0xff]
      %v392 = vld [vmem:[%s300 + $0x2a8] sm:$0xff]
      %v393 = vld [vmem:[%s300 + $0x2b0] sm:$0xff]
      %v394 = vld [vmem:[%s300 + $0x2b8] sm:$0xff]
      %v395 = vld [vmem:[%s300 + $0x2c0] sm:$0xff]
      %v396 = vld [vmem:[%s300 + $0x2c8] sm:$0xff]
      %v397 = vld [vmem:[%s300 + $0x2d0] sm:$0xff]
      %v398 = vld [vmem:[%s300 + $0x2d8] sm:$0xff]
      %v399 = vld [vmem:[%s300 + $0x2e0] sm:$0xff]
      %v400 = vld [vmem:[%s300 + $0x2e8] sm:$0xff]
      %v401 = vld [vmem:[%s300 + $0x2f0] sm:$0xff]
      %v402 = vld [vmem:[%s300 + $0x2f8] sm:$0xff]
      %v403 = vld [vmem:[%s300 + $0x300] sm:$0xff]
      %v404 = vld [vmem:[%s300 + $0x308] sm:$0xff]
      %v405 = vld [vmem:[%s300 + $0x310] sm:$0xff]
      %v406 = vld [vmem:[%s300 + $0x318] sm:$0xff]
      %v407 = vld [vmem:[%s300 + $0x320] sm:$0xff]
      %v408 = vld [vmem:[%s300 + $0x328] sm:$0xff]
      %v409 = vld [vmem:[%s300 + $0x330] sm:$0xff]
      %v410 = vld [vmem:[%s300 + $0x338] sm:$0xff]
      %v411 = vld [vmem:[%s300 + $0x340] sm:$0xff]
      %v412 = vld [vmem:[%s300 + $0x348] sm:$0xff]
      %v413 = vld [vmem:[%s300 + $0x350] sm:$0xff]
      %v414 = vld [vmem:[%s300 + $0x358] sm:$0xff]
      %v415 = vld [vmem:[%s300 + $0x360] sm:$0xff]
      %v416 = vld [vmem:[%s300 + $0x368] sm:$0xff]
      %v417 = vld [vmem:[%s300 + $0x370] sm:$0xff]
      %v418 = vld [vmem:[%s300 + $0x378] sm:$0xff]
      %v419 = vld [vmem:[%s300 + $0x380] sm:$0xff]
      %v420 = vld [vmem:[%s300 + $0x388] sm:$0xff]
      %v421 = vld [vmem:[%s300 + $0x390] sm:$0xff]
      %v422 = vld [vmem:[%s300 + $0x398] sm:$0xff]
      %v423 = vld [vmem:[%s300 + $0x3a0] sm:$0xff]
      %v424 = vld [vmem:[%s300 + $0x3a8] sm:$0xff]
      %v425 = vld [vmem:[%s300 + $0x3b0] sm:$0xff]
      %v426 = vld [vmem:[%s300 + $0x3b8] sm:$0xff]
      %v427 = vld [vmem:[%s300 + $0x3c0] sm:$0xff]
      %v428 = vld [vmem:[%s300 + $0x3c8] sm:$0xff]
      %v429 = vld [vmem:[%s300 + $0x3d0] sm:$0xff]
      %v430 = vld [vmem:[%s300 + $0x3d8] sm:$0xff]
      %v431 = vld [vmem:[%s300 + $0x3e0] sm:$0xff]
      %v432 = vld [vmem:[%s300 + $0x3e8] sm:$0xff]
      %v433 = vld [vmem:[%s300 + $0x3f0] sm:$0xff]
      %v434 = vld [vmem:[%s300 + $0x3f8] sm:$0xff]
      %v435 = vld [vmem:[%s300 + $0x400] sm:$0xff]
      %v436 = vld [vmem:[%s300 + $0x408] sm:$0xff]
      %v437 = vld [vmem:[%s300 + $0x410] sm:$0xff]
      %v438 = vld [vmem:[%s300 + $0x418] sm:$0xff]
      %v439 = vld [vmem:[%s300 + $0x420] sm:$0xff]
      %v440 = vld [vmem:[%s300 + $0x428] sm:$0xff]
      %v441 = vld [vmem:[%s300 + $0x430] sm:$0xff]
      %v442 = vld [vmem:[%s300 + $0x438] sm:$0xff]
      %v443 = vld [vmem:[%s300 + $0x440] sm:$0xff]
      %v444 = vld [vmem:[%s300 + $0x448] sm:$0xff]
      %v445 = vld [vmem:[%s300 + $0x450] sm:$0xff]
      %v446 = vld [vmem:[%s300 + $0x458] sm:$0xff]
      %v447 = vld [vmem:[%s300 + $0x460] sm:$0xff]
      %v448 = vld [vmem:[%s300 + $0x468] sm:$0xff]
      %v449 = vld [vmem:[%s300 + $0x470] sm:$0xff]
      %v450 = vld [vmem:[%s300 + $0x478] sm:$0xff]
      %v451 = vld [vmem:[%s300 + $0x480] sm:$0xff]
      %v452 = vld [vmem:[%s300 + $0x488] sm:$0xff]
      %v453 = vld [vmem:[%s300 + $0x490] sm:$0xff]
      %v454 = vld [vmem:[%s300 + $0x498] sm:$0xff]
      %v455 = vld [vmem:[%s300 + $0x4a0] sm:$0xff]
      %v456 = vld [vmem:[%s300 + $0x4a8] sm:$0xff]
      %v457 = vld [vmem:[%s1] sm:$0xff]
      %v458 = vld [vmem:[%s1 + $0x8] sm:$0xff]
      %v459 = vld [vmem:[%s1 + $0x10] sm:$0xff]
      %v460 = vld [vmem:[%s1 + $0x18] sm:$0xff]
      %v461 = vld [vmem:[%s1 + $0x20] sm:$0xff]
      %v462 = vld [vmem:[%s1 + $0x28] sm:$0xff]
      %v463 = vld [vmem:[%s1 + $0x30] sm:$0xff]
      %v464 = vld [vmem:[%s1 + $0x38] sm:$0xff]
      %v465 = vld [vmem:[%s1 + $0x40] sm:$0xff]
      %v466 = vld [vmem:[%s1 + $0x48] sm:$0xff]
      %v467 = vld [vmem:[%s1 + $0x50] sm:$0xff]
      %v468 = vld [vmem:[%s1 + $0x58] sm:$0xff]
      %v469 = vld [vmem:[%s1 + $0x60] sm:$0xff]
      %v470 = vld [vmem:[%s1 + $0x68] sm:$0xff]
      %v471 = vld [vmem:[%s1 + $0x70] sm:$0xff]
      %v472 = vld [vmem:[%s1 + $0x78] sm:$0xff]
      %v473 = vld [vmem:[%s2] sm:$0xff]
      %v474 = vld [vmem:[%s2 + $0x8] sm:$0xff]
      %v475 = vld [vmem:[%s2 + $0x10] sm:$0xff]
      %v476 = vld [vmem:[%s2 + $0x18] sm:$0xff]
      %v477 = vld [vmem:[%s2 + $0x20] sm:$0xff]
      %v478 = vld [vmem:[%s2 + $0x28] sm:$0xff]
      %v479 = vld [vmem:[%s2 + $0x30] sm:$0xff]
      %v480 = vld [vmem:[%s2 + $0x38] sm:$0xff]
      %482 = vset.pattern.permute.xlu0 0
      %483 = vperm.xlu0 %482, %v473
      %v484 = vpop.permute.xlu0 %483
      %487 = vset.pattern.permute.xlu0 0
      %488 = vperm.xlu0 %487, %v474
      %v489 = vpop.permute.xlu0 %488
      %492 = vset.pattern.permute.xlu0 0
      %493 = vperm.xlu0 %492, %v475
      %v494 = vpop.permute.xlu0 %493
      %497 = vset.pattern.permute.xlu0 0
      %498 = vperm.xlu0 %497, %v476
      %v499 = vpop.permute.xlu0 %498
      %502 = vset.pattern.permute.xlu0 0
      %503 = vperm.xlu0 %502, %v477
      %v504 = vpop.permute.xlu0 %503
      %507 = vset.pattern.permute.xlu0 0
      %508 = vperm.xlu0 %507, %v478
      %v509 = vpop.permute.xlu0 %508
      %512 = vset.pattern.permute.xlu0 0
      %513 = vperm.xlu0 %512, %v479
      %v514 = vpop.permute.xlu0 %513
      %517 = vset.pattern.permute.xlu0 0
      %518 = vperm.xlu0 %517, %v480
      %v519 = vpop.permute.xlu0 %518
      %v537 = vunpack.c.l.b16 %v457
      %v538 = vunpack.c.h.b16 %v457
      %v539 = vunpack.c.l.b16 %v458
      %v540 = vunpack.c.h.b16 %v458
      %v541 = vunpack.c.l.b16 %v459
      %v542 = vunpack.c.h.b16 %v459
      %v543 = vunpack.c.l.b16 %v460
      %v544 = vunpack.c.h.b16 %v460
      %v545 = vunpack.c.l.b16 %v461
      %v546 = vunpack.c.h.b16 %v461
      %v547 = vunpack.c.l.b16 %v462
      %v548 = vunpack.c.h.b16 %v462
      %v549 = vunpack.c.l.b16 %v463
      %v550 = vunpack.c.h.b16 %v463
      %v551 = vunpack.c.l.b16 %v464
      %v552 = vunpack.c.h.b16 %v464
      %v553 = vunpack.c.l.b16 %v465
      %v554 = vunpack.c.h.b16 %v465
      %v555 = vunpack.c.l.b16 %v466
      %v556 = vunpack.c.h.b16 %v466
      %v557 = vunpack.c.l.b16 %v467
      %v558 = vunpack.c.h.b16 %v467
      %v559 = vunpack.c.l.b16 %v468
      %v560 = vunpack.c.h.b16 %v468
      %v561 = vunpack.c.l.b16 %v469
      %v562 = vunpack.c.h.b16 %v469
      %v563 = vunpack.c.l.b16 %v470
      %v564 = vunpack.c.h.b16 %v470
      %v565 = vunpack.c.l.b16 %v471
      %v566 = vunpack.c.h.b16 %v471
      %v567 = vunpack.c.l.b16 %v472
      %v568 = vunpack.c.h.b16 %v472
      %v569 = vpack.c.b16 %v541, %v537
      %v570 = vpack.c.b16 %v542, %v538
      %v571 = vpack.c.b16 %v543, %v539
      %v572 = vpack.c.b16 %v544, %v540
      %v573 = vpack.c.b16 %v549, %v545
      %v574 = vpack.c.b16 %v550, %v546
      %v575 = vpack.c.b16 %v551, %v547
      %v576 = vpack.c.b16 %v552, %v548
      %v577 = vpack.c.b16 %v557, %v553
      %v578 = vpack.c.b16 %v558, %v554
      %v579 = vpack.c.b16 %v559, %v555
      %v580 = vpack.c.b16 %v560, %v556
      %v581 = vpack.c.b16 %v565, %v561
      %v582 = vpack.c.b16 %v566, %v562
      %v583 = vpack.c.b16 %v567, %v563
      %v584 = vpack.c.b16 %v568, %v564
      %v747 = vunpack.c.l.b16 %v307
      %v748 = vunpack.c.h.b16 %v307
      %v749 = vunpack.c.l.b16 %v308
      %v750 = vunpack.c.h.b16 %v308
      %v751 = vunpack.c.l.b16 %v309
      %v752 = vunpack.c.h.b16 %v309
      %v753 = vunpack.c.l.b16 %v310
      %v754 = vunpack.c.h.b16 %v310
      %v755 = vunpack.c.l.b16 %v311
      %v756 = vunpack.c.h.b16 %v311
      %v757 = vunpack.c.l.b16 %v312
      %v758 = vunpack.c.h.b16 %v312
      %v759 = vunpack.c.l.b16 %v313
      %v760 = vunpack.c.h.b16 %v313
      %v761 = vunpack.c.l.b16 %v314
      %v762 = vunpack.c.h.b16 %v314
      %v763 = vunpack.c.l.b16 %v315
      %v764 = vunpack.c.h.b16 %v315
      %v765 = vunpack.c.l.b16 %v316
      %v766 = vunpack.c.h.b16 %v316
      %v767 = vunpack.c.l.b16 %v317
      %v768 = vunpack.c.h.b16 %v317
      %v769 = vunpack.c.l.b16 %v318
      %v770 = vunpack.c.h.b16 %v318
      %v771 = vunpack.c.l.b16 %v319
      %v772 = vunpack.c.h.b16 %v319
      %v773 = vunpack.c.l.b16 %v320
      %v774 = vunpack.c.h.b16 %v320
      %v775 = vunpack.c.l.b16 %v321
      %v776 = vunpack.c.h.b16 %v321
      %v777 = vunpack.c.l.b16 %v322
      %v778 = vunpack.c.h.b16 %v322
      %v779 = vunpack.c.l.b16 %v323
      %v780 = vunpack.c.h.b16 %v323
      %v781 = vunpack.c.l.b16 %v324
      %v782 = vunpack.c.h.b16 %v324
      %v783 = vunpack.c.l.b16 %v325
      %v784 = vunpack.c.h.b16 %v325
      %v785 = vunpack.c.l.b16 %v326
      %v786 = vunpack.c.h.b16 %v326
      %v787 = vunpack.c.l.b16 %v327
      %v788 = vunpack.c.h.b16 %v327
      %v789 = vunpack.c.l.b16 %v328
      %v790 = vunpack.c.h.b16 %v328
      %v791 = vunpack.c.l.b16 %v329
      %v792 = vunpack.c.h.b16 %v329
      %v793 = vunpack.c.l.b16 %v330
      %v794 = vunpack.c.h.b16 %v330
      %v795 = vunpack.c.l.b16 %v331
      %v796 = vunpack.c.h.b16 %v331
      %v797 = vunpack.c.l.b16 %v332
      %v798 = vunpack.c.h.b16 %v332
      %v799 = vunpack.c.l.b16 %v333
      %v800 = vunpack.c.h.b16 %v333
      %v801 = vunpack.c.l.b16 %v334
      %v802 = vunpack.c.h.b16 %v334
      %v803 = vunpack.c.l.b16 %v335
      %v804 = vunpack.c.h.b16 %v335
      %v805 = vunpack.c.l.b16 %v336
      %v806 = vunpack.c.h.b16 %v336
      %v807 = vunpack.c.l.b16 %v337
      %v808 = vunpack.c.h.b16 %v337
      %v809 = vunpack.c.l.b16 %v338
      %v810 = vunpack.c.h.b16 %v338
      %v811 = vunpack.c.l.b16 %v339
      %v812 = vunpack.c.h.b16 %v339
      %v813 = vunpack.c.l.b16 %v340
      %v814 = vunpack.c.h.b16 %v340
      %v815 = vunpack.c.l.b16 %v341
      %v816 = vunpack.c.h.b16 %v341
      %v817 = vunpack.c.l.b16 %v342
      %v818 = vunpack.c.h.b16 %v342
      %v819 = vunpack.c.l.b16 %v343
      %v820 = vunpack.c.h.b16 %v343
      %v821 = vunpack.c.l.b16 %v344
      %v822 = vunpack.c.h.b16 %v344
      %v823 = vunpack.c.l.b16 %v345
      %v824 = vunpack.c.h.b16 %v345
      %v825 = vunpack.c.l.b16 %v346
      %v826 = vunpack.c.h.b16 %v346
      %v827 = vunpack.c.l.b16 %v347
      %v828 = vunpack.c.h.b16 %v347
      %v829 = vunpack.c.l.b16 %v348
      %v830 = vunpack.c.h.b16 %v348
      %v831 = vunpack.c.l.b16 %v349
      %v832 = vunpack.c.h.b16 %v349
      %v833 = vunpack.c.l.b16 %v350
      %v834 = vunpack.c.h.b16 %v350
      %v835 = vunpack.c.l.b16 %v351
      %v836 = vunpack.c.h.b16 %v351
      %v837 = vunpack.c.l.b16 %v352
      %v838 = vunpack.c.h.b16 %v352
      %v839 = vunpack.c.l.b16 %v353
      %v840 = vunpack.c.h.b16 %v353
      %v841 = vunpack.c.l.b16 %v354
      %v842 = vunpack.c.h.b16 %v354
      %v843 = vunpack.c.l.b16 %v355
      %v844 = vunpack.c.h.b16 %v355
      %v845 = vunpack.c.l.b16 %v356
      %v846 = vunpack.c.h.b16 %v356
      %v847 = vunpack.c.l.b16 %v357
      %v848 = vunpack.c.h.b16 %v357
      %v849 = vunpack.c.l.b16 %v358
      %v850 = vunpack.c.h.b16 %v358
      %v851 = vunpack.c.l.b16 %v359
      %v852 = vunpack.c.h.b16 %v359
      %v853 = vunpack.c.l.b16 %v360
      %v854 = vunpack.c.h.b16 %v360
      %v855 = vunpack.c.l.b16 %v361
      %v856 = vunpack.c.h.b16 %v361
      %v857 = vunpack.c.l.b16 %v362
      %v858 = vunpack.c.h.b16 %v362
      %v859 = vunpack.c.l.b16 %v363
      %v860 = vunpack.c.h.b16 %v363
      %v861 = vunpack.c.l.b16 %v364
      %v862 = vunpack.c.h.b16 %v364
      %v863 = vunpack.c.l.b16 %v365
      %v864 = vunpack.c.h.b16 %v365
      %v865 = vunpack.c.l.b16 %v366
      %v866 = vunpack.c.h.b16 %v366
      %v867 = vunpack.c.l.b16 %v367
      %v868 = vunpack.c.h.b16 %v367
      %v869 = vunpack.c.l.b16 %v368
      %v870 = vunpack.c.h.b16 %v368
      %v871 = vunpack.c.l.b16 %v369
      %v872 = vunpack.c.h.b16 %v369
      %v873 = vunpack.c.l.b16 %v370
      %v874 = vunpack.c.h.b16 %v370
      %v875 = vunpack.c.l.b16 %v371
      %v876 = vunpack.c.h.b16 %v371
      %v877 = vunpack.c.l.b16 %v372
      %v878 = vunpack.c.h.b16 %v372
      %v879 = vunpack.c.l.b16 %v373
      %v880 = vunpack.c.h.b16 %v373
      %v881 = vunpack.c.l.b16 %v374
      %v882 = vunpack.c.h.b16 %v374
      %v883 = vunpack.c.l.b16 %v375
      %v884 = vunpack.c.h.b16 %v375
      %v885 = vunpack.c.l.b16 %v376
      %v886 = vunpack.c.h.b16 %v376
      %v887 = vunpack.c.l.b16 %v377
      %v888 = vunpack.c.h.b16 %v377
      %v889 = vunpack.c.l.b16 %v378
      %v890 = vunpack.c.h.b16 %v378
      %v891 = vunpack.c.l.b16 %v379
      %v892 = vunpack.c.h.b16 %v379
      %v893 = vunpack.c.l.b16 %v380
      %v894 = vunpack.c.h.b16 %v380
      %v895 = vunpack.c.l.b16 %v381
      %v896 = vunpack.c.h.b16 %v381
      %v897 = vunpack.c.l.b16 %v382
      %v898 = vunpack.c.h.b16 %v382
      %v899 = vunpack.c.l.b16 %v383
      %v900 = vunpack.c.h.b16 %v383
      %v901 = vunpack.c.l.b16 %v384
      %v902 = vunpack.c.h.b16 %v384
      %v903 = vunpack.c.l.b16 %v385
      %v904 = vunpack.c.h.b16 %v385
      %v905 = vunpack.c.l.b16 %v386
      %v906 = vunpack.c.h.b16 %v386
      %v907 = vunpack.c.l.b16 %v387
      %v908 = vunpack.c.h.b16 %v387
      %v909 = vunpack.c.l.b16 %v388
      %v910 = vunpack.c.h.b16 %v388
      %v911 = vunpack.c.l.b16 %v389
      %v912 = vunpack.c.h.b16 %v389
      %v913 = vunpack.c.l.b16 %v390
      %v914 = vunpack.c.h.b16 %v390
      %v915 = vunpack.c.l.b16 %v391
      %v916 = vunpack.c.h.b16 %v391
      %v917 = vunpack.c.l.b16 %v392
      %v918 = vunpack.c.h.b16 %v392
      %v919 = vunpack.c.l.b16 %v393
      %v920 = vunpack.c.h.b16 %v393
      %v921 = vunpack.c.l.b16 %v394
      %v922 = vunpack.c.h.b16 %v394
      %v923 = vunpack.c.l.b16 %v395
      %v924 = vunpack.c.h.b16 %v395
      %v925 = vunpack.c.l.b16 %v396
      %v926 = vunpack.c.h.b16 %v396
      %v927 = vunpack.c.l.b16 %v397
      %v928 = vunpack.c.h.b16 %v397
      %v929 = vunpack.c.l.b16 %v398
      %v930 = vunpack.c.h.b16 %v398
      %v931 = vunpack.c.l.b16 %v399
      %v932 = vunpack.c.h.b16 %v399
      %v933 = vunpack.c.l.b16 %v400
      %v934 = vunpack.c.h.b16 %v400
      %v935 = vunpack.c.l.b16 %v401
      %v936 = vunpack.c.h.b16 %v401
      %v937 = vunpack.c.l.b16 %v402
      %v938 = vunpack.c.h.b16 %v402
      %v939 = vunpack.c.l.b16 %v403
      %v940 = vunpack.c.h.b16 %v403
      %v941 = vunpack.c.l.b16 %v404
      %v942 = vunpack.c.h.b16 %v404
      %v943 = vunpack.c.l.b16 %v405
      %v944 = vunpack.c.h.b16 %v405
      %v945 = vunpack.c.l.b16 %v406
      %v946 = vunpack.c.h.b16 %v406
      %v947 = vunpack.c.l.b16 %v407
      %v948 = vunpack.c.h.b16 %v407
      %v949 = vunpack.c.l.b16 %v408
      %v950 = vunpack.c.h.b16 %v408
      %v951 = vunpack.c.l.b16 %v409
      %v952 = vunpack.c.h.b16 %v409
      %v953 = vunpack.c.l.b16 %v410
      %v954 = vunpack.c.h.b16 %v410
      %v955 = vunpack.c.l.b16 %v411
      %v956 = vunpack.c.h.b16 %v411
      %v957 = vunpack.c.l.b16 %v412
      %v958 = vunpack.c.h.b16 %v412
      %v959 = vunpack.c.l.b16 %v413
      %v960 = vunpack.c.h.b16 %v413
      %v961 = vunpack.c.l.b16 %v414
      %v962 = vunpack.c.h.b16 %v414
      %v963 = vunpack.c.l.b16 %v415
      %v964 = vunpack.c.h.b16 %v415
      %v965 = vunpack.c.l.b16 %v416
      %v966 = vunpack.c.h.b16 %v416
      %v967 = vunpack.c.l.b16 %v417
      %v968 = vunpack.c.h.b16 %v417
      %v969 = vunpack.c.l.b16 %v418
      %v970 = vunpack.c.h.b16 %v418
      %v971 = vunpack.c.l.b16 %v419
      %v972 = vunpack.c.h.b16 %v419
      %v973 = vunpack.c.l.b16 %v420
      %v974 = vunpack.c.h.b16 %v420
      %v975 = vunpack.c.l.b16 %v421
      %v976 = vunpack.c.h.b16 %v421
      %v977 = vunpack.c.l.b16 %v422
      %v978 = vunpack.c.h.b16 %v422
      %v979 = vunpack.c.l.b16 %v423
      %v980 = vunpack.c.h.b16 %v423
      %v981 = vunpack.c.l.b16 %v424
      %v982 = vunpack.c.h.b16 %v424
      %v983 = vunpack.c.l.b16 %v425
      %v984 = vunpack.c.h.b16 %v425
      %v985 = vunpack.c.l.b16 %v426
      %v986 = vunpack.c.h.b16 %v426
      %v987 = vunpack.c.l.b16 %v427
      %v988 = vunpack.c.h.b16 %v427
      %v989 = vunpack.c.l.b16 %v428
      %v990 = vunpack.c.h.b16 %v428
      %v991 = vunpack.c.l.b16 %v429
      %v992 = vunpack.c.h.b16 %v429
      %v993 = vunpack.c.l.b16 %v430
      %v994 = vunpack.c.h.b16 %v430
      %v995 = vunpack.c.l.b16 %v431
      %v996 = vunpack.c.h.b16 %v431
      %v997 = vunpack.c.l.b16 %v432
      %v998 = vunpack.c.h.b16 %v432
      %v999 = vunpack.c.l.b16 %v433
      %v1000 = vunpack.c.h.b16 %v433
      %v1001 = vunpack.c.l.b16 %v434
      %v1002 = vunpack.c.h.b16 %v434
      %v1003 = vunpack.c.l.b16 %v435
      %v1004 = vunpack.c.h.b16 %v435
      %v1005 = vunpack.c.l.b16 %v436
      %v1006 = vunpack.c.h.b16 %v436
      %v1007 = vunpack.c.l.b16 %v437
      %v1008 = vunpack.c.h.b16 %v437
      %v1009 = vunpack.c.l.b16 %v438
      %v1010 = vunpack.c.h.b16 %v438
      %v1011 = vunpack.c.l.b16 %v439
      %v1012 = vunpack.c.h.b16 %v439
      %v1013 = vunpack.c.l.b16 %v440
      %v1014 = vunpack.c.h.b16 %v440
      %v1015 = vunpack.c.l.b16 %v441
      %v1016 = vunpack.c.h.b16 %v441
      %v1017 = vunpack.c.l.b16 %v442
      %v1018 = vunpack.c.h.b16 %v442
      %v1019 = vunpack.c.l.b16 %v443
      %v1020 = vunpack.c.h.b16 %v443
      %v1021 = vunpack.c.l.b16 %v444
      %v1022 = vunpack.c.h.b16 %v444
      %v1023 = vunpack.c.l.b16 %v445
      %v1024 = vunpack.c.h.b16 %v445
      %v1025 = vunpack.c.l.b16 %v446
      %v1026 = vunpack.c.h.b16 %v446
      %v1027 = vunpack.c.l.b16 %v447
      %v1028 = vunpack.c.h.b16 %v447
      %v1029 = vunpack.c.l.b16 %v448
      %v1030 = vunpack.c.h.b16 %v448
      %v1031 = vunpack.c.l.b16 %v449
      %v1032 = vunpack.c.h.b16 %v449
      %v1033 = vunpack.c.l.b16 %v450
      %v1034 = vunpack.c.h.b16 %v450
      %v1035 = vunpack.c.l.b16 %v451
      %v1036 = vunpack.c.h.b16 %v451
      %v1037 = vunpack.c.l.b16 %v452
      %v1038 = vunpack.c.h.b16 %v452
      %v1039 = vunpack.c.l.b16 %v453
      %v1040 = vunpack.c.h.b16 %v453
      %v1041 = vunpack.c.l.b16 %v454
      %v1042 = vunpack.c.h.b16 %v454
      %v1043 = vunpack.c.l.b16 %v455
      %v1044 = vunpack.c.h.b16 %v455
      %v1045 = vunpack.c.l.b16 %v456
      %v1046 = vunpack.c.h.b16 %v456
      %v1047 = vpack.c.b16 %v753, %v747
      %v1048 = vpack.c.b16 %v754, %v748
      %v1049 = vpack.c.b16 %v755, %v749
      %v1050 = vpack.c.b16 %v756, %v750
      %v1051 = vpack.c.b16 %v757, %v751
      %v1052 = vpack.c.b16 %v758, %v752
      %v1053 = vpack.c.b16 %v765, %v759
      %v1054 = vpack.c.b16 %v766, %v760
      %v1055 = vpack.c.b16 %v767, %v761
      %v1056 = vpack.c.b16 %v768, %v762
      %v1057 = vpack.c.b16 %v769, %v763
      %v1058 = vpack.c.b16 %v770, %v764
      %v1059 = vpack.c.b16 %v777, %v771
      %v1060 = vpack.c.b16 %v778, %v772
      %v1061 = vpack.c.b16 %v779, %v773
      %v1062 = vpack.c.b16 %v780, %v774
      %v1063 = vpack.c.b16 %v781, %v775
      %v1064 = vpack.c.b16 %v782, %v776
      %v1065 = vpack.c.b16 %v789, %v783
      %v1066 = vpack.c.b16 %v790, %v784
      %v1067 = vpack.c.b16 %v791, %v785
      %v1068 = vpack.c.b16 %v792, %v786
      %v1069 = vpack.c.b16 %v793, %v787
      %v1070 = vpack.c.b16 %v794, %v788
      %v1071 = vpack.c.b16 %v801, %v795
      %v1072 = vpack.c.b16 %v802, %v796
      %v1073 = vpack.c.b16 %v803, %v797
      %v1074 = vpack.c.b16 %v804, %v798
      %v1075 = vpack.c.b16 %v805, %v799
      %v1076 = vpack.c.b16 %v806, %v800
      %v1077 = vpack.c.b16 %v813, %v807
      %v1078 = vpack.c.b16 %v814, %v808
      %v1079 = vpack.c.b16 %v815, %v809
      %v1080 = vpack.c.b16 %v816, %v810
      %v1081 = vpack.c.b16 %v817, %v811
      %v1082 = vpack.c.b16 %v818, %v812
      %v1083 = vpack.c.b16 %v825, %v819
      %v1084 = vpack.c.b16 %v826, %v820
      %v1085 = vpack.c.b16 %v827, %v821
      %v1086 = vpack.c.b16 %v828, %v822
      %v1087 = vpack.c.b16 %v829, %v823
      %v1088 = vpack.c.b16 %v830, %v824
      %v1089 = vpack.c.b16 %v837, %v831
      %v1090 = vpack.c.b16 %v838, %v832
      %v1091 = vpack.c.b16 %v839, %v833
      %v1092 = vpack.c.b16 %v840, %v834
      %v1093 = vpack.c.b16 %v841, %v835
      %v1094 = vpack.c.b16 %v842, %v836
      %v1095 = vpack.c.b16 %v849, %v843
      %v1096 = vpack.c.b16 %v850, %v844
      %v1097 = vpack.c.b16 %v851, %v845
      %v1098 = vpack.c.b16 %v852, %v846
      %v1099 = vpack.c.b16 %v853, %v847
      %v1100 = vpack.c.b16 %v854, %v848
      %v1101 = vpack.c.b16 %v861, %v855
      %v1102 = vpack.c.b16 %v862, %v856
      %v1103 = vpack.c.b16 %v863, %v857
      %v1104 = vpack.c.b16 %v864, %v858
      %v1105 = vpack.c.b16 %v865, %v859
      %v1106 = vpack.c.b16 %v866, %v860
      %v1107 = vpack.c.b16 %v873, %v867
      %v1108 = vpack.c.b16 %v874, %v868
      %v1109 = vpack.c.b16 %v875, %v869
      %v1110 = vpack.c.b16 %v876, %v870
      %v1111 = vpack.c.b16 %v877, %v871
      %v1112 = vpack.c.b16 %v878, %v872
      %v1113 = vpack.c.b16 %v885, %v879
      %v1114 = vpack.c.b16 %v886, %v880
      %v1115 = vpack.c.b16 %v887, %v881
      %v1116 = vpack.c.b16 %v888, %v882
      %v1117 = vpack.c.b16 %v889, %v883
      %v1118 = vpack.c.b16 %v890, %v884
      %v1119 = vpack.c.b16 %v897, %v891
      %v1120 = vpack.c.b16 %v898, %v892
      %v1121 = vpack.c.b16 %v899, %v893
      %v1122 = vpack.c.b16 %v900, %v894
      %v1123 = vpack.c.b16 %v901, %v895
      %v1124 = vpack.c.b16 %v902, %v896
      %v1125 = vpack.c.b16 %v909, %v903
      %v1126 = vpack.c.b16 %v910, %v904
      %v1127 = vpack.c.b16 %v911, %v905
      %v1128 = vpack.c.b16 %v912, %v906
      %v1129 = vpack.c.b16 %v913, %v907
      %v1130 = vpack.c.b16 %v914, %v908
      %v1131 = vpack.c.b16 %v921, %v915
      %v1132 = vpack.c.b16 %v922, %v916
      %v1133 = vpack.c.b16 %v923, %v917
      %v1134 = vpack.c.b16 %v924, %v918
      %v1135 = vpack.c.b16 %v925, %v919
      %v1136 = vpack.c.b16 %v926, %v920
      %v1137 = vpack.c.b16 %v933, %v927
      %v1138 = vpack.c.b16 %v934, %v928
      %v1139 = vpack.c.b16 %v935, %v929
      %v1140 = vpack.c.b16 %v936, %v930
      %v1141 = vpack.c.b16 %v937, %v931
      %v1142 = vpack.c.b16 %v938, %v932
      %v1143 = vpack.c.b16 %v945, %v939
      %v1144 = vpack.c.b16 %v946, %v940
      %v1145 = vpack.c.b16 %v947, %v941
      %v1146 = vpack.c.b16 %v948, %v942
      %v1147 = vpack.c.b16 %v949, %v943
      %v1148 = vpack.c.b16 %v950, %v944
      %v1149 = vpack.c.b16 %v957, %v951
      %v1150 = vpack.c.b16 %v958, %v952
      %v1151 = vpack.c.b16 %v959, %v953
      %v1152 = vpack.c.b16 %v960, %v954
      %v1153 = vpack.c.b16 %v961, %v955
      %v1154 = vpack.c.b16 %v962, %v956
      %v1155 = vpack.c.b16 %v969, %v963
      %v1156 = vpack.c.b16 %v970, %v964
      %v1157 = vpack.c.b16 %v971, %v965
      %v1158 = vpack.c.b16 %v972, %v966
      %v1159 = vpack.c.b16 %v973, %v967
      %v1160 = vpack.c.b16 %v974, %v968
      %v1161 = vpack.c.b16 %v981, %v975
      %v1162 = vpack.c.b16 %v982, %v976
      %v1163 = vpack.c.b16 %v983, %v977
      %v1164 = vpack.c.b16 %v984, %v978
      %v1165 = vpack.c.b16 %v985, %v979
      %v1166 = vpack.c.b16 %v986, %v980
      %v1167 = vpack.c.b16 %v993, %v987
      %v1168 = vpack.c.b16 %v994, %v988
      %v1169 = vpack.c.b16 %v995, %v989
      %v1170 = vpack.c.b16 %v996, %v990
      %v1171 = vpack.c.b16 %v997, %v991
      %v1172 = vpack.c.b16 %v998, %v992
      %v1173 = vpack.c.b16 %v1005, %v999
      %v1174 = vpack.c.b16 %v1006, %v1000
      %v1175 = vpack.c.b16 %v1007, %v1001
      %v1176 = vpack.c.b16 %v1008, %v1002
      %v1177 = vpack.c.b16 %v1009, %v1003
      %v1178 = vpack.c.b16 %v1010, %v1004
      %v1179 = vpack.c.b16 %v1017, %v1011
      %v1180 = vpack.c.b16 %v1018, %v1012
      %v1181 = vpack.c.b16 %v1019, %v1013
      %v1182 = vpack.c.b16 %v1020, %v1014
      %v1183 = vpack.c.b16 %v1021, %v1015
      %v1184 = vpack.c.b16 %v1022, %v1016
      %v1185 = vpack.c.b16 %v1029, %v1023
      %v1186 = vpack.c.b16 %v1030, %v1024
      %v1187 = vpack.c.b16 %v1031, %v1025
      %v1188 = vpack.c.b16 %v1032, %v1026
      %v1189 = vpack.c.b16 %v1033, %v1027
      %v1190 = vpack.c.b16 %v1034, %v1028
      %v1191 = vpack.c.b16 %v1041, %v1035
      %v1192 = vpack.c.b16 %v1042, %v1036
      %v1193 = vpack.c.b16 %v1043, %v1037
      %v1194 = vpack.c.b16 %v1044, %v1038
      %v1195 = vpack.c.b16 %v1045, %v1039
      %v1196 = vpack.c.b16 %v1046, %v1040
      %vm1347 = vcmask 130048
      %v1349 = vsel %vm1347, %v572, 0
      %v1352 = vsel %vm1347, %v576, 0
      %v1355 = vsel %vm1347, %v580, 0
      %v1358 = vsel %vm1347, %v584, 0
      %1360 = vmatpush.bf16.msra.mxu0 %v1089
      %1361 = vmatpush.bf16.msra.mxu0 %v1083
      %1362 = vmatpush.bf16.msra.mxu0 %v1077
      %1363 = vmatpush.bf16.msra.mxu0 %v1071
      %1364 = vmatpush.bf16.msra.mxu0 %v1065
      %1365 = vmatpush.bf16.msra.mxu0 %v1059
      %1366 = vmatpush.bf16.msra.mxu0 %v1053
      %1367 = vmatpush.bf16.msra.mxu0 %v1047
      %1368 = vmatmul.bf16.gmra.mxu0 %v569
      %v1369 = vpop.f32.mrf.mxu0
      %v1370 = vadd.f32 %v484, %v1369
      %v1371 = vpop.f32.mrf.mxu0
      %v1372 = vadd.f32 %v489, %v1371
      %1373 = vmatmul.bf16.gmra.mxu0 %v573
      %v1374 = vpop.f32.mrf.mxu0
      %v1375 = vadd.f32 %v494, %v1374
      %v1376 = vpop.f32.mrf.mxu0
      %v1377 = vadd.f32 %v499, %v1376
      %1378 = vmatmul.bf16.gmra.mxu0 %v577
      %v1379 = vpop.f32.mrf.mxu0
      %v1380 = vadd.f32 %v504, %v1379
      %v1381 = vpop.f32.mrf.mxu0
      %v1382 = vadd.f32 %v509, %v1381
      %1383 = vmatmul.bf16.gmra.mxu0 %v581
      %v1384 = vpop.f32.mrf.mxu0
      %v1385 = vadd.f32 %v514, %v1384
      %v1386 = vpop.f32.mrf.mxu0
      %v1387 = vadd.f32 %v519, %v1386
      %1388 = vdwg.mxu0
      %1389 = vmatpush.bf16.msra.mxu0 %v1137
      %1390 = vmatpush.bf16.msra.mxu0 %v1131
      %1391 = vmatpush.bf16.msra.mxu0 %v1125
      %1392 = vmatpush.bf16.msra.mxu0 %v1119
      %1393 = vmatpush.bf16.msra.mxu0 %v1113
      %1394 = vmatpush.bf16.msra.mxu0 %v1107
      %1395 = vmatpush.bf16.msra.mxu0 %v1101
      %1396 = vmatpush.bf16.msra.mxu0 %v1095
      %1397 = vmatmul.bf16.gmra.mxu0 %v570
      %v1398 = vpop.f32.mrf.mxu0
      %v1399 = vadd.f32 %v1370, %v1398
      %v1400 = vpop.f32.mrf.mxu0
      %v1401 = vadd.f32 %v1372, %v1400
      %1402 = vmatmul.bf16.gmra.mxu0 %v574
      %v1403 = vpop.f32.mrf.mxu0
      %v1404 = vadd.f32 %v1375, %v1403
      %v1405 = vpop.f32.mrf.mxu0
      %v1406 = vadd.f32 %v1377, %v1405
      %1407 = vmatmul.bf16.gmra.mxu0 %v578
      %v1408 = vpop.f32.mrf.mxu0
      %v1409 = vadd.f32 %v1380, %v1408
      %v1410 = vpop.f32.mrf.mxu0
      %v1411 = vadd.f32 %v1382, %v1410
      %1412 = vmatmul.bf16.gmra.mxu0 %v582
      %v1413 = vpop.f32.mrf.mxu0
      %v1414 = vadd.f32 %v1385, %v1413
      %v1415 = vpop.f32.mrf.mxu0
      %v1416 = vadd.f32 %v1387, %v1415
      %1417 = vdwg.mxu0
      %1418 = vmatpush.bf16.msra.mxu0 %v1185
      %1419 = vmatpush.bf16.msra.mxu0 %v1179
      %1420 = vmatpush.bf16.msra.mxu0 %v1173
      %1421 = vmatpush.bf16.msra.mxu0 %v1167
      %1422 = vmatpush.bf16.msra.mxu0 %v1161
      %1423 = vmatpush.bf16.msra.mxu0 %v1155
      %1424 = vmatpush.bf16.msra.mxu0 %v1149
      %1425 = vmatpush.bf16.msra.mxu0 %v1143
      %1426 = vmatmul.bf16.gmra.mxu0 %v571
      %v1427 = vpop.f32.mrf.mxu0
      %v1428 = vadd.f32 %v1399, %v1427
      %v1429 = vpop.f32.mrf.mxu0
      %v1430 = vadd.f32 %v1401, %v1429
      %1431 = vmatmul.bf16.gmra.mxu0 %v575
      %v1432 = vpop.f32.mrf.mxu0
      %v1433 = vadd.f32 %v1404, %v1432
      %v1434 = vpop.f32.mrf.mxu0
      %v1435 = vadd.f32 %v1406, %v1434
      %1436 = vmatmul.bf16.gmra.mxu0 %v579
      %v1437 = vpop.f32.mrf.mxu0
      %v1438 = vadd.f32 %v1409, %v1437
      %v1439 = vpop.f32.mrf.mxu0
      %v1440 = vadd.f32 %v1411, %v1439
      %1441 = vmatmul.bf16.gmra.mxu0 %v583
      %v1442 = vpop.f32.mrf.mxu0
      %v1443 = vadd.f32 %v1414, %v1442
      %v1444 = vpop.f32.mrf.mxu0
      %v1445 = vadd.f32 %v1416, %v1444
      %1446 = vdwg.mxu0
      %1447 = vmatpush.bf16.msra.mxu0 0
      %1448 = vmatpush.bf16.msra.mxu0 0
      %1449 = vmatpush.bf16.msra.mxu0 0
      %1450 = vmatpush.bf16.msra.mxu0 0
      %1451 = vmatpush.bf16.msra.mxu0 0
      %1452 = vmatpush.bf16.msra.mxu0 0
      %1453 = vmatpush.bf16.msra.mxu0 0
      %1454 = vmatpush.bf16.msra.mxu0 %v1191
      %1455 = vmatmul.bf16.gmra.mxu0 %v1349
      %v1456 = vpop.f32.mrf.mxu0
      %v1457 = vadd.f32 %v1428, %v1456
      %v1458 = vpop.f32.mrf.mxu0
      %v1459 = vadd.f32 %v1430, %v1458
      %1460 = vmatmul.bf16.gmra.mxu0 %v1352
      %v1461 = vpop.f32.mrf.mxu0
      %v1462 = vadd.f32 %v1433, %v1461
      %v1463 = vpop.f32.mrf.mxu0
      %v1464 = vadd.f32 %v1435, %v1463
      %1465 = vmatmul.bf16.gmra.mxu0 %v1355
      %v1466 = vpop.f32.mrf.mxu0
      %v1467 = vadd.f32 %v1438, %v1466
      %v1468 = vpop.f32.mrf.mxu0
      %v1469 = vadd.f32 %v1440, %v1468
      %1470 = vmatmul.bf16.gmra.mxu0 %v1358
      %v1471 = vpop.f32.mrf.mxu0
      %v1472 = vadd.f32 %v1443, %v1471
      %v1473 = vpop.f32.mrf.mxu0
      %v1474 = vadd.f32 %v1445, %v1473
      %1475 = vdwg.mxu0
      %1476 = vmatpush.bf16.msra.mxu0 %v1090
      %1477 = vmatpush.bf16.msra.mxu0 %v1084
      %1478 = vmatpush.bf16.msra.mxu0 %v1078
      %1479 = vmatpush.bf16.msra.mxu0 %v1072
      %1480 = vmatpush.bf16.msra.mxu0 %v1066
      %1481 = vmatpush.bf16.msra.mxu0 %v1060
      %1482 = vmatpush.bf16.msra.mxu0 %v1054
      %1483 = vmatpush.bf16.msra.mxu0 %v1048
      %1484 = vmatmul.bf16.gmra.mxu0 %v569
      %v1485 = vpop.f32.mrf.mxu0
      %v1486 = vadd.f32 %v484, %v1485
      %v1487 = vpop.f32.mrf.mxu0
      %v1488 = vadd.f32 %v489, %v1487
      %1489 = vmatmul.bf16.gmra.mxu0 %v573
      %v1490 = vpop.f32.mrf.mxu0
      %v1491 = vadd.f32 %v494, %v1490
      %v1492 = vpop.f32.mrf.mxu0
      %v1493 = vadd.f32 %v499, %v1492
      %1494 = vmatmul.bf16.gmra.mxu0 %v577
      %v1495 = vpop.f32.mrf.mxu0
      %v1496 = vadd.f32 %v504, %v1495
      %v1497 = vpop.f32.mrf.mxu0
      %v1498 = vadd.f32 %v509, %v1497
      %1499 = vmatmul.bf16.gmra.mxu0 %v581
      %v1500 = vpop.f32.mrf.mxu0
      %v1501 = vadd.f32 %v514, %v1500
      %v1502 = vpop.f32.mrf.mxu0
      %v1503 = vadd.f32 %v519, %v1502
      %1504 = vdwg.mxu0
      %1505 = vmatpush.bf16.msra.mxu0 %v1138
      %1506 = vmatpush.bf16.msra.mxu0 %v1132
      %1507 = vmatpush.bf16.msra.mxu0 %v1126
      %1508 = vmatpush.bf16.msra.mxu0 %v1120
      %1509 = vmatpush.bf16.msra.mxu0 %v1114
      %1510 = vmatpush.bf16.msra.mxu0 %v1108
      %1511 = vmatpush.bf16.msra.mxu0 %v1102
      %1512 = vmatpush.bf16.msra.mxu0 %v1096
      %1513 = vmatmul.bf16.gmra.mxu0 %v570
      %v1514 = vpop.f32.mrf.mxu0
      %v1515 = vadd.f32 %v1486, %v1514
      %v1516 = vpop.f32.mrf.mxu0
      %v1517 = vadd.f32 %v1488, %v1516
      %1518 = vmatmul.bf16.gmra.mxu0 %v574
      %v1519 = vpop.f32.mrf.mxu0
      %v1520 = vadd.f32 %v1491, %v1519
      %v1521 = vpop.f32.mrf.mxu0
      %v1522 = vadd.f32 %v1493, %v1521
      %1523 = vmatmul.bf16.gmra.mxu0 %v578
      %v1524 = vpop.f32.mrf.mxu0
      %v1525 = vadd.f32 %v1496, %v1524
      %v1526 = vpop.f32.mrf.mxu0
      %v1527 = vadd.f32 %v1498, %v1526
      %1528 = vmatmul.bf16.gmra.mxu0 %v582
      %v1529 = vpop.f32.mrf.mxu0
      %v1530 = vadd.f32 %v1501, %v1529
      %v1531 = vpop.f32.mrf.mxu0
      %v1532 = vadd.f32 %v1503, %v1531
      %1533 = vdwg.mxu0
      %1534 = vmatpush.bf16.msra.mxu0 %v1186
      %1535 = vmatpush.bf16.msra.mxu0 %v1180
      %1536 = vmatpush.bf16.msra.mxu0 %v1174
      %1537 = vmatpush.bf16.msra.mxu0 %v1168
      %1538 = vmatpush.bf16.msra.mxu0 %v1162
      %1539 = vmatpush.bf16.msra.mxu0 %v1156
      %1540 = vmatpush.bf16.msra.mxu0 %v1150
      %1541 = vmatpush.bf16.msra.mxu0 %v1144
      %1542 = vmatmul.bf16.gmra.mxu0 %v571
      %v1543 = vpop.f32.mrf.mxu0
      %v1544 = vadd.f32 %v1515, %v1543
      %v1545 = vpop.f32.mrf.mxu0
      %v1546 = vadd.f32 %v1517, %v1545
      %1547 = vmatmul.bf16.gmra.mxu0 %v575
      %v1548 = vpop.f32.mrf.mxu0
      %v1549 = vadd.f32 %v1520, %v1548
      %v1550 = vpop.f32.mrf.mxu0
      %v1551 = vadd.f32 %v1522, %v1550
      %1552 = vmatmul.bf16.gmra.mxu0 %v579
      %v1553 = vpop.f32.mrf.mxu0
      %v1554 = vadd.f32 %v1525, %v1553
      %v1555 = vpop.f32.mrf.mxu0
      %v1556 = vadd.f32 %v1527, %v1555
      %1557 = vmatmul.bf16.gmra.mxu0 %v583
      %v1558 = vpop.f32.mrf.mxu0
      %v1559 = vadd.f32 %v1530, %v1558
      %v1560 = vpop.f32.mrf.mxu0
      %v1561 = vadd.f32 %v1532, %v1560
      %1562 = vdwg.mxu0
      %1563 = vmatpush.bf16.msra.mxu0 0
      %1564 = vmatpush.bf16.msra.mxu0 0
      %1565 = vmatpush.bf16.msra.mxu0 0
      %1566 = vmatpush.bf16.msra.mxu0 0
      %1567 = vmatpush.bf16.msra.mxu0 0
      %1568 = vmatpush.bf16.msra.mxu0 0
      %1569 = vmatpush.bf16.msra.mxu0 0
      %1570 = vmatpush.bf16.msra.mxu0 %v1192
      %1571 = vmatmul.bf16.gmra.mxu0 %v1349
      %v1572 = vpop.f32.mrf.mxu0
      %v1573 = vadd.f32 %v1544, %v1572
      %v1574 = vpop.f32.mrf.mxu0
      %v1575 = vadd.f32 %v1546, %v1574
      %1576 = vmatmul.bf16.gmra.mxu0 %v1352
      %v1577 = vpop.f32.mrf.mxu0
      %v1578 = vadd.f32 %v1549, %v1577
      %v1579 = vpop.f32.mrf.mxu0
      %v1580 = vadd.f32 %v1551, %v1579
      %1581 = vmatmul.bf16.gmra.mxu0 %v1355
      %v1582 = vpop.f32.mrf.mxu0
      %v1583 = vadd.f32 %v1554, %v1582
      %v1584 = vpop.f32.mrf.mxu0
      %v1585 = vadd.f32 %v1556, %v1584
      %1586 = vmatmul.bf16.gmra.mxu0 %v1358
      %v1587 = vpop.f32.mrf.mxu0
      %v1588 = vadd.f32 %v1559, %v1587
      %v1589 = vpop.f32.mrf.mxu0
      %v1590 = vadd.f32 %v1561, %v1589
      %1591 = vdwg.mxu0
      %1592 = vmatpush.bf16.msra.mxu0 %v1091
      %1593 = vmatpush.bf16.msra.mxu0 %v1085
      %1594 = vmatpush.bf16.msra.mxu0 %v1079
      %1595 = vmatpush.bf16.msra.mxu0 %v1073
      %1596 = vmatpush.bf16.msra.mxu0 %v1067
      %1597 = vmatpush.bf16.msra.mxu0 %v1061
      %1598 = vmatpush.bf16.msra.mxu0 %v1055
      %1599 = vmatpush.bf16.msra.mxu0 %v1049
      %1600 = vmatmul.bf16.gmra.mxu0 %v569
      %v1601 = vpop.f32.mrf.mxu0
      %v1602 = vadd.f32 %v484, %v1601
      %v1603 = vpop.f32.mrf.mxu0
      %v1604 = vadd.f32 %v489, %v1603
      %1605 = vmatmul.bf16.gmra.mxu0 %v573
      %v1606 = vpop.f32.mrf.mxu0
      %v1607 = vadd.f32 %v494, %v1606
      %v1608 = vpop.f32.mrf.mxu0
      %v1609 = vadd.f32 %v499, %v1608
      %1610 = vmatmul.bf16.gmra.mxu0 %v577
      %v1611 = vpop.f32.mrf.mxu0
      %v1612 = vadd.f32 %v504, %v1611
      %v1613 = vpop.f32.mrf.mxu0
      %v1614 = vadd.f32 %v509, %v1613
      %1615 = vmatmul.bf16.gmra.mxu0 %v581
      %v1616 = vpop.f32.mrf.mxu0
      %v1617 = vadd.f32 %v514, %v1616
      %v1618 = vpop.f32.mrf.mxu0
      %v1619 = vadd.f32 %v519, %v1618
      %1620 = vdwg.mxu0
      %1621 = vmatpush.bf16.msra.mxu0 %v1139
      %1622 = vmatpush.bf16.msra.mxu0 %v1133
      %1623 = vmatpush.bf16.msra.mxu0 %v1127
      %1624 = vmatpush.bf16.msra.mxu0 %v1121
      %1625 = vmatpush.bf16.msra.mxu0 %v1115
      %1626 = vmatpush.bf16.msra.mxu0 %v1109
      %1627 = vmatpush.bf16.msra.mxu0 %v1103
      %1628 = vmatpush.bf16.msra.mxu0 %v1097
      %1629 = vmatmul.bf16.gmra.mxu0 %v570
      %v1630 = vpop.f32.mrf.mxu0
      %v1631 = vadd.f32 %v1602, %v1630
      %v1632 = vpop.f32.mrf.mxu0
      %v1633 = vadd.f32 %v1604, %v1632
      %1634 = vmatmul.bf16.gmra.mxu0 %v574
      %v1635 = vpop.f32.mrf.mxu0
      %v1636 = vadd.f32 %v1607, %v1635
      %v1637 = vpop.f32.mrf.mxu0
      %v1638 = vadd.f32 %v1609, %v1637
      %1639 = vmatmul.bf16.gmra.mxu0 %v578
      %v1640 = vpop.f32.mrf.mxu0
      %v1641 = vadd.f32 %v1612, %v1640
      %v1642 = vpop.f32.mrf.mxu0
      %v1643 = vadd.f32 %v1614, %v1642
      %1644 = vmatmul.bf16.gmra.mxu0 %v582
      %v1645 = vpop.f32.mrf.mxu0
      %v1646 = vadd.f32 %v1617, %v1645
      %v1647 = vpop.f32.mrf.mxu0
      %v1648 = vadd.f32 %v1619, %v1647
      %1649 = vdwg.mxu0
      %1650 = vmatpush.bf16.msra.mxu0 %v1187
      %1651 = vmatpush.bf16.msra.mxu0 %v1181
      %1652 = vmatpush.bf16.msra.mxu0 %v1175
      %1653 = vmatpush.bf16.msra.mxu0 %v1169
      %1654 = vmatpush.bf16.msra.mxu0 %v1163
      %1655 = vmatpush.bf16.msra.mxu0 %v1157
      %1656 = vmatpush.bf16.msra.mxu0 %v1151
      %1657 = vmatpush.bf16.msra.mxu0 %v1145
      %1658 = vmatmul.bf16.gmra.mxu0 %v571
      %v1659 = vpop.f32.mrf.mxu0
      %v1660 = vadd.f32 %v1631, %v1659
      %v1661 = vpop.f32.mrf.mxu0
      %v1662 = vadd.f32 %v1633, %v1661
      %1663 = vmatmul.bf16.gmra.mxu0 %v575
      %v1664 = vpop.f32.mrf.mxu0
      %v1665 = vadd.f32 %v1636, %v1664
      %v1666 = vpop.f32.mrf.mxu0
      %v1667 = vadd.f32 %v1638, %v1666
      %1668 = vmatmul.bf16.gmra.mxu0 %v579
      %v1669 = vpop.f32.mrf.mxu0
      %v1670 = vadd.f32 %v1641, %v1669
      %v1671 = vpop.f32.mrf.mxu0
      %v1672 = vadd.f32 %v1643, %v1671
      %1673 = vmatmul.bf16.gmra.mxu0 %v583
      %v1674 = vpop.f32.mrf.mxu0
      %v1675 = vadd.f32 %v1646, %v1674
      %v1676 = vpop.f32.mrf.mxu0
      %v1677 = vadd.f32 %v1648, %v1676
      %1678 = vdwg.mxu0
      %1679 = vmatpush.bf16.msra.mxu0 0
      %1680 = vmatpush.bf16.msra.mxu0 0
      %1681 = vmatpush.bf16.msra.mxu0 0
      %1682 = vmatpush.bf16.msra.mxu0 0
      %1683 = vmatpush.bf16.msra.mxu0 0
      %1684 = vmatpush.bf16.msra.mxu0 0
      %1685 = vmatpush.bf16.msra.mxu0 0
      %1686 = vmatpush.bf16.msra.mxu0 %v1193
      %1687 = vmatmul.bf16.gmra.mxu0 %v1349
      %v1688 = vpop.f32.mrf.mxu0
      %v1689 = vadd.f32 %v1660, %v1688
      %v1690 = vpop.f32.mrf.mxu0
      %v1691 = vadd.f32 %v1662, %v1690
      %1692 = vmatmul.bf16.gmra.mxu0 %v1352
      %v1693 = vpop.f32.mrf.mxu0
      %v1694 = vadd.f32 %v1665, %v1693
      %v1695 = vpop.f32.mrf.mxu0
      %v1696 = vadd.f32 %v1667, %v1695
      %1697 = vmatmul.bf16.gmra.mxu0 %v1355
      %v1698 = vpop.f32.mrf.mxu0
      %v1699 = vadd.f32 %v1670, %v1698
      %v1700 = vpop.f32.mrf.mxu0
      %v1701 = vadd.f32 %v1672, %v1700
      %1702 = vmatmul.bf16.gmra.mxu0 %v1358
      %v1703 = vpop.f32.mrf.mxu0
      %v1704 = vadd.f32 %v1675, %v1703
      %v1705 = vpop.f32.mrf.mxu0
      %v1706 = vadd.f32 %v1677, %v1705
      %1707 = vdwg.mxu0
      %1708 = vmatpush.bf16.msra.mxu0 %v1092
      %1709 = vmatpush.bf16.msra.mxu0 %v1086
      %1710 = vmatpush.bf16.msra.mxu0 %v1080
      %1711 = vmatpush.bf16.msra.mxu0 %v1074
      %1712 = vmatpush.bf16.msra.mxu0 %v1068
      %1713 = vmatpush.bf16.msra.mxu0 %v1062
      %1714 = vmatpush.bf16.msra.mxu0 %v1056
      %1715 = vmatpush.bf16.msra.mxu0 %v1050
      %1716 = vmatmul.bf16.gmra.mxu0 %v569
      %v1717 = vpop.f32.mrf.mxu0
      %v1718 = vadd.f32 %v484, %v1717
      %v1719 = vpop.f32.mrf.mxu0
      %v1720 = vadd.f32 %v489, %v1719
      %1721 = vmatmul.bf16.gmra.mxu0 %v573
      %v1722 = vpop.f32.mrf.mxu0
      %v1723 = vadd.f32 %v494, %v1722
      %v1724 = vpop.f32.mrf.mxu0
      %v1725 = vadd.f32 %v499, %v1724
      %1726 = vmatmul.bf16.gmra.mxu0 %v577
      %v1727 = vpop.f32.mrf.mxu0
      %v1728 = vadd.f32 %v504, %v1727
      %v1729 = vpop.f32.mrf.mxu0
      %v1730 = vadd.f32 %v509, %v1729
      %1731 = vmatmul.bf16.gmra.mxu0 %v581
      %v1732 = vpop.f32.mrf.mxu0
      %v1733 = vadd.f32 %v514, %v1732
      %v1734 = vpop.f32.mrf.mxu0
      %v1735 = vadd.f32 %v519, %v1734
      %1736 = vdwg.mxu0
      %1737 = vmatpush.bf16.msra.mxu0 %v1140
      %1738 = vmatpush.bf16.msra.mxu0 %v1134
      %1739 = vmatpush.bf16.msra.mxu0 %v1128
      %1740 = vmatpush.bf16.msra.mxu0 %v1122
      %1741 = vmatpush.bf16.msra.mxu0 %v1116
      %1742 = vmatpush.bf16.msra.mxu0 %v1110
      %1743 = vmatpush.bf16.msra.mxu0 %v1104
      %1744 = vmatpush.bf16.msra.mxu0 %v1098
      %1745 = vmatmul.bf16.gmra.mxu0 %v570
      %v1746 = vpop.f32.mrf.mxu0
      %v1747 = vadd.f32 %v1718, %v1746
      %v1748 = vpop.f32.mrf.mxu0
      %v1749 = vadd.f32 %v1720, %v1748
      %1750 = vmatmul.bf16.gmra.mxu0 %v574
      %v1751 = vpop.f32.mrf.mxu0
      %v1752 = vadd.f32 %v1723, %v1751
      %v1753 = vpop.f32.mrf.mxu0
      %v1754 = vadd.f32 %v1725, %v1753
      %1755 = vmatmul.bf16.gmra.mxu0 %v578
      %v1756 = vpop.f32.mrf.mxu0
      %v1757 = vadd.f32 %v1728, %v1756
      %v1758 = vpop.f32.mrf.mxu0
      %v1759 = vadd.f32 %v1730, %v1758
      %1760 = vmatmul.bf16.gmra.mxu0 %v582
      %v1761 = vpop.f32.mrf.mxu0
      %v1762 = vadd.f32 %v1733, %v1761
      %v1763 = vpop.f32.mrf.mxu0
      %v1764 = vadd.f32 %v1735, %v1763
      %1765 = vdwg.mxu0
      %1766 = vmatpush.bf16.msra.mxu0 %v1188
      %1767 = vmatpush.bf16.msra.mxu0 %v1182
      %1768 = vmatpush.bf16.msra.mxu0 %v1176
      %1769 = vmatpush.bf16.msra.mxu0 %v1170
      %1770 = vmatpush.bf16.msra.mxu0 %v1164
      %1771 = vmatpush.bf16.msra.mxu0 %v1158
      %1772 = vmatpush.bf16.msra.mxu0 %v1152
      %1773 = vmatpush.bf16.msra.mxu0 %v1146
      %1774 = vmatmul.bf16.gmra.mxu0 %v571
      %v1775 = vpop.f32.mrf.mxu0
      %v1776 = vadd.f32 %v1747, %v1775
      %v1777 = vpop.f32.mrf.mxu0
      %v1778 = vadd.f32 %v1749, %v1777
      %1779 = vmatmul.bf16.gmra.mxu0 %v575
      %v1780 = vpop.f32.mrf.mxu0
      %v1781 = vadd.f32 %v1752, %v1780
      %v1782 = vpop.f32.mrf.mxu0
      %v1783 = vadd.f32 %v1754, %v1782
      %1784 = vmatmul.bf16.gmra.mxu0 %v579
      %v1785 = vpop.f32.mrf.mxu0
      %v1786 = vadd.f32 %v1757, %v1785
      %v1787 = vpop.f32.mrf.mxu0
      %v1788 = vadd.f32 %v1759, %v1787
      %1789 = vmatmul.bf16.gmra.mxu0 %v583
      %v1790 = vpop.f32.mrf.mxu0
      %v1791 = vadd.f32 %v1762, %v1790
      %v1792 = vpop.f32.mrf.mxu0
      %v1793 = vadd.f32 %v1764, %v1792
      %1794 = vdwg.mxu0
      %1795 = vmatpush.bf16.msra.mxu0 0
      %1796 = vmatpush.bf16.msra.mxu0 0
      %1797 = vmatpush.bf16.msra.mxu0 0
      %1798 = vmatpush.bf16.msra.mxu0 0
      %1799 = vmatpush.bf16.msra.mxu0 0
      %1800 = vmatpush.bf16.msra.mxu0 0
      %1801 = vmatpush.bf16.msra.mxu0 0
      %1802 = vmatpush.bf16.msra.mxu0 %v1194
      %1803 = vmatmul.bf16.gmra.mxu0 %v1349
      %v1804 = vpop.f32.mrf.mxu0
      %v1805 = vadd.f32 %v1776, %v1804
      %v1806 = vpop.f32.mrf.mxu0
      %v1807 = vadd.f32 %v1778, %v1806
      %1808 = vmatmul.bf16.gmra.mxu0 %v1352
      %v1809 = vpop.f32.mrf.mxu0
      %v1810 = vadd.f32 %v1781, %v1809
      %v1811 = vpop.f32.mrf.mxu0
      %v1812 = vadd.f32 %v1783, %v1811
      %1813 = vmatmul.bf16.gmra.mxu0 %v1355
      %v1814 = vpop.f32.mrf.mxu0
      %v1815 = vadd.f32 %v1786, %v1814
      %v1816 = vpop.f32.mrf.mxu0
      %v1817 = vadd.f32 %v1788, %v1816
      %1818 = vmatmul.bf16.gmra.mxu0 %v1358
      %v1819 = vpop.f32.mrf.mxu0
      %v1820 = vadd.f32 %v1791, %v1819
      %v1821 = vpop.f32.mrf.mxu0
      %v1822 = vadd.f32 %v1793, %v1821
      %1823 = vdwg.mxu0
      %1824 = vmatpush.bf16.msra.mxu0 %v1093
      %1825 = vmatpush.bf16.msra.mxu0 %v1087
      %1826 = vmatpush.bf16.msra.mxu0 %v1081
      %1827 = vmatpush.bf16.msra.mxu0 %v1075
      %1828 = vmatpush.bf16.msra.mxu0 %v1069
      %1829 = vmatpush.bf16.msra.mxu0 %v1063
      %1830 = vmatpush.bf16.msra.mxu0 %v1057
      %1831 = vmatpush.bf16.msra.mxu0 %v1051
      %1832 = vmatmul.bf16.gmra.mxu0 %v569
      %v1833 = vpop.f32.mrf.mxu0
      %v1834 = vadd.f32 %v484, %v1833
      %v1835 = vpop.f32.mrf.mxu0
      %v1836 = vadd.f32 %v489, %v1835
      %1837 = vmatmul.bf16.gmra.mxu0 %v573
      %v1838 = vpop.f32.mrf.mxu0
      %v1839 = vadd.f32 %v494, %v1838
      %v1840 = vpop.f32.mrf.mxu0
      %v1841 = vadd.f32 %v499, %v1840
      %1842 = vmatmul.bf16.gmra.mxu0 %v577
      %v1843 = vpop.f32.mrf.mxu0
      %v1844 = vadd.f32 %v504, %v1843
      %v1845 = vpop.f32.mrf.mxu0
      %v1846 = vadd.f32 %v509, %v1845
      %1847 = vmatmul.bf16.gmra.mxu0 %v581
      %v1848 = vpop.f32.mrf.mxu0
      %v1849 = vadd.f32 %v514, %v1848
      %v1850 = vpop.f32.mrf.mxu0
      %v1851 = vadd.f32 %v519, %v1850
      %1852 = vdwg.mxu0
      %1853 = vmatpush.bf16.msra.mxu0 %v1141
      %1854 = vmatpush.bf16.msra.mxu0 %v1135
      %1855 = vmatpush.bf16.msra.mxu0 %v1129
      %1856 = vmatpush.bf16.msra.mxu0 %v1123
      %1857 = vmatpush.bf16.msra.mxu0 %v1117
      %1858 = vmatpush.bf16.msra.mxu0 %v1111
      %1859 = vmatpush.bf16.msra.mxu0 %v1105
      %1860 = vmatpush.bf16.msra.mxu0 %v1099
      %1861 = vmatmul.bf16.gmra.mxu0 %v570
      %v1862 = vpop.f32.mrf.mxu0
      %v1863 = vadd.f32 %v1834, %v1862
      %v1864 = vpop.f32.mrf.mxu0
      %v1865 = vadd.f32 %v1836, %v1864
      %1866 = vmatmul.bf16.gmra.mxu0 %v574
      %v1867 = vpop.f32.mrf.mxu0
      %v1868 = vadd.f32 %v1839, %v1867
      %v1869 = vpop.f32.mrf.mxu0
      %v1870 = vadd.f32 %v1841, %v1869
      %1871 = vmatmul.bf16.gmra.mxu0 %v578
      %v1872 = vpop.f32.mrf.mxu0
      %v1873 = vadd.f32 %v1844, %v1872
      %v1874 = vpop.f32.mrf.mxu0
      %v1875 = vadd.f32 %v1846, %v1874
      %1876 = vmatmul.bf16.gmra.mxu0 %v582
      %v1877 = vpop.f32.mrf.mxu0
      %v1878 = vadd.f32 %v1849, %v1877
      %v1879 = vpop.f32.mrf.mxu0
      %v1880 = vadd.f32 %v1851, %v1879
      %1881 = vdwg.mxu0
      %1882 = vmatpush.bf16.msra.mxu0 %v1189
      %1883 = vmatpush.bf16.msra.mxu0 %v1183
      %1884 = vmatpush.bf16.msra.mxu0 %v1177
      %1885 = vmatpush.bf16.msra.mxu0 %v1171
      %1886 = vmatpush.bf16.msra.mxu0 %v1165
      %1887 = vmatpush.bf16.msra.mxu0 %v1159
      %1888 = vmatpush.bf16.msra.mxu0 %v1153
      %1889 = vmatpush.bf16.msra.mxu0 %v1147
      %1890 = vmatmul.bf16.gmra.mxu0 %v571
      %v1891 = vpop.f32.mrf.mxu0
      %v1892 = vadd.f32 %v1863, %v1891
      %v1893 = vpop.f32.mrf.mxu0
      %v1894 = vadd.f32 %v1865, %v1893
      %1895 = vmatmul.bf16.gmra.mxu0 %v575
      %v1896 = vpop.f32.mrf.mxu0
      %v1897 = vadd.f32 %v1868, %v1896
      %v1898 = vpop.f32.mrf.mxu0
      %v1899 = vadd.f32 %v1870, %v1898
      %1900 = vmatmul.bf16.gmra.mxu0 %v579
      %v1901 = vpop.f32.mrf.mxu0
      %v1902 = vadd.f32 %v1873, %v1901
      %v1903 = vpop.f32.mrf.mxu0
      %v1904 = vadd.f32 %v1875, %v1903
      %1905 = vmatmul.bf16.gmra.mxu0 %v583
      %v1906 = vpop.f32.mrf.mxu0
      %v1907 = vadd.f32 %v1878, %v1906
      %v1908 = vpop.f32.mrf.mxu0
      %v1909 = vadd.f32 %v1880, %v1908
      %1910 = vdwg.mxu0
      %1911 = vmatpush.bf16.msra.mxu0 0
      %1912 = vmatpush.bf16.msra.mxu0 0
      %1913 = vmatpush.bf16.msra.mxu0 0
      %1914 = vmatpush.bf16.msra.mxu0 0
      %1915 = vmatpush.bf16.msra.mxu0 0
      %1916 = vmatpush.bf16.msra.mxu0 0
      %1917 = vmatpush.bf16.msra.mxu0 0
      %1918 = vmatpush.bf16.msra.mxu0 %v1195
      %1919 = vmatmul.bf16.gmra.mxu0 %v1349
      %v1920 = vpop.f32.mrf.mxu0
      %v1921 = vadd.f32 %v1892, %v1920
      %v1922 = vpop.f32.mrf.mxu0
      %v1923 = vadd.f32 %v1894, %v1922
      %1924 = vmatmul.bf16.gmra.mxu0 %v1352
      %v1925 = vpop.f32.mrf.mxu0
      %v1926 = vadd.f32 %v1897, %v1925
      %v1927 = vpop.f32.mrf.mxu0
      %v1928 = vadd.f32 %v1899, %v1927
      %1929 = vmatmul.bf16.gmra.mxu0 %v1355
      %v1930 = vpop.f32.mrf.mxu0
      %v1931 = vadd.f32 %v1902, %v1930
      %v1932 = vpop.f32.mrf.mxu0
      %v1933 = vadd.f32 %v1904, %v1932
      %1934 = vmatmul.bf16.gmra.mxu0 %v1358
      %v1935 = vpop.f32.mrf.mxu0
      %v1936 = vadd.f32 %v1907, %v1935
      %v1937 = vpop.f32.mrf.mxu0
      %v1938 = vadd.f32 %v1909, %v1937
      %1939 = vdwg.mxu0
      %1940 = vmatpush.bf16.msra.mxu0 %v1094
      %1941 = vmatpush.bf16.msra.mxu0 %v1088
      %1942 = vmatpush.bf16.msra.mxu0 %v1082
      %1943 = vmatpush.bf16.msra.mxu0 %v1076
      %1944 = vmatpush.bf16.msra.mxu0 %v1070
      %1945 = vmatpush.bf16.msra.mxu0 %v1064
      %1946 = vmatpush.bf16.msra.mxu0 %v1058
      %1947 = vmatpush.bf16.msra.mxu0 %v1052
      %1948 = vmatmul.bf16.gmra.mxu0 %v569
      %v1949 = vpop.f32.mrf.mxu0
      %v1950 = vadd.f32 %v484, %v1949
      %v1951 = vpop.f32.mrf.mxu0
      %v1952 = vadd.f32 %v489, %v1951
      %1953 = vmatmul.bf16.gmra.mxu0 %v573
      %v1954 = vpop.f32.mrf.mxu0
      %v1955 = vadd.f32 %v494, %v1954
      %v1956 = vpop.f32.mrf.mxu0
      %v1957 = vadd.f32 %v499, %v1956
      %1958 = vmatmul.bf16.gmra.mxu0 %v577
      %v1959 = vpop.f32.mrf.mxu0
      %v1960 = vadd.f32 %v504, %v1959
      %v1961 = vpop.f32.mrf.mxu0
      %v1962 = vadd.f32 %v509, %v1961
      %1963 = vmatmul.bf16.gmra.mxu0 %v581
      %v1964 = vpop.f32.mrf.mxu0
      %v1965 = vadd.f32 %v514, %v1964
      %v1966 = vpop.f32.mrf.mxu0
      %v1967 = vadd.f32 %v519, %v1966
      %1968 = vdwg.mxu0
      %1969 = vmatpush.bf16.msra.mxu0 %v1142
      %1970 = vmatpush.bf16.msra.mxu0 %v1136
      %1971 = vmatpush.bf16.msra.mxu0 %v1130
      %1972 = vmatpush.bf16.msra.mxu0 %v1124
      %1973 = vmatpush.bf16.msra.mxu0 %v1118
      %1974 = vmatpush.bf16.msra.mxu0 %v1112
      %1975 = vmatpush.bf16.msra.mxu0 %v1106
      %1976 = vmatpush.bf16.msra.mxu0 %v1100
      %1977 = vmatmul.bf16.gmra.mxu0 %v570
      %v1978 = vpop.f32.mrf.mxu0
      %v1979 = vadd.f32 %v1950, %v1978
      %v1980 = vpop.f32.mrf.mxu0
      %v1981 = vadd.f32 %v1952, %v1980
      %1982 = vmatmul.bf16.gmra.mxu0 %v574
      %v1983 = vpop.f32.mrf.mxu0
      %v1984 = vadd.f32 %v1955, %v1983
      %v1985 = vpop.f32.mrf.mxu0
      %v1986 = vadd.f32 %v1957, %v1985
      %1987 = vmatmul.bf16.gmra.mxu0 %v578
      %v1988 = vpop.f32.mrf.mxu0
      %v1989 = vadd.f32 %v1960, %v1988
      %v1990 = vpop.f32.mrf.mxu0
      %v1991 = vadd.f32 %v1962, %v1990
      %1992 = vmatmul.bf16.gmra.mxu0 %v582
      %v1993 = vpop.f32.mrf.mxu0
      %v1994 = vadd.f32 %v1965, %v1993
      %v1995 = vpop.f32.mrf.mxu0
      %v1996 = vadd.f32 %v1967, %v1995
      %1997 = vdwg.mxu0
      %1998 = vmatpush.bf16.msra.mxu0 %v1190
      %1999 = vmatpush.bf16.msra.mxu0 %v1184
      %2000 = vmatpush.bf16.msra.mxu0 %v1178
      %2001 = vmatpush.bf16.msra.mxu0 %v1172
      %2002 = vmatpush.bf16.msra.mxu0 %v1166
      %2003 = vmatpush.bf16.msra.mxu0 %v1160
      %2004 = vmatpush.bf16.msra.mxu0 %v1154
      %2005 = vmatpush.bf16.msra.mxu0 %v1148
      %2006 = vmatmul.bf16.gmra.mxu0 %v571
      %v2007 = vpop.f32.mrf.mxu0
      %v2008 = vadd.f32 %v1979, %v2007
      %v2009 = vpop.f32.mrf.mxu0
      %v2010 = vadd.f32 %v1981, %v2009
      %2011 = vmatmul.bf16.gmra.mxu0 %v575
      %v2012 = vpop.f32.mrf.mxu0
      %v2013 = vadd.f32 %v1984, %v2012
      %v2014 = vpop.f32.mrf.mxu0
      %v2015 = vadd.f32 %v1986, %v2014
      %2016 = vmatmul.bf16.gmra.mxu0 %v579
      %v2017 = vpop.f32.mrf.mxu0
      %v2018 = vadd.f32 %v1989, %v2017
      %v2019 = vpop.f32.mrf.mxu0
      %v2020 = vadd.f32 %v1991, %v2019
      %2021 = vmatmul.bf16.gmra.mxu0 %v583
      %v2022 = vpop.f32.mrf.mxu0
      %v2023 = vadd.f32 %v1994, %v2022
      %v2024 = vpop.f32.mrf.mxu0
      %v2025 = vadd.f32 %v1996, %v2024
      %2026 = vdwg.mxu0
      %2027 = vmatpush.bf16.msra.mxu0 0
      %2028 = vmatpush.bf16.msra.mxu0 0
      %2029 = vmatpush.bf16.msra.mxu0 0
      %2030 = vmatpush.bf16.msra.mxu0 0
      %2031 = vmatpush.bf16.msra.mxu0 0
      %2032 = vmatpush.bf16.msra.mxu0 0
      %2033 = vmatpush.bf16.msra.mxu0 0
      %2034 = vmatpush.bf16.msra.mxu0 %v1196
      %2035 = vmatmul.bf16.gmra.mxu0 %v1349
      %v2036 = vpop.f32.mrf.mxu0
      %v2037 = vadd.f32 %v2008, %v2036
      %v2038 = vpop.f32.mrf.mxu0
      %v2039 = vadd.f32 %v2010, %v2038
      %2040 = vmatmul.bf16.gmra.mxu0 %v1352
      %v2041 = vpop.f32.mrf.mxu0
      %v2042 = vadd.f32 %v2013, %v2041
      %v2043 = vpop.f32.mrf.mxu0
      %v2044 = vadd.f32 %v2015, %v2043
      %2045 = vmatmul.bf16.gmra.mxu0 %v1355
      %v2046 = vpop.f32.mrf.mxu0
      %v2047 = vadd.f32 %v2018, %v2046
      %v2048 = vpop.f32.mrf.mxu0
      %v2049 = vadd.f32 %v2020, %v2048
      %2050 = vmatmul.bf16.gmra.mxu0 %v1358
      %v2051 = vpop.f32.mrf.mxu0
      %v2052 = vadd.f32 %v2023, %v2051
      %v2053 = vpop.f32.mrf.mxu0
      %v2054 = vadd.f32 %v2025, %v2053
      %2055 = vdwg.mxu0
      %vm2056 = vcmp.gt.f32.partialorder %v1457, 0.0
      %vm2057 = vcmp.gt.f32.partialorder %v1573, 0.0
      %vm2058 = vcmp.gt.f32.partialorder %v1689, 0.0
      %vm2059 = vcmp.gt.f32.partialorder %v1805, 0.0
      %vm2060 = vcmp.gt.f32.partialorder %v1921, 0.0
      %vm2061 = vcmp.gt.f32.partialorder %v2037, 0.0
      %vm2062 = vcmp.gt.f32.partialorder %v1459, 0.0
      %vm2063 = vcmp.gt.f32.partialorder %v1575, 0.0
      %vm2064 = vcmp.gt.f32.partialorder %v1691, 0.0
      %vm2065 = vcmp.gt.f32.partialorder %v1807, 0.0
      %vm2066 = vcmp.gt.f32.partialorder %v1923, 0.0
      %vm2067 = vcmp.gt.f32.partialorder %v2039, 0.0
      %vm2068 = vcmp.gt.f32.partialorder %v1462, 0.0
      %vm2069 = vcmp.gt.f32.partialorder %v1578, 0.0
      %vm2070 = vcmp.gt.f32.partialorder %v1694, 0.0
      %vm2071 = vcmp.gt.f32.partialorder %v1810, 0.0
      %vm2072 = vcmp.gt.f32.partialorder %v1926, 0.0
      %vm2073 = vcmp.gt.f32.partialorder %v2042, 0.0
      %vm2074 = vcmp.gt.f32.partialorder %v1464, 0.0
      %vm2075 = vcmp.gt.f32.partialorder %v1580, 0.0
      %vm2076 = vcmp.gt.f32.partialorder %v1696, 0.0
      %vm2077 = vcmp.gt.f32.partialorder %v1812, 0.0
      %vm2078 = vcmp.gt.f32.partialorder %v1928, 0.0
      %vm2079 = vcmp.gt.f32.partialorder %v2044, 0.0
      %vm2080 = vcmp.gt.f32.partialorder %v1467, 0.0
      %vm2081 = vcmp.gt.f32.partialorder %v1583, 0.0
      %vm2082 = vcmp.gt.f32.partialorder %v1699, 0.0
      %vm2083 = vcmp.gt.f32.partialorder %v1815, 0.0
      %vm2084 = vcmp.gt.f32.partialorder %v1931, 0.0
      %vm2085 = vcmp.gt.f32.partialorder %v2047, 0.0
      %vm2086 = vcmp.gt.f32.partialorder %v1469, 0.0
      %vm2087 = vcmp.gt.f32.partialorder %v1585, 0.0
      %vm2088 = vcmp.gt.f32.partialorder %v1701, 0.0
      %vm2089 = vcmp.gt.f32.partialorder %v1817, 0.0
      %vm2090 = vcmp.gt.f32.partialorder %v1933, 0.0
      %vm2091 = vcmp.gt.f32.partialorder %v2049, 0.0
      %vm2092 = vcmp.gt.f32.partialorder %v1472, 0.0
      %vm2093 = vcmp.gt.f32.partialorder %v1588, 0.0
      %vm2094 = vcmp.gt.f32.partialorder %v1704, 0.0
      %vm2095 = vcmp.gt.f32.partialorder %v1820, 0.0
      %vm2096 = vcmp.gt.f32.partialorder %v1936, 0.0
      %vm2097 = vcmp.gt.f32.partialorder %v2052, 0.0
      %vm2098 = vcmp.gt.f32.partialorder %v1474, 0.0
      %vm2099 = vcmp.gt.f32.partialorder %v1590, 0.0
      %vm2100 = vcmp.gt.f32.partialorder %v1706, 0.0
      %vm2101 = vcmp.gt.f32.partialorder %v1822, 0.0
      %vm2102 = vcmp.gt.f32.partialorder %v1938, 0.0
      %vm2103 = vcmp.gt.f32.partialorder %v2054, 0.0
      %v2104 = vmin.f32 %v1457, 0.0
      %v2105 = vmin.f32 %v1573, 0.0
      %v2106 = vmin.f32 %v1689, 0.0
      %v2107 = vmin.f32 %v1805, 0.0
      %v2108 = vmin.f32 %v1921, 0.0
      %v2109 = vmin.f32 %v2037, 0.0
      %v2110 = vmin.f32 %v1459, 0.0
      %v2111 = vmin.f32 %v1575, 0.0
      %v2112 = vmin.f32 %v1691, 0.0
      %v2113 = vmin.f32 %v1807, 0.0
      %v2114 = vmin.f32 %v1923, 0.0
      %v2115 = vmin.f32 %v2039, 0.0
      %v2116 = vmin.f32 %v1462, 0.0
      %v2117 = vmin.f32 %v1578, 0.0
      %v2118 = vmin.f32 %v1694, 0.0
      %v2119 = vmin.f32 %v1810, 0.0
      %v2120 = vmin.f32 %v1926, 0.0
      %v2121 = vmin.f32 %v2042, 0.0
      %v2122 = vmin.f32 %v1464, 0.0
      %v2123 = vmin.f32 %v1580, 0.0
      %v2124 = vmin.f32 %v1696, 0.0
      %v2125 = vmin.f32 %v1812, 0.0
      %v2126 = vmin.f32 %v1928, 0.0
      %v2127 = vmin.f32 %v2044, 0.0
      %v2128 = vmin.f32 %v1467, 0.0
      %v2129 = vmin.f32 %v1583, 0.0
      %v2130 = vmin.f32 %v1699, 0.0
      %v2131 = vmin.f32 %v1815, 0.0
      %v2132 = vmin.f32 %v1931, 0.0
      %v2133 = vmin.f32 %v2047, 0.0
      %v2134 = vmin.f32 %v1469, 0.0
      %v2135 = vmin.f32 %v1585, 0.0
      %v2136 = vmin.f32 %v1701, 0.0
      %v2137 = vmin.f32 %v1817, 0.0
      %v2138 = vmin.f32 %v1933, 0.0
      %v2139 = vmin.f32 %v2049, 0.0
      %v2140 = vmin.f32 %v1472, 0.0
      %v2141 = vmin.f32 %v1588, 0.0
      %v2142 = vmin.f32 %v1704, 0.0
      %v2143 = vmin.f32 %v1820, 0.0
      %v2144 = vmin.f32 %v1936, 0.0
      %v2145 = vmin.f32 %v2052, 0.0
      %v2146 = vmin.f32 %v1474, 0.0
      %v2147 = vmin.f32 %v1590, 0.0
      %v2148 = vmin.f32 %v1706, 0.0
      %v2149 = vmin.f32 %v1822, 0.0
      %v2150 = vmin.f32 %v1938, 0.0
      %v2151 = vmin.f32 %v2054, 0.0
      %v2152 = vmul.f32 %v2104, 1.442695
      %v2153 = vpow.pop %v2152
      %v2154 = vmul.f32 %v2105, 1.442695
      %v2155 = vpow.pop %v2154
      %v2156 = vmul.f32 %v2106, 1.442695
      %v2157 = vpow.pop %v2156
      %v2158 = vmul.f32 %v2107, 1.442695
      %v2159 = vpow.pop %v2158
      %v2160 = vmul.f32 %v2108, 1.442695
      %v2161 = vpow.pop %v2160
      %v2162 = vmul.f32 %v2109, 1.442695
      %v2163 = vpow.pop %v2162
      %v2164 = vmul.f32 %v2110, 1.442695
      %v2165 = vpow.pop %v2164
      %v2166 = vmul.f32 %v2111, 1.442695
      %v2167 = vpow.pop %v2166
      %v2168 = vmul.f32 %v2112, 1.442695
      %v2169 = vpow.pop %v2168
      %v2170 = vmul.f32 %v2113, 1.442695
      %v2171 = vpow.pop %v2170
      %v2172 = vmul.f32 %v2114, 1.442695
      %v2173 = vpow.pop %v2172
      %v2174 = vmul.f32 %v2115, 1.442695
      %v2175 = vpow.pop %v2174
      %v2176 = vmul.f32 %v2116, 1.442695
      %v2177 = vpow.pop %v2176
      %v2178 = vmul.f32 %v2117, 1.442695
      %v2179 = vpow.pop %v2178
      %v2180 = vmul.f32 %v2118, 1.442695
      %v2181 = vpow.pop %v2180
      %v2182 = vmul.f32 %v2119, 1.442695
      %v2183 = vpow.pop %v2182
      %v2184 = vmul.f32 %v2120, 1.442695
      %v2185 = vpow.pop %v2184
      %v2186 = vmul.f32 %v2121, 1.442695
      %v2187 = vpow.pop %v2186
      %v2188 = vmul.f32 %v2122, 1.442695
      %v2189 = vpow.pop %v2188
      %v2190 = vmul.f32 %v2123, 1.442695
      %v2191 = vpow.pop %v2190
      %v2192 = vmul.f32 %v2124, 1.442695
      %v2193 = vpow.pop %v2192
      %v2194 = vmul.f32 %v2125, 1.442695
      %v2195 = vpow.pop %v2194
      %v2196 = vmul.f32 %v2126, 1.442695
      %v2197 = vpow.pop %v2196
      %v2198 = vmul.f32 %v2127, 1.442695
      %v2199 = vpow.pop %v2198
      %v2200 = vmul.f32 %v2128, 1.442695
      %v2201 = vpow.pop %v2200
      %v2202 = vmul.f32 %v2129, 1.442695
      %v2203 = vpow.pop %v2202
      %v2204 = vmul.f32 %v2130, 1.442695
      %v2205 = vpow.pop %v2204
      %v2206 = vmul.f32 %v2131, 1.442695
      %v2207 = vpow.pop %v2206
      %v2208 = vmul.f32 %v2132, 1.442695
      %v2209 = vpow.pop %v2208
      %v2210 = vmul.f32 %v2133, 1.442695
      %v2211 = vpow.pop %v2210
      %v2212 = vmul.f32 %v2134, 1.442695
      %v2213 = vpow.pop %v2212
      %v2214 = vmul.f32 %v2135, 1.442695
      %v2215 = vpow.pop %v2214
      %v2216 = vmul.f32 %v2136, 1.442695
      %v2217 = vpow.pop %v2216
      %v2218 = vmul.f32 %v2137, 1.442695
      %v2219 = vpow.pop %v2218
      %v2220 = vmul.f32 %v2138, 1.442695
      %v2221 = vpow.pop %v2220
      %v2222 = vmul.f32 %v2139, 1.442695
      %v2223 = vpow.pop %v2222
      %v2224 = vmul.f32 %v2140, 1.442695
      %v2225 = vpow.pop %v2224
      %v2226 = vmul.f32 %v2141, 1.442695
      %v2227 = vpow.pop %v2226
      %v2228 = vmul.f32 %v2142, 1.442695
      %v2229 = vpow.pop %v2228
      %v2230 = vmul.f32 %v2143, 1.442695
      %v2231 = vpow.pop %v2230
      %v2232 = vmul.f32 %v2144, 1.442695
      %v2233 = vpow.pop %v2232
      %v2234 = vmul.f32 %v2145, 1.442695
      %v2235 = vpow.pop %v2234
      %v2236 = vmul.f32 %v2146, 1.442695
      %v2237 = vpow.pop %v2236
      %v2238 = vmul.f32 %v2147, 1.442695
      %v2239 = vpow.pop %v2238
      %v2240 = vmul.f32 %v2148, 1.442695
      %v2241 = vpow.pop %v2240
      %v2242 = vmul.f32 %v2149, 1.442695
      %v2243 = vpow.pop %v2242
      %v2244 = vmul.f32 %v2150, 1.442695
      %v2245 = vpow.pop %v2244
      %v2246 = vmul.f32 %v2151, 1.442695
      %v2247 = vpow.pop %v2246
      %v2248 = vsub.f32 %v2153, 1.0
      %v2249 = vsub.f32 %v2155, 1.0
      %v2250 = vsub.f32 %v2157, 1.0
      %v2251 = vsub.f32 %v2159, 1.0
      %v2252 = vsub.f32 %v2161, 1.0
      %v2253 = vsub.f32 %v2163, 1.0
      %v2254 = vsub.f32 %v2165, 1.0
      %v2255 = vsub.f32 %v2167, 1.0
      %v2256 = vsub.f32 %v2169, 1.0
      %v2257 = vsub.f32 %v2171, 1.0
      %v2258 = vsub.f32 %v2173, 1.0
      %v2259 = vsub.f32 %v2175, 1.0
      %v2260 = vsub.f32 %v2177, 1.0
      %v2261 = vsub.f32 %v2179, 1.0
      %v2262 = vsub.f32 %v2181, 1.0
      %v2263 = vsub.f32 %v2183, 1.0
      %v2264 = vsub.f32 %v2185, 1.0
      %v2265 = vsub.f32 %v2187, 1.0
      %v2266 = vsub.f32 %v2189, 1.0
      %v2267 = vsub.f32 %v2191, 1.0
      %v2268 = vsub.f32 %v2193, 1.0
      %v2269 = vsub.f32 %v2195, 1.0
      %v2270 = vsub.f32 %v2197, 1.0
      %v2271 = vsub.f32 %v2199, 1.0
      %v2272 = vsub.f32 %v2201, 1.0
      %v2273 = vsub.f32 %v2203, 1.0
      %v2274 = vsub.f32 %v2205, 1.0
      %v2275 = vsub.f32 %v2207, 1.0
      %v2276 = vsub.f32 %v2209, 1.0
      %v2277 = vsub.f32 %v2211, 1.0
      %v2278 = vsub.f32 %v2213, 1.0
      %v2279 = vsub.f32 %v2215, 1.0
      %v2280 = vsub.f32 %v2217, 1.0
      %v2281 = vsub.f32 %v2219, 1.0
      %v2282 = vsub.f32 %v2221, 1.0
      %v2283 = vsub.f32 %v2223, 1.0
      %v2284 = vsub.f32 %v2225, 1.0
      %v2285 = vsub.f32 %v2227, 1.0
      %v2286 = vsub.f32 %v2229, 1.0
      %v2287 = vsub.f32 %v2231, 1.0
      %v2288 = vsub.f32 %v2233, 1.0
      %v2289 = vsub.f32 %v2235, 1.0
      %v2290 = vsub.f32 %v2237, 1.0
      %v2291 = vsub.f32 %v2239, 1.0
      %v2292 = vsub.f32 %v2241, 1.0
      %v2293 = vsub.f32 %v2243, 1.0
      %v2294 = vsub.f32 %v2245, 1.0
      %v2295 = vsub.f32 %v2247, 1.0
      %v2296 = vsel %vm2056, %v1457, %v2248
      %v2297 = vsel %vm2057, %v1573, %v2249
      %v2298 = vsel %vm2058, %v1689, %v2250
      %v2299 = vsel %vm2059, %v1805, %v2251
      %v2300 = vsel %vm2060, %v1921, %v2252
      %v2301 = vsel %vm2061, %v2037, %v2253
      %v2302 = vsel %vm2062, %v1459, %v2254
      %v2303 = vsel %vm2063, %v1575, %v2255
      %v2304 = vsel %vm2064, %v1691, %v2256
      %v2305 = vsel %vm2065, %v1807, %v2257
      %v2306 = vsel %vm2066, %v1923, %v2258
      %v2307 = vsel %vm2067, %v2039, %v2259
      %v2308 = vsel %vm2068, %v1462, %v2260
      %v2309 = vsel %vm2069, %v1578, %v2261
      %v2310 = vsel %vm2070, %v1694, %v2262
      %v2311 = vsel %vm2071, %v1810, %v2263
      %v2312 = vsel %vm2072, %v1926, %v2264
      %v2313 = vsel %vm2073, %v2042, %v2265
      %v2314 = vsel %vm2074, %v1464, %v2266
      %v2315 = vsel %vm2075, %v1580, %v2267
      %v2316 = vsel %vm2076, %v1696, %v2268
      %v2317 = vsel %vm2077, %v1812, %v2269
      %v2318 = vsel %vm2078, %v1928, %v2270
      %v2319 = vsel %vm2079, %v2044, %v2271
      %v2320 = vsel %vm2080, %v1467, %v2272
      %v2321 = vsel %vm2081, %v1583, %v2273
      %v2322 = vsel %vm2082, %v1699, %v2274
      %v2323 = vsel %vm2083, %v1815, %v2275
      %v2324 = vsel %vm2084, %v1931, %v2276
      %v2325 = vsel %vm2085, %v2047, %v2277
      %v2326 = vsel %vm2086, %v1469, %v2278
      %v2327 = vsel %vm2087, %v1585, %v2279
      %v2328 = vsel %vm2088, %v1701, %v2280
      %v2329 = vsel %vm2089, %v1817, %v2281
      %v2330 = vsel %vm2090, %v1933, %v2282
      %v2331 = vsel %vm2091, %v2049, %v2283
      %v2332 = vsel %vm2092, %v1472, %v2284
      %v2333 = vsel %vm2093, %v1588, %v2285
      %v2334 = vsel %vm2094, %v1704, %v2286
      %v2335 = vsel %vm2095, %v1820, %v2287
      %v2336 = vsel %vm2096, %v1936, %v2288
      %v2337 = vsel %vm2097, %v2052, %v2289
      %v2338 = vsel %vm2098, %v1474, %v2290
      %v2339 = vsel %vm2099, %v1590, %v2291
      %v2340 = vsel %vm2100, %v1706, %v2292
      %v2341 = vsel %vm2101, %v1822, %v2293
      %v2342 = vsel %vm2102, %v1938, %v2294
      %v2343 = vsel %vm2103, %v2054, %v2295
      %v2344 = vpack.c.bf16 %v2302, %v2296
      %v2345 = vpack.c.bf16 %v2303, %v2297
      %v2346 = vpack.c.bf16 %v2304, %v2298
      %v2347 = vpack.c.bf16 %v2305, %v2299
      %v2348 = vpack.c.bf16 %v2306, %v2300
      %v2349 = vpack.c.bf16 %v2307, %v2301
      %v2350 = vpack.c.bf16 %v2314, %v2308
      %v2351 = vpack.c.bf16 %v2315, %v2309
      %v2352 = vpack.c.bf16 %v2316, %v2310
      %v2353 = vpack.c.bf16 %v2317, %v2311
      %v2354 = vpack.c.bf16 %v2318, %v2312
      %v2355 = vpack.c.bf16 %v2319, %v2313
      %v2356 = vpack.c.bf16 %v2326, %v2320
      %v2357 = vpack.c.bf16 %v2327, %v2321
      %v2358 = vpack.c.bf16 %v2328, %v2322
      %v2359 = vpack.c.bf16 %v2329, %v2323
      %v2360 = vpack.c.bf16 %v2330, %v2324
      %v2361 = vpack.c.bf16 %v2331, %v2325
      %v2362 = vpack.c.bf16 %v2338, %v2332
      %v2363 = vpack.c.bf16 %v2339, %v2333
      %v2364 = vpack.c.bf16 %v2340, %v2334
      %v2365 = vpack.c.bf16 %v2341, %v2335
      %v2366 = vpack.c.bf16 %v2342, %v2336
      %v2367 = vpack.c.bf16 %v2343, %v2337
      %v2368 = vld [vmem:[%s3] sm:$0xff]
      %v2369 = vld [vmem:[%s3 + $0x8] sm:$0xff]
      %v2370 = vld [vmem:[%s3 + $0x10] sm:$0xff]
      %v2371 = vld [vmem:[%s3 + $0x18] sm:$0xff]
      %v2372 = vld [vmem:[%s3 + $0x20] sm:$0xff]
      %v2373 = vld [vmem:[%s3 + $0x28] sm:$0xff]
      %v2374 = vld [vmem:[%s3 + $0x30] sm:$0xff]
      %v2375 = vld [vmem:[%s3 + $0x38] sm:$0xff]
      %v2376 = vld [vmem:[%s3 + $0x40] sm:$0xff]
      %v2377 = vld [vmem:[%s3 + $0x48] sm:$0xff]
      %v2378 = vld [vmem:[%s3 + $0x50] sm:$0xff]
      %v2379 = vld [vmem:[%s3 + $0x58] sm:$0xff]
      %v2380 = vld [vmem:[%s3 + $0x60] sm:$0xff]
      %v2381 = vld [vmem:[%s3 + $0x68] sm:$0xff]
      %v2382 = vld [vmem:[%s3 + $0x70] sm:$0xff]
      %v2383 = vld [vmem:[%s3 + $0x78] sm:$0xff]
      %v2384 = vld [vmem:[%s3 + $0x80] sm:$0xff]
      %v2385 = vld [vmem:[%s3 + $0x88] sm:$0xff]
      %v2386 = vld [vmem:[%s3 + $0x90] sm:$0xff]
      %v2387 = vld [vmem:[%s3 + $0x98] sm:$0xff]
      %v2388 = vld [vmem:[%s3 + $0xa0] sm:$0xff]
      %v2389 = vld [vmem:[%s3 + $0xa8] sm:$0xff]
      %v2390 = vld [vmem:[%s3 + $0xb0] sm:$0xff]
      %v2391 = vld [vmem:[%s3 + $0xb8] sm:$0xff]
      %v2392 = vld [vmem:[%s3 + $0xc0] sm:$0xff]
      %v2393 = vld [vmem:[%s3 + $0xc8] sm:$0xff]
      %v2394 = vld [vmem:[%s3 + $0xd0] sm:$0xff]
      %v2395 = vld [vmem:[%s3 + $0xd8] sm:$0xff]
      %v2396 = vld [vmem:[%s3 + $0xe0] sm:$0xff]
      %v2397 = vld [vmem:[%s3 + $0xe8] sm:$0xff]
      %v2398 = vld [vmem:[%s3 + $0xf0] sm:$0xff]
      %v2399 = vld [vmem:[%s3 + $0xf8] sm:$0xff]
      %v2400 = vld [vmem:[%s3 + $0x100] sm:$0xff]
      %v2401 = vld [vmem:[%s3 + $0x108] sm:$0xff]
      %v2402 = vld [vmem:[%s3 + $0x110] sm:$0xff]
      %v2403 = vld [vmem:[%s3 + $0x118] sm:$0xff]
      %v2404 = vld [vmem:[%s3 + $0x120] sm:$0xff]
      %v2405 = vld [vmem:[%s3 + $0x128] sm:$0xff]
      %v2406 = vld [vmem:[%s3 + $0x130] sm:$0xff]
      %v2407 = vld [vmem:[%s3 + $0x138] sm:$0xff]
      %v2408 = vld [vmem:[%s3 + $0x140] sm:$0xff]
      %v2409 = vld [vmem:[%s3 + $0x148] sm:$0xff]
      %v2410 = vld [vmem:[%s3 + $0x150] sm:$0xff]
      %v2411 = vld [vmem:[%s3 + $0x158] sm:$0xff]
      %v2412 = vld [vmem:[%s3 + $0x160] sm:$0xff]
      %v2413 = vld [vmem:[%s3 + $0x168] sm:$0xff]
      %v2414 = vld [vmem:[%s3 + $0x170] sm:$0xff]
      %v2415 = vld [vmem:[%s3 + $0x178] sm:$0xff]
      %v2416 = vld [vmem:[%s3 + $0x180] sm:$0xff]
      %v2417 = vld [vmem:[%s3 + $0x188] sm:$0xff]
      %v2418 = vld [vmem:[%s3 + $0x190] sm:$0xff]
      %v2419 = vld [vmem:[%s3 + $0x198] sm:$0xff]
      %v2420 = vld [vmem:[%s3 + $0x1a0] sm:$0xff]
      %v2421 = vld [vmem:[%s3 + $0x1a8] sm:$0xff]
      %v2422 = vld [vmem:[%s3 + $0x1b0] sm:$0xff]
      %v2423 = vld [vmem:[%s3 + $0x1b8] sm:$0xff]
      %v2424 = vld [vmem:[%s3 + $0x1c0] sm:$0xff]
      %v2425 = vld [vmem:[%s3 + $0x1c8] sm:$0xff]
      %v2426 = vld [vmem:[%s3 + $0x1d0] sm:$0xff]
      %v2427 = vld [vmem:[%s3 + $0x1d8] sm:$0xff]
      %v2428 = vld [vmem:[%s3 + $0x1e0] sm:$0xff]
      %v2429 = vld [vmem:[%s3 + $0x1e8] sm:$0xff]
      %v2430 = vld [vmem:[%s3 + $0x1f0] sm:$0xff]
      %v2431 = vld [vmem:[%s3 + $0x1f8] sm:$0xff]
      %v2432 = vld [vmem:[%s3 + $0x200] sm:$0xff]
      %v2433 = vld [vmem:[%s3 + $0x208] sm:$0xff]
      %v2434 = vld [vmem:[%s3 + $0x210] sm:$0xff]
      %v2435 = vld [vmem:[%s3 + $0x218] sm:$0xff]
      %v2436 = vld [vmem:[%s3 + $0x220] sm:$0xff]
      %v2437 = vld [vmem:[%s3 + $0x228] sm:$0xff]
      %v2438 = vld [vmem:[%s3 + $0x230] sm:$0xff]
      %v2439 = vld [vmem:[%s3 + $0x238] sm:$0xff]
      %v2440 = vld [vmem:[%s3 + $0x240] sm:$0xff]
      %v2441 = vld [vmem:[%s3 + $0x248] sm:$0xff]
      %v2442 = vld [vmem:[%s3 + $0x250] sm:$0xff]
      %v2443 = vld [vmem:[%s3 + $0x258] sm:$0xff]
      %v2444 = vld [vmem:[%s3 + $0x260] sm:$0xff]
      %v2445 = vld [vmem:[%s3 + $0x268] sm:$0xff]
      %v2446 = vld [vmem:[%s3 + $0x270] sm:$0xff]
      %v2447 = vld [vmem:[%s3 + $0x278] sm:$0xff]
      %v2448 = vld [vmem:[%s3 + $0x280] sm:$0xff]
      %v2449 = vld [vmem:[%s3 + $0x288] sm:$0xff]
      %v2450 = vld [vmem:[%s3 + $0x290] sm:$0xff]
      %v2451 = vld [vmem:[%s3 + $0x298] sm:$0xff]
      %v2452 = vld [vmem:[%s3 + $0x2a0] sm:$0xff]
      %v2453 = vld [vmem:[%s3 + $0x2a8] sm:$0xff]
      %v2454 = vld [vmem:[%s3 + $0x2b0] sm:$0xff]
      %v2455 = vld [vmem:[%s3 + $0x2b8] sm:$0xff]
      %v2456 = vld [vmem:[%s3 + $0x2c0] sm:$0xff]
      %v2457 = vld [vmem:[%s3 + $0x2c8] sm:$0xff]
      %v2458 = vld [vmem:[%s3 + $0x2d0] sm:$0xff]
      %v2459 = vld [vmem:[%s3 + $0x2d8] sm:$0xff]
      %v2460 = vld [vmem:[%s3 + $0x2e0] sm:$0xff]
      %v2461 = vld [vmem:[%s3 + $0x2e8] sm:$0xff]
      %v2462 = vld [vmem:[%s3 + $0x2f0] sm:$0xff]
      %v2463 = vld [vmem:[%s3 + $0x2f8] sm:$0xff]
      %v2464 = vld [vmem:[%s3 + $0x300] sm:$0xff]
      %v2465 = vld [vmem:[%s3 + $0x308] sm:$0xff]
      %v2466 = vld [vmem:[%s3 + $0x310] sm:$0xff]
      %v2467 = vld [vmem:[%s3 + $0x318] sm:$0xff]
      %v2468 = vld [vmem:[%s3 + $0x320] sm:$0xff]
      %v2469 = vld [vmem:[%s3 + $0x328] sm:$0xff]
      %v2470 = vld [vmem:[%s3 + $0x330] sm:$0xff]
      %v2471 = vld [vmem:[%s3 + $0x338] sm:$0xff]
      %v2472 = vld [vmem:[%s3 + $0x340] sm:$0xff]
      %v2473 = vld [vmem:[%s3 + $0x348] sm:$0xff]
      %v2474 = vld [vmem:[%s3 + $0x350] sm:$0xff]
      %v2475 = vld [vmem:[%s3 + $0x358] sm:$0xff]
      %v2476 = vld [vmem:[%s3 + $0x360] sm:$0xff]
      %v2477 = vld [vmem:[%s3 + $0x368] sm:$0xff]
      %v2478 = vld [vmem:[%s3 + $0x370] sm:$0xff]
      %v2479 = vld [vmem:[%s3 + $0x378] sm:$0xff]
      %v2480 = vld [vmem:[%s3 + $0x380] sm:$0xff]
      %v2481 = vld [vmem:[%s3 + $0x388] sm:$0xff]
      %v2482 = vld [vmem:[%s3 + $0x390] sm:$0xff]
      %v2483 = vld [vmem:[%s3 + $0x398] sm:$0xff]
      %v2484 = vld [vmem:[%s3 + $0x3a0] sm:$0xff]
      %v2485 = vld [vmem:[%s3 + $0x3a8] sm:$0xff]
      %v2486 = vld [vmem:[%s3 + $0x3b0] sm:$0xff]
      %v2487 = vld [vmem:[%s3 + $0x3b8] sm:$0xff]
      %v2488 = vld [vmem:[%s3 + $0x3c0] sm:$0xff]
      %v2489 = vld [vmem:[%s3 + $0x3c8] sm:$0xff]
      %v2490 = vld [vmem:[%s3 + $0x3d0] sm:$0xff]
      %v2491 = vld [vmem:[%s3 + $0x3d8] sm:$0xff]
      %v2492 = vld [vmem:[%s3 + $0x3e0] sm:$0xff]
      %v2493 = vld [vmem:[%s3 + $0x3e8] sm:$0xff]
      %v2494 = vld [vmem:[%s3 + $0x3f0] sm:$0xff]
      %v2495 = vld [vmem:[%s3 + $0x3f8] sm:$0xff]
      %v2496 = vld [vmem:[%s3 + $0x400] sm:$0xff]
      %v2497 = vld [vmem:[%s3 + $0x408] sm:$0xff]
      %v2498 = vld [vmem:[%s3 + $0x410] sm:$0xff]
      %v2499 = vld [vmem:[%s3 + $0x418] sm:$0xff]
      %v2500 = vld [vmem:[%s3 + $0x420] sm:$0xff]
      %v2501 = vld [vmem:[%s3 + $0x428] sm:$0xff]
      %v2502 = vld [vmem:[%s3 + $0x430] sm:$0xff]
      %v2503 = vld [vmem:[%s3 + $0x438] sm:$0xff]
      %v2504 = vld [vmem:[%s3 + $0x440] sm:$0xff]
      %v2505 = vld [vmem:[%s3 + $0x448] sm:$0xff]
      %v2506 = vld [vmem:[%s3 + $0x450] sm:$0xff]
      %v2507 = vld [vmem:[%s3 + $0x458] sm:$0xff]
      %v2508 = vld [vmem:[%s3 + $0x460] sm:$0xff]
      %v2509 = vld [vmem:[%s3 + $0x468] sm:$0xff]
      %v2510 = vld [vmem:[%s3 + $0x470] sm:$0xff]
      %v2511 = vld [vmem:[%s3 + $0x478] sm:$0xff]
      %v2512 = vld [vmem:[%s3 + $0x480] sm:$0xff]
      %v2513 = vld [vmem:[%s3 + $0x488] sm:$0xff]
      %v2514 = vld [vmem:[%s3 + $0x490] sm:$0xff]
      %v2515 = vld [vmem:[%s3 + $0x498] sm:$0xff]
      %v2516 = vld [vmem:[%s3 + $0x4a0] sm:$0xff]
      %v2517 = vld [vmem:[%s3 + $0x4a8] sm:$0xff]
      %v2518 = vld [vmem:[%s3 + $0x4b0] sm:$0xff]
      %v2519 = vld [vmem:[%s3 + $0x4b8] sm:$0xff]
      %v2520 = vld [vmem:[%s3 + $0x4c0] sm:$0xff]
      %v2521 = vld [vmem:[%s3 + $0x4c8] sm:$0xff]
      %v2522 = vld [vmem:[%s3 + $0x4d0] sm:$0xff]
      %v2523 = vld [vmem:[%s3 + $0x4d8] sm:$0xff]
      %v2524 = vld [vmem:[%s3 + $0x4e0] sm:$0xff]
      %v2525 = vld [vmem:[%s3 + $0x4e8] sm:$0xff]
      %v2526 = vld [vmem:[%s3 + $0x4f0] sm:$0xff]
      %v2527 = vld [vmem:[%s3 + $0x4f8] sm:$0xff]
      %v2528 = vld [vmem:[%s3 + $0x500] sm:$0xff]
      %v2529 = vld [vmem:[%s3 + $0x508] sm:$0xff]
      %v2530 = vld [vmem:[%s3 + $0x510] sm:$0xff]
      %v2531 = vld [vmem:[%s3 + $0x518] sm:$0xff]
      %v2532 = vld [vmem:[%s3 + $0x520] sm:$0xff]
      %v2533 = vld [vmem:[%s3 + $0x528] sm:$0xff]
      %v2534 = vld [vmem:[%s3 + $0x530] sm:$0xff]
      %v2535 = vld [vmem:[%s3 + $0x538] sm:$0xff]
      %v2536 = vld [vmem:[%s3 + $0x540] sm:$0xff]
      %v2537 = vld [vmem:[%s3 + $0x548] sm:$0xff]
      %v2538 = vld [vmem:[%s3 + $0x550] sm:$0xff]
      %v2539 = vld [vmem:[%s3 + $0x558] sm:$0xff]
      %v2540 = vld [vmem:[%s3 + $0x560] sm:$0xff]
      %v2541 = vld [vmem:[%s3 + $0x568] sm:$0xff]
      %v2542 = vld [vmem:[%s3 + $0x570] sm:$0xff]
      %v2543 = vld [vmem:[%s3 + $0x578] sm:$0xff]
      %v2544 = vld [vmem:[%s3 + $0x580] sm:$0xff]
      %v2545 = vld [vmem:[%s3 + $0x588] sm:$0xff]
      %v2546 = vld [vmem:[%s3 + $0x590] sm:$0xff]
      %v2547 = vld [vmem:[%s3 + $0x598] sm:$0xff]
      %v2548 = vld [vmem:[%s3 + $0x5a0] sm:$0xff]
      %v2549 = vld [vmem:[%s3 + $0x5a8] sm:$0xff]
      %v2550 = vld [vmem:[%s3 + $0x5b0] sm:$0xff]
      %v2551 = vld [vmem:[%s3 + $0x5b8] sm:$0xff]
      %v2552 = vld [vmem:[%s3 + $0x5c0] sm:$0xff]
      %v2553 = vld [vmem:[%s3 + $0x5c8] sm:$0xff]
      %v2554 = vld [vmem:[%s3 + $0x5d0] sm:$0xff]
      %v2555 = vld [vmem:[%s3 + $0x5d8] sm:$0xff]
      %v2556 = vld [vmem:[%s3 + $0x5e0] sm:$0xff]
      %v2557 = vld [vmem:[%s3 + $0x5e8] sm:$0xff]
      %v2558 = vld [vmem:[%s3 + $0x5f0] sm:$0xff]
      %v2559 = vld [vmem:[%s3 + $0x5f8] sm:$0xff]
      %v2752 = vunpack.c.l.b16 %v2368
      %v2753 = vunpack.c.h.b16 %v2368
      %v2754 = vunpack.c.l.b16 %v2369
      %v2755 = vunpack.c.h.b16 %v2369
      %v2756 = vunpack.c.l.b16 %v2370
      %v2757 = vunpack.c.h.b16 %v2370
      %v2758 = vunpack.c.l.b16 %v2371
      %v2759 = vunpack.c.h.b16 %v2371
      %v2760 = vunpack.c.l.b16 %v2372
      %v2761 = vunpack.c.h.b16 %v2372
      %v2762 = vunpack.c.l.b16 %v2373
      %v2763 = vunpack.c.h.b16 %v2373
      %v2764 = vunpack.c.l.b16 %v2374
      %v2765 = vunpack.c.h.b16 %v2374
      %v2766 = vunpack.c.l.b16 %v2375
      %v2767 = vunpack.c.h.b16 %v2375
      %v2768 = vunpack.c.l.b16 %v2376
      %v2769 = vunpack.c.h.b16 %v2376
      %v2770 = vunpack.c.l.b16 %v2377
      %v2771 = vunpack.c.h.b16 %v2377
      %v2772 = vunpack.c.l.b16 %v2378
      %v2773 = vunpack.c.h.b16 %v2378
      %v2774 = vunpack.c.l.b16 %v2379
      %v2775 = vunpack.c.h.b16 %v2379
      %v2776 = vunpack.c.l.b16 %v2380
      %v2777 = vunpack.c.h.b16 %v2380
      %v2778 = vunpack.c.l.b16 %v2381
      %v2779 = vunpack.c.h.b16 %v2381
      %v2780 = vunpack.c.l.b16 %v2382
      %v2781 = vunpack.c.h.b16 %v2382
      %v2782 = vunpack.c.l.b16 %v2383
      %v2783 = vunpack.c.h.b16 %v2383
      %v2784 = vunpack.c.l.b16 %v2384
      %v2785 = vunpack.c.h.b16 %v2384
      %v2786 = vunpack.c.l.b16 %v2385
      %v2787 = vunpack.c.h.b16 %v2385
      %v2788 = vunpack.c.l.b16 %v2386
      %v2789 = vunpack.c.h.b16 %v2386
      %v2790 = vunpack.c.l.b16 %v2387
      %v2791 = vunpack.c.h.b16 %v2387
      %v2792 = vunpack.c.l.b16 %v2388
      %v2793 = vunpack.c.h.b16 %v2388
      %v2794 = vunpack.c.l.b16 %v2389
      %v2795 = vunpack.c.h.b16 %v2389
      %v2796 = vunpack.c.l.b16 %v2390
      %v2797 = vunpack.c.h.b16 %v2390
      %v2798 = vunpack.c.l.b16 %v2391
      %v2799 = vunpack.c.h.b16 %v2391
      %v2800 = vunpack.c.l.b16 %v2392
      %v2801 = vunpack.c.h.b16 %v2392
      %v2802 = vunpack.c.l.b16 %v2393
      %v2803 = vunpack.c.h.b16 %v2393
      %v2804 = vunpack.c.l.b16 %v2394
      %v2805 = vunpack.c.h.b16 %v2394
      %v2806 = vunpack.c.l.b16 %v2395
      %v2807 = vunpack.c.h.b16 %v2395
      %v2808 = vunpack.c.l.b16 %v2396
      %v2809 = vunpack.c.h.b16 %v2396
      %v2810 = vunpack.c.l.b16 %v2397
      %v2811 = vunpack.c.h.b16 %v2397
      %v2812 = vunpack.c.l.b16 %v2398
      %v2813 = vunpack.c.h.b16 %v2398
      %v2814 = vunpack.c.l.b16 %v2399
      %v2815 = vunpack.c.h.b16 %v2399
      %v2816 = vunpack.c.l.b16 %v2400
      %v2817 = vunpack.c.h.b16 %v2400
      %v2818 = vunpack.c.l.b16 %v2401
      %v2819 = vunpack.c.h.b16 %v2401
      %v2820 = vunpack.c.l.b16 %v2402
      %v2821 = vunpack.c.h.b16 %v2402
      %v2822 = vunpack.c.l.b16 %v2403
      %v2823 = vunpack.c.h.b16 %v2403
      %v2824 = vunpack.c.l.b16 %v2404
      %v2825 = vunpack.c.h.b16 %v2404
      %v2826 = vunpack.c.l.b16 %v2405
      %v2827 = vunpack.c.h.b16 %v2405
      %v2828 = vunpack.c.l.b16 %v2406
      %v2829 = vunpack.c.h.b16 %v2406
      %v2830 = vunpack.c.l.b16 %v2407
      %v2831 = vunpack.c.h.b16 %v2407
      %v2832 = vunpack.c.l.b16 %v2408
      %v2833 = vunpack.c.h.b16 %v2408
      %v2834 = vunpack.c.l.b16 %v2409
      %v2835 = vunpack.c.h.b16 %v2409
      %v2836 = vunpack.c.l.b16 %v2410
      %v2837 = vunpack.c.h.b16 %v2410
      %v2838 = vunpack.c.l.b16 %v2411
      %v2839 = vunpack.c.h.b16 %v2411
      %v2840 = vunpack.c.l.b16 %v2412
      %v2841 = vunpack.c.h.b16 %v2412
      %v2842 = vunpack.c.l.b16 %v2413
      %v2843 = vunpack.c.h.b16 %v2413
      %v2844 = vunpack.c.l.b16 %v2414
      %v2845 = vunpack.c.h.b16 %v2414
      %v2846 = vunpack.c.l.b16 %v2415
      %v2847 = vunpack.c.h.b16 %v2415
      %v2848 = vunpack.c.l.b16 %v2416
      %v2849 = vunpack.c.h.b16 %v2416
      %v2850 = vunpack.c.l.b16 %v2417
      %v2851 = vunpack.c.h.b16 %v2417
      %v2852 = vunpack.c.l.b16 %v2418
      %v2853 = vunpack.c.h.b16 %v2418
      %v2854 = vunpack.c.l.b16 %v2419
      %v2855 = vunpack.c.h.b16 %v2419
      %v2856 = vunpack.c.l.b16 %v2420
      %v2857 = vunpack.c.h.b16 %v2420
      %v2858 = vunpack.c.l.b16 %v2421
      %v2859 = vunpack.c.h.b16 %v2421
      %v2860 = vunpack.c.l.b16 %v2422
      %v2861 = vunpack.c.h.b16 %v2422
      %v2862 = vunpack.c.l.b16 %v2423
      %v2863 = vunpack.c.h.b16 %v2423
      %v2864 = vunpack.c.l.b16 %v2424
      %v2865 = vunpack.c.h.b16 %v2424
      %v2866 = vunpack.c.l.b16 %v2425
      %v2867 = vunpack.c.h.b16 %v2425
      %v2868 = vunpack.c.l.b16 %v2426
      %v2869 = vunpack.c.h.b16 %v2426
      %v2870 = vunpack.c.l.b16 %v2427
      %v2871 = vunpack.c.h.b16 %v2427
      %v2872 = vunpack.c.l.b16 %v2428
      %v2873 = vunpack.c.h.b16 %v2428
      %v2874 = vunpack.c.l.b16 %v2429
      %v2875 = vunpack.c.h.b16 %v2429
      %v2876 = vunpack.c.l.b16 %v2430
      %v2877 = vunpack.c.h.b16 %v2430
      %v2878 = vunpack.c.l.b16 %v2431
      %v2879 = vunpack.c.h.b16 %v2431
      %v2880 = vunpack.c.l.b16 %v2432
      %v2881 = vunpack.c.h.b16 %v2432
      %v2882 = vunpack.c.l.b16 %v2433
      %v2883 = vunpack.c.h.b16 %v2433
      %v2884 = vunpack.c.l.b16 %v2434
      %v2885 = vunpack.c.h.b16 %v2434
      %v2886 = vunpack.c.l.b16 %v2435
      %v2887 = vunpack.c.h.b16 %v2435
      %v2888 = vunpack.c.l.b16 %v2436
      %v2889 = vunpack.c.h.b16 %v2436
      %v2890 = vunpack.c.l.b16 %v2437
      %v2891 = vunpack.c.h.b16 %v2437
      %v2892 = vunpack.c.l.b16 %v2438
      %v2893 = vunpack.c.h.b16 %v2438
      %v2894 = vunpack.c.l.b16 %v2439
      %v2895 = vunpack.c.h.b16 %v2439
      %v2896 = vunpack.c.l.b16 %v2440
      %v2897 = vunpack.c.h.b16 %v2440
      %v2898 = vunpack.c.l.b16 %v2441
      %v2899 = vunpack.c.h.b16 %v2441
      %v2900 = vunpack.c.l.b16 %v2442
      %v2901 = vunpack.c.h.b16 %v2442
      %v2902 = vunpack.c.l.b16 %v2443
      %v2903 = vunpack.c.h.b16 %v2443
      %v2904 = vunpack.c.l.b16 %v2444
      %v2905 = vunpack.c.h.b16 %v2444
      %v2906 = vunpack.c.l.b16 %v2445
      %v2907 = vunpack.c.h.b16 %v2445
      %v2908 = vunpack.c.l.b16 %v2446
      %v2909 = vunpack.c.h.b16 %v2446
      %v2910 = vunpack.c.l.b16 %v2447
      %v2911 = vunpack.c.h.b16 %v2447
      %v2912 = vunpack.c.l.b16 %v2448
      %v2913 = vunpack.c.h.b16 %v2448
      %v2914 = vunpack.c.l.b16 %v2449
      %v2915 = vunpack.c.h.b16 %v2449
      %v2916 = vunpack.c.l.b16 %v2450
      %v2917 = vunpack.c.h.b16 %v2450
      %v2918 = vunpack.c.l.b16 %v2451
      %v2919 = vunpack.c.h.b16 %v2451
      %v2920 = vunpack.c.l.b16 %v2452
      %v2921 = vunpack.c.h.b16 %v2452
      %v2922 = vunpack.c.l.b16 %v2453
      %v2923 = vunpack.c.h.b16 %v2453
      %v2924 = vunpack.c.l.b16 %v2454
      %v2925 = vunpack.c.h.b16 %v2454
      %v2926 = vunpack.c.l.b16 %v2455
      %v2927 = vunpack.c.h.b16 %v2455
      %v2928 = vunpack.c.l.b16 %v2456
      %v2929 = vunpack.c.h.b16 %v2456
      %v2930 = vunpack.c.l.b16 %v2457
      %v2931 = vunpack.c.h.b16 %v2457
      %v2932 = vunpack.c.l.b16 %v2458
      %v2933 = vunpack.c.h.b16 %v2458
      %v2934 = vunpack.c.l.b16 %v2459
      %v2935 = vunpack.c.h.b16 %v2459
      %v2936 = vunpack.c.l.b16 %v2460
      %v2937 = vunpack.c.h.b16 %v2460
      %v2938 = vunpack.c.l.b16 %v2461
      %v2939 = vunpack.c.h.b16 %v2461
      %v2940 = vunpack.c.l.b16 %v2462
      %v2941 = vunpack.c.h.b16 %v2462
      %v2942 = vunpack.c.l.b16 %v2463
      %v2943 = vunpack.c.h.b16 %v2463
      %v2944 = vunpack.c.l.b16 %v2464
      %v2945 = vunpack.c.h.b16 %v2464
      %v2946 = vunpack.c.l.b16 %v2465
      %v2947 = vunpack.c.h.b16 %v2465
      %v2948 = vunpack.c.l.b16 %v2466
      %v2949 = vunpack.c.h.b16 %v2466
      %v2950 = vunpack.c.l.b16 %v2467
      %v2951 = vunpack.c.h.b16 %v2467
      %v2952 = vunpack.c.l.b16 %v2468
      %v2953 = vunpack.c.h.b16 %v2468
      %v2954 = vunpack.c.l.b16 %v2469
      %v2955 = vunpack.c.h.b16 %v2469
      %v2956 = vunpack.c.l.b16 %v2470
      %v2957 = vunpack.c.h.b16 %v2470
      %v2958 = vunpack.c.l.b16 %v2471
      %v2959 = vunpack.c.h.b16 %v2471
      %v2960 = vunpack.c.l.b16 %v2472
      %v2961 = vunpack.c.h.b16 %v2472
      %v2962 = vunpack.c.l.b16 %v2473
      %v2963 = vunpack.c.h.b16 %v2473
      %v2964 = vunpack.c.l.b16 %v2474
      %v2965 = vunpack.c.h.b16 %v2474
      %v2966 = vunpack.c.l.b16 %v2475
      %v2967 = vunpack.c.h.b16 %v2475
      %v2968 = vunpack.c.l.b16 %v2476
      %v2969 = vunpack.c.h.b16 %v2476
      %v2970 = vunpack.c.l.b16 %v2477
      %v2971 = vunpack.c.h.b16 %v2477
      %v2972 = vunpack.c.l.b16 %v2478
      %v2973 = vunpack.c.h.b16 %v2478
      %v2974 = vunpack.c.l.b16 %v2479
      %v2975 = vunpack.c.h.b16 %v2479
      %v2976 = vunpack.c.l.b16 %v2480
      %v2977 = vunpack.c.h.b16 %v2480
      %v2978 = vunpack.c.l.b16 %v2481
      %v2979 = vunpack.c.h.b16 %v2481
      %v2980 = vunpack.c.l.b16 %v2482
      %v2981 = vunpack.c.h.b16 %v2482
      %v2982 = vunpack.c.l.b16 %v2483
      %v2983 = vunpack.c.h.b16 %v2483
      %v2984 = vunpack.c.l.b16 %v2484
      %v2985 = vunpack.c.h.b16 %v2484
      %v2986 = vunpack.c.l.b16 %v2485
      %v2987 = vunpack.c.h.b16 %v2485
      %v2988 = vunpack.c.l.b16 %v2486
      %v2989 = vunpack.c.h.b16 %v2486
      %v2990 = vunpack.c.l.b16 %v2487
      %v2991 = vunpack.c.h.b16 %v2487
      %v2992 = vunpack.c.l.b16 %v2488
      %v2993 = vunpack.c.h.b16 %v2488
      %v2994 = vunpack.c.l.b16 %v2489
      %v2995 = vunpack.c.h.b16 %v2489
      %v2996 = vunpack.c.l.b16 %v2490
      %v2997 = vunpack.c.h.b16 %v2490
      %v2998 = vunpack.c.l.b16 %v2491
      %v2999 = vunpack.c.h.b16 %v2491
      %v3000 = vunpack.c.l.b16 %v2492
      %v3001 = vunpack.c.h.b16 %v2492
      %v3002 = vunpack.c.l.b16 %v2493
      %v3003 = vunpack.c.h.b16 %v2493
      %v3004 = vunpack.c.l.b16 %v2494
      %v3005 = vunpack.c.h.b16 %v2494
      %v3006 = vunpack.c.l.b16 %v2495
      %v3007 = vunpack.c.h.b16 %v2495
      %v3008 = vunpack.c.l.b16 %v2496
      %v3009 = vunpack.c.h.b16 %v2496
      %v3010 = vunpack.c.l.b16 %v2497
      %v3011 = vunpack.c.h.b16 %v2497
      %v3012 = vunpack.c.l.b16 %v2498
      %v3013 = vunpack.c.h.b16 %v2498
      %v3014 = vunpack.c.l.b16 %v2499
      %v3015 = vunpack.c.h.b16 %v2499
      %v3016 = vunpack.c.l.b16 %v2500
      %v3017 = vunpack.c.h.b16 %v2500
      %v3018 = vunpack.c.l.b16 %v2501
      %v3019 = vunpack.c.h.b16 %v2501
      %v3020 = vunpack.c.l.b16 %v2502
      %v3021 = vunpack.c.h.b16 %v2502
      %v3022 = vunpack.c.l.b16 %v2503
      %v3023 = vunpack.c.h.b16 %v2503
      %v3024 = vunpack.c.l.b16 %v2504
      %v3025 = vunpack.c.h.b16 %v2504
      %v3026 = vunpack.c.l.b16 %v2505
      %v3027 = vunpack.c.h.b16 %v2505
      %v3028 = vunpack.c.l.b16 %v2506
      %v3029 = vunpack.c.h.b16 %v2506
      %v3030 = vunpack.c.l.b16 %v2507
      %v3031 = vunpack.c.h.b16 %v2507
      %v3032 = vunpack.c.l.b16 %v2508
      %v3033 = vunpack.c.h.b16 %v2508
      %v3034 = vunpack.c.l.b16 %v2509
      %v3035 = vunpack.c.h.b16 %v2509
      %v3036 = vunpack.c.l.b16 %v2510
      %v3037 = vunpack.c.h.b16 %v2510
      %v3038 = vunpack.c.l.b16 %v2511
      %v3039 = vunpack.c.h.b16 %v2511
      %v3040 = vunpack.c.l.b16 %v2512
      %v3041 = vunpack.c.h.b16 %v2512
      %v3042 = vunpack.c.l.b16 %v2513
      %v3043 = vunpack.c.h.b16 %v2513
      %v3044 = vunpack.c.l.b16 %v2514
      %v3045 = vunpack.c.h.b16 %v2514
      %v3046 = vunpack.c.l.b16 %v2515
      %v3047 = vunpack.c.h.b16 %v2515
      %v3048 = vunpack.c.l.b16 %v2516
      %v3049 = vunpack.c.h.b16 %v2516
      %v3050 = vunpack.c.l.b16 %v2517
      %v3051 = vunpack.c.h.b16 %v2517
      %v3052 = vunpack.c.l.b16 %v2518
      %v3053 = vunpack.c.h.b16 %v2518
      %v3054 = vunpack.c.l.b16 %v2519
      %v3055 = vunpack.c.h.b16 %v2519
      %v3056 = vunpack.c.l.b16 %v2520
      %v3057 = vunpack.c.h.b16 %v2520
      %v3058 = vunpack.c.l.b16 %v2521
      %v3059 = vunpack.c.h.b16 %v2521
      %v3060 = vunpack.c.l.b16 %v2522
      %v3061 = vunpack.c.h.b16 %v2522
      %v3062 = vunpack.c.l.b16 %v2523
      %v3063 = vunpack.c.h.b16 %v2523
      %v3064 = vunpack.c.l.b16 %v2524
      %v3065 = vunpack.c.h.b16 %v2524
      %v3066 = vunpack.c.l.b16 %v2525
      %v3067 = vunpack.c.h.b16 %v2525
      %v3068 = vunpack.c.l.b16 %v2526
      %v3069 = vunpack.c.h.b16 %v2526
      %v3070 = vunpack.c.l.b16 %v2527
      %v3071 = vunpack.c.h.b16 %v2527
      %v3072 = vunpack.c.l.b16 %v2528
      %v3073 = vunpack.c.h.b16 %v2528
      %v3074 = vunpack.c.l.b16 %v2529
      %v3075 = vunpack.c.h.b16 %v2529
      %v3076 = vunpack.c.l.b16 %v2530
      %v3077 = vunpack.c.h.b16 %v2530
      %v3078 = vunpack.c.l.b16 %v2531
      %v3079 = vunpack.c.h.b16 %v2531
      %v3080 = vunpack.c.l.b16 %v2532
      %v3081 = vunpack.c.h.b16 %v2532
      %v3082 = vunpack.c.l.b16 %v2533
      %v3083 = vunpack.c.h.b16 %v2533
      %v3084 = vunpack.c.l.b16 %v2534
      %v3085 = vunpack.c.h.b16 %v2534
      %v3086 = vunpack.c.l.b16 %v2535
      %v3087 = vunpack.c.h.b16 %v2535
      %v3088 = vunpack.c.l.b16 %v2536
      %v3089 = vunpack.c.h.b16 %v2536
      %v3090 = vunpack.c.l.b16 %v2537
      %v3091 = vunpack.c.h.b16 %v2537
      %v3092 = vunpack.c.l.b16 %v2538
      %v3093 = vunpack.c.h.b16 %v2538
      %v3094 = vunpack.c.l.b16 %v2539
      %v3095 = vunpack.c.h.b16 %v2539
      %v3096 = vunpack.c.l.b16 %v2540
      %v3097 = vunpack.c.h.b16 %v2540
      %v3098 = vunpack.c.l.b16 %v2541
      %v3099 = vunpack.c.h.b16 %v2541
      %v3100 = vunpack.c.l.b16 %v2542
      %v3101 = vunpack.c.h.b16 %v2542
      %v3102 = vunpack.c.l.b16 %v2543
      %v3103 = vunpack.c.h.b16 %v2543
      %v3104 = vunpack.c.l.b16 %v2544
      %v3105 = vunpack.c.h.b16 %v2544
      %v3106 = vunpack.c.l.b16 %v2545
      %v3107 = vunpack.c.h.b16 %v2545
      %v3108 = vunpack.c.l.b16 %v2546
      %v3109 = vunpack.c.h.b16 %v2546
      %v3110 = vunpack.c.l.b16 %v2547
      %v3111 = vunpack.c.h.b16 %v2547
      %v3112 = vunpack.c.l.b16 %v2548
      %v3113 = vunpack.c.h.b16 %v2548
      %v3114 = vunpack.c.l.b16 %v2549
      %v3115 = vunpack.c.h.b16 %v2549
      %v3116 = vunpack.c.l.b16 %v2550
      %v3117 = vunpack.c.h.b16 %v2550
      %v3118 = vunpack.c.l.b16 %v2551
      %v3119 = vunpack.c.h.b16 %v2551
      %v3120 = vunpack.c.l.b16 %v2552
      %v3121 = vunpack.c.h.b16 %v2552
      %v3122 = vunpack.c.l.b16 %v2553
      %v3123 = vunpack.c.h.b16 %v2553
      %v3124 = vunpack.c.l.b16 %v2554
      %v3125 = vunpack.c.h.b16 %v2554
      %v3126 = vunpack.c.l.b16 %v2555
      %v3127 = vunpack.c.h.b16 %v2555
      %v3128 = vunpack.c.l.b16 %v2556
      %v3129 = vunpack.c.h.b16 %v2556
      %v3130 = vunpack.c.l.b16 %v2557
      %v3131 = vunpack.c.h.b16 %v2557
      %v3132 = vunpack.c.l.b16 %v2558
      %v3133 = vunpack.c.h.b16 %v2558
      %v3134 = vunpack.c.l.b16 %v2559
      %v3135 = vunpack.c.h.b16 %v2559
      %v3136 = vpack.c.b16 %v2756, %v2752
      %v3137 = vpack.c.b16 %v2757, %v2753
      %v3138 = vpack.c.b16 %v2758, %v2754
      %v3139 = vpack.c.b16 %v2759, %v2755
      %v3140 = vpack.c.b16 %v2764, %v2760
      %v3141 = vpack.c.b16 %v2765, %v2761
      %v3142 = vpack.c.b16 %v2766, %v2762
      %v3143 = vpack.c.b16 %v2767, %v2763
      %v3144 = vpack.c.b16 %v2772, %v2768
      %v3145 = vpack.c.b16 %v2773, %v2769
      %v3146 = vpack.c.b16 %v2774, %v2770
      %v3147 = vpack.c.b16 %v2775, %v2771
      %v3148 = vpack.c.b16 %v2780, %v2776
      %v3149 = vpack.c.b16 %v2781, %v2777
      %v3150 = vpack.c.b16 %v2782, %v2778
      %v3151 = vpack.c.b16 %v2783, %v2779
      %v3152 = vpack.c.b16 %v2788, %v2784
      %v3153 = vpack.c.b16 %v2789, %v2785
      %v3154 = vpack.c.b16 %v2790, %v2786
      %v3155 = vpack.c.b16 %v2791, %v2787
      %v3156 = vpack.c.b16 %v2796, %v2792
      %v3157 = vpack.c.b16 %v2797, %v2793
      %v3158 = vpack.c.b16 %v2798, %v2794
      %v3159 = vpack.c.b16 %v2799, %v2795
      %v3160 = vpack.c.b16 %v2804, %v2800
      %v3161 = vpack.c.b16 %v2805, %v2801
      %v3162 = vpack.c.b16 %v2806, %v2802
      %v3163 = vpack.c.b16 %v2807, %v2803
      %v3164 = vpack.c.b16 %v2812, %v2808
      %v3165 = vpack.c.b16 %v2813, %v2809
      %v3166 = vpack.c.b16 %v2814, %v2810
      %v3167 = vpack.c.b16 %v2815, %v2811
      %v3168 = vpack.c.b16 %v2820, %v2816
      %v3169 = vpack.c.b16 %v2821, %v2817
      %v3170 = vpack.c.b16 %v2822, %v2818
      %v3171 = vpack.c.b16 %v2823, %v2819
      %v3172 = vpack.c.b16 %v2828, %v2824
      %v3173 = vpack.c.b16 %v2829, %v2825
      %v3174 = vpack.c.b16 %v2830, %v2826
      %v3175 = vpack.c.b16 %v2831, %v2827
      %v3176 = vpack.c.b16 %v2836, %v2832
      %v3177 = vpack.c.b16 %v2837, %v2833
      %v3178 = vpack.c.b16 %v2838, %v2834
      %v3179 = vpack.c.b16 %v2839, %v2835
      %v3180 = vpack.c.b16 %v2844, %v2840
      %v3181 = vpack.c.b16 %v2845, %v2841
      %v3182 = vpack.c.b16 %v2846, %v2842
      %v3183 = vpack.c.b16 %v2847, %v2843
      %v3184 = vpack.c.b16 %v2852, %v2848
      %v3185 = vpack.c.b16 %v2853, %v2849
      %v3186 = vpack.c.b16 %v2854, %v2850
      %v3187 = vpack.c.b16 %v2855, %v2851
      %v3188 = vpack.c.b16 %v2860, %v2856
      %v3189 = vpack.c.b16 %v2861, %v2857
      %v3190 = vpack.c.b16 %v2862, %v2858
      %v3191 = vpack.c.b16 %v2863, %v2859
      %v3192 = vpack.c.b16 %v2868, %v2864
      %v3193 = vpack.c.b16 %v2869, %v2865
      %v3194 = vpack.c.b16 %v2870, %v2866
      %v3195 = vpack.c.b16 %v2871, %v2867
      %v3196 = vpack.c.b16 %v2876, %v2872
      %v3197 = vpack.c.b16 %v2877, %v2873
      %v3198 = vpack.c.b16 %v2878, %v2874
      %v3199 = vpack.c.b16 %v2879, %v2875
      %v3200 = vpack.c.b16 %v2884, %v2880
      %v3201 = vpack.c.b16 %v2885, %v2881
      %v3202 = vpack.c.b16 %v2886, %v2882
      %v3203 = vpack.c.b16 %v2887, %v2883
      %v3204 = vpack.c.b16 %v2892, %v2888
      %v3205 = vpack.c.b16 %v2893, %v2889
      %v3206 = vpack.c.b16 %v2894, %v2890
      %v3207 = vpack.c.b16 %v2895, %v2891
      %v3208 = vpack.c.b16 %v2900, %v2896
      %v3209 = vpack.c.b16 %v2901, %v2897
      %v3210 = vpack.c.b16 %v2902, %v2898
      %v3211 = vpack.c.b16 %v2903, %v2899
      %v3212 = vpack.c.b16 %v2908, %v2904
      %v3213 = vpack.c.b16 %v2909, %v2905
      %v3214 = vpack.c.b16 %v2910, %v2906
      %v3215 = vpack.c.b16 %v2911, %v2907
      %v3216 = vpack.c.b16 %v2916, %v2912
      %v3217 = vpack.c.b16 %v2917, %v2913
      %v3218 = vpack.c.b16 %v2918, %v2914
      %v3219 = vpack.c.b16 %v2919, %v2915
      %v3220 = vpack.c.b16 %v2924, %v2920
      %v3221 = vpack.c.b16 %v2925, %v2921
      %v3222 = vpack.c.b16 %v2926, %v2922
      %v3223 = vpack.c.b16 %v2927, %v2923
      %v3224 = vpack.c.b16 %v2932, %v2928
      %v3225 = vpack.c.b16 %v2933, %v2929
      %v3226 = vpack.c.b16 %v2934, %v2930
      %v3227 = vpack.c.b16 %v2935, %v2931
      %v3228 = vpack.c.b16 %v2940, %v2936
      %v3229 = vpack.c.b16 %v2941, %v2937
      %v3230 = vpack.c.b16 %v2942, %v2938
      %v3231 = vpack.c.b16 %v2943, %v2939
      %v3232 = vpack.c.b16 %v2948, %v2944
      %v3233 = vpack.c.b16 %v2949, %v2945
      %v3234 = vpack.c.b16 %v2950, %v2946
      %v3235 = vpack.c.b16 %v2951, %v2947
      %v3236 = vpack.c.b16 %v2956, %v2952
      %v3237 = vpack.c.b16 %v2957, %v2953
      %v3238 = vpack.c.b16 %v2958, %v2954
      %v3239 = vpack.c.b16 %v2959, %v2955
      %v3240 = vpack.c.b16 %v2964, %v2960
      %v3241 = vpack.c.b16 %v2965, %v2961
      %v3242 = vpack.c.b16 %v2966, %v2962
      %v3243 = vpack.c.b16 %v2967, %v2963
      %v3244 = vpack.c.b16 %v2972, %v2968
      %v3245 = vpack.c.b16 %v2973, %v2969
      %v3246 = vpack.c.b16 %v2974, %v2970
      %v3247 = vpack.c.b16 %v2975, %v2971
      %v3248 = vpack.c.b16 %v2980, %v2976
      %v3249 = vpack.c.b16 %v2981, %v2977
      %v3250 = vpack.c.b16 %v2982, %v2978
      %v3251 = vpack.c.b16 %v2983, %v2979
      %v3252 = vpack.c.b16 %v2988, %v2984
      %v3253 = vpack.c.b16 %v2989, %v2985
      %v3254 = vpack.c.b16 %v2990, %v2986
      %v3255 = vpack.c.b16 %v2991, %v2987
      %v3256 = vpack.c.b16 %v2996, %v2992
      %v3257 = vpack.c.b16 %v2997, %v2993
      %v3258 = vpack.c.b16 %v2998, %v2994
      %v3259 = vpack.c.b16 %v2999, %v2995
      %v3260 = vpack.c.b16 %v3004, %v3000
      %v3261 = vpack.c.b16 %v3005, %v3001
      %v3262 = vpack.c.b16 %v3006, %v3002
      %v3263 = vpack.c.b16 %v3007, %v3003
      %v3264 = vpack.c.b16 %v3012, %v3008
      %v3265 = vpack.c.b16 %v3013, %v3009
      %v3266 = vpack.c.b16 %v3014, %v3010
      %v3267 = vpack.c.b16 %v3015, %v3011
      %v3268 = vpack.c.b16 %v3020, %v3016
      %v3269 = vpack.c.b16 %v3021, %v3017
      %v3270 = vpack.c.b16 %v3022, %v3018
      %v3271 = vpack.c.b16 %v3023, %v3019
      %v3272 = vpack.c.b16 %v3028, %v3024
      %v3273 = vpack.c.b16 %v3029, %v3025
      %v3274 = vpack.c.b16 %v3030, %v3026
      %v3275 = vpack.c.b16 %v3031, %v3027
      %v3276 = vpack.c.b16 %v3036, %v3032
      %v3277 = vpack.c.b16 %v3037, %v3033
      %v3278 = vpack.c.b16 %v3038, %v3034
      %v3279 = vpack.c.b16 %v3039, %v3035
      %v3280 = vpack.c.b16 %v3044, %v3040
      %v3281 = vpack.c.b16 %v3045, %v3041
      %v3282 = vpack.c.b16 %v3046, %v3042
      %v3283 = vpack.c.b16 %v3047, %v3043
      %v3284 = vpack.c.b16 %v3052, %v3048
      %v3285 = vpack.c.b16 %v3053, %v3049
      %v3286 = vpack.c.b16 %v3054, %v3050
      %v3287 = vpack.c.b16 %v3055, %v3051
      %v3288 = vpack.c.b16 %v3060, %v3056
      %v3289 = vpack.c.b16 %v3061, %v3057
      %v3290 = vpack.c.b16 %v3062, %v3058
      %v3291 = vpack.c.b16 %v3063, %v3059
      %v3292 = vpack.c.b16 %v3068, %v3064
      %v3293 = vpack.c.b16 %v3069, %v3065
      %v3294 = vpack.c.b16 %v3070, %v3066
      %v3295 = vpack.c.b16 %v3071, %v3067
      %v3296 = vpack.c.b16 %v3076, %v3072
      %v3297 = vpack.c.b16 %v3077, %v3073
      %v3298 = vpack.c.b16 %v3078, %v3074
      %v3299 = vpack.c.b16 %v3079, %v3075
      %v3300 = vpack.c.b16 %v3084, %v3080
      %v3301 = vpack.c.b16 %v3085, %v3081
      %v3302 = vpack.c.b16 %v3086, %v3082
      %v3303 = vpack.c.b16 %v3087, %v3083
      %v3304 = vpack.c.b16 %v3092, %v3088
      %v3305 = vpack.c.b16 %v3093, %v3089
      %v3306 = vpack.c.b16 %v3094, %v3090
      %v3307 = vpack.c.b16 %v3095, %v3091
      %v3308 = vpack.c.b16 %v3100, %v3096
      %v3309 = vpack.c.b16 %v3101, %v3097
      %v3310 = vpack.c.b16 %v3102, %v3098
      %v3311 = vpack.c.b16 %v3103, %v3099
      %v3312 = vpack.c.b16 %v3108, %v3104
      %v3313 = vpack.c.b16 %v3109, %v3105
      %v3314 = vpack.c.b16 %v3110, %v3106
      %v3315 = vpack.c.b16 %v3111, %v3107
      %v3316 = vpack.c.b16 %v3116, %v3112
      %v3317 = vpack.c.b16 %v3117, %v3113
      %v3318 = vpack.c.b16 %v3118, %v3114
      %v3319 = vpack.c.b16 %v3119, %v3115
      %v3320 = vpack.c.b16 %v3124, %v3120
      %v3321 = vpack.c.b16 %v3125, %v3121
      %v3322 = vpack.c.b16 %v3126, %v3122
      %v3323 = vpack.c.b16 %v3127, %v3123
      %v3324 = vpack.c.b16 %v3132, %v3128
      %v3325 = vpack.c.b16 %v3133, %v3129
      %v3326 = vpack.c.b16 %v3134, %v3130
      %v3327 = vpack.c.b16 %v3135, %v3131
      %3520 = vmatpush.bf16.msra.mxu0 %v3164
      %3521 = vmatpush.bf16.msra.mxu0 %v3160
      %3522 = vmatpush.bf16.msra.mxu0 %v3156
      %3523 = vmatpush.bf16.msra.mxu0 %v3152
      %3524 = vmatpush.bf16.msra.mxu0 %v3148
      %3525 = vmatpush.bf16.msra.mxu0 %v3144
      %3526 = vmatpush.bf16.msra.mxu0 %v3140
      %3527 = vmatpush.bf16.msra.mxu0 %v3136
      %3528 = vmatmul.bf16.gmra.mxu0 %v2344
      %v3529 = vpop.f32.mrf.mxu0
      %v3530 = vadd.f32 0.0, %v3529
      %v3531 = vpop.f32.mrf.mxu0
      %v3532 = vadd.f32 0.0, %v3531
      %3533 = vmatmul.bf16.gmra.mxu0 %v2350
      %v3534 = vpop.f32.mrf.mxu0
      %v3535 = vadd.f32 0.0, %v3534
      %v3536 = vpop.f32.mrf.mxu0
      %v3537 = vadd.f32 0.0, %v3536
      %3538 = vmatmul.bf16.gmra.mxu0 %v2356
      %v3539 = vpop.f32.mrf.mxu0
      %v3540 = vadd.f32 0.0, %v3539
      %v3541 = vpop.f32.mrf.mxu0
      %v3542 = vadd.f32 0.0, %v3541
      %3543 = vmatmul.bf16.gmra.mxu0 %v2362
      %v3544 = vpop.f32.mrf.mxu0
      %v3545 = vadd.f32 0.0, %v3544
      %v3546 = vpop.f32.mrf.mxu0
      %v3547 = vadd.f32 0.0, %v3546
      %3548 = vdwg.mxu0
      %3549 = vmatpush.bf16.msra.mxu0 %v3196
      %3550 = vmatpush.bf16.msra.mxu0 %v3192
      %3551 = vmatpush.bf16.msra.mxu0 %v3188
      %3552 = vmatpush.bf16.msra.mxu0 %v3184
      %3553 = vmatpush.bf16.msra.mxu0 %v3180
      %3554 = vmatpush.bf16.msra.mxu0 %v3176
      %3555 = vmatpush.bf16.msra.mxu0 %v3172
      %3556 = vmatpush.bf16.msra.mxu0 %v3168
      %3557 = vmatmul.bf16.gmra.mxu0 %v2345
      %v3558 = vpop.f32.mrf.mxu0
      %v3559 = vadd.f32 %v3530, %v3558
      %v3560 = vpop.f32.mrf.mxu0
      %v3561 = vadd.f32 %v3532, %v3560
      %3562 = vmatmul.bf16.gmra.mxu0 %v2351
      %v3563 = vpop.f32.mrf.mxu0
      %v3564 = vadd.f32 %v3535, %v3563
      %v3565 = vpop.f32.mrf.mxu0
      %v3566 = vadd.f32 %v3537, %v3565
      %3567 = vmatmul.bf16.gmra.mxu0 %v2357
      %v3568 = vpop.f32.mrf.mxu0
      %v3569 = vadd.f32 %v3540, %v3568
      %v3570 = vpop.f32.mrf.mxu0
      %v3571 = vadd.f32 %v3542, %v3570
      %3572 = vmatmul.bf16.gmra.mxu0 %v2363
      %v3573 = vpop.f32.mrf.mxu0
      %v3574 = vadd.f32 %v3545, %v3573
      %v3575 = vpop.f32.mrf.mxu0
      %v3576 = vadd.f32 %v3547, %v3575
      %3577 = vdwg.mxu0
      %3578 = vmatpush.bf16.msra.mxu0 %v3228
      %3579 = vmatpush.bf16.msra.mxu0 %v3224
      %3580 = vmatpush.bf16.msra.mxu0 %v3220
      %3581 = vmatpush.bf16.msra.mxu0 %v3216
      %3582 = vmatpush.bf16.msra.mxu0 %v3212
      %3583 = vmatpush.bf16.msra.mxu0 %v3208
      %3584 = vmatpush.bf16.msra.mxu0 %v3204
      %3585 = vmatpush.bf16.msra.mxu0 %v3200
      %3586 = vmatmul.bf16.gmra.mxu0 %v2346
      %v3587 = vpop.f32.mrf.mxu0
      %v3588 = vadd.f32 %v3559, %v3587
      %v3589 = vpop.f32.mrf.mxu0
      %v3590 = vadd.f32 %v3561, %v3589
      %3591 = vmatmul.bf16.gmra.mxu0 %v2352
      %v3592 = vpop.f32.mrf.mxu0
      %v3593 = vadd.f32 %v3564, %v3592
      %v3594 = vpop.f32.mrf.mxu0
      %v3595 = vadd.f32 %v3566, %v3594
      %3596 = vmatmul.bf16.gmra.mxu0 %v2358
      %v3597 = vpop.f32.mrf.mxu0
      %v3598 = vadd.f32 %v3569, %v3597
      %v3599 = vpop.f32.mrf.mxu0
      %v3600 = vadd.f32 %v3571, %v3599
      %3601 = vmatmul.bf16.gmra.mxu0 %v2364
      %v3602 = vpop.f32.mrf.mxu0
      %v3603 = vadd.f32 %v3574, %v3602
      %v3604 = vpop.f32.mrf.mxu0
      %v3605 = vadd.f32 %v3576, %v3604
      %3606 = vdwg.mxu0
      %3607 = vmatpush.bf16.msra.mxu0 %v3260
      %3608 = vmatpush.bf16.msra.mxu0 %v3256
      %3609 = vmatpush.bf16.msra.mxu0 %v3252
      %3610 = vmatpush.bf16.msra.mxu0 %v3248
      %3611 = vmatpush.bf16.msra.mxu0 %v3244
      %3612 = vmatpush.bf16.msra.mxu0 %v3240
      %3613 = vmatpush.bf16.msra.mxu0 %v3236
      %3614 = vmatpush.bf16.msra.mxu0 %v3232
      %3615 = vmatmul.bf16.gmra.mxu0 %v2347
      %v3616 = vpop.f32.mrf.mxu0
      %v3617 = vadd.f32 %v3588, %v3616
      %v3618 = vpop.f32.mrf.mxu0
      %v3619 = vadd.f32 %v3590, %v3618
      %3620 = vmatmul.bf16.gmra.mxu0 %v2353
      %v3621 = vpop.f32.mrf.mxu0
      %v3622 = vadd.f32 %v3593, %v3621
      %v3623 = vpop.f32.mrf.mxu0
      %v3624 = vadd.f32 %v3595, %v3623
      %3625 = vmatmul.bf16.gmra.mxu0 %v2359
      %v3626 = vpop.f32.mrf.mxu0
      %v3627 = vadd.f32 %v3598, %v3626
      %v3628 = vpop.f32.mrf.mxu0
      %v3629 = vadd.f32 %v3600, %v3628
      %3630 = vmatmul.bf16.gmra.mxu0 %v2365
      %v3631 = vpop.f32.mrf.mxu0
      %v3632 = vadd.f32 %v3603, %v3631
      %v3633 = vpop.f32.mrf.mxu0
      %v3634 = vadd.f32 %v3605, %v3633
      %3635 = vdwg.mxu0
      %3636 = vmatpush.bf16.msra.mxu0 %v3292
      %3637 = vmatpush.bf16.msra.mxu0 %v3288
      %3638 = vmatpush.bf16.msra.mxu0 %v3284
      %3639 = vmatpush.bf16.msra.mxu0 %v3280
      %3640 = vmatpush.bf16.msra.mxu0 %v3276
      %3641 = vmatpush.bf16.msra.mxu0 %v3272
      %3642 = vmatpush.bf16.msra.mxu0 %v3268
      %3643 = vmatpush.bf16.msra.mxu0 %v3264
      %3644 = vmatmul.bf16.gmra.mxu0 %v2348
      %v3645 = vpop.f32.mrf.mxu0
      %v3646 = vadd.f32 %v3617, %v3645
      %v3647 = vpop.f32.mrf.mxu0
      %v3648 = vadd.f32 %v3619, %v3647
      %3649 = vmatmul.bf16.gmra.mxu0 %v2354
      %v3650 = vpop.f32.mrf.mxu0
      %v3651 = vadd.f32 %v3622, %v3650
      %v3652 = vpop.f32.mrf.mxu0
      %v3653 = vadd.f32 %v3624, %v3652
      %3654 = vmatmul.bf16.gmra.mxu0 %v2360
      %v3655 = vpop.f32.mrf.mxu0
      %v3656 = vadd.f32 %v3627, %v3655
      %v3657 = vpop.f32.mrf.mxu0
      %v3658 = vadd.f32 %v3629, %v3657
      %3659 = vmatmul.bf16.gmra.mxu0 %v2366
      %v3660 = vpop.f32.mrf.mxu0
      %v3661 = vadd.f32 %v3632, %v3660
      %v3662 = vpop.f32.mrf.mxu0
      %v3663 = vadd.f32 %v3634, %v3662
      %3664 = vdwg.mxu0
      %3665 = vmatpush.bf16.msra.mxu0 %v3324
      %3666 = vmatpush.bf16.msra.mxu0 %v3320
      %3667 = vmatpush.bf16.msra.mxu0 %v3316
      %3668 = vmatpush.bf16.msra.mxu0 %v3312
      %3669 = vmatpush.bf16.msra.mxu0 %v3308
      %3670 = vmatpush.bf16.msra.mxu0 %v3304
      %3671 = vmatpush.bf16.msra.mxu0 %v3300
      %3672 = vmatpush.bf16.msra.mxu0 %v3296
      %3673 = vmatmul.bf16.gmra.mxu0 %v2349
      %v3674 = vpop.f32.mrf.mxu0
      %v3675 = vadd.f32 %v3646, %v3674
      %v3676 = vpop.f32.mrf.mxu0
      %v3677 = vadd.f32 %v3648, %v3676
      %3678 = vmatmul.bf16.gmra.mxu0 %v2355
      %v3679 = vpop.f32.mrf.mxu0
      %v3680 = vadd.f32 %v3651, %v3679
      %v3681 = vpop.f32.mrf.mxu0
      %v3682 = vadd.f32 %v3653, %v3681
      %3683 = vmatmul.bf16.gmra.mxu0 %v2361
      %v3684 = vpop.f32.mrf.mxu0
      %v3685 = vadd.f32 %v3656, %v3684
      %v3686 = vpop.f32.mrf.mxu0
      %v3687 = vadd.f32 %v3658, %v3686
      %3688 = vmatmul.bf16.gmra.mxu0 %v2367
      %v3689 = vpop.f32.mrf.mxu0
      %v3690 = vadd.f32 %v3661, %v3689
      %v3691 = vpop.f32.mrf.mxu0
      %v3692 = vadd.f32 %v3663, %v3691
      %3693 = vdwg.mxu0
      %3694 = vmatpush.bf16.msra.mxu0 %v3165
      %3695 = vmatpush.bf16.msra.mxu0 %v3161
      %3696 = vmatpush.bf16.msra.mxu0 %v3157
      %3697 = vmatpush.bf16.msra.mxu0 %v3153
      %3698 = vmatpush.bf16.msra.mxu0 %v3149
      %3699 = vmatpush.bf16.msra.mxu0 %v3145
      %3700 = vmatpush.bf16.msra.mxu0 %v3141
      %3701 = vmatpush.bf16.msra.mxu0 %v3137
      %3702 = vmatmul.bf16.gmra.mxu0 %v2344
      %v3703 = vpop.f32.mrf.mxu0
      %v3704 = vadd.f32 0.0, %v3703
      %v3705 = vpop.f32.mrf.mxu0
      %v3706 = vadd.f32 0.0, %v3705
      %3707 = vmatmul.bf16.gmra.mxu0 %v2350
      %v3708 = vpop.f32.mrf.mxu0
      %v3709 = vadd.f32 0.0, %v3708
      %v3710 = vpop.f32.mrf.mxu0
      %v3711 = vadd.f32 0.0, %v3710
      %3712 = vmatmul.bf16.gmra.mxu0 %v2356
      %v3713 = vpop.f32.mrf.mxu0
      %v3714 = vadd.f32 0.0, %v3713
      %v3715 = vpop.f32.mrf.mxu0
      %v3716 = vadd.f32 0.0, %v3715
      %3717 = vmatmul.bf16.gmra.mxu0 %v2362
      %v3718 = vpop.f32.mrf.mxu0
      %v3719 = vadd.f32 0.0, %v3718
      %v3720 = vpop.f32.mrf.mxu0
      %v3721 = vadd.f32 0.0, %v3720
      %3722 = vdwg.mxu0
      %3723 = vmatpush.bf16.msra.mxu0 %v3197
      %3724 = vmatpush.bf16.msra.mxu0 %v3193
      %3725 = vmatpush.bf16.msra.mxu0 %v3189
      %3726 = vmatpush.bf16.msra.mxu0 %v3185
      %3727 = vmatpush.bf16.msra.mxu0 %v3181
      %3728 = vmatpush.bf16.msra.mxu0 %v3177
      %3729 = vmatpush.bf16.msra.mxu0 %v3173
      %3730 = vmatpush.bf16.msra.mxu0 %v3169
      %3731 = vmatmul.bf16.gmra.mxu0 %v2345
      %v3732 = vpop.f32.mrf.mxu0
      %v3733 = vadd.f32 %v3704, %v3732
      %v3734 = vpop.f32.mrf.mxu0
      %v3735 = vadd.f32 %v3706, %v3734
      %3736 = vmatmul.bf16.gmra.mxu0 %v2351
      %v3737 = vpop.f32.mrf.mxu0
      %v3738 = vadd.f32 %v3709, %v3737
      %v3739 = vpop.f32.mrf.mxu0
      %v3740 = vadd.f32 %v3711, %v3739
      %3741 = vmatmul.bf16.gmra.mxu0 %v2357
      %v3742 = vpop.f32.mrf.mxu0
      %v3743 = vadd.f32 %v3714, %v3742
      %v3744 = vpop.f32.mrf.mxu0
      %v3745 = vadd.f32 %v3716, %v3744
      %3746 = vmatmul.bf16.gmra.mxu0 %v2363
      %v3747 = vpop.f32.mrf.mxu0
      %v3748 = vadd.f32 %v3719, %v3747
      %v3749 = vpop.f32.mrf.mxu0
      %v3750 = vadd.f32 %v3721, %v3749
      %3751 = vdwg.mxu0
      %3752 = vmatpush.bf16.msra.mxu0 %v3229
      %3753 = vmatpush.bf16.msra.mxu0 %v3225
      %3754 = vmatpush.bf16.msra.mxu0 %v3221
      %3755 = vmatpush.bf16.msra.mxu0 %v3217
      %3756 = vmatpush.bf16.msra.mxu0 %v3213
      %3757 = vmatpush.bf16.msra.mxu0 %v3209
      %3758 = vmatpush.bf16.msra.mxu0 %v3205
      %3759 = vmatpush.bf16.msra.mxu0 %v3201
      %3760 = vmatmul.bf16.gmra.mxu0 %v2346
      %v3761 = vpop.f32.mrf.mxu0
      %v3762 = vadd.f32 %v3733, %v3761
      %v3763 = vpop.f32.mrf.mxu0
      %v3764 = vadd.f32 %v3735, %v3763
      %3765 = vmatmul.bf16.gmra.mxu0 %v2352
      %v3766 = vpop.f32.mrf.mxu0
      %v3767 = vadd.f32 %v3738, %v3766
      %v3768 = vpop.f32.mrf.mxu0
      %v3769 = vadd.f32 %v3740, %v3768
      %3770 = vmatmul.bf16.gmra.mxu0 %v2358
      %v3771 = vpop.f32.mrf.mxu0
      %v3772 = vadd.f32 %v3743, %v3771
      %v3773 = vpop.f32.mrf.mxu0
      %v3774 = vadd.f32 %v3745, %v3773
      %3775 = vmatmul.bf16.gmra.mxu0 %v2364
      %v3776 = vpop.f32.mrf.mxu0
      %v3777 = vadd.f32 %v3748, %v3776
      %v3778 = vpop.f32.mrf.mxu0
      %v3779 = vadd.f32 %v3750, %v3778
      %3780 = vdwg.mxu0
      %3781 = vmatpush.bf16.msra.mxu0 %v3261
      %3782 = vmatpush.bf16.msra.mxu0 %v3257
      %3783 = vmatpush.bf16.msra.mxu0 %v3253
      %3784 = vmatpush.bf16.msra.mxu0 %v3249
      %3785 = vmatpush.bf16.msra.mxu0 %v3245
      %3786 = vmatpush.bf16.msra.mxu0 %v3241
      %3787 = vmatpush.bf16.msra.mxu0 %v3237
      %3788 = vmatpush.bf16.msra.mxu0 %v3233
      %3789 = vmatmul.bf16.gmra.mxu0 %v2347
      %v3790 = vpop.f32.mrf.mxu0
      %v3791 = vadd.f32 %v3762, %v3790
      %v3792 = vpop.f32.mrf.mxu0
      %v3793 = vadd.f32 %v3764, %v3792
      %3794 = vmatmul.bf16.gmra.mxu0 %v2353
      %v3795 = vpop.f32.mrf.mxu0
      %v3796 = vadd.f32 %v3767, %v3795
      %v3797 = vpop.f32.mrf.mxu0
      %v3798 = vadd.f32 %v3769, %v3797
      %3799 = vmatmul.bf16.gmra.mxu0 %v2359
      %v3800 = vpop.f32.mrf.mxu0
      %v3801 = vadd.f32 %v3772, %v3800
      %v3802 = vpop.f32.mrf.mxu0
      %v3803 = vadd.f32 %v3774, %v3802
      %3804 = vmatmul.bf16.gmra.mxu0 %v2365
      %v3805 = vpop.f32.mrf.mxu0
      %v3806 = vadd.f32 %v3777, %v3805
      %v3807 = vpop.f32.mrf.mxu0
      %v3808 = vadd.f32 %v3779, %v3807
      %3809 = vdwg.mxu0
      %3810 = vmatpush.bf16.msra.mxu0 %v3293
      %3811 = vmatpush.bf16.msra.mxu0 %v3289
      %3812 = vmatpush.bf16.msra.mxu0 %v3285
      %3813 = vmatpush.bf16.msra.mxu0 %v3281
      %3814 = vmatpush.bf16.msra.mxu0 %v3277
      %3815 = vmatpush.bf16.msra.mxu0 %v3273
      %3816 = vmatpush.bf16.msra.mxu0 %v3269
      %3817 = vmatpush.bf16.msra.mxu0 %v3265
      %3818 = vmatmul.bf16.gmra.mxu0 %v2348
      %v3819 = vpop.f32.mrf.mxu0
      %v3820 = vadd.f32 %v3791, %v3819
      %v3821 = vpop.f32.mrf.mxu0
      %v3822 = vadd.f32 %v3793, %v3821
      %3823 = vmatmul.bf16.gmra.mxu0 %v2354
      %v3824 = vpop.f32.mrf.mxu0
      %v3825 = vadd.f32 %v3796, %v3824
      %v3826 = vpop.f32.mrf.mxu0
      %v3827 = vadd.f32 %v3798, %v3826
      %3828 = vmatmul.bf16.gmra.mxu0 %v2360
      %v3829 = vpop.f32.mrf.mxu0
      %v3830 = vadd.f32 %v3801, %v3829
      %v3831 = vpop.f32.mrf.mxu0
      %v3832 = vadd.f32 %v3803, %v3831
      %3833 = vmatmul.bf16.gmra.mxu0 %v2366
      %v3834 = vpop.f32.mrf.mxu0
      %v3835 = vadd.f32 %v3806, %v3834
      %v3836 = vpop.f32.mrf.mxu0
      %v3837 = vadd.f32 %v3808, %v3836
      %3838 = vdwg.mxu0
      %3839 = vmatpush.bf16.msra.mxu0 %v3325
      %3840 = vmatpush.bf16.msra.mxu0 %v3321
      %3841 = vmatpush.bf16.msra.mxu0 %v3317
      %3842 = vmatpush.bf16.msra.mxu0 %v3313
      %3843 = vmatpush.bf16.msra.mxu0 %v3309
      %3844 = vmatpush.bf16.msra.mxu0 %v3305
      %3845 = vmatpush.bf16.msra.mxu0 %v3301
      %3846 = vmatpush.bf16.msra.mxu0 %v3297
      %3847 = vmatmul.bf16.gmra.mxu0 %v2349
      %v3848 = vpop.f32.mrf.mxu0
      %v3849 = vadd.f32 %v3820, %v3848
      %v3850 = vpop.f32.mrf.mxu0
      %v3851 = vadd.f32 %v3822, %v3850
      %3852 = vmatmul.bf16.gmra.mxu0 %v2355
      %v3853 = vpop.f32.mrf.mxu0
      %v3854 = vadd.f32 %v3825, %v3853
      %v3855 = vpop.f32.mrf.mxu0
      %v3856 = vadd.f32 %v3827, %v3855
      %3857 = vmatmul.bf16.gmra.mxu0 %v2361
      %v3858 = vpop.f32.mrf.mxu0
      %v3859 = vadd.f32 %v3830, %v3858
      %v3860 = vpop.f32.mrf.mxu0
      %v3861 = vadd.f32 %v3832, %v3860
      %3862 = vmatmul.bf16.gmra.mxu0 %v2367
      %v3863 = vpop.f32.mrf.mxu0
      %v3864 = vadd.f32 %v3835, %v3863
      %v3865 = vpop.f32.mrf.mxu0
      %v3866 = vadd.f32 %v3837, %v3865
      %3867 = vdwg.mxu0
      %3868 = vmatpush.bf16.msra.mxu0 %v3166
      %3869 = vmatpush.bf16.msra.mxu0 %v3162
      %3870 = vmatpush.bf16.msra.mxu0 %v3158
      %3871 = vmatpush.bf16.msra.mxu0 %v3154
      %3872 = vmatpush.bf16.msra.mxu0 %v3150
      %3873 = vmatpush.bf16.msra.mxu0 %v3146
      %3874 = vmatpush.bf16.msra.mxu0 %v3142
      %3875 = vmatpush.bf16.msra.mxu0 %v3138
      %3876 = vmatmul.bf16.gmra.mxu0 %v2344
      %v3877 = vpop.f32.mrf.mxu0
      %v3878 = vadd.f32 0.0, %v3877
      %v3879 = vpop.f32.mrf.mxu0
      %v3880 = vadd.f32 0.0, %v3879
      %3881 = vmatmul.bf16.gmra.mxu0 %v2350
      %v3882 = vpop.f32.mrf.mxu0
      %v3883 = vadd.f32 0.0, %v3882
      %v3884 = vpop.f32.mrf.mxu0
      %v3885 = vadd.f32 0.0, %v3884
      %3886 = vmatmul.bf16.gmra.mxu0 %v2356
      %v3887 = vpop.f32.mrf.mxu0
      %v3888 = vadd.f32 0.0, %v3887
      %v3889 = vpop.f32.mrf.mxu0
      %v3890 = vadd.f32 0.0, %v3889
      %3891 = vmatmul.bf16.gmra.mxu0 %v2362
      %v3892 = vpop.f32.mrf.mxu0
      %v3893 = vadd.f32 0.0, %v3892
      %v3894 = vpop.f32.mrf.mxu0
      %v3895 = vadd.f32 0.0, %v3894
      %3896 = vdwg.mxu0
      %3897 = vmatpush.bf16.msra.mxu0 %v3198
      %3898 = vmatpush.bf16.msra.mxu0 %v3194
      %3899 = vmatpush.bf16.msra.mxu0 %v3190
      %3900 = vmatpush.bf16.msra.mxu0 %v3186
      %3901 = vmatpush.bf16.msra.mxu0 %v3182
      %3902 = vmatpush.bf16.msra.mxu0 %v3178
      %3903 = vmatpush.bf16.msra.mxu0 %v3174
      %3904 = vmatpush.bf16.msra.mxu0 %v3170
      %3905 = vmatmul.bf16.gmra.mxu0 %v2345
      %v3906 = vpop.f32.mrf.mxu0
      %v3907 = vadd.f32 %v3878, %v3906
      %v3908 = vpop.f32.mrf.mxu0
      %v3909 = vadd.f32 %v3880, %v3908
      %3910 = vmatmul.bf16.gmra.mxu0 %v2351
      %v3911 = vpop.f32.mrf.mxu0
      %v3912 = vadd.f32 %v3883, %v3911
      %v3913 = vpop.f32.mrf.mxu0
      %v3914 = vadd.f32 %v3885, %v3913
      %3915 = vmatmul.bf16.gmra.mxu0 %v2357
      %v3916 = vpop.f32.mrf.mxu0
      %v3917 = vadd.f32 %v3888, %v3916
      %v3918 = vpop.f32.mrf.mxu0
      %v3919 = vadd.f32 %v3890, %v3918
      %3920 = vmatmul.bf16.gmra.mxu0 %v2363
      %v3921 = vpop.f32.mrf.mxu0
      %v3922 = vadd.f32 %v3893, %v3921
      %v3923 = vpop.f32.mrf.mxu0
      %v3924 = vadd.f32 %v3895, %v3923
      %3925 = vdwg.mxu0
      %3926 = vmatpush.bf16.msra.mxu0 %v3230
      %3927 = vmatpush.bf16.msra.mxu0 %v3226
      %3928 = vmatpush.bf16.msra.mxu0 %v3222
      %3929 = vmatpush.bf16.msra.mxu0 %v3218
      %3930 = vmatpush.bf16.msra.mxu0 %v3214
      %3931 = vmatpush.bf16.msra.mxu0 %v3210
      %3932 = vmatpush.bf16.msra.mxu0 %v3206
      %3933 = vmatpush.bf16.msra.mxu0 %v3202
      %3934 = vmatmul.bf16.gmra.mxu0 %v2346
      %v3935 = vpop.f32.mrf.mxu0
      %v3936 = vadd.f32 %v3907, %v3935
      %v3937 = vpop.f32.mrf.mxu0
      %v3938 = vadd.f32 %v3909, %v3937
      %3939 = vmatmul.bf16.gmra.mxu0 %v2352
      %v3940 = vpop.f32.mrf.mxu0
      %v3941 = vadd.f32 %v3912, %v3940
      %v3942 = vpop.f32.mrf.mxu0
      %v3943 = vadd.f32 %v3914, %v3942
      %3944 = vmatmul.bf16.gmra.mxu0 %v2358
      %v3945 = vpop.f32.mrf.mxu0
      %v3946 = vadd.f32 %v3917, %v3945
      %v3947 = vpop.f32.mrf.mxu0
      %v3948 = vadd.f32 %v3919, %v3947
      %3949 = vmatmul.bf16.gmra.mxu0 %v2364
      %v3950 = vpop.f32.mrf.mxu0
      %v3951 = vadd.f32 %v3922, %v3950
      %v3952 = vpop.f32.mrf.mxu0
      %v3953 = vadd.f32 %v3924, %v3952
      %3954 = vdwg.mxu0
      %3955 = vmatpush.bf16.msra.mxu0 %v3262
      %3956 = vmatpush.bf16.msra.mxu0 %v3258
      %3957 = vmatpush.bf16.msra.mxu0 %v3254
      %3958 = vmatpush.bf16.msra.mxu0 %v3250
      %3959 = vmatpush.bf16.msra.mxu0 %v3246
      %3960 = vmatpush.bf16.msra.mxu0 %v3242
      %3961 = vmatpush.bf16.msra.mxu0 %v3238
      %3962 = vmatpush.bf16.msra.mxu0 %v3234
      %3963 = vmatmul.bf16.gmra.mxu0 %v2347
      %v3964 = vpop.f32.mrf.mxu0
      %v3965 = vadd.f32 %v3936, %v3964
      %v3966 = vpop.f32.mrf.mxu0
      %v3967 = vadd.f32 %v3938, %v3966
      %3968 = vmatmul.bf16.gmra.mxu0 %v2353
      %v3969 = vpop.f32.mrf.mxu0
      %v3970 = vadd.f32 %v3941, %v3969
      %v3971 = vpop.f32.mrf.mxu0
      %v3972 = vadd.f32 %v3943, %v3971
      %3973 = vmatmul.bf16.gmra.mxu0 %v2359
      %v3974 = vpop.f32.mrf.mxu0
      %v3975 = vadd.f32 %v3946, %v3974
      %v3976 = vpop.f32.mrf.mxu0
      %v3977 = vadd.f32 %v3948, %v3976
      %3978 = vmatmul.bf16.gmra.mxu0 %v2365
      %v3979 = vpop.f32.mrf.mxu0
      %v3980 = vadd.f32 %v3951, %v3979
      %v3981 = vpop.f32.mrf.mxu0
      %v3982 = vadd.f32 %v3953, %v3981
      %3983 = vdwg.mxu0
      %3984 = vmatpush.bf16.msra.mxu0 %v3294
      %3985 = vmatpush.bf16.msra.mxu0 %v3290
      %3986 = vmatpush.bf16.msra.mxu0 %v3286
      %3987 = vmatpush.bf16.msra.mxu0 %v3282
      %3988 = vmatpush.bf16.msra.mxu0 %v3278
      %3989 = vmatpush.bf16.msra.mxu0 %v3274
      %3990 = vmatpush.bf16.msra.mxu0 %v3270
      %3991 = vmatpush.bf16.msra.mxu0 %v3266
      %3992 = vmatmul.bf16.gmra.mxu0 %v2348
      %v3993 = vpop.f32.mrf.mxu0
      %v3994 = vadd.f32 %v3965, %v3993
      %v3995 = vpop.f32.mrf.mxu0
      %v3996 = vadd.f32 %v3967, %v3995
      %3997 = vmatmul.bf16.gmra.mxu0 %v2354
      %v3998 = vpop.f32.mrf.mxu0
      %v3999 = vadd.f32 %v3970, %v3998
      %v4000 = vpop.f32.mrf.mxu0
      %v4001 = vadd.f32 %v3972, %v4000
      %4002 = vmatmul.bf16.gmra.mxu0 %v2360
      %v4003 = vpop.f32.mrf.mxu0
      %v4004 = vadd.f32 %v3975, %v4003
      %v4005 = vpop.f32.mrf.mxu0
      %v4006 = vadd.f32 %v3977, %v4005
      %4007 = vmatmul.bf16.gmra.mxu0 %v2366
      %v4008 = vpop.f32.mrf.mxu0
      %v4009 = vadd.f32 %v3980, %v4008
      %v4010 = vpop.f32.mrf.mxu0
      %v4011 = vadd.f32 %v3982, %v4010
      %4012 = vdwg.mxu0
      %4013 = vmatpush.bf16.msra.mxu0 %v3326
      %4014 = vmatpush.bf16.msra.mxu0 %v3322
      %4015 = vmatpush.bf16.msra.mxu0 %v3318
      %4016 = vmatpush.bf16.msra.mxu0 %v3314
      %4017 = vmatpush.bf16.msra.mxu0 %v3310
      %4018 = vmatpush.bf16.msra.mxu0 %v3306
      %4019 = vmatpush.bf16.msra.mxu0 %v3302
      %4020 = vmatpush.bf16.msra.mxu0 %v3298
      %4021 = vmatmul.bf16.gmra.mxu0 %v2349
      %v4022 = vpop.f32.mrf.mxu0
      %v4023 = vadd.f32 %v3994, %v4022
      %v4024 = vpop.f32.mrf.mxu0
      %v4025 = vadd.f32 %v3996, %v4024
      %4026 = vmatmul.bf16.gmra.mxu0 %v2355
      %v4027 = vpop.f32.mrf.mxu0
      %v4028 = vadd.f32 %v3999, %v4027
      %v4029 = vpop.f32.mrf.mxu0
      %v4030 = vadd.f32 %v4001, %v4029
      %4031 = vmatmul.bf16.gmra.mxu0 %v2361
      %v4032 = vpop.f32.mrf.mxu0
      %v4033 = vadd.f32 %v4004, %v4032
      %v4034 = vpop.f32.mrf.mxu0
      %v4035 = vadd.f32 %v4006, %v4034
      %4036 = vmatmul.bf16.gmra.mxu0 %v2367
      %v4037 = vpop.f32.mrf.mxu0
      %v4038 = vadd.f32 %v4009, %v4037
      %v4039 = vpop.f32.mrf.mxu0
      %v4040 = vadd.f32 %v4011, %v4039
      %4041 = vdwg.mxu0
      %4042 = vmatpush.bf16.msra.mxu0 %v3167
      %4043 = vmatpush.bf16.msra.mxu0 %v3163
      %4044 = vmatpush.bf16.msra.mxu0 %v3159
      %4045 = vmatpush.bf16.msra.mxu0 %v3155
      %4046 = vmatpush.bf16.msra.mxu0 %v3151
      %4047 = vmatpush.bf16.msra.mxu0 %v3147
      %4048 = vmatpush.bf16.msra.mxu0 %v3143
      %4049 = vmatpush.bf16.msra.mxu0 %v3139
      %4050 = vmatmul.bf16.gmra.mxu0 %v2344
      %v4051 = vpop.f32.mrf.mxu0
      %v4052 = vadd.f32 0.0, %v4051
      %v4053 = vpop.f32.mrf.mxu0
      %v4054 = vadd.f32 0.0, %v4053
      %4055 = vmatmul.bf16.gmra.mxu0 %v2350
      %v4056 = vpop.f32.mrf.mxu0
      %v4057 = vadd.f32 0.0, %v4056
      %v4058 = vpop.f32.mrf.mxu0
      %v4059 = vadd.f32 0.0, %v4058
      %4060 = vmatmul.bf16.gmra.mxu0 %v2356
      %v4061 = vpop.f32.mrf.mxu0
      %v4062 = vadd.f32 0.0, %v4061
      %v4063 = vpop.f32.mrf.mxu0
      %v4064 = vadd.f32 0.0, %v4063
      %4065 = vmatmul.bf16.gmra.mxu0 %v2362
      %v4066 = vpop.f32.mrf.mxu0
      %v4067 = vadd.f32 0.0, %v4066
      %v4068 = vpop.f32.mrf.mxu0
      %v4069 = vadd.f32 0.0, %v4068
      %4070 = vdwg.mxu0
      %4071 = vmatpush.bf16.msra.mxu0 %v3199
      %4072 = vmatpush.bf16.msra.mxu0 %v3195
      %4073 = vmatpush.bf16.msra.mxu0 %v3191
      %4074 = vmatpush.bf16.msra.mxu0 %v3187
      %4075 = vmatpush.bf16.msra.mxu0 %v3183
      %4076 = vmatpush.bf16.msra.mxu0 %v3179
      %4077 = vmatpush.bf16.msra.mxu0 %v3175
      %4078 = vmatpush.bf16.msra.mxu0 %v3171
      %4079 = vmatmul.bf16.gmra.mxu0 %v2345
      %v4080 = vpop.f32.mrf.mxu0
      %v4081 = vadd.f32 %v4052, %v4080
      %v4082 = vpop.f32.mrf.mxu0
      %v4083 = vadd.f32 %v4054, %v4082
      %4084 = vmatmul.bf16.gmra.mxu0 %v2351
      %v4085 = vpop.f32.mrf.mxu0
      %v4086 = vadd.f32 %v4057, %v4085
      %v4087 = vpop.f32.mrf.mxu0
      %v4088 = vadd.f32 %v4059, %v4087
      %4089 = vmatmul.bf16.gmra.mxu0 %v2357
      %v4090 = vpop.f32.mrf.mxu0
      %v4091 = vadd.f32 %v4062, %v4090
      %v4092 = vpop.f32.mrf.mxu0
      %v4093 = vadd.f32 %v4064, %v4092
      %4094 = vmatmul.bf16.gmra.mxu0 %v2363
      %v4095 = vpop.f32.mrf.mxu0
      %v4096 = vadd.f32 %v4067, %v4095
      %v4097 = vpop.f32.mrf.mxu0
      %v4098 = vadd.f32 %v4069, %v4097
      %4099 = vdwg.mxu0
      %4100 = vmatpush.bf16.msra.mxu0 %v3231
      %4101 = vmatpush.bf16.msra.mxu0 %v3227
      %4102 = vmatpush.bf16.msra.mxu0 %v3223
      %4103 = vmatpush.bf16.msra.mxu0 %v3219
      %4104 = vmatpush.bf16.msra.mxu0 %v3215
      %4105 = vmatpush.bf16.msra.mxu0 %v3211
      %4106 = vmatpush.bf16.msra.mxu0 %v3207
      %4107 = vmatpush.bf16.msra.mxu0 %v3203
      %4108 = vmatmul.bf16.gmra.mxu0 %v2346
      %v4109 = vpop.f32.mrf.mxu0
      %v4110 = vadd.f32 %v4081, %v4109
      %v4111 = vpop.f32.mrf.mxu0
      %v4112 = vadd.f32 %v4083, %v4111
      %4113 = vmatmul.bf16.gmra.mxu0 %v2352
      %v4114 = vpop.f32.mrf.mxu0
      %v4115 = vadd.f32 %v4086, %v4114
      %v4116 = vpop.f32.mrf.mxu0
      %v4117 = vadd.f32 %v4088, %v4116
      %4118 = vmatmul.bf16.gmra.mxu0 %v2358
      %v4119 = vpop.f32.mrf.mxu0
      %v4120 = vadd.f32 %v4091, %v4119
      %v4121 = vpop.f32.mrf.mxu0
      %v4122 = vadd.f32 %v4093, %v4121
      %4123 = vmatmul.bf16.gmra.mxu0 %v2364
      %v4124 = vpop.f32.mrf.mxu0
      %v4125 = vadd.f32 %v4096, %v4124
      %v4126 = vpop.f32.mrf.mxu0
      %v4127 = vadd.f32 %v4098, %v4126
      %4128 = vdwg.mxu0
      %4129 = vmatpush.bf16.msra.mxu0 %v3263
      %4130 = vmatpush.bf16.msra.mxu0 %v3259
      %4131 = vmatpush.bf16.msra.mxu0 %v3255
      %4132 = vmatpush.bf16.msra.mxu0 %v3251
      %4133 = vmatpush.bf16.msra.mxu0 %v3247
      %4134 = vmatpush.bf16.msra.mxu0 %v3243
      %4135 = vmatpush.bf16.msra.mxu0 %v3239
      %4136 = vmatpush.bf16.msra.mxu0 %v3235
      %4137 = vmatmul.bf16.gmra.mxu0 %v2347
      %v4138 = vpop.f32.mrf.mxu0
      %v4139 = vadd.f32 %v4110, %v4138
      %v4140 = vpop.f32.mrf.mxu0
      %v4141 = vadd.f32 %v4112, %v4140
      %4142 = vmatmul.bf16.gmra.mxu0 %v2353
      %v4143 = vpop.f32.mrf.mxu0
      %v4144 = vadd.f32 %v4115, %v4143
      %v4145 = vpop.f32.mrf.mxu0
      %v4146 = vadd.f32 %v4117, %v4145
      %4147 = vmatmul.bf16.gmra.mxu0 %v2359
      %v4148 = vpop.f32.mrf.mxu0
      %v4149 = vadd.f32 %v4120, %v4148
      %v4150 = vpop.f32.mrf.mxu0
      %v4151 = vadd.f32 %v4122, %v4150
      %4152 = vmatmul.bf16.gmra.mxu0 %v2365
      %v4153 = vpop.f32.mrf.mxu0
      %v4154 = vadd.f32 %v4125, %v4153
      %v4155 = vpop.f32.mrf.mxu0
      %v4156 = vadd.f32 %v4127, %v4155
      %4157 = vdwg.mxu0
      %4158 = vmatpush.bf16.msra.mxu0 %v3295
      %4159 = vmatpush.bf16.msra.mxu0 %v3291
      %4160 = vmatpush.bf16.msra.mxu0 %v3287
      %4161 = vmatpush.bf16.msra.mxu0 %v3283
      %4162 = vmatpush.bf16.msra.mxu0 %v3279
      %4163 = vmatpush.bf16.msra.mxu0 %v3275
      %4164 = vmatpush.bf16.msra.mxu0 %v3271
      %4165 = vmatpush.bf16.msra.mxu0 %v3267
      %4166 = vmatmul.bf16.gmra.mxu0 %v2348
      %v4167 = vpop.f32.mrf.mxu0
      %v4168 = vadd.f32 %v4139, %v4167
      %v4169 = vpop.f32.mrf.mxu0
      %v4170 = vadd.f32 %v4141, %v4169
      %4171 = vmatmul.bf16.gmra.mxu0 %v2354
      %v4172 = vpop.f32.mrf.mxu0
      %v4173 = vadd.f32 %v4144, %v4172
      %v4174 = vpop.f32.mrf.mxu0
      %v4175 = vadd.f32 %v4146, %v4174
      %4176 = vmatmul.bf16.gmra.mxu0 %v2360
      %v4177 = vpop.f32.mrf.mxu0
      %v4178 = vadd.f32 %v4149, %v4177
      %v4179 = vpop.f32.mrf.mxu0
      %v4180 = vadd.f32 %v4151, %v4179
      %4181 = vmatmul.bf16.gmra.mxu0 %v2366
      %v4182 = vpop.f32.mrf.mxu0
      %v4183 = vadd.f32 %v4154, %v4182
      %v4184 = vpop.f32.mrf.mxu0
      %v4185 = vadd.f32 %v4156, %v4184
      %4186 = vdwg.mxu0
      %4187 = vmatpush.bf16.msra.mxu0 %v3327
      %4188 = vmatpush.bf16.msra.mxu0 %v3323
      %4189 = vmatpush.bf16.msra.mxu0 %v3319
      %4190 = vmatpush.bf16.msra.mxu0 %v3315
      %4191 = vmatpush.bf16.msra.mxu0 %v3311
      %4192 = vmatpush.bf16.msra.mxu0 %v3307
      %4193 = vmatpush.bf16.msra.mxu0 %v3303
      %4194 = vmatpush.bf16.msra.mxu0 %v3299
      %4195 = vmatmul.bf16.gmra.mxu0 %v2349
      %v4196 = vpop.f32.mrf.mxu0
      %v4197 = vadd.f32 %v4168, %v4196
      %v4198 = vpop.f32.mrf.mxu0
      %v4199 = vadd.f32 %v4170, %v4198
      %4200 = vmatmul.bf16.gmra.mxu0 %v2355
      %v4201 = vpop.f32.mrf.mxu0
      %v4202 = vadd.f32 %v4173, %v4201
      %v4203 = vpop.f32.mrf.mxu0
      %v4204 = vadd.f32 %v4175, %v4203
      %4205 = vmatmul.bf16.gmra.mxu0 %v2361
      %v4206 = vpop.f32.mrf.mxu0
      %v4207 = vadd.f32 %v4178, %v4206
      %v4208 = vpop.f32.mrf.mxu0
      %v4209 = vadd.f32 %v4180, %v4208
      %4210 = vmatmul.bf16.gmra.mxu0 %v2367
      %v4211 = vpop.f32.mrf.mxu0
      %v4212 = vadd.f32 %v4183, %v4211
      %v4213 = vpop.f32.mrf.mxu0
      %v4214 = vadd.f32 %v4185, %v4213
      %4215 = vdwg.mxu0
      %v4216 = vld [vmem:[%s4] sm:$0xff]
      %v4217 = vld [vmem:[%s4 + $0x8] sm:$0xff]
      %v4218 = vld [vmem:[%s4 + $0x10] sm:$0xff]
      %v4219 = vld [vmem:[%s4 + $0x18] sm:$0xff]
      %v4220 = vld [vmem:[%s4 + $0x20] sm:$0xff]
      %v4221 = vld [vmem:[%s4 + $0x28] sm:$0xff]
      %v4222 = vld [vmem:[%s4 + $0x30] sm:$0xff]
      %v4223 = vld [vmem:[%s4 + $0x38] sm:$0xff]
      %4225 = vset.pattern.permute.xlu0 0
      %4226 = vperm.xlu0 %4225, %v4216
      %v4227 = vpop.permute.xlu0 %4226
      %4230 = vset.pattern.permute.xlu0 0
      %4231 = vperm.xlu0 %4230, %v4217
      %v4232 = vpop.permute.xlu0 %4231
      %4235 = vset.pattern.permute.xlu0 0
      %4236 = vperm.xlu0 %4235, %v4218
      %v4237 = vpop.permute.xlu0 %4236
      %4240 = vset.pattern.permute.xlu0 0
      %4241 = vperm.xlu0 %4240, %v4219
      %v4242 = vpop.permute.xlu0 %4241
      %4245 = vset.pattern.permute.xlu0 0
      %4246 = vperm.xlu0 %4245, %v4220
      %v4247 = vpop.permute.xlu0 %4246
      %4250 = vset.pattern.permute.xlu0 0
      %4251 = vperm.xlu0 %4250, %v4221
      %v4252 = vpop.permute.xlu0 %4251
      %4255 = vset.pattern.permute.xlu0 0
      %4256 = vperm.xlu0 %4255, %v4222
      %v4257 = vpop.permute.xlu0 %4256
      %4260 = vset.pattern.permute.xlu0 0
      %4261 = vperm.xlu0 %4260, %v4223
      %v4262 = vpop.permute.xlu0 %4261
      %v4264 = vmul.f32 %v4227, %v3675
      %v4265 = vmul.f32 %v4227, %v3849
      %v4266 = vmul.f32 %v4227, %v4023
      %v4267 = vmul.f32 %v4227, %v4197
      %v4268 = vmul.f32 %v4232, %v3677
      %v4269 = vmul.f32 %v4232, %v3851
      %v4270 = vmul.f32 %v4232, %v4025
      %v4271 = vmul.f32 %v4232, %v4199
      %v4272 = vmul.f32 %v4237, %v3680
      %v4273 = vmul.f32 %v4237, %v3854
      %v4274 = vmul.f32 %v4237, %v4028
      %v4275 = vmul.f32 %v4237, %v4202
      %v4276 = vmul.f32 %v4242, %v3682
      %v4277 = vmul.f32 %v4242, %v3856
      %v4278 = vmul.f32 %v4242, %v4030
      %v4279 = vmul.f32 %v4242, %v4204
      %v4280 = vmul.f32 %v4247, %v3685
      %v4281 = vmul.f32 %v4247, %v3859
      %v4282 = vmul.f32 %v4247, %v4033
      %v4283 = vmul.f32 %v4247, %v4207
      %v4284 = vmul.f32 %v4252, %v3687
      %v4285 = vmul.f32 %v4252, %v3861
      %v4286 = vmul.f32 %v4252, %v4035
      %v4287 = vmul.f32 %v4252, %v4209
      %v4288 = vmul.f32 %v4257, %v3690
      %v4289 = vmul.f32 %v4257, %v3864
      %v4290 = vmul.f32 %v4257, %v4038
      %v4291 = vmul.f32 %v4257, %v4212
      %v4292 = vmul.f32 %v4262, %v3692
      %v4293 = vmul.f32 %v4262, %v3866
      %v4294 = vmul.f32 %v4262, %v4040
      %v4295 = vmul.f32 %v4262, %v4214
      %4296 = vset.pattern.permute.xlu0 1
      %4297 = vperm.xlu0 %4296, %v4216
      %v4298 = vpop.permute.xlu0 %4297
      %4300 = vset.pattern.permute.xlu0 1
      %4301 = vperm.xlu0 %4300, %v4217
      %v4302 = vpop.permute.xlu0 %4301
      %4304 = vset.pattern.permute.xlu0 1
      %4305 = vperm.xlu0 %4304, %v4218
      %v4306 = vpop.permute.xlu0 %4305
      %4308 = vset.pattern.permute.xlu0 1
      %4309 = vperm.xlu0 %4308, %v4219
      %v4310 = vpop.permute.xlu0 %4309
      %4312 = vset.pattern.permute.xlu0 1
      %4313 = vperm.xlu0 %4312, %v4220
      %v4314 = vpop.permute.xlu0 %4313
      %4316 = vset.pattern.permute.xlu0 1
      %4317 = vperm.xlu0 %4316, %v4221
      %v4318 = vpop.permute.xlu0 %4317
      %4320 = vset.pattern.permute.xlu0 1
      %4321 = vperm.xlu0 %4320, %v4222
      %v4322 = vpop.permute.xlu0 %4321
      %4324 = vset.pattern.permute.xlu0 1
      %4325 = vperm.xlu0 %4324, %v4223
      %v4326 = vpop.permute.xlu0 %4325
      %v4328 = vmul.f32 %v4298, %v3675
      %v4329 = vmul.f32 %v4298, %v3849
      %v4330 = vmul.f32 %v4298, %v4023
      %v4331 = vmul.f32 %v4298, %v4197
      %v4332 = vmul.f32 %v4302, %v3677
      %v4333 = vmul.f32 %v4302, %v3851
      %v4334 = vmul.f32 %v4302, %v4025
      %v4335 = vmul.f32 %v4302, %v4199
      %v4336 = vmul.f32 %v4306, %v3680
      %v4337 = vmul.f32 %v4306, %v3854
      %v4338 = vmul.f32 %v4306, %v4028
      %v4339 = vmul.f32 %v4306, %v4202
      %v4340 = vmul.f32 %v4310, %v3682
      %v4341 = vmul.f32 %v4310, %v3856
      %v4342 = vmul.f32 %v4310, %v4030
      %v4343 = vmul.f32 %v4310, %v4204
      %v4344 = vmul.f32 %v4314, %v3685
      %v4345 = vmul.f32 %v4314, %v3859
      %v4346 = vmul.f32 %v4314, %v4033
      %v4347 = vmul.f32 %v4314, %v4207
      %v4348 = vmul.f32 %v4318, %v3687
      %v4349 = vmul.f32 %v4318, %v3861
      %v4350 = vmul.f32 %v4318, %v4035
      %v4351 = vmul.f32 %v4318, %v4209
      %v4352 = vmul.f32 %v4322, %v3690
      %v4353 = vmul.f32 %v4322, %v3864
      %v4354 = vmul.f32 %v4322, %v4038
      %v4355 = vmul.f32 %v4322, %v4212
      %v4356 = vmul.f32 %v4326, %v3692
      %v4357 = vmul.f32 %v4326, %v3866
      %v4358 = vmul.f32 %v4326, %v4040
      %v4359 = vmul.f32 %v4326, %v4214
      %4392 = vrot.lane.b32.xlu0 %v4328, 127
      %v4393 = vpop.permute.xlu0 %4392
      %4394 = vrot.lane.b32.xlu0 %v4329, 127
      %v4395 = vpop.permute.xlu0 %4394
      %4396 = vrot.lane.b32.xlu0 %v4330, 127
      %v4397 = vpop.permute.xlu0 %4396
      %4398 = vrot.lane.b32.xlu0 %v4331, 127
      %v4399 = vpop.permute.xlu0 %4398
      %4400 = vrot.lane.b32.xlu0 %v4332, 127
      %v4401 = vpop.permute.xlu0 %4400
      %4402 = vrot.lane.b32.xlu0 %v4333, 127
      %v4403 = vpop.permute.xlu0 %4402
      %4404 = vrot.lane.b32.xlu0 %v4334, 127
      %v4405 = vpop.permute.xlu0 %4404
      %4406 = vrot.lane.b32.xlu0 %v4335, 127
      %v4407 = vpop.permute.xlu0 %4406
      %4408 = vrot.lane.b32.xlu0 %v4336, 127
      %v4409 = vpop.permute.xlu0 %4408
      %4410 = vrot.lane.b32.xlu0 %v4337, 127
      %v4411 = vpop.permute.xlu0 %4410
      %4412 = vrot.lane.b32.xlu0 %v4338, 127
      %v4413 = vpop.permute.xlu0 %4412
      %4414 = vrot.lane.b32.xlu0 %v4339, 127
      %v4415 = vpop.permute.xlu0 %4414
      %4416 = vrot.lane.b32.xlu0 %v4340, 127
      %v4417 = vpop.permute.xlu0 %4416
      %4418 = vrot.lane.b32.xlu0 %v4341, 127
      %v4419 = vpop.permute.xlu0 %4418
      %4420 = vrot.lane.b32.xlu0 %v4342, 127
      %v4421 = vpop.permute.xlu0 %4420
      %4422 = vrot.lane.b32.xlu0 %v4343, 127
      %v4423 = vpop.permute.xlu0 %4422
      %4424 = vrot.lane.b32.xlu0 %v4344, 127
      %v4425 = vpop.permute.xlu0 %4424
      %4426 = vrot.lane.b32.xlu0 %v4345, 127
      %v4427 = vpop.permute.xlu0 %4426
      %4428 = vrot.lane.b32.xlu0 %v4346, 127
      %v4429 = vpop.permute.xlu0 %4428
      %4430 = vrot.lane.b32.xlu0 %v4347, 127
      %v4431 = vpop.permute.xlu0 %4430
      %4432 = vrot.lane.b32.xlu0 %v4348, 127
      %v4433 = vpop.permute.xlu0 %4432
      %4434 = vrot.lane.b32.xlu0 %v4349, 127
      %v4435 = vpop.permute.xlu0 %4434
      %4436 = vrot.lane.b32.xlu0 %v4350, 127
      %v4437 = vpop.permute.xlu0 %4436
      %4438 = vrot.lane.b32.xlu0 %v4351, 127
      %v4439 = vpop.permute.xlu0 %4438
      %4440 = vrot.lane.b32.xlu0 %v4352, 127
      %v4441 = vpop.permute.xlu0 %4440
      %4442 = vrot.lane.b32.xlu0 %v4353, 127
      %v4443 = vpop.permute.xlu0 %4442
      %4444 = vrot.lane.b32.xlu0 %v4354, 127
      %v4445 = vpop.permute.xlu0 %4444
      %4446 = vrot.lane.b32.xlu0 %v4355, 127
      %v4447 = vpop.permute.xlu0 %4446
      %4448 = vrot.lane.b32.xlu0 %v4356, 127
      %v4449 = vpop.permute.xlu0 %4448
      %4450 = vrot.lane.b32.xlu0 %v4357, 127
      %v4451 = vpop.permute.xlu0 %4450
      %4452 = vrot.lane.b32.xlu0 %v4358, 127
      %v4453 = vpop.permute.xlu0 %4452
      %4454 = vrot.lane.b32.xlu0 %v4359, 127
      %v4455 = vpop.permute.xlu0 %4454
      %vm4456 = vcmask 1039360
      %v4457 = vsel %vm4456, %v4393, %v4395
      %v4458 = vsel %vm4456, %v4395, %v4397
      %v4459 = vsel %vm4456, %v4397, %v4399
      %v4460 = vsel %vm4456, %v4401, %v4403
      %v4461 = vsel %vm4456, %v4403, %v4405
      %v4462 = vsel %vm4456, %v4405, %v4407
      %v4463 = vsel %vm4456, %v4409, %v4411
      %v4464 = vsel %vm4456, %v4411, %v4413
      %v4465 = vsel %vm4456, %v4413, %v4415
      %v4466 = vsel %vm4456, %v4417, %v4419
      %v4467 = vsel %vm4456, %v4419, %v4421
      %v4468 = vsel %vm4456, %v4421, %v4423
      %v4469 = vsel %vm4456, %v4425, %v4427
      %v4470 = vsel %vm4456, %v4427, %v4429
      %v4471 = vsel %vm4456, %v4429, %v4431
      %v4472 = vsel %vm4456, %v4433, %v4435
      %v4473 = vsel %vm4456, %v4435, %v4437
      %v4474 = vsel %vm4456, %v4437, %v4439
      %v4475 = vsel %vm4456, %v4441, %v4443
      %v4476 = vsel %vm4456, %v4443, %v4445
      %v4477 = vsel %vm4456, %v4445, %v4447
      %v4478 = vsel %vm4456, %v4449, %v4451
      %v4479 = vsel %vm4456, %v4451, %v4453
      %v4480 = vsel %vm4456, %v4453, %v4455
      %v4513 = vadd.f32 %v4264, %v4457
      %v4514 = vadd.f32 %v4265, %v4458
      %v4515 = vadd.f32 %v4266, %v4459
      %v4516 = vadd.f32 %v4267, %v4399
      %v4517 = vadd.f32 %v4268, %v4460
      %v4518 = vadd.f32 %v4269, %v4461
      %v4519 = vadd.f32 %v4270, %v4462
      %v4520 = vadd.f32 %v4271, %v4407
      %v4521 = vadd.f32 %v4272, %v4463
      %v4522 = vadd.f32 %v4273, %v4464
      %v4523 = vadd.f32 %v4274, %v4465
      %v4524 = vadd.f32 %v4275, %v4415
      %v4525 = vadd.f32 %v4276, %v4466
      %v4526 = vadd.f32 %v4277, %v4467
      %v4527 = vadd.f32 %v4278, %v4468
      %v4528 = vadd.f32 %v4279, %v4423
      %v4529 = vadd.f32 %v4280, %v4469
      %v4530 = vadd.f32 %v4281, %v4470
      %v4531 = vadd.f32 %v4282, %v4471
      %v4532 = vadd.f32 %v4283, %v4431
      %v4533 = vadd.f32 %v4284, %v4472
      %v4534 = vadd.f32 %v4285, %v4473
      %v4535 = vadd.f32 %v4286, %v4474
      %v4536 = vadd.f32 %v4287, %v4439
      %v4537 = vadd.f32 %v4288, %v4475
      %v4538 = vadd.f32 %v4289, %v4476
      %v4539 = vadd.f32 %v4290, %v4477
      %v4540 = vadd.f32 %v4291, %v4447
      %v4541 = vadd.f32 %v4292, %v4478
      %v4542 = vadd.f32 %v4293, %v4479
      %v4543 = vadd.f32 %v4294, %v4480
      %v4544 = vadd.f32 %v4295, %v4455
      %4545 = vset.pattern.permute.xlu0 2
      %4546 = vperm.xlu0 %4545, %v4216
      %v4547 = vpop.permute.xlu0 %4546
      %4549 = vset.pattern.permute.xlu0 2
      %4550 = vperm.xlu0 %4549, %v4217
      %v4551 = vpop.permute.xlu0 %4550
      %4553 = vset.pattern.permute.xlu0 2
      %4554 = vperm.xlu0 %4553, %v4218
      %v4555 = vpop.permute.xlu0 %4554
      %4557 = vset.pattern.permute.xlu0 2
      %4558 = vperm.xlu0 %4557, %v4219
      %v4559 = vpop.permute.xlu0 %4558
      %4561 = vset.pattern.permute.xlu0 2
      %4562 = vperm.xlu0 %4561, %v4220
      %v4563 = vpop.permute.xlu0 %4562
      %4565 = vset.pattern.permute.xlu0 2
      %4566 = vperm.xlu0 %4565, %v4221
      %v4567 = vpop.permute.xlu0 %4566
      %4569 = vset.pattern.permute.xlu0 2
      %4570 = vperm.xlu0 %4569, %v4222
      %v4571 = vpop.permute.xlu0 %4570
      %4573 = vset.pattern.permute.xlu0 2
      %4574 = vperm.xlu0 %4573, %v4223
      %v4575 = vpop.permute.xlu0 %4574
      %v4577 = vmul.f32 %v4547, %v3675
      %v4578 = vmul.f32 %v4547, %v3849
      %v4579 = vmul.f32 %v4547, %v4023
      %v4580 = vmul.f32 %v4547, %v4197
      %v4581 = vmul.f32 %v4551, %v3677
      %v4582 = vmul.f32 %v4551, %v3851
      %v4583 = vmul.f32 %v4551, %v4025
      %v4584 = vmul.f32 %v4551, %v4199
      %v4585 = vmul.f32 %v4555, %v3680
      %v4586 = vmul.f32 %v4555, %v3854
      %v4587 = vmul.f32 %v4555, %v4028
      %v4588 = vmul.f32 %v4555, %v4202
      %v4589 = vmul.f32 %v4559, %v3682
      %v4590 = vmul.f32 %v4559, %v3856
      %v4591 = vmul.f32 %v4559, %v4030
      %v4592 = vmul.f32 %v4559, %v4204
      %v4593 = vmul.f32 %v4563, %v3685
      %v4594 = vmul.f32 %v4563, %v3859
      %v4595 = vmul.f32 %v4563, %v4033
      %v4596 = vmul.f32 %v4563, %v4207
      %v4597 = vmul.f32 %v4567, %v3687
      %v4598 = vmul.f32 %v4567, %v3861
      %v4599 = vmul.f32 %v4567, %v4035
      %v4600 = vmul.f32 %v4567, %v4209
      %v4601 = vmul.f32 %v4571, %v3690
      %v4602 = vmul.f32 %v4571, %v3864
      %v4603 = vmul.f32 %v4571, %v4038
      %v4604 = vmul.f32 %v4571, %v4212
      %v4605 = vmul.f32 %v4575, %v3692
      %v4606 = vmul.f32 %v4575, %v3866
      %v4607 = vmul.f32 %v4575, %v4040
      %v4608 = vmul.f32 %v4575, %v4214
      %4641 = vrot.lane.b32.xlu0 %v4577, 126
      %v4642 = vpop.permute.xlu0 %4641
      %4643 = vrot.lane.b32.xlu0 %v4578, 126
      %v4644 = vpop.permute.xlu0 %4643
      %4645 = vrot.lane.b32.xlu0 %v4579, 126
      %v4646 = vpop.permute.xlu0 %4645
      %4647 = vrot.lane.b32.xlu0 %v4580, 126
      %v4648 = vpop.permute.xlu0 %4647
      %4649 = vrot.lane.b32.xlu0 %v4581, 126
      %v4650 = vpop.permute.xlu0 %4649
      %4651 = vrot.lane.b32.xlu0 %v4582, 126
      %v4652 = vpop.permute.xlu0 %4651
      %4653 = vrot.lane.b32.xlu0 %v4583, 126
      %v4654 = vpop.permute.xlu0 %4653
      %4655 = vrot.lane.b32.xlu0 %v4584, 126
      %v4656 = vpop.permute.xlu0 %4655
      %4657 = vrot.lane.b32.xlu0 %v4585, 126
      %v4658 = vpop.permute.xlu0 %4657
      %4659 = vrot.lane.b32.xlu0 %v4586, 126
      %v4660 = vpop.permute.xlu0 %4659
      %4661 = vrot.lane.b32.xlu0 %v4587, 126
      %v4662 = vpop.permute.xlu0 %4661
      %4663 = vrot.lane.b32.xlu0 %v4588, 126
      %v4664 = vpop.permute.xlu0 %4663
      %4665 = vrot.lane.b32.xlu0 %v4589, 126
      %v4666 = vpop.permute.xlu0 %4665
      %4667 = vrot.lane.b32.xlu0 %v4590, 126
      %v4668 = vpop.permute.xlu0 %4667
      %4669 = vrot.lane.b32.xlu0 %v4591, 126
      %v4670 = vpop.permute.xlu0 %4669
      %4671 = vrot.lane.b32.xlu0 %v4592, 126
      %v4672 = vpop.permute.xlu0 %4671
      %4673 = vrot.lane.b32.xlu0 %v4593, 126
      %v4674 = vpop.permute.xlu0 %4673
      %4675 = vrot.lane.b32.xlu0 %v4594, 126
      %v4676 = vpop.permute.xlu0 %4675
      %4677 = vrot.lane.b32.xlu0 %v4595, 126
      %v4678 = vpop.permute.xlu0 %4677
      %4679 = vrot.lane.b32.xlu0 %v4596, 126
      %v4680 = vpop.permute.xlu0 %4679
      %4681 = vrot.lane.b32.xlu0 %v4597, 126
      %v4682 = vpop.permute.xlu0 %4681
      %4683 = vrot.lane.b32.xlu0 %v4598, 126
      %v4684 = vpop.permute.xlu0 %4683
      %4685 = vrot.lane.b32.xlu0 %v4599, 126
      %v4686 = vpop.permute.xlu0 %4685
      %4687 = vrot.lane.b32.xlu0 %v4600, 126
      %v4688 = vpop.permute.xlu0 %4687
      %4689 = vrot.lane.b32.xlu0 %v4601, 126
      %v4690 = vpop.permute.xlu0 %4689
      %4691 = vrot.lane.b32.xlu0 %v4602, 126
      %v4692 = vpop.permute.xlu0 %4691
      %4693 = vrot.lane.b32.xlu0 %v4603, 126
      %v4694 = vpop.permute.xlu0 %4693
      %4695 = vrot.lane.b32.xlu0 %v4604, 126
      %v4696 = vpop.permute.xlu0 %4695
      %4697 = vrot.lane.b32.xlu0 %v4605, 126
      %v4698 = vpop.permute.xlu0 %4697
      %4699 = vrot.lane.b32.xlu0 %v4606, 126
      %v4700 = vpop.permute.xlu0 %4699
      %4701 = vrot.lane.b32.xlu0 %v4607, 126
      %v4702 = vpop.permute.xlu0 %4701
      %4703 = vrot.lane.b32.xlu0 %v4608, 126
      %v4704 = vpop.permute.xlu0 %4703
      %vm4705 = vcmask 1031168
      %v4706 = vsel %vm4705, %v4642, %v4644
      %v4707 = vsel %vm4705, %v4644, %v4646
      %v4708 = vsel %vm4705, %v4646, %v4648
      %v4709 = vsel %vm4705, %v4650, %v4652
      %v4710 = vsel %vm4705, %v4652, %v4654
      %v4711 = vsel %vm4705, %v4654, %v4656
      %v4712 = vsel %vm4705, %v4658, %v4660
      %v4713 = vsel %vm4705, %v4660, %v4662
      %v4714 = vsel %vm4705, %v4662, %v4664
      %v4715 = vsel %vm4705, %v4666, %v4668
      %v4716 = vsel %vm4705, %v4668, %v4670
      %v4717 = vsel %vm4705, %v4670, %v4672
      %v4718 = vsel %vm4705, %v4674, %v4676
      %v4719 = vsel %vm4705, %v4676, %v4678
      %v4720 = vsel %vm4705, %v4678, %v4680
      %v4721 = vsel %vm4705, %v4682, %v4684
      %v4722 = vsel %vm4705, %v4684, %v4686
      %v4723 = vsel %vm4705, %v4686, %v4688
      %v4724 = vsel %vm4705, %v4690, %v4692
      %v4725 = vsel %vm4705, %v4692, %v4694
      %v4726 = vsel %vm4705, %v4694, %v4696
      %v4727 = vsel %vm4705, %v4698, %v4700
      %v4728 = vsel %vm4705, %v4700, %v4702
      %v4729 = vsel %vm4705, %v4702, %v4704
      %v4762 = vadd.f32 %v4513, %v4706
      %v4763 = vadd.f32 %v4514, %v4707
      %v4764 = vadd.f32 %v4515, %v4708
      %v4765 = vadd.f32 %v4516, %v4648
      %v4766 = vadd.f32 %v4517, %v4709
      %v4767 = vadd.f32 %v4518, %v4710
      %v4768 = vadd.f32 %v4519, %v4711
      %v4769 = vadd.f32 %v4520, %v4656
      %v4770 = vadd.f32 %v4521, %v4712
      %v4771 = vadd.f32 %v4522, %v4713
      %v4772 = vadd.f32 %v4523, %v4714
      %v4773 = vadd.f32 %v4524, %v4664
      %v4774 = vadd.f32 %v4525, %v4715
      %v4775 = vadd.f32 %v4526, %v4716
      %v4776 = vadd.f32 %v4527, %v4717
      %v4777 = vadd.f32 %v4528, %v4672
      %v4778 = vadd.f32 %v4529, %v4718
      %v4779 = vadd.f32 %v4530, %v4719
      %v4780 = vadd.f32 %v4531, %v4720
      %v4781 = vadd.f32 %v4532, %v4680
      %v4782 = vadd.f32 %v4533, %v4721
      %v4783 = vadd.f32 %v4534, %v4722
      %v4784 = vadd.f32 %v4535, %v4723
      %v4785 = vadd.f32 %v4536, %v4688
      %v4786 = vadd.f32 %v4537, %v4724
      %v4787 = vadd.f32 %v4538, %v4725
      %v4788 = vadd.f32 %v4539, %v4726
      %v4789 = vadd.f32 %v4540, %v4696
      %v4790 = vadd.f32 %v4541, %v4727
      %v4791 = vadd.f32 %v4542, %v4728
      %v4792 = vadd.f32 %v4543, %v4729
      %v4793 = vadd.f32 %v4544, %v4704
      %4794 = vset.pattern.permute.xlu0 3
      %4795 = vperm.xlu0 %4794, %v4216
      %v4796 = vpop.permute.xlu0 %4795
      %4798 = vset.pattern.permute.xlu0 3
      %4799 = vperm.xlu0 %4798, %v4217
      %v4800 = vpop.permute.xlu0 %4799
      %4802 = vset.pattern.permute.xlu0 3
      %4803 = vperm.xlu0 %4802, %v4218
      %v4804 = vpop.permute.xlu0 %4803
      %4806 = vset.pattern.permute.xlu0 3
      %4807 = vperm.xlu0 %4806, %v4219
      %v4808 = vpop.permute.xlu0 %4807
      %4810 = vset.pattern.permute.xlu0 3
      %4811 = vperm.xlu0 %4810, %v4220
      %v4812 = vpop.permute.xlu0 %4811
      %4814 = vset.pattern.permute.xlu0 3
      %4815 = vperm.xlu0 %4814, %v4221
      %v4816 = vpop.permute.xlu0 %4815
      %4818 = vset.pattern.permute.xlu0 3
      %4819 = vperm.xlu0 %4818, %v4222
      %v4820 = vpop.permute.xlu0 %4819
      %4822 = vset.pattern.permute.xlu0 3
      %4823 = vperm.xlu0 %4822, %v4223
      %v4824 = vpop.permute.xlu0 %4823
      %v4826 = vmul.f32 %v4796, %v3675
      %v4827 = vmul.f32 %v4796, %v3849
      %v4828 = vmul.f32 %v4796, %v4023
      %v4829 = vmul.f32 %v4796, %v4197
      %v4830 = vmul.f32 %v4800, %v3677
      %v4831 = vmul.f32 %v4800, %v3851
      %v4832 = vmul.f32 %v4800, %v4025
      %v4833 = vmul.f32 %v4800, %v4199
      %v4834 = vmul.f32 %v4804, %v3680
      %v4835 = vmul.f32 %v4804, %v3854
      %v4836 = vmul.f32 %v4804, %v4028
      %v4837 = vmul.f32 %v4804, %v4202
      %v4838 = vmul.f32 %v4808, %v3682
      %v4839 = vmul.f32 %v4808, %v3856
      %v4840 = vmul.f32 %v4808, %v4030
      %v4841 = vmul.f32 %v4808, %v4204
      %v4842 = vmul.f32 %v4812, %v3685
      %v4843 = vmul.f32 %v4812, %v3859
      %v4844 = vmul.f32 %v4812, %v4033
      %v4845 = vmul.f32 %v4812, %v4207
      %v4846 = vmul.f32 %v4816, %v3687
      %v4847 = vmul.f32 %v4816, %v3861
      %v4848 = vmul.f32 %v4816, %v4035
      %v4849 = vmul.f32 %v4816, %v4209
      %v4850 = vmul.f32 %v4820, %v3690
      %v4851 = vmul.f32 %v4820, %v3864
      %v4852 = vmul.f32 %v4820, %v4038
      %v4853 = vmul.f32 %v4820, %v4212
      %v4854 = vmul.f32 %v4824, %v3692
      %v4855 = vmul.f32 %v4824, %v3866
      %v4856 = vmul.f32 %v4824, %v4040
      %v4857 = vmul.f32 %v4824, %v4214
      %4890 = vrot.lane.b32.xlu0 %v4826, 125
      %v4891 = vpop.permute.xlu0 %4890
      %4892 = vrot.lane.b32.xlu0 %v4827, 125
      %v4893 = vpop.permute.xlu0 %4892
      %4894 = vrot.lane.b32.xlu0 %v4828, 125
      %v4895 = vpop.permute.xlu0 %4894
      %4896 = vrot.lane.b32.xlu0 %v4829, 125
      %v4897 = vpop.permute.xlu0 %4896
      %4898 = vrot.lane.b32.xlu0 %v4830, 125
      %v4899 = vpop.permute.xlu0 %4898
      %4900 = vrot.lane.b32.xlu0 %v4831, 125
      %v4901 = vpop.permute.xlu0 %4900
      %4902 = vrot.lane.b32.xlu0 %v4832, 125
      %v4903 = vpop.permute.xlu0 %4902
      %4904 = vrot.lane.b32.xlu0 %v4833, 125
      %v4905 = vpop.permute.xlu0 %4904
      %4906 = vrot.lane.b32.xlu0 %v4834, 125
      %v4907 = vpop.permute.xlu0 %4906
      %4908 = vrot.lane.b32.xlu0 %v4835, 125
      %v4909 = vpop.permute.xlu0 %4908
      %4910 = vrot.lane.b32.xlu0 %v4836, 125
      %v4911 = vpop.permute.xlu0 %4910
      %4912 = vrot.lane.b32.xlu0 %v4837, 125
      %v4913 = vpop.permute.xlu0 %4912
      %4914 = vrot.lane.b32.xlu0 %v4838, 125
      %v4915 = vpop.permute.xlu0 %4914
      %4916 = vrot.lane.b32.xlu0 %v4839, 125
      %v4917 = vpop.permute.xlu0 %4916
      %4918 = vrot.lane.b32.xlu0 %v4840, 125
      %v4919 = vpop.permute.xlu0 %4918
      %4920 = vrot.lane.b32.xlu0 %v4841, 125
      %v4921 = vpop.permute.xlu0 %4920
      %4922 = vrot.lane.b32.xlu0 %v4842, 125
      %v4923 = vpop.permute.xlu0 %4922
      %4924 = vrot.lane.b32.xlu0 %v4843, 125
      %v4925 = vpop.permute.xlu0 %4924
      %4926 = vrot.lane.b32.xlu0 %v4844, 125
      %v4927 = vpop.permute.xlu0 %4926
      %4928 = vrot.lane.b32.xlu0 %v4845, 125
      %v4929 = vpop.permute.xlu0 %4928
      %4930 = vrot.lane.b32.xlu0 %v4846, 125
      %v4931 = vpop.permute.xlu0 %4930
      %4932 = vrot.lane.b32.xlu0 %v4847, 125
      %v4933 = vpop.permute.xlu0 %4932
      %4934 = vrot.lane.b32.xlu0 %v4848, 125
      %v4935 = vpop.permute.xlu0 %4934
      %4936 = vrot.lane.b32.xlu0 %v4849, 125
      %v4937 = vpop.permute.xlu0 %4936
      %4938 = vrot.lane.b32.xlu0 %v4850, 125
      %v4939 = vpop.permute.xlu0 %4938
      %4940 = vrot.lane.b32.xlu0 %v4851, 125
      %v4941 = vpop.permute.xlu0 %4940
      %4942 = vrot.lane.b32.xlu0 %v4852, 125
      %v4943 = vpop.permute.xlu0 %4942
      %4944 = vrot.lane.b32.xlu0 %v4853, 125
      %v4945 = vpop.permute.xlu0 %4944
      %4946 = vrot.lane.b32.xlu0 %v4854, 125
      %v4947 = vpop.permute.xlu0 %4946
      %4948 = vrot.lane.b32.xlu0 %v4855, 125
      %v4949 = vpop.permute.xlu0 %4948
      %4950 = vrot.lane.b32.xlu0 %v4856, 125
      %v4951 = vpop.permute.xlu0 %4950
      %4952 = vrot.lane.b32.xlu0 %v4857, 125
      %v4953 = vpop.permute.xlu0 %4952
      %vm4954 = vcmask 1022976
      %v4955 = vsel %vm4954, %v4891, %v4893
      %v4956 = vsel %vm4954, %v4893, %v4895
      %v4957 = vsel %vm4954, %v4895, %v4897
      %v4958 = vsel %vm4954, %v4899, %v4901
      %v4959 = vsel %vm4954, %v4901, %v4903
      %v4960 = vsel %vm4954, %v4903, %v4905
      %v4961 = vsel %vm4954, %v4907, %v4909
      %v4962 = vsel %vm4954, %v4909, %v4911
      %v4963 = vsel %vm4954, %v4911, %v4913
      %v4964 = vsel %vm4954, %v4915, %v4917
      %v4965 = vsel %vm4954, %v4917, %v4919
      %v4966 = vsel %vm4954, %v4919, %v4921
      %v4967 = vsel %vm4954, %v4923, %v4925
      %v4968 = vsel %vm4954, %v4925, %v4927
      %v4969 = vsel %vm4954, %v4927, %v4929
      %v4970 = vsel %vm4954, %v4931, %v4933
      %v4971 = vsel %vm4954, %v4933, %v4935
      %v4972 = vsel %vm4954, %v4935, %v4937
      %v4973 = vsel %vm4954, %v4939, %v4941
      %v4974 = vsel %vm4954, %v4941, %v4943
      %v4975 = vsel %vm4954, %v4943, %v4945
      %v4976 = vsel %vm4954, %v4947, %v4949
      %v4977 = vsel %vm4954, %v4949, %v4951
      %v4978 = vsel %vm4954, %v4951, %v4953
      %v5011 = vadd.f32 %v4762, %v4955
      %v5012 = vadd.f32 %v4763, %v4956
      %v5013 = vadd.f32 %v4764, %v4957
      %v5014 = vadd.f32 %v4765, %v4897
      %v5015 = vadd.f32 %v4766, %v4958
      %v5016 = vadd.f32 %v4767, %v4959
      %v5017 = vadd.f32 %v4768, %v4960
      %v5018 = vadd.f32 %v4769, %v4905
      %v5019 = vadd.f32 %v4770, %v4961
      %v5020 = vadd.f32 %v4771, %v4962
      %v5021 = vadd.f32 %v4772, %v4963
      %v5022 = vadd.f32 %v4773, %v4913
      %v5023 = vadd.f32 %v4774, %v4964
      %v5024 = vadd.f32 %v4775, %v4965
      %v5025 = vadd.f32 %v4776, %v4966
      %v5026 = vadd.f32 %v4777, %v4921
      %v5027 = vadd.f32 %v4778, %v4967
      %v5028 = vadd.f32 %v4779, %v4968
      %v5029 = vadd.f32 %v4780, %v4969
      %v5030 = vadd.f32 %v4781, %v4929
      %v5031 = vadd.f32 %v4782, %v4970
      %v5032 = vadd.f32 %v4783, %v4971
      %v5033 = vadd.f32 %v4784, %v4972
      %v5034 = vadd.f32 %v4785, %v4937
      %v5035 = vadd.f32 %v4786, %v4973
      %v5036 = vadd.f32 %v4787, %v4974
      %v5037 = vadd.f32 %v4788, %v4975
      %v5038 = vadd.f32 %v4789, %v4945
      %v5039 = vadd.f32 %v4790, %v4976
      %v5040 = vadd.f32 %v4791, %v4977
      %v5041 = vadd.f32 %v4792, %v4978
      %v5042 = vadd.f32 %v4793, %v4953
      %5043 = vset.pattern.permute.xlu0 4
      %5044 = vperm.xlu0 %5043, %v4216
      %v5045 = vpop.permute.xlu0 %5044
      %5047 = vset.pattern.permute.xlu0 4
      %5048 = vperm.xlu0 %5047, %v4217
      %v5049 = vpop.permute.xlu0 %5048
      %5051 = vset.pattern.permute.xlu0 4
      %5052 = vperm.xlu0 %5051, %v4218
      %v5053 = vpop.permute.xlu0 %5052
      %5055 = vset.pattern.permute.xlu0 4
      %5056 = vperm.xlu0 %5055, %v4219
      %v5057 = vpop.permute.xlu0 %5056
      %5059 = vset.pattern.permute.xlu0 4
      %5060 = vperm.xlu0 %5059, %v4220
      %v5061 = vpop.permute.xlu0 %5060
      %5063 = vset.pattern.permute.xlu0 4
      %5064 = vperm.xlu0 %5063, %v4221
      %v5065 = vpop.permute.xlu0 %5064
      %5067 = vset.pattern.permute.xlu0 4
      %5068 = vperm.xlu0 %5067, %v4222
      %v5069 = vpop.permute.xlu0 %5068
      %5071 = vset.pattern.permute.xlu0 4
      %5072 = vperm.xlu0 %5071, %v4223
      %v5073 = vpop.permute.xlu0 %5072
      %v5075 = vmul.f32 %v5045, %v3675
      %v5076 = vmul.f32 %v5045, %v3849
      %v5077 = vmul.f32 %v5045, %v4023
      %v5078 = vmul.f32 %v5045, %v4197
      %v5079 = vmul.f32 %v5049, %v3677
      %v5080 = vmul.f32 %v5049, %v3851
      %v5081 = vmul.f32 %v5049, %v4025
      %v5082 = vmul.f32 %v5049, %v4199
      %v5083 = vmul.f32 %v5053, %v3680
      %v5084 = vmul.f32 %v5053, %v3854
      %v5085 = vmul.f32 %v5053, %v4028
      %v5086 = vmul.f32 %v5053, %v4202
      %v5087 = vmul.f32 %v5057, %v3682
      %v5088 = vmul.f32 %v5057, %v3856
      %v5089 = vmul.f32 %v5057, %v4030
      %v5090 = vmul.f32 %v5057, %v4204
      %v5091 = vmul.f32 %v5061, %v3685
      %v5092 = vmul.f32 %v5061, %v3859
      %v5093 = vmul.f32 %v5061, %v4033
      %v5094 = vmul.f32 %v5061, %v4207
      %v5095 = vmul.f32 %v5065, %v3687
      %v5096 = vmul.f32 %v5065, %v3861
      %v5097 = vmul.f32 %v5065, %v4035
      %v5098 = vmul.f32 %v5065, %v4209
      %v5099 = vmul.f32 %v5069, %v3690
      %v5100 = vmul.f32 %v5069, %v3864
      %v5101 = vmul.f32 %v5069, %v4038
      %v5102 = vmul.f32 %v5069, %v4212
      %v5103 = vmul.f32 %v5073, %v3692
      %v5104 = vmul.f32 %v5073, %v3866
      %v5105 = vmul.f32 %v5073, %v4040
      %v5106 = vmul.f32 %v5073, %v4214
      %5139 = vrot.lane.b32.xlu0 %v5075, 124
      %v5140 = vpop.permute.xlu0 %5139
      %5141 = vrot.lane.b32.xlu0 %v5076, 124
      %v5142 = vpop.permute.xlu0 %5141
      %5143 = vrot.lane.b32.xlu0 %v5077, 124
      %v5144 = vpop.permute.xlu0 %5143
      %5145 = vrot.lane.b32.xlu0 %v5078, 124
      %v5146 = vpop.permute.xlu0 %5145
      %5147 = vrot.lane.b32.xlu0 %v5079, 124
      %v5148 = vpop.permute.xlu0 %5147
      %5149 = vrot.lane.b32.xlu0 %v5080, 124
      %v5150 = vpop.permute.xlu0 %5149
      %5151 = vrot.lane.b32.xlu0 %v5081, 124
      %v5152 = vpop.permute.xlu0 %5151
      %5153 = vrot.lane.b32.xlu0 %v5082, 124
      %v5154 = vpop.permute.xlu0 %5153
      %5155 = vrot.lane.b32.xlu0 %v5083, 124
      %v5156 = vpop.permute.xlu0 %5155
      %5157 = vrot.lane.b32.xlu0 %v5084, 124
      %v5158 = vpop.permute.xlu0 %5157
      %5159 = vrot.lane.b32.xlu0 %v5085, 124
      %v5160 = vpop.permute.xlu0 %5159
      %5161 = vrot.lane.b32.xlu0 %v5086, 124
      %v5162 = vpop.permute.xlu0 %5161
      %5163 = vrot.lane.b32.xlu0 %v5087, 124
      %v5164 = vpop.permute.xlu0 %5163
      %5165 = vrot.lane.b32.xlu0 %v5088, 124
      %v5166 = vpop.permute.xlu0 %5165
      %5167 = vrot.lane.b32.xlu0 %v5089, 124
      %v5168 = vpop.permute.xlu0 %5167
      %5169 = vrot.lane.b32.xlu0 %v5090, 124
      %v5170 = vpop.permute.xlu0 %5169
      %5171 = vrot.lane.b32.xlu0 %v5091, 124
      %v5172 = vpop.permute.xlu0 %5171
      %5173 = vrot.lane.b32.xlu0 %v5092, 124
      %v5174 = vpop.permute.xlu0 %5173
      %5175 = vrot.lane.b32.xlu0 %v5093, 124
      %v5176 = vpop.permute.xlu0 %5175
      %5177 = vrot.lane.b32.xlu0 %v5094, 124
      %v5178 = vpop.permute.xlu0 %5177
      %5179 = vrot.lane.b32.xlu0 %v5095, 124
      %v5180 = vpop.permute.xlu0 %5179
      %5181 = vrot.lane.b32.xlu0 %v5096, 124
      %v5182 = vpop.permute.xlu0 %5181
      %5183 = vrot.lane.b32.xlu0 %v5097, 124
      %v5184 = vpop.permute.xlu0 %5183
      %5185 = vrot.lane.b32.xlu0 %v5098, 124
      %v5186 = vpop.permute.xlu0 %5185
      %5187 = vrot.lane.b32.xlu0 %v5099, 124
      %v5188 = vpop.permute.xlu0 %5187
      %5189 = vrot.lane.b32.xlu0 %v5100, 124
      %v5190 = vpop.permute.xlu0 %5189
      %5191 = vrot.lane.b32.xlu0 %v5101, 124
      %v5192 = vpop.permute.xlu0 %5191
      %5193 = vrot.lane.b32.xlu0 %v5102, 124
      %v5194 = vpop.permute.xlu0 %5193
      %5195 = vrot.lane.b32.xlu0 %v5103, 124
      %v5196 = vpop.permute.xlu0 %5195
      %5197 = vrot.lane.b32.xlu0 %v5104, 124
      %v5198 = vpop.permute.xlu0 %5197
      %5199 = vrot.lane.b32.xlu0 %v5105, 124
      %v5200 = vpop.permute.xlu0 %5199
      %5201 = vrot.lane.b32.xlu0 %v5106, 124
      %v5202 = vpop.permute.xlu0 %5201
      %vm5203 = vcmask 1014784
      %v5204 = vsel %vm5203, %v5140, %v5142
      %v5205 = vsel %vm5203, %v5142, %v5144
      %v5206 = vsel %vm5203, %v5144, %v5146
      %v5207 = vsel %vm5203, %v5148, %v5150
      %v5208 = vsel %vm5203, %v5150, %v5152
      %v5209 = vsel %vm5203, %v5152, %v5154
      %v5210 = vsel %vm5203, %v5156, %v5158
      %v5211 = vsel %vm5203, %v5158, %v5160
      %v5212 = vsel %vm5203, %v5160, %v5162
      %v5213 = vsel %vm5203, %v5164, %v5166
      %v5214 = vsel %vm5203, %v5166, %v5168
      %v5215 = vsel %vm5203, %v5168, %v5170
      %v5216 = vsel %vm5203, %v5172, %v5174
      %v5217 = vsel %vm5203, %v5174, %v5176
      %v5218 = vsel %vm5203, %v5176, %v5178
      %v5219 = vsel %vm5203, %v5180, %v5182
      %v5220 = vsel %vm5203, %v5182, %v5184
      %v5221 = vsel %vm5203, %v5184, %v5186
      %v5222 = vsel %vm5203, %v5188, %v5190
      %v5223 = vsel %vm5203, %v5190, %v5192
      %v5224 = vsel %vm5203, %v5192, %v5194
      %v5225 = vsel %vm5203, %v5196, %v5198
      %v5226 = vsel %vm5203, %v5198, %v5200
      %v5227 = vsel %vm5203, %v5200, %v5202
      %v5260 = vadd.f32 %v5011, %v5204
      %v5261 = vadd.f32 %v5012, %v5205
      %v5262 = vadd.f32 %v5013, %v5206
      %v5263 = vadd.f32 %v5014, %v5146
      %v5264 = vadd.f32 %v5015, %v5207
      %v5265 = vadd.f32 %v5016, %v5208
      %v5266 = vadd.f32 %v5017, %v5209
      %v5267 = vadd.f32 %v5018, %v5154
      %v5268 = vadd.f32 %v5019, %v5210
      %v5269 = vadd.f32 %v5020, %v5211
      %v5270 = vadd.f32 %v5021, %v5212
      %v5271 = vadd.f32 %v5022, %v5162
      %v5272 = vadd.f32 %v5023, %v5213
      %v5273 = vadd.f32 %v5024, %v5214
      %v5274 = vadd.f32 %v5025, %v5215
      %v5275 = vadd.f32 %v5026, %v5170
      %v5276 = vadd.f32 %v5027, %v5216
      %v5277 = vadd.f32 %v5028, %v5217
      %v5278 = vadd.f32 %v5029, %v5218
      %v5279 = vadd.f32 %v5030, %v5178
      %v5280 = vadd.f32 %v5031, %v5219
      %v5281 = vadd.f32 %v5032, %v5220
      %v5282 = vadd.f32 %v5033, %v5221
      %v5283 = vadd.f32 %v5034, %v5186
      %v5284 = vadd.f32 %v5035, %v5222
      %v5285 = vadd.f32 %v5036, %v5223
      %v5286 = vadd.f32 %v5037, %v5224
      %v5287 = vadd.f32 %v5038, %v5194
      %v5288 = vadd.f32 %v5039, %v5225
      %v5289 = vadd.f32 %v5040, %v5226
      %v5290 = vadd.f32 %v5041, %v5227
      %v5291 = vadd.f32 %v5042, %v5202
      %5292 = vset.pattern.permute.xlu0 5
      %5293 = vperm.xlu0 %5292, %v4216
      %v5294 = vpop.permute.xlu0 %5293
      %5296 = vset.pattern.permute.xlu0 5
      %5297 = vperm.xlu0 %5296, %v4217
      %v5298 = vpop.permute.xlu0 %5297
      %5300 = vset.pattern.permute.xlu0 5
      %5301 = vperm.xlu0 %5300, %v4218
      %v5302 = vpop.permute.xlu0 %5301
      %5304 = vset.pattern.permute.xlu0 5
      %5305 = vperm.xlu0 %5304, %v4219
      %v5306 = vpop.permute.xlu0 %5305
      %5308 = vset.pattern.permute.xlu0 5
      %5309 = vperm.xlu0 %5308, %v4220
      %v5310 = vpop.permute.xlu0 %5309
      %5312 = vset.pattern.permute.xlu0 5
      %5313 = vperm.xlu0 %5312, %v4221
      %v5314 = vpop.permute.xlu0 %5313
      %5316 = vset.pattern.permute.xlu0 5
      %5317 = vperm.xlu0 %5316, %v4222
      %v5318 = vpop.permute.xlu0 %5317
      %5320 = vset.pattern.permute.xlu0 5
      %5321 = vperm.xlu0 %5320, %v4223
      %v5322 = vpop.permute.xlu0 %5321
      %v5324 = vmul.f32 %v5294, %v3675
      %v5325 = vmul.f32 %v5294, %v3849
      %v5326 = vmul.f32 %v5294, %v4023
      %v5327 = vmul.f32 %v5294, %v4197
      %v5328 = vmul.f32 %v5298, %v3677
      %v5329 = vmul.f32 %v5298, %v3851
      %v5330 = vmul.f32 %v5298, %v4025
      %v5331 = vmul.f32 %v5298, %v4199
      %v5332 = vmul.f32 %v5302, %v3680
      %v5333 = vmul.f32 %v5302, %v3854
      %v5334 = vmul.f32 %v5302, %v4028
      %v5335 = vmul.f32 %v5302, %v4202
      %v5336 = vmul.f32 %v5306, %v3682
      %v5337 = vmul.f32 %v5306, %v3856
      %v5338 = vmul.f32 %v5306, %v4030
      %v5339 = vmul.f32 %v5306, %v4204
      %v5340 = vmul.f32 %v5310, %v3685
      %v5341 = vmul.f32 %v5310, %v3859
      %v5342 = vmul.f32 %v5310, %v4033
      %v5343 = vmul.f32 %v5310, %v4207
      %v5344 = vmul.f32 %v5314, %v3687
      %v5345 = vmul.f32 %v5314, %v3861
      %v5346 = vmul.f32 %v5314, %v4035
      %v5347 = vmul.f32 %v5314, %v4209
      %v5348 = vmul.f32 %v5318, %v3690
      %v5349 = vmul.f32 %v5318, %v3864
      %v5350 = vmul.f32 %v5318, %v4038
      %v5351 = vmul.f32 %v5318, %v4212
      %v5352 = vmul.f32 %v5322, %v3692
      %v5353 = vmul.f32 %v5322, %v3866
      %v5354 = vmul.f32 %v5322, %v4040
      %v5355 = vmul.f32 %v5322, %v4214
      %5388 = vrot.lane.b32.xlu0 %v5324, 123
      %v5389 = vpop.permute.xlu0 %5388
      %5390 = vrot.lane.b32.xlu0 %v5325, 123
      %v5391 = vpop.permute.xlu0 %5390
      %5392 = vrot.lane.b32.xlu0 %v5326, 123
      %v5393 = vpop.permute.xlu0 %5392
      %5394 = vrot.lane.b32.xlu0 %v5327, 123
      %v5395 = vpop.permute.xlu0 %5394
      %5396 = vrot.lane.b32.xlu0 %v5328, 123
      %v5397 = vpop.permute.xlu0 %5396
      %5398 = vrot.lane.b32.xlu0 %v5329, 123
      %v5399 = vpop.permute.xlu0 %5398
      %5400 = vrot.lane.b32.xlu0 %v5330, 123
      %v5401 = vpop.permute.xlu0 %5400
      %5402 = vrot.lane.b32.xlu0 %v5331, 123
      %v5403 = vpop.permute.xlu0 %5402
      %5404 = vrot.lane.b32.xlu0 %v5332, 123
      %v5405 = vpop.permute.xlu0 %5404
      %5406 = vrot.lane.b32.xlu0 %v5333, 123
      %v5407 = vpop.permute.xlu0 %5406
      %5408 = vrot.lane.b32.xlu0 %v5334, 123
      %v5409 = vpop.permute.xlu0 %5408
      %5410 = vrot.lane.b32.xlu0 %v5335, 123
      %v5411 = vpop.permute.xlu0 %5410
      %5412 = vrot.lane.b32.xlu0 %v5336, 123
      %v5413 = vpop.permute.xlu0 %5412
      %5414 = vrot.lane.b32.xlu0 %v5337, 123
      %v5415 = vpop.permute.xlu0 %5414
      %5416 = vrot.lane.b32.xlu0 %v5338, 123
      %v5417 = vpop.permute.xlu0 %5416
      %5418 = vrot.lane.b32.xlu0 %v5339, 123
      %v5419 = vpop.permute.xlu0 %5418
      %5420 = vrot.lane.b32.xlu0 %v5340, 123
      %v5421 = vpop.permute.xlu0 %5420
      %5422 = vrot.lane.b32.xlu0 %v5341, 123
      %v5423 = vpop.permute.xlu0 %5422
      %5424 = vrot.lane.b32.xlu0 %v5342, 123
      %v5425 = vpop.permute.xlu0 %5424
      %5426 = vrot.lane.b32.xlu0 %v5343, 123
      %v5427 = vpop.permute.xlu0 %5426
      %5428 = vrot.lane.b32.xlu0 %v5344, 123
      %v5429 = vpop.permute.xlu0 %5428
      %5430 = vrot.lane.b32.xlu0 %v5345, 123
      %v5431 = vpop.permute.xlu0 %5430
      %5432 = vrot.lane.b32.xlu0 %v5346, 123
      %v5433 = vpop.permute.xlu0 %5432
      %5434 = vrot.lane.b32.xlu0 %v5347, 123
      %v5435 = vpop.permute.xlu0 %5434
      %5436 = vrot.lane.b32.xlu0 %v5348, 123
      %v5437 = vpop.permute.xlu0 %5436
      %5438 = vrot.lane.b32.xlu0 %v5349, 123
      %v5439 = vpop.permute.xlu0 %5438
      %5440 = vrot.lane.b32.xlu0 %v5350, 123
      %v5441 = vpop.permute.xlu0 %5440
      %5442 = vrot.lane.b32.xlu0 %v5351, 123
      %v5443 = vpop.permute.xlu0 %5442
      %5444 = vrot.lane.b32.xlu0 %v5352, 123
      %v5445 = vpop.permute.xlu0 %5444
      %5446 = vrot.lane.b32.xlu0 %v5353, 123
      %v5447 = vpop.permute.xlu0 %5446
      %5448 = vrot.lane.b32.xlu0 %v5354, 123
      %v5449 = vpop.permute.xlu0 %5448
      %5450 = vrot.lane.b32.xlu0 %v5355, 123
      %v5451 = vpop.permute.xlu0 %5450
      %vm5452 = vcmask 1006592
      %v5453 = vsel %vm5452, %v5389, %v5391
      %v5454 = vsel %vm5452, %v5391, %v5393
      %v5455 = vsel %vm5452, %v5393, %v5395
      %v5456 = vsel %vm5452, %v5397, %v5399
      %v5457 = vsel %vm5452, %v5399, %v5401
      %v5458 = vsel %vm5452, %v5401, %v5403
      %v5459 = vsel %vm5452, %v5405, %v5407
      %v5460 = vsel %vm5452, %v5407, %v5409
      %v5461 = vsel %vm5452, %v5409, %v5411
      %v5462 = vsel %vm5452, %v5413, %v5415
      %v5463 = vsel %vm5452, %v5415, %v5417
      %v5464 = vsel %vm5452, %v5417, %v5419
      %v5465 = vsel %vm5452, %v5421, %v5423
      %v5466 = vsel %vm5452, %v5423, %v5425
      %v5467 = vsel %vm5452, %v5425, %v5427
      %v5468 = vsel %vm5452, %v5429, %v5431
      %v5469 = vsel %vm5452, %v5431, %v5433
      %v5470 = vsel %vm5452, %v5433, %v5435
      %v5471 = vsel %vm5452, %v5437, %v5439
      %v5472 = vsel %vm5452, %v5439, %v5441
      %v5473 = vsel %vm5452, %v5441, %v5443
      %v5474 = vsel %vm5452, %v5445, %v5447
      %v5475 = vsel %vm5452, %v5447, %v5449
      %v5476 = vsel %vm5452, %v5449, %v5451
      %v5509 = vadd.f32 %v5260, %v5453
      %v5510 = vadd.f32 %v5261, %v5454
      %v5511 = vadd.f32 %v5262, %v5455
      %v5512 = vadd.f32 %v5263, %v5395
      %v5513 = vadd.f32 %v5264, %v5456
      %v5514 = vadd.f32 %v5265, %v5457
      %v5515 = vadd.f32 %v5266, %v5458
      %v5516 = vadd.f32 %v5267, %v5403
      %v5517 = vadd.f32 %v5268, %v5459
      %v5518 = vadd.f32 %v5269, %v5460
      %v5519 = vadd.f32 %v5270, %v5461
      %v5520 = vadd.f32 %v5271, %v5411
      %v5521 = vadd.f32 %v5272, %v5462
      %v5522 = vadd.f32 %v5273, %v5463
      %v5523 = vadd.f32 %v5274, %v5464
      %v5524 = vadd.f32 %v5275, %v5419
      %v5525 = vadd.f32 %v5276, %v5465
      %v5526 = vadd.f32 %v5277, %v5466
      %v5527 = vadd.f32 %v5278, %v5467
      %v5528 = vadd.f32 %v5279, %v5427
      %v5529 = vadd.f32 %v5280, %v5468
      %v5530 = vadd.f32 %v5281, %v5469
      %v5531 = vadd.f32 %v5282, %v5470
      %v5532 = vadd.f32 %v5283, %v5435
      %v5533 = vadd.f32 %v5284, %v5471
      %v5534 = vadd.f32 %v5285, %v5472
      %v5535 = vadd.f32 %v5286, %v5473
      %v5536 = vadd.f32 %v5287, %v5443
      %v5537 = vadd.f32 %v5288, %v5474
      %v5538 = vadd.f32 %v5289, %v5475
      %v5539 = vadd.f32 %v5290, %v5476
      %v5540 = vadd.f32 %v5291, %v5451
      %5541 = vset.pattern.permute.xlu0 6
      %5542 = vperm.xlu0 %5541, %v4216
      %v5543 = vpop.permute.xlu0 %5542
      %5545 = vset.pattern.permute.xlu0 6
      %5546 = vperm.xlu0 %5545, %v4217
      %v5547 = vpop.permute.xlu0 %5546
      %5549 = vset.pattern.permute.xlu0 6
      %5550 = vperm.xlu0 %5549, %v4218
      %v5551 = vpop.permute.xlu0 %5550
      %5553 = vset.pattern.permute.xlu0 6
      %5554 = vperm.xlu0 %5553, %v4219
      %v5555 = vpop.permute.xlu0 %5554
      %5557 = vset.pattern.permute.xlu0 6
      %5558 = vperm.xlu0 %5557, %v4220
      %v5559 = vpop.permute.xlu0 %5558
      %5561 = vset.pattern.permute.xlu0 6
      %5562 = vperm.xlu0 %5561, %v4221
      %v5563 = vpop.permute.xlu0 %5562
      %5565 = vset.pattern.permute.xlu0 6
      %5566 = vperm.xlu0 %5565, %v4222
      %v5567 = vpop.permute.xlu0 %5566
      %5569 = vset.pattern.permute.xlu0 6
      %5570 = vperm.xlu0 %5569, %v4223
      %v5571 = vpop.permute.xlu0 %5570
      %v5573 = vmul.f32 %v5543, %v3675
      %v5574 = vmul.f32 %v5543, %v3849
      %v5575 = vmul.f32 %v5543, %v4023
      %v5576 = vmul.f32 %v5543, %v4197
      %v5577 = vmul.f32 %v5547, %v3677
      %v5578 = vmul.f32 %v5547, %v3851
      %v5579 = vmul.f32 %v5547, %v4025
      %v5580 = vmul.f32 %v5547, %v4199
      %v5581 = vmul.f32 %v5551, %v3680
      %v5582 = vmul.f32 %v5551, %v3854
      %v5583 = vmul.f32 %v5551, %v4028
      %v5584 = vmul.f32 %v5551, %v4202
      %v5585 = vmul.f32 %v5555, %v3682
      %v5586 = vmul.f32 %v5555, %v3856
      %v5587 = vmul.f32 %v5555, %v4030
      %v5588 = vmul.f32 %v5555, %v4204
      %v5589 = vmul.f32 %v5559, %v3685
      %v5590 = vmul.f32 %v5559, %v3859
      %v5591 = vmul.f32 %v5559, %v4033
      %v5592 = vmul.f32 %v5559, %v4207
      %v5593 = vmul.f32 %v5563, %v3687
      %v5594 = vmul.f32 %v5563, %v3861
      %v5595 = vmul.f32 %v5563, %v4035
      %v5596 = vmul.f32 %v5563, %v4209
      %v5597 = vmul.f32 %v5567, %v3690
      %v5598 = vmul.f32 %v5567, %v3864
      %v5599 = vmul.f32 %v5567, %v4038
      %v5600 = vmul.f32 %v5567, %v4212
      %v5601 = vmul.f32 %v5571, %v3692
      %v5602 = vmul.f32 %v5571, %v3866
      %v5603 = vmul.f32 %v5571, %v4040
      %v5604 = vmul.f32 %v5571, %v4214
      %5637 = vrot.lane.b32.xlu0 %v5573, 122
      %v5638 = vpop.permute.xlu0 %5637
      %5639 = vrot.lane.b32.xlu0 %v5574, 122
      %v5640 = vpop.permute.xlu0 %5639
      %5641 = vrot.lane.b32.xlu0 %v5575, 122
      %v5642 = vpop.permute.xlu0 %5641
      %5643 = vrot.lane.b32.xlu0 %v5576, 122
      %v5644 = vpop.permute.xlu0 %5643
      %5645 = vrot.lane.b32.xlu0 %v5577, 122
      %v5646 = vpop.permute.xlu0 %5645
      %5647 = vrot.lane.b32.xlu0 %v5578, 122
      %v5648 = vpop.permute.xlu0 %5647
      %5649 = vrot.lane.b32.xlu0 %v5579, 122
      %v5650 = vpop.permute.xlu0 %5649
      %5651 = vrot.lane.b32.xlu0 %v5580, 122
      %v5652 = vpop.permute.xlu0 %5651
      %5653 = vrot.lane.b32.xlu0 %v5581, 122
      %v5654 = vpop.permute.xlu0 %5653
      %5655 = vrot.lane.b32.xlu0 %v5582, 122
      %v5656 = vpop.permute.xlu0 %5655
      %5657 = vrot.lane.b32.xlu0 %v5583, 122
      %v5658 = vpop.permute.xlu0 %5657
      %5659 = vrot.lane.b32.xlu0 %v5584, 122
      %v5660 = vpop.permute.xlu0 %5659
      %5661 = vrot.lane.b32.xlu0 %v5585, 122
      %v5662 = vpop.permute.xlu0 %5661
      %5663 = vrot.lane.b32.xlu0 %v5586, 122
      %v5664 = vpop.permute.xlu0 %5663
      %5665 = vrot.lane.b32.xlu0 %v5587, 122
      %v5666 = vpop.permute.xlu0 %5665
      %5667 = vrot.lane.b32.xlu0 %v5588, 122
      %v5668 = vpop.permute.xlu0 %5667
      %5669 = vrot.lane.b32.xlu0 %v5589, 122
      %v5670 = vpop.permute.xlu0 %5669
      %5671 = vrot.lane.b32.xlu0 %v5590, 122
      %v5672 = vpop.permute.xlu0 %5671
      %5673 = vrot.lane.b32.xlu0 %v5591, 122
      %v5674 = vpop.permute.xlu0 %5673
      %5675 = vrot.lane.b32.xlu0 %v5592, 122
      %v5676 = vpop.permute.xlu0 %5675
      %5677 = vrot.lane.b32.xlu0 %v5593, 122
      %v5678 = vpop.permute.xlu0 %5677
      %5679 = vrot.lane.b32.xlu0 %v5594, 122
      %v5680 = vpop.permute.xlu0 %5679
      %5681 = vrot.lane.b32.xlu0 %v5595, 122
      %v5682 = vpop.permute.xlu0 %5681
      %5683 = vrot.lane.b32.xlu0 %v5596, 122
      %v5684 = vpop.permute.xlu0 %5683
      %5685 = vrot.lane.b32.xlu0 %v5597, 122
      %v5686 = vpop.permute.xlu0 %5685
      %5687 = vrot.lane.b32.xlu0 %v5598, 122
      %v5688 = vpop.permute.xlu0 %5687
      %5689 = vrot.lane.b32.xlu0 %v5599, 122
      %v5690 = vpop.permute.xlu0 %5689
      %5691 = vrot.lane.b32.xlu0 %v5600, 122
      %v5692 = vpop.permute.xlu0 %5691
      %5693 = vrot.lane.b32.xlu0 %v5601, 122
      %v5694 = vpop.permute.xlu0 %5693
      %5695 = vrot.lane.b32.xlu0 %v5602, 122
      %v5696 = vpop.permute.xlu0 %5695
      %5697 = vrot.lane.b32.xlu0 %v5603, 122
      %v5698 = vpop.permute.xlu0 %5697
      %5699 = vrot.lane.b32.xlu0 %v5604, 122
      %v5700 = vpop.permute.xlu0 %5699
      %vm5701 = vcmask 998400
      %v5702 = vsel %vm5701, %v5638, %v5640
      %v5703 = vsel %vm5701, %v5640, %v5642
      %v5704 = vsel %vm5701, %v5642, %v5644
      %v5705 = vsel %vm5701, %v5646, %v5648
      %v5706 = vsel %vm5701, %v5648, %v5650
      %v5707 = vsel %vm5701, %v5650, %v5652
      %v5708 = vsel %vm5701, %v5654, %v5656
      %v5709 = vsel %vm5701, %v5656, %v5658
      %v5710 = vsel %vm5701, %v5658, %v5660
      %v5711 = vsel %vm5701, %v5662, %v5664
      %v5712 = vsel %vm5701, %v5664, %v5666
      %v5713 = vsel %vm5701, %v5666, %v5668
      %v5714 = vsel %vm5701, %v5670, %v5672
      %v5715 = vsel %vm5701, %v5672, %v5674
      %v5716 = vsel %vm5701, %v5674, %v5676
      %v5717 = vsel %vm5701, %v5678, %v5680
      %v5718 = vsel %vm5701, %v5680, %v5682
      %v5719 = vsel %vm5701, %v5682, %v5684
      %v5720 = vsel %vm5701, %v5686, %v5688
      %v5721 = vsel %vm5701, %v5688, %v5690
      %v5722 = vsel %vm5701, %v5690, %v5692
      %v5723 = vsel %vm5701, %v5694, %v5696
      %v5724 = vsel %vm5701, %v5696, %v5698
      %v5725 = vsel %vm5701, %v5698, %v5700
      %v5758 = vadd.f32 %v5509, %v5702
      %v5759 = vadd.f32 %v5510, %v5703
      %v5760 = vadd.f32 %v5511, %v5704
      %v5761 = vadd.f32 %v5512, %v5644
      %v5762 = vadd.f32 %v5513, %v5705
      %v5763 = vadd.f32 %v5514, %v5706
      %v5764 = vadd.f32 %v5515, %v5707
      %v5765 = vadd.f32 %v5516, %v5652
      %v5766 = vadd.f32 %v5517, %v5708
      %v5767 = vadd.f32 %v5518, %v5709
      %v5768 = vadd.f32 %v5519, %v5710
      %v5769 = vadd.f32 %v5520, %v5660
      %v5770 = vadd.f32 %v5521, %v5711
      %v5771 = vadd.f32 %v5522, %v5712
      %v5772 = vadd.f32 %v5523, %v5713
      %v5773 = vadd.f32 %v5524, %v5668
      %v5774 = vadd.f32 %v5525, %v5714
      %v5775 = vadd.f32 %v5526, %v5715
      %v5776 = vadd.f32 %v5527, %v5716
      %v5777 = vadd.f32 %v5528, %v5676
      %v5778 = vadd.f32 %v5529, %v5717
      %v5779 = vadd.f32 %v5530, %v5718
      %v5780 = vadd.f32 %v5531, %v5719
      %v5781 = vadd.f32 %v5532, %v5684
      %v5782 = vadd.f32 %v5533, %v5720
      %v5783 = vadd.f32 %v5534, %v5721
      %v5784 = vadd.f32 %v5535, %v5722
      %v5785 = vadd.f32 %v5536, %v5692
      %v5786 = vadd.f32 %v5537, %v5723
      %v5787 = vadd.f32 %v5538, %v5724
      %v5788 = vadd.f32 %v5539, %v5725
      %v5789 = vadd.f32 %v5540, %v5700
      %5790 = vset.pattern.permute.xlu0 7
      %5791 = vperm.xlu0 %5790, %v4216
      %v5792 = vpop.permute.xlu0 %5791
      %5794 = vset.pattern.permute.xlu0 7
      %5795 = vperm.xlu0 %5794, %v4217
      %v5796 = vpop.permute.xlu0 %5795
      %5798 = vset.pattern.permute.xlu0 7
      %5799 = vperm.xlu0 %5798, %v4218
      %v5800 = vpop.permute.xlu0 %5799
      %5802 = vset.pattern.permute.xlu0 7
      %5803 = vperm.xlu0 %5802, %v4219
      %v5804 = vpop.permute.xlu0 %5803
      %5806 = vset.pattern.permute.xlu0 7
      %5807 = vperm.xlu0 %5806, %v4220
      %v5808 = vpop.permute.xlu0 %5807
      %5810 = vset.pattern.permute.xlu0 7
      %5811 = vperm.xlu0 %5810, %v4221
      %v5812 = vpop.permute.xlu0 %5811
      %5814 = vset.pattern.permute.xlu0 7
      %5815 = vperm.xlu0 %5814, %v4222
      %v5816 = vpop.permute.xlu0 %5815
      %5818 = vset.pattern.permute.xlu0 7
      %5819 = vperm.xlu0 %5818, %v4223
      %v5820 = vpop.permute.xlu0 %5819
      %v5822 = vmul.f32 %v5792, %v3675
      %v5823 = vmul.f32 %v5792, %v3849
      %v5824 = vmul.f32 %v5792, %v4023
      %v5825 = vmul.f32 %v5792, %v4197
      %v5826 = vmul.f32 %v5796, %v3677
      %v5827 = vmul.f32 %v5796, %v3851
      %v5828 = vmul.f32 %v5796, %v4025
      %v5829 = vmul.f32 %v5796, %v4199
      %v5830 = vmul.f32 %v5800, %v3680
      %v5831 = vmul.f32 %v5800, %v3854
      %v5832 = vmul.f32 %v5800, %v4028
      %v5833 = vmul.f32 %v5800, %v4202
      %v5834 = vmul.f32 %v5804, %v3682
      %v5835 = vmul.f32 %v5804, %v3856
      %v5836 = vmul.f32 %v5804, %v4030
      %v5837 = vmul.f32 %v5804, %v4204
      %v5838 = vmul.f32 %v5808, %v3685
      %v5839 = vmul.f32 %v5808, %v3859
      %v5840 = vmul.f32 %v5808, %v4033
      %v5841 = vmul.f32 %v5808, %v4207
      %v5842 = vmul.f32 %v5812, %v3687
      %v5843 = vmul.f32 %v5812, %v3861
      %v5844 = vmul.f32 %v5812, %v4035
      %v5845 = vmul.f32 %v5812, %v4209
      %v5846 = vmul.f32 %v5816, %v3690
      %v5847 = vmul.f32 %v5816, %v3864
      %v5848 = vmul.f32 %v5816, %v4038
      %v5849 = vmul.f32 %v5816, %v4212
      %v5850 = vmul.f32 %v5820, %v3692
      %v5851 = vmul.f32 %v5820, %v3866
      %v5852 = vmul.f32 %v5820, %v4040
      %v5853 = vmul.f32 %v5820, %v4214
      %5886 = vrot.lane.b32.xlu0 %v5822, 121
      %v5887 = vpop.permute.xlu0 %5886
      %5888 = vrot.lane.b32.xlu0 %v5823, 121
      %v5889 = vpop.permute.xlu0 %5888
      %5890 = vrot.lane.b32.xlu0 %v5824, 121
      %v5891 = vpop.permute.xlu0 %5890
      %5892 = vrot.lane.b32.xlu0 %v5825, 121
      %v5893 = vpop.permute.xlu0 %5892
      %5894 = vrot.lane.b32.xlu0 %v5826, 121
      %v5895 = vpop.permute.xlu0 %5894
      %5896 = vrot.lane.b32.xlu0 %v5827, 121
      %v5897 = vpop.permute.xlu0 %5896
      %5898 = vrot.lane.b32.xlu0 %v5828, 121
      %v5899 = vpop.permute.xlu0 %5898
      %5900 = vrot.lane.b32.xlu0 %v5829, 121
      %v5901 = vpop.permute.xlu0 %5900
      %5902 = vrot.lane.b32.xlu0 %v5830, 121
      %v5903 = vpop.permute.xlu0 %5902
      %5904 = vrot.lane.b32.xlu0 %v5831, 121
      %v5905 = vpop.permute.xlu0 %5904
      %5906 = vrot.lane.b32.xlu0 %v5832, 121
      %v5907 = vpop.permute.xlu0 %5906
      %5908 = vrot.lane.b32.xlu0 %v5833, 121
      %v5909 = vpop.permute.xlu0 %5908
      %5910 = vrot.lane.b32.xlu0 %v5834, 121
      %v5911 = vpop.permute.xlu0 %5910
      %5912 = vrot.lane.b32.xlu0 %v5835, 121
      %v5913 = vpop.permute.xlu0 %5912
      %5914 = vrot.lane.b32.xlu0 %v5836, 121
      %v5915 = vpop.permute.xlu0 %5914
      %5916 = vrot.lane.b32.xlu0 %v5837, 121
      %v5917 = vpop.permute.xlu0 %5916
      %5918 = vrot.lane.b32.xlu0 %v5838, 121
      %v5919 = vpop.permute.xlu0 %5918
      %5920 = vrot.lane.b32.xlu0 %v5839, 121
      %v5921 = vpop.permute.xlu0 %5920
      %5922 = vrot.lane.b32.xlu0 %v5840, 121
      %v5923 = vpop.permute.xlu0 %5922
      %5924 = vrot.lane.b32.xlu0 %v5841, 121
      %v5925 = vpop.permute.xlu0 %5924
      %5926 = vrot.lane.b32.xlu0 %v5842, 121
      %v5927 = vpop.permute.xlu0 %5926
      %5928 = vrot.lane.b32.xlu0 %v5843, 121
      %v5929 = vpop.permute.xlu0 %5928
      %5930 = vrot.lane.b32.xlu0 %v5844, 121
      %v5931 = vpop.permute.xlu0 %5930
      %5932 = vrot.lane.b32.xlu0 %v5845, 121
      %v5933 = vpop.permute.xlu0 %5932
      %5934 = vrot.lane.b32.xlu0 %v5846, 121
      %v5935 = vpop.permute.xlu0 %5934
      %5936 = vrot.lane.b32.xlu0 %v5847, 121
      %v5937 = vpop.permute.xlu0 %5936
      %5938 = vrot.lane.b32.xlu0 %v5848, 121
      %v5939 = vpop.permute.xlu0 %5938
      %5940 = vrot.lane.b32.xlu0 %v5849, 121
      %v5941 = vpop.permute.xlu0 %5940
      %5942 = vrot.lane.b32.xlu0 %v5850, 121
      %v5943 = vpop.permute.xlu0 %5942
      %5944 = vrot.lane.b32.xlu0 %v5851, 121
      %v5945 = vpop.permute.xlu0 %5944
      %5946 = vrot.lane.b32.xlu0 %v5852, 121
      %v5947 = vpop.permute.xlu0 %5946
      %5948 = vrot.lane.b32.xlu0 %v5853, 121
      %v5949 = vpop.permute.xlu0 %5948
      %vm5950 = vcmask 990208
      %v5951 = vsel %vm5950, %v5887, %v5889
      %v5952 = vsel %vm5950, %v5889, %v5891
      %v5953 = vsel %vm5950, %v5891, %v5893
      %v5954 = vsel %vm5950, %v5895, %v5897
      %v5955 = vsel %vm5950, %v5897, %v5899
      %v5956 = vsel %vm5950, %v5899, %v5901
      %v5957 = vsel %vm5950, %v5903, %v5905
      %v5958 = vsel %vm5950, %v5905, %v5907
      %v5959 = vsel %vm5950, %v5907, %v5909
      %v5960 = vsel %vm5950, %v5911, %v5913
      %v5961 = vsel %vm5950, %v5913, %v5915
      %v5962 = vsel %vm5950, %v5915, %v5917
      %v5963 = vsel %vm5950, %v5919, %v5921
      %v5964 = vsel %vm5950, %v5921, %v5923
      %v5965 = vsel %vm5950, %v5923, %v5925
      %v5966 = vsel %vm5950, %v5927, %v5929
      %v5967 = vsel %vm5950, %v5929, %v5931
      %v5968 = vsel %vm5950, %v5931, %v5933
      %v5969 = vsel %vm5950, %v5935, %v5937
      %v5970 = vsel %vm5950, %v5937, %v5939
      %v5971 = vsel %vm5950, %v5939, %v5941
      %v5972 = vsel %vm5950, %v5943, %v5945
      %v5973 = vsel %vm5950, %v5945, %v5947
      %v5974 = vsel %vm5950, %v5947, %v5949
      %v6007 = vadd.f32 %v5758, %v5951
      %v6008 = vadd.f32 %v5759, %v5952
      %v6009 = vadd.f32 %v5760, %v5953
      %v6010 = vadd.f32 %v5761, %v5893
      %v6011 = vadd.f32 %v5762, %v5954
      %v6012 = vadd.f32 %v5763, %v5955
      %v6013 = vadd.f32 %v5764, %v5956
      %v6014 = vadd.f32 %v5765, %v5901
      %v6015 = vadd.f32 %v5766, %v5957
      %v6016 = vadd.f32 %v5767, %v5958
      %v6017 = vadd.f32 %v5768, %v5959
      %v6018 = vadd.f32 %v5769, %v5909
      %v6019 = vadd.f32 %v5770, %v5960
      %v6020 = vadd.f32 %v5771, %v5961
      %v6021 = vadd.f32 %v5772, %v5962
      %v6022 = vadd.f32 %v5773, %v5917
      %v6023 = vadd.f32 %v5774, %v5963
      %v6024 = vadd.f32 %v5775, %v5964
      %v6025 = vadd.f32 %v5776, %v5965
      %v6026 = vadd.f32 %v5777, %v5925
      %v6027 = vadd.f32 %v5778, %v5966
      %v6028 = vadd.f32 %v5779, %v5967
      %v6029 = vadd.f32 %v5780, %v5968
      %v6030 = vadd.f32 %v5781, %v5933
      %v6031 = vadd.f32 %v5782, %v5969
      %v6032 = vadd.f32 %v5783, %v5970
      %v6033 = vadd.f32 %v5784, %v5971
      %v6034 = vadd.f32 %v5785, %v5941
      %v6035 = vadd.f32 %v5786, %v5972
      %v6036 = vadd.f32 %v5787, %v5973
      %v6037 = vadd.f32 %v5788, %v5974
      %v6038 = vadd.f32 %v5789, %v5949
      %6039 = vset.pattern.permute.xlu0 8
      %6040 = vperm.xlu0 %6039, %v4216
      %v6041 = vpop.permute.xlu0 %6040
      %6043 = vset.pattern.permute.xlu0 8
      %6044 = vperm.xlu0 %6043, %v4217
      %v6045 = vpop.permute.xlu0 %6044
      %6047 = vset.pattern.permute.xlu0 8
      %6048 = vperm.xlu0 %6047, %v4218
      %v6049 = vpop.permute.xlu0 %6048
      %6051 = vset.pattern.permute.xlu0 8
      %6052 = vperm.xlu0 %6051, %v4219
      %v6053 = vpop.permute.xlu0 %6052
      %6055 = vset.pattern.permute.xlu0 8
      %6056 = vperm.xlu0 %6055, %v4220
      %v6057 = vpop.permute.xlu0 %6056
      %6059 = vset.pattern.permute.xlu0 8
      %6060 = vperm.xlu0 %6059, %v4221
      %v6061 = vpop.permute.xlu0 %6060
      %6063 = vset.pattern.permute.xlu0 8
      %6064 = vperm.xlu0 %6063, %v4222
      %v6065 = vpop.permute.xlu0 %6064
      %6067 = vset.pattern.permute.xlu0 8
      %6068 = vperm.xlu0 %6067, %v4223
      %v6069 = vpop.permute.xlu0 %6068
      %v6071 = vmul.f32 %v6041, %v3675
      %v6072 = vmul.f32 %v6041, %v3849
      %v6073 = vmul.f32 %v6041, %v4023
      %v6074 = vmul.f32 %v6041, %v4197
      %v6075 = vmul.f32 %v6045, %v3677
      %v6076 = vmul.f32 %v6045, %v3851
      %v6077 = vmul.f32 %v6045, %v4025
      %v6078 = vmul.f32 %v6045, %v4199
      %v6079 = vmul.f32 %v6049, %v3680
      %v6080 = vmul.f32 %v6049, %v3854
      %v6081 = vmul.f32 %v6049, %v4028
      %v6082 = vmul.f32 %v6049, %v4202
      %v6083 = vmul.f32 %v6053, %v3682
      %v6084 = vmul.f32 %v6053, %v3856
      %v6085 = vmul.f32 %v6053, %v4030
      %v6086 = vmul.f32 %v6053, %v4204
      %v6087 = vmul.f32 %v6057, %v3685
      %v6088 = vmul.f32 %v6057, %v3859
      %v6089 = vmul.f32 %v6057, %v4033
      %v6090 = vmul.f32 %v6057, %v4207
      %v6091 = vmul.f32 %v6061, %v3687
      %v6092 = vmul.f32 %v6061, %v3861
      %v6093 = vmul.f32 %v6061, %v4035
      %v6094 = vmul.f32 %v6061, %v4209
      %v6095 = vmul.f32 %v6065, %v3690
      %v6096 = vmul.f32 %v6065, %v3864
      %v6097 = vmul.f32 %v6065, %v4038
      %v6098 = vmul.f32 %v6065, %v4212
      %v6099 = vmul.f32 %v6069, %v3692
      %v6100 = vmul.f32 %v6069, %v3866
      %v6101 = vmul.f32 %v6069, %v4040
      %v6102 = vmul.f32 %v6069, %v4214
      %6135 = vrot.lane.b32.xlu0 %v6071, 120
      %v6136 = vpop.permute.xlu0 %6135
      %6137 = vrot.lane.b32.xlu0 %v6072, 120
      %v6138 = vpop.permute.xlu0 %6137
      %6139 = vrot.lane.b32.xlu0 %v6073, 120
      %v6140 = vpop.permute.xlu0 %6139
      %6141 = vrot.lane.b32.xlu0 %v6074, 120
      %v6142 = vpop.permute.xlu0 %6141
      %6143 = vrot.lane.b32.xlu0 %v6075, 120
      %v6144 = vpop.permute.xlu0 %6143
      %6145 = vrot.lane.b32.xlu0 %v6076, 120
      %v6146 = vpop.permute.xlu0 %6145
      %6147 = vrot.lane.b32.xlu0 %v6077, 120
      %v6148 = vpop.permute.xlu0 %6147
      %6149 = vrot.lane.b32.xlu0 %v6078, 120
      %v6150 = vpop.permute.xlu0 %6149
      %6151 = vrot.lane.b32.xlu0 %v6079, 120
      %v6152 = vpop.permute.xlu0 %6151
      %6153 = vrot.lane.b32.xlu0 %v6080, 120
      %v6154 = vpop.permute.xlu0 %6153
      %6155 = vrot.lane.b32.xlu0 %v6081, 120
      %v6156 = vpop.permute.xlu0 %6155
      %6157 = vrot.lane.b32.xlu0 %v6082, 120
      %v6158 = vpop.permute.xlu0 %6157
      %6159 = vrot.lane.b32.xlu0 %v6083, 120
      %v6160 = vpop.permute.xlu0 %6159
      %6161 = vrot.lane.b32.xlu0 %v6084, 120
      %v6162 = vpop.permute.xlu0 %6161
      %6163 = vrot.lane.b32.xlu0 %v6085, 120
      %v6164 = vpop.permute.xlu0 %6163
      %6165 = vrot.lane.b32.xlu0 %v6086, 120
      %v6166 = vpop.permute.xlu0 %6165
      %6167 = vrot.lane.b32.xlu0 %v6087, 120
      %v6168 = vpop.permute.xlu0 %6167
      %6169 = vrot.lane.b32.xlu0 %v6088, 120
      %v6170 = vpop.permute.xlu0 %6169
      %6171 = vrot.lane.b32.xlu0 %v6089, 120
      %v6172 = vpop.permute.xlu0 %6171
      %6173 = vrot.lane.b32.xlu0 %v6090, 120
      %v6174 = vpop.permute.xlu0 %6173
      %6175 = vrot.lane.b32.xlu0 %v6091, 120
      %v6176 = vpop.permute.xlu0 %6175
      %6177 = vrot.lane.b32.xlu0 %v6092, 120
      %v6178 = vpop.permute.xlu0 %6177
      %6179 = vrot.lane.b32.xlu0 %v6093, 120
      %v6180 = vpop.permute.xlu0 %6179
      %6181 = vrot.lane.b32.xlu0 %v6094, 120
      %v6182 = vpop.permute.xlu0 %6181
      %6183 = vrot.lane.b32.xlu0 %v6095, 120
      %v6184 = vpop.permute.xlu0 %6183
      %6185 = vrot.lane.b32.xlu0 %v6096, 120
      %v6186 = vpop.permute.xlu0 %6185
      %6187 = vrot.lane.b32.xlu0 %v6097, 120
      %v6188 = vpop.permute.xlu0 %6187
      %6189 = vrot.lane.b32.xlu0 %v6098, 120
      %v6190 = vpop.permute.xlu0 %6189
      %6191 = vrot.lane.b32.xlu0 %v6099, 120
      %v6192 = vpop.permute.xlu0 %6191
      %6193 = vrot.lane.b32.xlu0 %v6100, 120
      %v6194 = vpop.permute.xlu0 %6193
      %6195 = vrot.lane.b32.xlu0 %v6101, 120
      %v6196 = vpop.permute.xlu0 %6195
      %6197 = vrot.lane.b32.xlu0 %v6102, 120
      %v6198 = vpop.permute.xlu0 %6197
      %vm6199 = vcmask 982016
      %v6200 = vsel %vm6199, %v6136, %v6138
      %v6201 = vsel %vm6199, %v6138, %v6140
      %v6202 = vsel %vm6199, %v6140, %v6142
      %v6203 = vsel %vm6199, %v6144, %v6146
      %v6204 = vsel %vm6199, %v6146, %v6148
      %v6205 = vsel %vm6199, %v6148, %v6150
      %v6206 = vsel %vm6199, %v6152, %v6154
      %v6207 = vsel %vm6199, %v6154, %v6156
      %v6208 = vsel %vm6199, %v6156, %v6158
      %v6209 = vsel %vm6199, %v6160, %v6162
      %v6210 = vsel %vm6199, %v6162, %v6164
      %v6211 = vsel %vm6199, %v6164, %v6166
      %v6212 = vsel %vm6199, %v6168, %v6170
      %v6213 = vsel %vm6199, %v6170, %v6172
      %v6214 = vsel %vm6199, %v6172, %v6174
      %v6215 = vsel %vm6199, %v6176, %v6178
      %v6216 = vsel %vm6199, %v6178, %v6180
      %v6217 = vsel %vm6199, %v6180, %v6182
      %v6218 = vsel %vm6199, %v6184, %v6186
      %v6219 = vsel %vm6199, %v6186, %v6188
      %v6220 = vsel %vm6199, %v6188, %v6190
      %v6221 = vsel %vm6199, %v6192, %v6194
      %v6222 = vsel %vm6199, %v6194, %v6196
      %v6223 = vsel %vm6199, %v6196, %v6198
      %v6256 = vadd.f32 %v6007, %v6200
      %v6257 = vadd.f32 %v6008, %v6201
      %v6258 = vadd.f32 %v6009, %v6202
      %v6259 = vadd.f32 %v6010, %v6142
      %v6260 = vadd.f32 %v6011, %v6203
      %v6261 = vadd.f32 %v6012, %v6204
      %v6262 = vadd.f32 %v6013, %v6205
      %v6263 = vadd.f32 %v6014, %v6150
      %v6264 = vadd.f32 %v6015, %v6206
      %v6265 = vadd.f32 %v6016, %v6207
      %v6266 = vadd.f32 %v6017, %v6208
      %v6267 = vadd.f32 %v6018, %v6158
      %v6268 = vadd.f32 %v6019, %v6209
      %v6269 = vadd.f32 %v6020, %v6210
      %v6270 = vadd.f32 %v6021, %v6211
      %v6271 = vadd.f32 %v6022, %v6166
      %v6272 = vadd.f32 %v6023, %v6212
      %v6273 = vadd.f32 %v6024, %v6213
      %v6274 = vadd.f32 %v6025, %v6214
      %v6275 = vadd.f32 %v6026, %v6174
      %v6276 = vadd.f32 %v6027, %v6215
      %v6277 = vadd.f32 %v6028, %v6216
      %v6278 = vadd.f32 %v6029, %v6217
      %v6279 = vadd.f32 %v6030, %v6182
      %v6280 = vadd.f32 %v6031, %v6218
      %v6281 = vadd.f32 %v6032, %v6219
      %v6282 = vadd.f32 %v6033, %v6220
      %v6283 = vadd.f32 %v6034, %v6190
      %v6284 = vadd.f32 %v6035, %v6221
      %v6285 = vadd.f32 %v6036, %v6222
      %v6286 = vadd.f32 %v6037, %v6223
      %v6287 = vadd.f32 %v6038, %v6198
      %6288 = vset.pattern.permute.xlu0 9
      %6289 = vperm.xlu0 %6288, %v4216
      %v6290 = vpop.permute.xlu0 %6289
      %6292 = vset.pattern.permute.xlu0 9
      %6293 = vperm.xlu0 %6292, %v4217
      %v6294 = vpop.permute.xlu0 %6293
      %6296 = vset.pattern.permute.xlu0 9
      %6297 = vperm.xlu0 %6296, %v4218
      %v6298 = vpop.permute.xlu0 %6297
      %6300 = vset.pattern.permute.xlu0 9
      %6301 = vperm.xlu0 %6300, %v4219
      %v6302 = vpop.permute.xlu0 %6301
      %6304 = vset.pattern.permute.xlu0 9
      %6305 = vperm.xlu0 %6304, %v4220
      %v6306 = vpop.permute.xlu0 %6305
      %6308 = vset.pattern.permute.xlu0 9
      %6309 = vperm.xlu0 %6308, %v4221
      %v6310 = vpop.permute.xlu0 %6309
      %6312 = vset.pattern.permute.xlu0 9
      %6313 = vperm.xlu0 %6312, %v4222
      %v6314 = vpop.permute.xlu0 %6313
      %6316 = vset.pattern.permute.xlu0 9
      %6317 = vperm.xlu0 %6316, %v4223
      %v6318 = vpop.permute.xlu0 %6317
      %v6320 = vmul.f32 %v6290, %v3675
      %v6321 = vmul.f32 %v6290, %v3849
      %v6322 = vmul.f32 %v6290, %v4023
      %v6323 = vmul.f32 %v6290, %v4197
      %v6324 = vmul.f32 %v6294, %v3677
      %v6325 = vmul.f32 %v6294, %v3851
      %v6326 = vmul.f32 %v6294, %v4025
      %v6327 = vmul.f32 %v6294, %v4199
      %v6328 = vmul.f32 %v6298, %v3680
      %v6329 = vmul.f32 %v6298, %v3854
      %v6330 = vmul.f32 %v6298, %v4028
      %v6331 = vmul.f32 %v6298, %v4202
      %v6332 = vmul.f32 %v6302, %v3682
      %v6333 = vmul.f32 %v6302, %v3856
      %v6334 = vmul.f32 %v6302, %v4030
      %v6335 = vmul.f32 %v6302, %v4204
      %v6336 = vmul.f32 %v6306, %v3685
      %v6337 = vmul.f32 %v6306, %v3859
      %v6338 = vmul.f32 %v6306, %v4033
      %v6339 = vmul.f32 %v6306, %v4207
      %v6340 = vmul.f32 %v6310, %v3687
      %v6341 = vmul.f32 %v6310, %v3861
      %v6342 = vmul.f32 %v6310, %v4035
      %v6343 = vmul.f32 %v6310, %v4209
      %v6344 = vmul.f32 %v6314, %v3690
      %v6345 = vmul.f32 %v6314, %v3864
      %v6346 = vmul.f32 %v6314, %v4038
      %v6347 = vmul.f32 %v6314, %v4212
      %v6348 = vmul.f32 %v6318, %v3692
      %v6349 = vmul.f32 %v6318, %v3866
      %v6350 = vmul.f32 %v6318, %v4040
      %v6351 = vmul.f32 %v6318, %v4214
      %6384 = vrot.lane.b32.xlu0 %v6320, 119
      %v6385 = vpop.permute.xlu0 %6384
      %6386 = vrot.lane.b32.xlu0 %v6321, 119
      %v6387 = vpop.permute.xlu0 %6386
      %6388 = vrot.lane.b32.xlu0 %v6322, 119
      %v6389 = vpop.permute.xlu0 %6388
      %6390 = vrot.lane.b32.xlu0 %v6323, 119
      %v6391 = vpop.permute.xlu0 %6390
      %6392 = vrot.lane.b32.xlu0 %v6324, 119
      %v6393 = vpop.permute.xlu0 %6392
      %6394 = vrot.lane.b32.xlu0 %v6325, 119
      %v6395 = vpop.permute.xlu0 %6394
      %6396 = vrot.lane.b32.xlu0 %v6326, 119
      %v6397 = vpop.permute.xlu0 %6396
      %6398 = vrot.lane.b32.xlu0 %v6327, 119
      %v6399 = vpop.permute.xlu0 %6398
      %6400 = vrot.lane.b32.xlu0 %v6328, 119
      %v6401 = vpop.permute.xlu0 %6400
      %6402 = vrot.lane.b32.xlu0 %v6329, 119
      %v6403 = vpop.permute.xlu0 %6402
      %6404 = vrot.lane.b32.xlu0 %v6330, 119
      %v6405 = vpop.permute.xlu0 %6404
      %6406 = vrot.lane.b32.xlu0 %v6331, 119
      %v6407 = vpop.permute.xlu0 %6406
      %6408 = vrot.lane.b32.xlu0 %v6332, 119
      %v6409 = vpop.permute.xlu0 %6408
      %6410 = vrot.lane.b32.xlu0 %v6333, 119
      %v6411 = vpop.permute.xlu0 %6410
      %6412 = vrot.lane.b32.xlu0 %v6334, 119
      %v6413 = vpop.permute.xlu0 %6412
      %6414 = vrot.lane.b32.xlu0 %v6335, 119
      %v6415 = vpop.permute.xlu0 %6414
      %6416 = vrot.lane.b32.xlu0 %v6336, 119
      %v6417 = vpop.permute.xlu0 %6416
      %6418 = vrot.lane.b32.xlu0 %v6337, 119
      %v6419 = vpop.permute.xlu0 %6418
      %6420 = vrot.lane.b32.xlu0 %v6338, 119
      %v6421 = vpop.permute.xlu0 %6420
      %6422 = vrot.lane.b32.xlu0 %v6339, 119
      %v6423 = vpop.permute.xlu0 %6422
      %6424 = vrot.lane.b32.xlu0 %v6340, 119
      %v6425 = vpop.permute.xlu0 %6424
      %6426 = vrot.lane.b32.xlu0 %v6341, 119
      %v6427 = vpop.permute.xlu0 %6426
      %6428 = vrot.lane.b32.xlu0 %v6342, 119
      %v6429 = vpop.permute.xlu0 %6428
      %6430 = vrot.lane.b32.xlu0 %v6343, 119
      %v6431 = vpop.permute.xlu0 %6430
      %6432 = vrot.lane.b32.xlu0 %v6344, 119
      %v6433 = vpop.permute.xlu0 %6432
      %6434 = vrot.lane.b32.xlu0 %v6345, 119
      %v6435 = vpop.permute.xlu0 %6434
      %6436 = vrot.lane.b32.xlu0 %v6346, 119
      %v6437 = vpop.permute.xlu0 %6436
      %6438 = vrot.lane.b32.xlu0 %v6347, 119
      %v6439 = vpop.permute.xlu0 %6438
      %6440 = vrot.lane.b32.xlu0 %v6348, 119
      %v6441 = vpop.permute.xlu0 %6440
      %6442 = vrot.lane.b32.xlu0 %v6349, 119
      %v6443 = vpop.permute.xlu0 %6442
      %6444 = vrot.lane.b32.xlu0 %v6350, 119
      %v6445 = vpop.permute.xlu0 %6444
      %6446 = vrot.lane.b32.xlu0 %v6351, 119
      %v6447 = vpop.permute.xlu0 %6446
      %vm6448 = vcmask 973824
      %v6449 = vsel %vm6448, %v6385, %v6387
      %v6450 = vsel %vm6448, %v6387, %v6389
      %v6451 = vsel %vm6448, %v6389, %v6391
      %v6452 = vsel %vm6448, %v6393, %v6395
      %v6453 = vsel %vm6448, %v6395, %v6397
      %v6454 = vsel %vm6448, %v6397, %v6399
      %v6455 = vsel %vm6448, %v6401, %v6403
      %v6456 = vsel %vm6448, %v6403, %v6405
      %v6457 = vsel %vm6448, %v6405, %v6407
      %v6458 = vsel %vm6448, %v6409, %v6411
      %v6459 = vsel %vm6448, %v6411, %v6413
      %v6460 = vsel %vm6448, %v6413, %v6415
      %v6461 = vsel %vm6448, %v6417, %v6419
      %v6462 = vsel %vm6448, %v6419, %v6421
      %v6463 = vsel %vm6448, %v6421, %v6423
      %v6464 = vsel %vm6448, %v6425, %v6427
      %v6465 = vsel %vm6448, %v6427, %v6429
      %v6466 = vsel %vm6448, %v6429, %v6431
      %v6467 = vsel %vm6448, %v6433, %v6435
      %v6468 = vsel %vm6448, %v6435, %v6437
      %v6469 = vsel %vm6448, %v6437, %v6439
      %v6470 = vsel %vm6448, %v6441, %v6443
      %v6471 = vsel %vm6448, %v6443, %v6445
      %v6472 = vsel %vm6448, %v6445, %v6447
      %v6505 = vadd.f32 %v6256, %v6449
      %v6506 = vadd.f32 %v6257, %v6450
      %v6507 = vadd.f32 %v6258, %v6451
      %v6508 = vadd.f32 %v6259, %v6391
      %v6509 = vadd.f32 %v6260, %v6452
      %v6510 = vadd.f32 %v6261, %v6453
      %v6511 = vadd.f32 %v6262, %v6454
      %v6512 = vadd.f32 %v6263, %v6399
      %v6513 = vadd.f32 %v6264, %v6455
      %v6514 = vadd.f32 %v6265, %v6456
      %v6515 = vadd.f32 %v6266, %v6457
      %v6516 = vadd.f32 %v6267, %v6407
      %v6517 = vadd.f32 %v6268, %v6458
      %v6518 = vadd.f32 %v6269, %v6459
      %v6519 = vadd.f32 %v6270, %v6460
      %v6520 = vadd.f32 %v6271, %v6415
      %v6521 = vadd.f32 %v6272, %v6461
      %v6522 = vadd.f32 %v6273, %v6462
      %v6523 = vadd.f32 %v6274, %v6463
      %v6524 = vadd.f32 %v6275, %v6423
      %v6525 = vadd.f32 %v6276, %v6464
      %v6526 = vadd.f32 %v6277, %v6465
      %v6527 = vadd.f32 %v6278, %v6466
      %v6528 = vadd.f32 %v6279, %v6431
      %v6529 = vadd.f32 %v6280, %v6467
      %v6530 = vadd.f32 %v6281, %v6468
      %v6531 = vadd.f32 %v6282, %v6469
      %v6532 = vadd.f32 %v6283, %v6439
      %v6533 = vadd.f32 %v6284, %v6470
      %v6534 = vadd.f32 %v6285, %v6471
      %v6535 = vadd.f32 %v6286, %v6472
      %v6536 = vadd.f32 %v6287, %v6447
      %6537 = vset.pattern.permute.xlu0 10
      %6538 = vperm.xlu0 %6537, %v4216
      %v6539 = vpop.permute.xlu0 %6538
      %6541 = vset.pattern.permute.xlu0 10
      %6542 = vperm.xlu0 %6541, %v4217
      %v6543 = vpop.permute.xlu0 %6542
      %6545 = vset.pattern.permute.xlu0 10
      %6546 = vperm.xlu0 %6545, %v4218
      %v6547 = vpop.permute.xlu0 %6546
      %6549 = vset.pattern.permute.xlu0 10
      %6550 = vperm.xlu0 %6549, %v4219
      %v6551 = vpop.permute.xlu0 %6550
      %6553 = vset.pattern.permute.xlu0 10
      %6554 = vperm.xlu0 %6553, %v4220
      %v6555 = vpop.permute.xlu0 %6554
      %6557 = vset.pattern.permute.xlu0 10
      %6558 = vperm.xlu0 %6557, %v4221
      %v6559 = vpop.permute.xlu0 %6558
      %6561 = vset.pattern.permute.xlu0 10
      %6562 = vperm.xlu0 %6561, %v4222
      %v6563 = vpop.permute.xlu0 %6562
      %6565 = vset.pattern.permute.xlu0 10
      %6566 = vperm.xlu0 %6565, %v4223
      %v6567 = vpop.permute.xlu0 %6566
      %v6569 = vmul.f32 %v6539, %v3675
      %v6570 = vmul.f32 %v6539, %v3849
      %v6571 = vmul.f32 %v6539, %v4023
      %v6572 = vmul.f32 %v6539, %v4197
      %v6573 = vmul.f32 %v6543, %v3677
      %v6574 = vmul.f32 %v6543, %v3851
      %v6575 = vmul.f32 %v6543, %v4025
      %v6576 = vmul.f32 %v6543, %v4199
      %v6577 = vmul.f32 %v6547, %v3680
      %v6578 = vmul.f32 %v6547, %v3854
      %v6579 = vmul.f32 %v6547, %v4028
      %v6580 = vmul.f32 %v6547, %v4202
      %v6581 = vmul.f32 %v6551, %v3682
      %v6582 = vmul.f32 %v6551, %v3856
      %v6583 = vmul.f32 %v6551, %v4030
      %v6584 = vmul.f32 %v6551, %v4204
      %v6585 = vmul.f32 %v6555, %v3685
      %v6586 = vmul.f32 %v6555, %v3859
      %v6587 = vmul.f32 %v6555, %v4033
      %v6588 = vmul.f32 %v6555, %v4207
      %v6589 = vmul.f32 %v6559, %v3687
      %v6590 = vmul.f32 %v6559, %v3861
      %v6591 = vmul.f32 %v6559, %v4035
      %v6592 = vmul.f32 %v6559, %v4209
      %v6593 = vmul.f32 %v6563, %v3690
      %v6594 = vmul.f32 %v6563, %v3864
      %v6595 = vmul.f32 %v6563, %v4038
      %v6596 = vmul.f32 %v6563, %v4212
      %v6597 = vmul.f32 %v6567, %v3692
      %v6598 = vmul.f32 %v6567, %v3866
      %v6599 = vmul.f32 %v6567, %v4040
      %v6600 = vmul.f32 %v6567, %v4214
      %6633 = vrot.lane.b32.xlu0 %v6569, 118
      %v6634 = vpop.permute.xlu0 %6633
      %6635 = vrot.lane.b32.xlu0 %v6570, 118
      %v6636 = vpop.permute.xlu0 %6635
      %6637 = vrot.lane.b32.xlu0 %v6571, 118
      %v6638 = vpop.permute.xlu0 %6637
      %6639 = vrot.lane.b32.xlu0 %v6572, 118
      %v6640 = vpop.permute.xlu0 %6639
      %6641 = vrot.lane.b32.xlu0 %v6573, 118
      %v6642 = vpop.permute.xlu0 %6641
      %6643 = vrot.lane.b32.xlu0 %v6574, 118
      %v6644 = vpop.permute.xlu0 %6643
      %6645 = vrot.lane.b32.xlu0 %v6575, 118
      %v6646 = vpop.permute.xlu0 %6645
      %6647 = vrot.lane.b32.xlu0 %v6576, 118
      %v6648 = vpop.permute.xlu0 %6647
      %6649 = vrot.lane.b32.xlu0 %v6577, 118
      %v6650 = vpop.permute.xlu0 %6649
      %6651 = vrot.lane.b32.xlu0 %v6578, 118
      %v6652 = vpop.permute.xlu0 %6651
      %6653 = vrot.lane.b32.xlu0 %v6579, 118
      %v6654 = vpop.permute.xlu0 %6653
      %6655 = vrot.lane.b32.xlu0 %v6580, 118
      %v6656 = vpop.permute.xlu0 %6655
      %6657 = vrot.lane.b32.xlu0 %v6581, 118
      %v6658 = vpop.permute.xlu0 %6657
      %6659 = vrot.lane.b32.xlu0 %v6582, 118
      %v6660 = vpop.permute.xlu0 %6659
      %6661 = vrot.lane.b32.xlu0 %v6583, 118
      %v6662 = vpop.permute.xlu0 %6661
      %6663 = vrot.lane.b32.xlu0 %v6584, 118
      %v6664 = vpop.permute.xlu0 %6663
      %6665 = vrot.lane.b32.xlu0 %v6585, 118
      %v6666 = vpop.permute.xlu0 %6665
      %6667 = vrot.lane.b32.xlu0 %v6586, 118
      %v6668 = vpop.permute.xlu0 %6667
      %6669 = vrot.lane.b32.xlu0 %v6587, 118
      %v6670 = vpop.permute.xlu0 %6669
      %6671 = vrot.lane.b32.xlu0 %v6588, 118
      %v6672 = vpop.permute.xlu0 %6671
      %6673 = vrot.lane.b32.xlu0 %v6589, 118
      %v6674 = vpop.permute.xlu0 %6673
      %6675 = vrot.lane.b32.xlu0 %v6590, 118
      %v6676 = vpop.permute.xlu0 %6675
      %6677 = vrot.lane.b32.xlu0 %v6591, 118
      %v6678 = vpop.permute.xlu0 %6677
      %6679 = vrot.lane.b32.xlu0 %v6592, 118
      %v6680 = vpop.permute.xlu0 %6679
      %6681 = vrot.lane.b32.xlu0 %v6593, 118
      %v6682 = vpop.permute.xlu0 %6681
      %6683 = vrot.lane.b32.xlu0 %v6594, 118
      %v6684 = vpop.permute.xlu0 %6683
      %6685 = vrot.lane.b32.xlu0 %v6595, 118
      %v6686 = vpop.permute.xlu0 %6685
      %6687 = vrot.lane.b32.xlu0 %v6596, 118
      %v6688 = vpop.permute.xlu0 %6687
      %6689 = vrot.lane.b32.xlu0 %v6597, 118
      %v6690 = vpop.permute.xlu0 %6689
      %6691 = vrot.lane.b32.xlu0 %v6598, 118
      %v6692 = vpop.permute.xlu0 %6691
      %6693 = vrot.lane.b32.xlu0 %v6599, 118
      %v6694 = vpop.permute.xlu0 %6693
      %6695 = vrot.lane.b32.xlu0 %v6600, 118
      %v6696 = vpop.permute.xlu0 %6695
      %vm6697 = vcmask 965632
      %v6698 = vsel %vm6697, %v6634, %v6636
      %v6699 = vsel %vm6697, %v6636, %v6638
      %v6700 = vsel %vm6697, %v6638, %v6640
      %v6701 = vsel %vm6697, %v6642, %v6644
      %v6702 = vsel %vm6697, %v6644, %v6646
      %v6703 = vsel %vm6697, %v6646, %v6648
      %v6704 = vsel %vm6697, %v6650, %v6652
      %v6705 = vsel %vm6697, %v6652, %v6654
      %v6706 = vsel %vm6697, %v6654, %v6656
      %v6707 = vsel %vm6697, %v6658, %v6660
      %v6708 = vsel %vm6697, %v6660, %v6662
      %v6709 = vsel %vm6697, %v6662, %v6664
      %v6710 = vsel %vm6697, %v6666, %v6668
      %v6711 = vsel %vm6697, %v6668, %v6670
      %v6712 = vsel %vm6697, %v6670, %v6672
      %v6713 = vsel %vm6697, %v6674, %v6676
      %v6714 = vsel %vm6697, %v6676, %v6678
      %v6715 = vsel %vm6697, %v6678, %v6680
      %v6716 = vsel %vm6697, %v6682, %v6684
      %v6717 = vsel %vm6697, %v6684, %v6686
      %v6718 = vsel %vm6697, %v6686, %v6688
      %v6719 = vsel %vm6697, %v6690, %v6692
      %v6720 = vsel %vm6697, %v6692, %v6694
      %v6721 = vsel %vm6697, %v6694, %v6696
      %v6754 = vadd.f32 %v6505, %v6698
      %v6755 = vadd.f32 %v6506, %v6699
      %v6756 = vadd.f32 %v6507, %v6700
      %v6757 = vadd.f32 %v6508, %v6640
      %v6758 = vadd.f32 %v6509, %v6701
      %v6759 = vadd.f32 %v6510, %v6702
      %v6760 = vadd.f32 %v6511, %v6703
      %v6761 = vadd.f32 %v6512, %v6648
      %v6762 = vadd.f32 %v6513, %v6704
      %v6763 = vadd.f32 %v6514, %v6705
      %v6764 = vadd.f32 %v6515, %v6706
      %v6765 = vadd.f32 %v6516, %v6656
      %v6766 = vadd.f32 %v6517, %v6707
      %v6767 = vadd.f32 %v6518, %v6708
      %v6768 = vadd.f32 %v6519, %v6709
      %v6769 = vadd.f32 %v6520, %v6664
      %v6770 = vadd.f32 %v6521, %v6710
      %v6771 = vadd.f32 %v6522, %v6711
      %v6772 = vadd.f32 %v6523, %v6712
      %v6773 = vadd.f32 %v6524, %v6672
      %v6774 = vadd.f32 %v6525, %v6713
      %v6775 = vadd.f32 %v6526, %v6714
      %v6776 = vadd.f32 %v6527, %v6715
      %v6777 = vadd.f32 %v6528, %v6680
      %v6778 = vadd.f32 %v6529, %v6716
      %v6779 = vadd.f32 %v6530, %v6717
      %v6780 = vadd.f32 %v6531, %v6718
      %v6781 = vadd.f32 %v6532, %v6688
      %v6782 = vadd.f32 %v6533, %v6719
      %v6783 = vadd.f32 %v6534, %v6720
      %v6784 = vadd.f32 %v6535, %v6721
      %v6785 = vadd.f32 %v6536, %v6696
      %6786 = vset.pattern.permute.xlu0 11
      %6787 = vperm.xlu0 %6786, %v4216
      %v6788 = vpop.permute.xlu0 %6787
      %6790 = vset.pattern.permute.xlu0 11
      %6791 = vperm.xlu0 %6790, %v4217
      %v6792 = vpop.permute.xlu0 %6791
      %6794 = vset.pattern.permute.xlu0 11
      %6795 = vperm.xlu0 %6794, %v4218
      %v6796 = vpop.permute.xlu0 %6795
      %6798 = vset.pattern.permute.xlu0 11
      %6799 = vperm.xlu0 %6798, %v4219
      %v6800 = vpop.permute.xlu0 %6799
      %6802 = vset.pattern.permute.xlu0 11
      %6803 = vperm.xlu0 %6802, %v4220
      %v6804 = vpop.permute.xlu0 %6803
      %6806 = vset.pattern.permute.xlu0 11
      %6807 = vperm.xlu0 %6806, %v4221
      %v6808 = vpop.permute.xlu0 %6807
      %6810 = vset.pattern.permute.xlu0 11
      %6811 = vperm.xlu0 %6810, %v4222
      %v6812 = vpop.permute.xlu0 %6811
      %6814 = vset.pattern.permute.xlu0 11
      %6815 = vperm.xlu0 %6814, %v4223
      %v6816 = vpop.permute.xlu0 %6815
      %v6818 = vmul.f32 %v6788, %v3675
      %v6819 = vmul.f32 %v6788, %v3849
      %v6820 = vmul.f32 %v6788, %v4023
      %v6821 = vmul.f32 %v6788, %v4197
      %v6822 = vmul.f32 %v6792, %v3677
      %v6823 = vmul.f32 %v6792, %v3851
      %v6824 = vmul.f32 %v6792, %v4025
      %v6825 = vmul.f32 %v6792, %v4199
      %v6826 = vmul.f32 %v6796, %v3680
      %v6827 = vmul.f32 %v6796, %v3854
      %v6828 = vmul.f32 %v6796, %v4028
      %v6829 = vmul.f32 %v6796, %v4202
      %v6830 = vmul.f32 %v6800, %v3682
      %v6831 = vmul.f32 %v6800, %v3856
      %v6832 = vmul.f32 %v6800, %v4030
      %v6833 = vmul.f32 %v6800, %v4204
      %v6834 = vmul.f32 %v6804, %v3685
      %v6835 = vmul.f32 %v6804, %v3859
      %v6836 = vmul.f32 %v6804, %v4033
      %v6837 = vmul.f32 %v6804, %v4207
      %v6838 = vmul.f32 %v6808, %v3687
      %v6839 = vmul.f32 %v6808, %v3861
      %v6840 = vmul.f32 %v6808, %v4035
      %v6841 = vmul.f32 %v6808, %v4209
      %v6842 = vmul.f32 %v6812, %v3690
      %v6843 = vmul.f32 %v6812, %v3864
      %v6844 = vmul.f32 %v6812, %v4038
      %v6845 = vmul.f32 %v6812, %v4212
      %v6846 = vmul.f32 %v6816, %v3692
      %v6847 = vmul.f32 %v6816, %v3866
      %v6848 = vmul.f32 %v6816, %v4040
      %v6849 = vmul.f32 %v6816, %v4214
      %6882 = vrot.lane.b32.xlu0 %v6818, 117
      %v6883 = vpop.permute.xlu0 %6882
      %6884 = vrot.lane.b32.xlu0 %v6819, 117
      %v6885 = vpop.permute.xlu0 %6884
      %6886 = vrot.lane.b32.xlu0 %v6820, 117
      %v6887 = vpop.permute.xlu0 %6886
      %6888 = vrot.lane.b32.xlu0 %v6821, 117
      %v6889 = vpop.permute.xlu0 %6888
      %6890 = vrot.lane.b32.xlu0 %v6822, 117
      %v6891 = vpop.permute.xlu0 %6890
      %6892 = vrot.lane.b32.xlu0 %v6823, 117
      %v6893 = vpop.permute.xlu0 %6892
      %6894 = vrot.lane.b32.xlu0 %v6824, 117
      %v6895 = vpop.permute.xlu0 %6894
      %6896 = vrot.lane.b32.xlu0 %v6825, 117
      %v6897 = vpop.permute.xlu0 %6896
      %6898 = vrot.lane.b32.xlu0 %v6826, 117
      %v6899 = vpop.permute.xlu0 %6898
      %6900 = vrot.lane.b32.xlu0 %v6827, 117
      %v6901 = vpop.permute.xlu0 %6900
      %6902 = vrot.lane.b32.xlu0 %v6828, 117
      %v6903 = vpop.permute.xlu0 %6902
      %6904 = vrot.lane.b32.xlu0 %v6829, 117
      %v6905 = vpop.permute.xlu0 %6904
      %6906 = vrot.lane.b32.xlu0 %v6830, 117
      %v6907 = vpop.permute.xlu0 %6906
      %6908 = vrot.lane.b32.xlu0 %v6831, 117
      %v6909 = vpop.permute.xlu0 %6908
      %6910 = vrot.lane.b32.xlu0 %v6832, 117
      %v6911 = vpop.permute.xlu0 %6910
      %6912 = vrot.lane.b32.xlu0 %v6833, 117
      %v6913 = vpop.permute.xlu0 %6912
      %6914 = vrot.lane.b32.xlu0 %v6834, 117
      %v6915 = vpop.permute.xlu0 %6914
      %6916 = vrot.lane.b32.xlu0 %v6835, 117
      %v6917 = vpop.permute.xlu0 %6916
      %6918 = vrot.lane.b32.xlu0 %v6836, 117
      %v6919 = vpop.permute.xlu0 %6918
      %6920 = vrot.lane.b32.xlu0 %v6837, 117
      %v6921 = vpop.permute.xlu0 %6920
      %6922 = vrot.lane.b32.xlu0 %v6838, 117
      %v6923 = vpop.permute.xlu0 %6922
      %6924 = vrot.lane.b32.xlu0 %v6839, 117
      %v6925 = vpop.permute.xlu0 %6924
      %6926 = vrot.lane.b32.xlu0 %v6840, 117
      %v6927 = vpop.permute.xlu0 %6926
      %6928 = vrot.lane.b32.xlu0 %v6841, 117
      %v6929 = vpop.permute.xlu0 %6928
      %6930 = vrot.lane.b32.xlu0 %v6842, 117
      %v6931 = vpop.permute.xlu0 %6930
      %6932 = vrot.lane.b32.xlu0 %v6843, 117
      %v6933 = vpop.permute.xlu0 %6932
      %6934 = vrot.lane.b32.xlu0 %v6844, 117
      %v6935 = vpop.permute.xlu0 %6934
      %6936 = vrot.lane.b32.xlu0 %v6845, 117
      %v6937 = vpop.permute.xlu0 %6936
      %6938 = vrot.lane.b32.xlu0 %v6846, 117
      %v6939 = vpop.permute.xlu0 %6938
      %6940 = vrot.lane.b32.xlu0 %v6847, 117
      %v6941 = vpop.permute.xlu0 %6940
      %6942 = vrot.lane.b32.xlu0 %v6848, 117
      %v6943 = vpop.permute.xlu0 %6942
      %6944 = vrot.lane.b32.xlu0 %v6849, 117
      %v6945 = vpop.permute.xlu0 %6944
      %vm6946 = vcmask 957440
      %v6947 = vsel %vm6946, %v6883, %v6885
      %v6948 = vsel %vm6946, %v6885, %v6887
      %v6949 = vsel %vm6946, %v6887, %v6889
      %v6950 = vsel %vm6946, %v6891, %v6893
      %v6951 = vsel %vm6946, %v6893, %v6895
      %v6952 = vsel %vm6946, %v6895, %v6897
      %v6953 = vsel %vm6946, %v6899, %v6901
      %v6954 = vsel %vm6946, %v6901, %v6903
      %v6955 = vsel %vm6946, %v6903, %v6905
      %v6956 = vsel %vm6946, %v6907, %v6909
      %v6957 = vsel %vm6946, %v6909, %v6911
      %v6958 = vsel %vm6946, %v6911, %v6913
      %v6959 = vsel %vm6946, %v6915, %v6917
      %v6960 = vsel %vm6946, %v6917, %v6919
      %v6961 = vsel %vm6946, %v6919, %v6921
      %v6962 = vsel %vm6946, %v6923, %v6925
      %v6963 = vsel %vm6946, %v6925, %v6927
      %v6964 = vsel %vm6946, %v6927, %v6929
      %v6965 = vsel %vm6946, %v6931, %v6933
      %v6966 = vsel %vm6946, %v6933, %v6935
      %v6967 = vsel %vm6946, %v6935, %v6937
      %v6968 = vsel %vm6946, %v6939, %v6941
      %v6969 = vsel %vm6946, %v6941, %v6943
      %v6970 = vsel %vm6946, %v6943, %v6945
      %v7003 = vadd.f32 %v6754, %v6947
      %v7004 = vadd.f32 %v6755, %v6948
      %v7005 = vadd.f32 %v6756, %v6949
      %v7006 = vadd.f32 %v6757, %v6889
      %v7007 = vadd.f32 %v6758, %v6950
      %v7008 = vadd.f32 %v6759, %v6951
      %v7009 = vadd.f32 %v6760, %v6952
      %v7010 = vadd.f32 %v6761, %v6897
      %v7011 = vadd.f32 %v6762, %v6953
      %v7012 = vadd.f32 %v6763, %v6954
      %v7013 = vadd.f32 %v6764, %v6955
      %v7014 = vadd.f32 %v6765, %v6905
      %v7015 = vadd.f32 %v6766, %v6956
      %v7016 = vadd.f32 %v6767, %v6957
      %v7017 = vadd.f32 %v6768, %v6958
      %v7018 = vadd.f32 %v6769, %v6913
      %v7019 = vadd.f32 %v6770, %v6959
      %v7020 = vadd.f32 %v6771, %v6960
      %v7021 = vadd.f32 %v6772, %v6961
      %v7022 = vadd.f32 %v6773, %v6921
      %v7023 = vadd.f32 %v6774, %v6962
      %v7024 = vadd.f32 %v6775, %v6963
      %v7025 = vadd.f32 %v6776, %v6964
      %v7026 = vadd.f32 %v6777, %v6929
      %v7027 = vadd.f32 %v6778, %v6965
      %v7028 = vadd.f32 %v6779, %v6966
      %v7029 = vadd.f32 %v6780, %v6967
      %v7030 = vadd.f32 %v6781, %v6937
      %v7031 = vadd.f32 %v6782, %v6968
      %v7032 = vadd.f32 %v6783, %v6969
      %v7033 = vadd.f32 %v6784, %v6970
      %v7034 = vadd.f32 %v6785, %v6945
      %v7035 = vld [vmem:[%s5] sm:$0xf]
      %v7036 = vld [vmem:[%s5 + $0x4] sm:$0xf]
      %v7037 = vld [vmem:[%s5 + $0x8] sm:$0xf]
      %v7038 = vld [vmem:[%s5 + $0xc] sm:$0xf]
      %v7039 = vld [vmem:[%s5 + $0x10] sm:$0xf]
      %v7040 = vld [vmem:[%s5 + $0x14] sm:$0xf]
      %v7041 = vld [vmem:[%s5 + $0x18] sm:$0xf]
      %v7042 = vld [vmem:[%s5 + $0x1c] sm:$0xf]
      %v7043 = vpack.c.bf16 %v7007, %v7003
      %v7044 = vpack.c.bf16 %v7008, %v7004
      %v7045 = vpack.c.bf16 %v7009, %v7005
      %v7046 = vpack.c.bf16 %v7010, %v7006
      %v7047 = vpack.c.bf16 %v7015, %v7011
      %v7048 = vpack.c.bf16 %v7016, %v7012
      %v7049 = vpack.c.bf16 %v7017, %v7013
      %v7050 = vpack.c.bf16 %v7018, %v7014
      %v7051 = vpack.c.bf16 %v7023, %v7019
      %v7052 = vpack.c.bf16 %v7024, %v7020
      %v7053 = vpack.c.bf16 %v7025, %v7021
      %v7054 = vpack.c.bf16 %v7026, %v7022
      %v7055 = vpack.c.bf16 %v7031, %v7027
      %v7056 = vpack.c.bf16 %v7032, %v7028
      %v7057 = vpack.c.bf16 %v7033, %v7029
      %v7058 = vpack.c.bf16 %v7034, %v7030
      %v7059 = vld [vmem:[%s6] sm:$0xff]
      %v7060 = vld [vmem:[%s6 + $0x8] sm:$0xff]
      %v7061 = vld [vmem:[%s6 + $0x10] sm:$0xff]
      %v7062 = vld [vmem:[%s6 + $0x18] sm:$0xff]
      %v7063 = vld [vmem:[%s6 + $0x20] sm:$0xff]
      %v7064 = vld [vmem:[%s6 + $0x28] sm:$0xff]
      %v7065 = vld [vmem:[%s6 + $0x30] sm:$0xff]
      %v7066 = vld [vmem:[%s6 + $0x38] sm:$0xff]
      %7068 = vset.pattern.permute.xlu0 0
      %7069 = vperm.xlu0 %7068, %v7059
      %v7070 = vpop.permute.xlu0 %7069
      %7073 = vset.pattern.permute.xlu0 0
      %7074 = vperm.xlu0 %7073, %v7060
      %v7075 = vpop.permute.xlu0 %7074
      %7078 = vset.pattern.permute.xlu0 0
      %7079 = vperm.xlu0 %7078, %v7061
      %v7080 = vpop.permute.xlu0 %7079
      %7083 = vset.pattern.permute.xlu0 0
      %7084 = vperm.xlu0 %7083, %v7062
      %v7085 = vpop.permute.xlu0 %7084
      %7088 = vset.pattern.permute.xlu0 0
      %7089 = vperm.xlu0 %7088, %v7063
      %v7090 = vpop.permute.xlu0 %7089
      %7093 = vset.pattern.permute.xlu0 0
      %7094 = vperm.xlu0 %7093, %v7064
      %v7095 = vpop.permute.xlu0 %7094
      %7098 = vset.pattern.permute.xlu0 0
      %7099 = vperm.xlu0 %7098, %v7065
      %v7100 = vpop.permute.xlu0 %7099
      %7103 = vset.pattern.permute.xlu0 0
      %7104 = vperm.xlu0 %7103, %v7066
      %v7105 = vpop.permute.xlu0 %7104
      %v7115 = vunpack.c.l.b16 %v7035
      %v7116 = vunpack.c.l.b16 %v7036
      %v7117 = vunpack.c.l.b16 %v7037
      %v7118 = vunpack.c.l.b16 %v7038
      %v7119 = vunpack.c.l.b16 %v7039
      %v7120 = vunpack.c.l.b16 %v7040
      %v7121 = vunpack.c.l.b16 %v7041
      %v7122 = vunpack.c.l.b16 %v7042
      %v7123 = vpack.c.b16 %v7116, %v7115
      %v7124 = vpack.c.b16 %v7118, %v7117
      %v7125 = vpack.c.b16 %v7120, %v7119
      %v7126 = vpack.c.b16 %v7122, %v7121
      %vm7127 = vcmask 523264
      %v7129 = vsel %vm7127, %v7123, 0
      %v7132 = vsel %vm7127, %v7124, 0
      %v7135 = vsel %vm7127, %v7125, 0
      %v7138 = vsel %vm7127, %v7126, 0
      %7140 = vmatpush.bf16.msra.mxu0 0
      %7141 = vmatpush.bf16.msra.mxu0 0
      %7142 = vmatpush.bf16.msra.mxu0 0
      %7143 = vmatpush.bf16.msra.mxu0 0
      %7144 = vmatpush.bf16.msra.mxu0 %v7055
      %7145 = vmatpush.bf16.msra.mxu0 %v7051
      %7146 = vmatpush.bf16.msra.mxu0 %v7047
      %7147 = vmatpush.bf16.msra.mxu0 %v7043
      %7148 = vmatmul.bf16.gmra.mxu0 %v7129
      %v7149 = vpop.f32.mrf.mxu0
      %v7150 = vadd.f32 %v7070, %v7149
      %v7151 = vpop.f32.mrf.mxu0
      %v7152 = vadd.f32 %v7075, %v7151
      %7153 = vmatmul.bf16.gmra.mxu0 %v7132
      %v7154 = vpop.f32.mrf.mxu0
      %v7155 = vadd.f32 %v7080, %v7154
      %v7156 = vpop.f32.mrf.mxu0
      %v7157 = vadd.f32 %v7085, %v7156
      %7158 = vmatmul.bf16.gmra.mxu0 %v7135
      %v7159 = vpop.f32.mrf.mxu0
      %v7160 = vadd.f32 %v7090, %v7159
      %v7161 = vpop.f32.mrf.mxu0
      %v7162 = vadd.f32 %v7095, %v7161
      %7163 = vmatmul.bf16.gmra.mxu0 %v7138
      %v7164 = vpop.f32.mrf.mxu0
      %v7165 = vadd.f32 %v7100, %v7164
      %v7166 = vpop.f32.mrf.mxu0
      %v7167 = vadd.f32 %v7105, %v7166
      %7168 = vdwg.mxu0
      %7169 = vmatpush.bf16.msra.mxu0 0
      %7170 = vmatpush.bf16.msra.mxu0 0
      %7171 = vmatpush.bf16.msra.mxu0 0
      %7172 = vmatpush.bf16.msra.mxu0 0
      %7173 = vmatpush.bf16.msra.mxu0 %v7056
      %7174 = vmatpush.bf16.msra.mxu0 %v7052
      %7175 = vmatpush.bf16.msra.mxu0 %v7048
      %7176 = vmatpush.bf16.msra.mxu0 %v7044
      %7177 = vmatmul.bf16.gmra.mxu0 %v7129
      %v7178 = vpop.f32.mrf.mxu0
      %v7179 = vadd.f32 %v7070, %v7178
      %v7180 = vpop.f32.mrf.mxu0
      %v7181 = vadd.f32 %v7075, %v7180
      %7182 = vmatmul.bf16.gmra.mxu0 %v7132
      %v7183 = vpop.f32.mrf.mxu0
      %v7184 = vadd.f32 %v7080, %v7183
      %v7185 = vpop.f32.mrf.mxu0
      %v7186 = vadd.f32 %v7085, %v7185
      %7187 = vmatmul.bf16.gmra.mxu0 %v7135
      %v7188 = vpop.f32.mrf.mxu0
      %v7189 = vadd.f32 %v7090, %v7188
      %v7190 = vpop.f32.mrf.mxu0
      %v7191 = vadd.f32 %v7095, %v7190
      %7192 = vmatmul.bf16.gmra.mxu0 %v7138
      %v7193 = vpop.f32.mrf.mxu0
      %v7194 = vadd.f32 %v7100, %v7193
      %v7195 = vpop.f32.mrf.mxu0
      %v7196 = vadd.f32 %v7105, %v7195
      %7197 = vdwg.mxu0
      %7198 = vmatpush.bf16.msra.mxu0 0
      %7199 = vmatpush.bf16.msra.mxu0 0
      %7200 = vmatpush.bf16.msra.mxu0 0
      %7201 = vmatpush.bf16.msra.mxu0 0
      %7202 = vmatpush.bf16.msra.mxu0 %v7057
      %7203 = vmatpush.bf16.msra.mxu0 %v7053
      %7204 = vmatpush.bf16.msra.mxu0 %v7049
      %7205 = vmatpush.bf16.msra.mxu0 %v7045
      %7206 = vmatmul.bf16.gmra.mxu0 %v7129
      %v7207 = vpop.f32.mrf.mxu0
      %v7208 = vadd.f32 %v7070, %v7207
      %v7209 = vpop.f32.mrf.mxu0
      %v7210 = vadd.f32 %v7075, %v7209
      %7211 = vmatmul.bf16.gmra.mxu0 %v7132
      %v7212 = vpop.f32.mrf.mxu0
      %v7213 = vadd.f32 %v7080, %v7212
      %v7214 = vpop.f32.mrf.mxu0
      %v7215 = vadd.f32 %v7085, %v7214
      %7216 = vmatmul.bf16.gmra.mxu0 %v7135
      %v7217 = vpop.f32.mrf.mxu0
      %v7218 = vadd.f32 %v7090, %v7217
      %v7219 = vpop.f32.mrf.mxu0
      %v7220 = vadd.f32 %v7095, %v7219
      %7221 = vmatmul.bf16.gmra.mxu0 %v7138
      %v7222 = vpop.f32.mrf.mxu0
      %v7223 = vadd.f32 %v7100, %v7222
      %v7224 = vpop.f32.mrf.mxu0
      %v7225 = vadd.f32 %v7105, %v7224
      %7226 = vdwg.mxu0
      %7227 = vmatpush.bf16.msra.mxu0 0
      %7228 = vmatpush.bf16.msra.mxu0 0
      %7229 = vmatpush.bf16.msra.mxu0 0
      %7230 = vmatpush.bf16.msra.mxu0 0
      %7231 = vmatpush.bf16.msra.mxu0 %v7058
      %7232 = vmatpush.bf16.msra.mxu0 %v7054
      %7233 = vmatpush.bf16.msra.mxu0 %v7050
      %7234 = vmatpush.bf16.msra.mxu0 %v7046
      %7235 = vmatmul.bf16.gmra.mxu0 %v7129
      %v7236 = vpop.f32.mrf.mxu0
      %v7237 = vadd.f32 %v7070, %v7236
      %v7238 = vpop.f32.mrf.mxu0
      %v7239 = vadd.f32 %v7075, %v7238
      %7240 = vmatmul.bf16.gmra.mxu0 %v7132
      %v7241 = vpop.f32.mrf.mxu0
      %v7242 = vadd.f32 %v7080, %v7241
      %v7243 = vpop.f32.mrf.mxu0
      %v7244 = vadd.f32 %v7085, %v7243
      %7245 = vmatmul.bf16.gmra.mxu0 %v7135
      %v7246 = vpop.f32.mrf.mxu0
      %v7247 = vadd.f32 %v7090, %v7246
      %v7248 = vpop.f32.mrf.mxu0
      %v7249 = vadd.f32 %v7095, %v7248
      %7250 = vmatmul.bf16.gmra.mxu0 %v7138
      %v7251 = vpop.f32.mrf.mxu0
      %v7252 = vadd.f32 %v7100, %v7251
      %v7253 = vpop.f32.mrf.mxu0
      %v7254 = vadd.f32 %v7105, %v7253
      %7255 = vdwg.mxu0
      %vm7256 = vcmp.gt.f32.partialorder %v7150, 0.0
      %vm7257 = vcmp.gt.f32.partialorder %v7179, 0.0
      %vm7258 = vcmp.gt.f32.partialorder %v7208, 0.0
      %vm7259 = vcmp.gt.f32.partialorder %v7237, 0.0
      %vm7260 = vcmp.gt.f32.partialorder %v7152, 0.0
      %vm7261 = vcmp.gt.f32.partialorder %v7181, 0.0
      %vm7262 = vcmp.gt.f32.partialorder %v7210, 0.0
      %vm7263 = vcmp.gt.f32.partialorder %v7239, 0.0
      %vm7264 = vcmp.gt.f32.partialorder %v7155, 0.0
      %vm7265 = vcmp.gt.f32.partialorder %v7184, 0.0
      %vm7266 = vcmp.gt.f32.partialorder %v7213, 0.0
      %vm7267 = vcmp.gt.f32.partialorder %v7242, 0.0
      %vm7268 = vcmp.gt.f32.partialorder %v7157, 0.0
      %vm7269 = vcmp.gt.f32.partialorder %v7186, 0.0
      %vm7270 = vcmp.gt.f32.partialorder %v7215, 0.0
      %vm7271 = vcmp.gt.f32.partialorder %v7244, 0.0
      %vm7272 = vcmp.gt.f32.partialorder %v7160, 0.0
      %vm7273 = vcmp.gt.f32.partialorder %v7189, 0.0
      %vm7274 = vcmp.gt.f32.partialorder %v7218, 0.0
      %vm7275 = vcmp.gt.f32.partialorder %v7247, 0.0
      %vm7276 = vcmp.gt.f32.partialorder %v7162, 0.0
      %vm7277 = vcmp.gt.f32.partialorder %v7191, 0.0
      %vm7278 = vcmp.gt.f32.partialorder %v7220, 0.0
      %vm7279 = vcmp.gt.f32.partialorder %v7249, 0.0
      %vm7280 = vcmp.gt.f32.partialorder %v7165, 0.0
      %vm7281 = vcmp.gt.f32.partialorder %v7194, 0.0
      %vm7282 = vcmp.gt.f32.partialorder %v7223, 0.0
      %vm7283 = vcmp.gt.f32.partialorder %v7252, 0.0
      %vm7284 = vcmp.gt.f32.partialorder %v7167, 0.0
      %vm7285 = vcmp.gt.f32.partialorder %v7196, 0.0
      %vm7286 = vcmp.gt.f32.partialorder %v7225, 0.0
      %vm7287 = vcmp.gt.f32.partialorder %v7254, 0.0
      %v7288 = vmin.f32 %v7150, 0.0
      %v7289 = vmin.f32 %v7179, 0.0
      %v7290 = vmin.f32 %v7208, 0.0
      %v7291 = vmin.f32 %v7237, 0.0
      %v7292 = vmin.f32 %v7152, 0.0
      %v7293 = vmin.f32 %v7181, 0.0
      %v7294 = vmin.f32 %v7210, 0.0
      %v7295 = vmin.f32 %v7239, 0.0
      %v7296 = vmin.f32 %v7155, 0.0
      %v7297 = vmin.f32 %v7184, 0.0
      %v7298 = vmin.f32 %v7213, 0.0
      %v7299 = vmin.f32 %v7242, 0.0
      %v7300 = vmin.f32 %v7157, 0.0
      %v7301 = vmin.f32 %v7186, 0.0
      %v7302 = vmin.f32 %v7215, 0.0
      %v7303 = vmin.f32 %v7244, 0.0
      %v7304 = vmin.f32 %v7160, 0.0
      %v7305 = vmin.f32 %v7189, 0.0
      %v7306 = vmin.f32 %v7218, 0.0
      %v7307 = vmin.f32 %v7247, 0.0
      %v7308 = vmin.f32 %v7162, 0.0
      %v7309 = vmin.f32 %v7191, 0.0
      %v7310 = vmin.f32 %v7220, 0.0
      %v7311 = vmin.f32 %v7249, 0.0
      %v7312 = vmin.f32 %v7165, 0.0
      %v7313 = vmin.f32 %v7194, 0.0
      %v7314 = vmin.f32 %v7223, 0.0
      %v7315 = vmin.f32 %v7252, 0.0
      %v7316 = vmin.f32 %v7167, 0.0
      %v7317 = vmin.f32 %v7196, 0.0
      %v7318 = vmin.f32 %v7225, 0.0
      %v7319 = vmin.f32 %v7254, 0.0
      %v7320 = vmul.f32 %v7288, 1.442695
      %v7321 = vpow.pop %v7320
      %v7322 = vmul.f32 %v7289, 1.442695
      %v7323 = vpow.pop %v7322
      %v7324 = vmul.f32 %v7290, 1.442695
      %v7325 = vpow.pop %v7324
      %v7326 = vmul.f32 %v7291, 1.442695
      %v7327 = vpow.pop %v7326
      %v7328 = vmul.f32 %v7292, 1.442695
      %v7329 = vpow.pop %v7328
      %v7330 = vmul.f32 %v7293, 1.442695
      %v7331 = vpow.pop %v7330
      %v7332 = vmul.f32 %v7294, 1.442695
      %v7333 = vpow.pop %v7332
      %v7334 = vmul.f32 %v7295, 1.442695
      %v7335 = vpow.pop %v7334
      %v7336 = vmul.f32 %v7296, 1.442695
      %v7337 = vpow.pop %v7336
      %v7338 = vmul.f32 %v7297, 1.442695
      %v7339 = vpow.pop %v7338
      %v7340 = vmul.f32 %v7298, 1.442695
      %v7341 = vpow.pop %v7340
      %v7342 = vmul.f32 %v7299, 1.442695
      %v7343 = vpow.pop %v7342
      %v7344 = vmul.f32 %v7300, 1.442695
      %v7345 = vpow.pop %v7344
      %v7346 = vmul.f32 %v7301, 1.442695
      %v7347 = vpow.pop %v7346
      %v7348 = vmul.f32 %v7302, 1.442695
      %v7349 = vpow.pop %v7348
      %v7350 = vmul.f32 %v7303, 1.442695
      %v7351 = vpow.pop %v7350
      %v7352 = vmul.f32 %v7304, 1.442695
      %v7353 = vpow.pop %v7352
      %v7354 = vmul.f32 %v7305, 1.442695
      %v7355 = vpow.pop %v7354
      %v7356 = vmul.f32 %v7306, 1.442695
      %v7357 = vpow.pop %v7356
      %v7358 = vmul.f32 %v7307, 1.442695
      %v7359 = vpow.pop %v7358
      %v7360 = vmul.f32 %v7308, 1.442695
      %v7361 = vpow.pop %v7360
      %v7362 = vmul.f32 %v7309, 1.442695
      %v7363 = vpow.pop %v7362
      %v7364 = vmul.f32 %v7310, 1.442695
      %v7365 = vpow.pop %v7364
      %v7366 = vmul.f32 %v7311, 1.442695
      %v7367 = vpow.pop %v7366
      %v7368 = vmul.f32 %v7312, 1.442695
      %v7369 = vpow.pop %v7368
      %v7370 = vmul.f32 %v7313, 1.442695
      %v7371 = vpow.pop %v7370
      %v7372 = vmul.f32 %v7314, 1.442695
      %v7373 = vpow.pop %v7372
      %v7374 = vmul.f32 %v7315, 1.442695
      %v7375 = vpow.pop %v7374
      %v7376 = vmul.f32 %v7316, 1.442695
      %v7377 = vpow.pop %v7376
      %v7378 = vmul.f32 %v7317, 1.442695
      %v7379 = vpow.pop %v7378
      %v7380 = vmul.f32 %v7318, 1.442695
      %v7381 = vpow.pop %v7380
      %v7382 = vmul.f32 %v7319, 1.442695
      %v7383 = vpow.pop %v7382
      %v7384 = vsub.f32 %v7321, 1.0
      %v7385 = vsub.f32 %v7323, 1.0
      %v7386 = vsub.f32 %v7325, 1.0
      %v7387 = vsub.f32 %v7327, 1.0
      %v7388 = vsub.f32 %v7329, 1.0
      %v7389 = vsub.f32 %v7331, 1.0
      %v7390 = vsub.f32 %v7333, 1.0
      %v7391 = vsub.f32 %v7335, 1.0
      %v7392 = vsub.f32 %v7337, 1.0
      %v7393 = vsub.f32 %v7339, 1.0
      %v7394 = vsub.f32 %v7341, 1.0
      %v7395 = vsub.f32 %v7343, 1.0
      %v7396 = vsub.f32 %v7345, 1.0
      %v7397 = vsub.f32 %v7347, 1.0
      %v7398 = vsub.f32 %v7349, 1.0
      %v7399 = vsub.f32 %v7351, 1.0
      %v7400 = vsub.f32 %v7353, 1.0
      %v7401 = vsub.f32 %v7355, 1.0
      %v7402 = vsub.f32 %v7357, 1.0
      %v7403 = vsub.f32 %v7359, 1.0
      %v7404 = vsub.f32 %v7361, 1.0
      %v7405 = vsub.f32 %v7363, 1.0
      %v7406 = vsub.f32 %v7365, 1.0
      %v7407 = vsub.f32 %v7367, 1.0
      %v7408 = vsub.f32 %v7369, 1.0
      %v7409 = vsub.f32 %v7371, 1.0
      %v7410 = vsub.f32 %v7373, 1.0
      %v7411 = vsub.f32 %v7375, 1.0
      %v7412 = vsub.f32 %v7377, 1.0
      %v7413 = vsub.f32 %v7379, 1.0
      %v7414 = vsub.f32 %v7381, 1.0
      %v7415 = vsub.f32 %v7383, 1.0
      %v7416 = vsel %vm7256, %v7150, %v7384
      %v7417 = vsel %vm7257, %v7179, %v7385
      %v7418 = vsel %vm7258, %v7208, %v7386
      %v7419 = vsel %vm7259, %v7237, %v7387
      %v7420 = vsel %vm7260, %v7152, %v7388
      %v7421 = vsel %vm7261, %v7181, %v7389
      %v7422 = vsel %vm7262, %v7210, %v7390
      %v7423 = vsel %vm7263, %v7239, %v7391
      %v7424 = vsel %vm7264, %v7155, %v7392
      %v7425 = vsel %vm7265, %v7184, %v7393
      %v7426 = vsel %vm7266, %v7213, %v7394
      %v7427 = vsel %vm7267, %v7242, %v7395
      %v7428 = vsel %vm7268, %v7157, %v7396
      %v7429 = vsel %vm7269, %v7186, %v7397
      %v7430 = vsel %vm7270, %v7215, %v7398
      %v7431 = vsel %vm7271, %v7244, %v7399
      %v7432 = vsel %vm7272, %v7160, %v7400
      %v7433 = vsel %vm7273, %v7189, %v7401
      %v7434 = vsel %vm7274, %v7218, %v7402
      %v7435 = vsel %vm7275, %v7247, %v7403
      %v7436 = vsel %vm7276, %v7162, %v7404
      %v7437 = vsel %vm7277, %v7191, %v7405
      %v7438 = vsel %vm7278, %v7220, %v7406
      %v7439 = vsel %vm7279, %v7249, %v7407
      %v7440 = vsel %vm7280, %v7165, %v7408
      %v7441 = vsel %vm7281, %v7194, %v7409
      %v7442 = vsel %vm7282, %v7223, %v7410
      %v7443 = vsel %vm7283, %v7252, %v7411
      %v7444 = vsel %vm7284, %v7167, %v7412
      %v7445 = vsel %vm7285, %v7196, %v7413
      %v7446 = vsel %vm7286, %v7225, %v7414
      %v7447 = vsel %vm7287, %v7254, %v7415
      %v7448 = vpack.c.bf16 %v7420, %v7416
      %v7449 = vpack.c.bf16 %v7421, %v7417
      %v7450 = vpack.c.bf16 %v7422, %v7418
      %v7451 = vpack.c.bf16 %v7423, %v7419
      %v7452 = vpack.c.bf16 %v7428, %v7424
      %v7453 = vpack.c.bf16 %v7429, %v7425
      %v7454 = vpack.c.bf16 %v7430, %v7426
      %v7455 = vpack.c.bf16 %v7431, %v7427
      %v7456 = vpack.c.bf16 %v7436, %v7432
      %v7457 = vpack.c.bf16 %v7437, %v7433
      %v7458 = vpack.c.bf16 %v7438, %v7434
      %v7459 = vpack.c.bf16 %v7439, %v7435
      %v7460 = vpack.c.bf16 %v7444, %v7440
      %v7461 = vpack.c.bf16 %v7445, %v7441
      %v7462 = vpack.c.bf16 %v7446, %v7442
      %v7463 = vpack.c.bf16 %v7447, %v7443
      %v7464 = vld [vmem:[%s7] sm:$0xf]
      %v7465 = vld [vmem:[%s7 + $0x4] sm:$0xf]
      %v7466 = vld [vmem:[%s7 + $0x8] sm:$0xf]
      %v7467 = vld [vmem:[%s7 + $0xc] sm:$0xf]
      %v7468 = vld [vmem:[%s7 + $0x10] sm:$0xf]
      %v7469 = vld [vmem:[%s7 + $0x14] sm:$0xf]
      %v7470 = vld [vmem:[%s7 + $0x18] sm:$0xf]
      %v7471 = vld [vmem:[%s7 + $0x1c] sm:$0xf]
      %v7472 = vld [vmem:[%s7 + $0x20] sm:$0xf]
      %v7473 = vld [vmem:[%s7 + $0x24] sm:$0xf]
      %v7474 = vld [vmem:[%s7 + $0x28] sm:$0xf]
      %v7475 = vld [vmem:[%s7 + $0x2c] sm:$0xf]
      %v7476 = vld [vmem:[%s7 + $0x30] sm:$0xf]
      %v7477 = vld [vmem:[%s7 + $0x34] sm:$0xf]
      %v7478 = vld [vmem:[%s7 + $0x38] sm:$0xf]
      %v7479 = vld [vmem:[%s7 + $0x3c] sm:$0xf]
      %v7480 = vld [vmem:[%s7 + $0x40] sm:$0xf]
      %v7481 = vld [vmem:[%s7 + $0x44] sm:$0xf]
      %v7482 = vld [vmem:[%s7 + $0x48] sm:$0xf]
      %v7483 = vld [vmem:[%s7 + $0x4c] sm:$0xf]
      %v7484 = vld [vmem:[%s7 + $0x50] sm:$0xf]
      %v7485 = vld [vmem:[%s7 + $0x54] sm:$0xf]
      %v7486 = vld [vmem:[%s7 + $0x58] sm:$0xf]
      %v7487 = vld [vmem:[%s7 + $0x5c] sm:$0xf]
      %v7488 = vld [vmem:[%s7 + $0x60] sm:$0xf]
      %v7489 = vld [vmem:[%s7 + $0x64] sm:$0xf]
      %v7490 = vld [vmem:[%s7 + $0x68] sm:$0xf]
      %v7491 = vld [vmem:[%s7 + $0x6c] sm:$0xf]
      %v7492 = vld [vmem:[%s7 + $0x70] sm:$0xf]
      %v7493 = vld [vmem:[%s7 + $0x74] sm:$0xf]
      %v7494 = vld [vmem:[%s7 + $0x78] sm:$0xf]
      %v7495 = vld [vmem:[%s7 + $0x7c] sm:$0xf]
      %v7496 = vld [vmem:[%s7 + $0x80] sm:$0xf]
      %v7497 = vld [vmem:[%s7 + $0x84] sm:$0xf]
      %v7498 = vld [vmem:[%s7 + $0x88] sm:$0xf]
      %v7499 = vld [vmem:[%s7 + $0x8c] sm:$0xf]
      %v7500 = vld [vmem:[%s7 + $0x90] sm:$0xf]
      %v7501 = vld [vmem:[%s7 + $0x94] sm:$0xf]
      %v7502 = vld [vmem:[%s7 + $0x98] sm:$0xf]
      %v7503 = vld [vmem:[%s7 + $0x9c] sm:$0xf]
      %v7504 = vld [vmem:[%s7 + $0xa0] sm:$0xf]
      %v7505 = vld [vmem:[%s7 + $0xa4] sm:$0xf]
      %v7506 = vld [vmem:[%s7 + $0xa8] sm:$0xf]
      %v7507 = vld [vmem:[%s7 + $0xac] sm:$0xf]
      %v7508 = vld [vmem:[%s7 + $0xb0] sm:$0xf]
      %v7509 = vld [vmem:[%s7 + $0xb4] sm:$0xf]
      %v7510 = vld [vmem:[%s7 + $0xb8] sm:$0xf]
      %v7511 = vld [vmem:[%s7 + $0xbc] sm:$0xf]
      %v7512 = vld [vmem:[%s7 + $0xc0] sm:$0xf]
      %v7513 = vld [vmem:[%s7 + $0xc4] sm:$0xf]
      %v7514 = vld [vmem:[%s7 + $0xc8] sm:$0xf]
      %v7515 = vld [vmem:[%s7 + $0xcc] sm:$0xf]
      %v7516 = vld [vmem:[%s7 + $0xd0] sm:$0xf]
      %v7517 = vld [vmem:[%s7 + $0xd4] sm:$0xf]
      %v7518 = vld [vmem:[%s7 + $0xd8] sm:$0xf]
      %v7519 = vld [vmem:[%s7 + $0xdc] sm:$0xf]
      %v7520 = vld [vmem:[%s7 + $0xe0] sm:$0xf]
      %v7521 = vld [vmem:[%s7 + $0xe4] sm:$0xf]
      %v7522 = vld [vmem:[%s7 + $0xe8] sm:$0xf]
      %v7523 = vld [vmem:[%s7 + $0xec] sm:$0xf]
      %v7584 = vunpack.c.l.b16 %v7464
      %v7585 = vunpack.c.l.b16 %v7465
      %v7586 = vunpack.c.l.b16 %v7466
      %v7587 = vunpack.c.l.b16 %v7467
      %v7588 = vunpack.c.l.b16 %v7468
      %v7589 = vunpack.c.l.b16 %v7469
      %v7590 = vunpack.c.l.b16 %v7470
      %v7591 = vunpack.c.l.b16 %v7471
      %v7592 = vunpack.c.l.b16 %v7472
      %v7593 = vunpack.c.l.b16 %v7473
      %v7594 = vunpack.c.l.b16 %v7474
      %v7595 = vunpack.c.l.b16 %v7475
      %v7596 = vunpack.c.l.b16 %v7476
      %v7597 = vunpack.c.l.b16 %v7477
      %v7598 = vunpack.c.l.b16 %v7478
      %v7599 = vunpack.c.l.b16 %v7479
      %v7600 = vunpack.c.l.b16 %v7480
      %v7601 = vunpack.c.l.b16 %v7481
      %v7602 = vunpack.c.l.b16 %v7482
      %v7603 = vunpack.c.l.b16 %v7483
      %v7604 = vunpack.c.l.b16 %v7484
      %v7605 = vunpack.c.l.b16 %v7485
      %v7606 = vunpack.c.l.b16 %v7486
      %v7607 = vunpack.c.l.b16 %v7487
      %v7608 = vunpack.c.l.b16 %v7488
      %v7609 = vunpack.c.l.b16 %v7489
      %v7610 = vunpack.c.l.b16 %v7490
      %v7611 = vunpack.c.l.b16 %v7491
      %v7612 = vunpack.c.l.b16 %v7492
      %v7613 = vunpack.c.l.b16 %v7493
      %v7614 = vunpack.c.l.b16 %v7494
      %v7615 = vunpack.c.l.b16 %v7495
      %v7616 = vunpack.c.l.b16 %v7496
      %v7617 = vunpack.c.l.b16 %v7497
      %v7618 = vunpack.c.l.b16 %v7498
      %v7619 = vunpack.c.l.b16 %v7499
      %v7620 = vunpack.c.l.b16 %v7500
      %v7621 = vunpack.c.l.b16 %v7501
      %v7622 = vunpack.c.l.b16 %v7502
      %v7623 = vunpack.c.l.b16 %v7503
      %v7624 = vunpack.c.l.b16 %v7504
      %v7625 = vunpack.c.l.b16 %v7505
      %v7626 = vunpack.c.l.b16 %v7506
      %v7627 = vunpack.c.l.b16 %v7507
      %v7628 = vunpack.c.l.b16 %v7508
      %v7629 = vunpack.c.l.b16 %v7509
      %v7630 = vunpack.c.l.b16 %v7510
      %v7631 = vunpack.c.l.b16 %v7511
      %v7632 = vunpack.c.l.b16 %v7512
      %v7633 = vunpack.c.l.b16 %v7513
      %v7634 = vunpack.c.l.b16 %v7514
      %v7635 = vunpack.c.l.b16 %v7515
      %v7636 = vunpack.c.l.b16 %v7516
      %v7637 = vunpack.c.l.b16 %v7517
      %v7638 = vunpack.c.l.b16 %v7518
      %v7639 = vunpack.c.l.b16 %v7519
      %v7640 = vunpack.c.l.b16 %v7520
      %v7641 = vunpack.c.l.b16 %v7521
      %v7642 = vunpack.c.l.b16 %v7522
      %v7643 = vunpack.c.l.b16 %v7523
      %v7644 = vpack.c.b16 %v7585, %v7584
      %v7645 = vpack.c.b16 %v7587, %v7586
      %v7646 = vpack.c.b16 %v7589, %v7588
      %v7647 = vpack.c.b16 %v7591, %v7590
      %v7648 = vpack.c.b16 %v7593, %v7592
      %v7649 = vpack.c.b16 %v7595, %v7594
      %v7650 = vpack.c.b16 %v7597, %v7596
      %v7651 = vpack.c.b16 %v7599, %v7598
      %v7652 = vpack.c.b16 %v7601, %v7600
      %v7653 = vpack.c.b16 %v7603, %v7602
      %v7654 = vpack.c.b16 %v7605, %v7604
      %v7655 = vpack.c.b16 %v7607, %v7606
      %v7656 = vpack.c.b16 %v7609, %v7608
      %v7657 = vpack.c.b16 %v7611, %v7610
      %v7658 = vpack.c.b16 %v7613, %v7612
      %v7659 = vpack.c.b16 %v7615, %v7614
      %v7660 = vpack.c.b16 %v7617, %v7616
      %v7661 = vpack.c.b16 %v7619, %v7618
      %v7662 = vpack.c.b16 %v7621, %v7620
      %v7663 = vpack.c.b16 %v7623, %v7622
      %v7664 = vpack.c.b16 %v7625, %v7624
      %v7665 = vpack.c.b16 %v7627, %v7626
      %v7666 = vpack.c.b16 %v7629, %v7628
      %v7667 = vpack.c.b16 %v7631, %v7630
      %v7668 = vpack.c.b16 %v7633, %v7632
      %v7669 = vpack.c.b16 %v7635, %v7634
      %v7670 = vpack.c.b16 %v7637, %v7636
      %v7671 = vpack.c.b16 %v7639, %v7638
      %v7672 = vpack.c.b16 %v7641, %v7640
      %v7673 = vpack.c.b16 %v7643, %v7642
      %vm7704 = vcmask 785408
      %v7706 = vsel %vm7704, %v7451, 0
      %v7709 = vsel %vm7704, %v7455, 0
      %v7712 = vsel %vm7704, %v7459, 0
      %v7715 = vsel %vm7704, %v7463, 0
      %7717 = vmatpush.bf16.msra.mxu0 %v7651
      %7718 = vmatpush.bf16.msra.mxu0 %v7650
      %7719 = vmatpush.bf16.msra.mxu0 %v7649
      %7720 = vmatpush.bf16.msra.mxu0 %v7648
      %7721 = vmatpush.bf16.msra.mxu0 %v7647
      %7722 = vmatpush.bf16.msra.mxu0 %v7646
      %7723 = vmatpush.bf16.msra.mxu0 %v7645
      %7724 = vmatpush.bf16.msra.mxu0 %v7644
      %7725 = vmatmul.bf16.gmra.mxu0 %v7448
      %v7726 = vpop.f32.mrf.mxu0
      %v7727 = vadd.f32 0.0, %v7726
      %v7728 = vpop.f32.mrf.mxu0
      %v7729 = vadd.f32 0.0, %v7728
      %7730 = vmatmul.bf16.gmra.mxu0 %v7452
      %v7731 = vpop.f32.mrf.mxu0
      %v7732 = vadd.f32 0.0, %v7731
      %v7733 = vpop.f32.mrf.mxu0
      %v7734 = vadd.f32 0.0, %v7733
      %7735 = vmatmul.bf16.gmra.mxu0 %v7456
      %v7736 = vpop.f32.mrf.mxu0
      %v7737 = vadd.f32 0.0, %v7736
      %v7738 = vpop.f32.mrf.mxu0
      %v7739 = vadd.f32 0.0, %v7738
      %7740 = vmatmul.bf16.gmra.mxu0 %v7460
      %v7741 = vpop.f32.mrf.mxu0
      %v7742 = vadd.f32 0.0, %v7741
      %v7743 = vpop.f32.mrf.mxu0
      %v7744 = vadd.f32 0.0, %v7743
      %7745 = vdwg.mxu0
      %7746 = vmatpush.bf16.msra.mxu0 %v7659
      %7747 = vmatpush.bf16.msra.mxu0 %v7658
      %7748 = vmatpush.bf16.msra.mxu0 %v7657
      %7749 = vmatpush.bf16.msra.mxu0 %v7656
      %7750 = vmatpush.bf16.msra.mxu0 %v7655
      %7751 = vmatpush.bf16.msra.mxu0 %v7654
      %7752 = vmatpush.bf16.msra.mxu0 %v7653
      %7753 = vmatpush.bf16.msra.mxu0 %v7652
      %7754 = vmatmul.bf16.gmra.mxu0 %v7449
      %v7755 = vpop.f32.mrf.mxu0
      %v7756 = vadd.f32 %v7727, %v7755
      %v7757 = vpop.f32.mrf.mxu0
      %v7758 = vadd.f32 %v7729, %v7757
      %7759 = vmatmul.bf16.gmra.mxu0 %v7453
      %v7760 = vpop.f32.mrf.mxu0
      %v7761 = vadd.f32 %v7732, %v7760
      %v7762 = vpop.f32.mrf.mxu0
      %v7763 = vadd.f32 %v7734, %v7762
      %7764 = vmatmul.bf16.gmra.mxu0 %v7457
      %v7765 = vpop.f32.mrf.mxu0
      %v7766 = vadd.f32 %v7737, %v7765
      %v7767 = vpop.f32.mrf.mxu0
      %v7768 = vadd.f32 %v7739, %v7767
      %7769 = vmatmul.bf16.gmra.mxu0 %v7461
      %v7770 = vpop.f32.mrf.mxu0
      %v7771 = vadd.f32 %v7742, %v7770
      %v7772 = vpop.f32.mrf.mxu0
      %v7773 = vadd.f32 %v7744, %v7772
      %7774 = vdwg.mxu0
      %7775 = vmatpush.bf16.msra.mxu0 %v7667
      %7776 = vmatpush.bf16.msra.mxu0 %v7666
      %7777 = vmatpush.bf16.msra.mxu0 %v7665
      %7778 = vmatpush.bf16.msra.mxu0 %v7664
      %7779 = vmatpush.bf16.msra.mxu0 %v7663
      %7780 = vmatpush.bf16.msra.mxu0 %v7662
      %7781 = vmatpush.bf16.msra.mxu0 %v7661
      %7782 = vmatpush.bf16.msra.mxu0 %v7660
      %7783 = vmatmul.bf16.gmra.mxu0 %v7450
      %v7784 = vpop.f32.mrf.mxu0
      %v7785 = vadd.f32 %v7756, %v7784
      %v7786 = vpop.f32.mrf.mxu0
      %v7787 = vadd.f32 %v7758, %v7786
      %7788 = vmatmul.bf16.gmra.mxu0 %v7454
      %v7789 = vpop.f32.mrf.mxu0
      %v7790 = vadd.f32 %v7761, %v7789
      %v7791 = vpop.f32.mrf.mxu0
      %v7792 = vadd.f32 %v7763, %v7791
      %7793 = vmatmul.bf16.gmra.mxu0 %v7458
      %v7794 = vpop.f32.mrf.mxu0
      %v7795 = vadd.f32 %v7766, %v7794
      %v7796 = vpop.f32.mrf.mxu0
      %v7797 = vadd.f32 %v7768, %v7796
      %7798 = vmatmul.bf16.gmra.mxu0 %v7462
      %v7799 = vpop.f32.mrf.mxu0
      %v7800 = vadd.f32 %v7771, %v7799
      %v7801 = vpop.f32.mrf.mxu0
      %v7802 = vadd.f32 %v7773, %v7801
      %7803 = vdwg.mxu0
      %7804 = vmatpush.bf16.msra.mxu0 0
      %7805 = vmatpush.bf16.msra.mxu0 0
      %7806 = vmatpush.bf16.msra.mxu0 %v7673
      %7807 = vmatpush.bf16.msra.mxu0 %v7672
      %7808 = vmatpush.bf16.msra.mxu0 %v7671
      %7809 = vmatpush.bf16.msra.mxu0 %v7670
      %7810 = vmatpush.bf16.msra.mxu0 %v7669
      %7811 = vmatpush.bf16.msra.mxu0 %v7668
      %7812 = vmatmul.bf16.gmra.mxu0 %v7706
      %v7813 = vpop.f32.mrf.mxu0
      %v7814 = vadd.f32 %v7785, %v7813
      %v7815 = vpop.f32.mrf.mxu0
      %v7816 = vadd.f32 %v7787, %v7815
      %7817 = vmatmul.bf16.gmra.mxu0 %v7709
      %v7818 = vpop.f32.mrf.mxu0
      %v7819 = vadd.f32 %v7790, %v7818
      %v7820 = vpop.f32.mrf.mxu0
      %v7821 = vadd.f32 %v7792, %v7820
      %7822 = vmatmul.bf16.gmra.mxu0 %v7712
      %v7823 = vpop.f32.mrf.mxu0
      %v7824 = vadd.f32 %v7795, %v7823
      %v7825 = vpop.f32.mrf.mxu0
      %v7826 = vadd.f32 %v7797, %v7825
      %7827 = vmatmul.bf16.gmra.mxu0 %v7715
      %v7828 = vpop.f32.mrf.mxu0
      %v7829 = vadd.f32 %v7800, %v7828
      %v7830 = vpop.f32.mrf.mxu0
      %v7831 = vadd.f32 %v7802, %v7830
      %7832 = vdwg.mxu0
      %7833 = vst.msk [vmem:[%s305] sm:$0xff] %vm7704, %v7814
      %7834 = vst.msk [vmem:[%s305 + $0x8] sm:$0xff] %vm7704, %v7816
      %7835 = vst.msk [vmem:[%s305 + $0x10] sm:$0xff] %vm7704, %v7819
      %7836 = vst.msk [vmem:[%s305 + $0x18] sm:$0xff] %vm7704, %v7821
      %7837 = vst.msk [vmem:[%s305 + $0x20] sm:$0xff] %vm7704, %v7824
      %7838 = vst.msk [vmem:[%s305 + $0x28] sm:$0xff] %vm7704, %v7826
      %7839 = vst.msk [vmem:[%s305 + $0x30] sm:$0xff] %vm7704, %v7829
      %7840 = vst.msk [vmem:[%s305 + $0x38] sm:$0xff] %vm7704, %v7831
      %p7841 = scmp.lt.s32.totalorder %s19, 1
      %s7842 = scalar_select %p7841, %s19, 1
      %s7843 = smul.addr %s7842, 8
      %s7844 = smul.addr %s7843, 8
      %s7845 = scalar_lea.vmem %s8, %s7844
      // Predicated region
      $region53: #{eegnet_pallas.1} parent=51 // pred_check
        %p7846 = pneg %p210
      $region54: #{eegnet_pallas.1} parent=51 // pred_check_branch
        %7848 = sbr.rel (%p7846) target = $region56
      $region55: #{eegnet_pallas.1} parent=51 // pred_region
        _
      $region56: #{eegnet_pallas.1} parent=51 // pred_fallthru
        _
    $region52: #{eegnet_pallas.1} parent=5 // pred_fallthru
      _
    %p7849 = scmp.le.s32.totalorder 2, %s14
    // Predicated region
    $region57: #{eegnet_pallas.1} parent=5 // pred_check
      %p7850 = pneg %p7849
    $region58: #{eegnet_pallas.1} parent=5 // pred_check_branch
      %7852 = sbr.rel (%p7850) target = $region60
    $region59: #{eegnet_pallas.1} parent=5 // pred_region
      %s7853 = ssub.s32 %s14, 2
      // Predicated region
      $region61: #{eegnet_pallas.1} parent=59 // pred_check
        %p7854 = pneg %p216
      $region62: #{eegnet_pallas.1} parent=59 // pred_check_branch
        %7856 = sbr.rel (%p7854) target = $region64
      $region63: #{eegnet_pallas.1} parent=59 // pred_region
        %p7857 = scmp.lt.s32.totalorder %s20, 1
        %s7858 = scalar_select %p7857, %s20, 1
        %s7859 = smul.addr %s7858, 8
        %s7860 = smul.addr %s7859, 8
        %s7861 = scalar_lea.vmem %s8, %s7860
      $region64: #{eegnet_pallas.1} parent=59 // pred_fallthru
        _
    $region60: #{eegnet_pallas.1} parent=5 // pred_fallthru
      _
  $region6: #{eegnet_pallas.1} parent=0 // loop_footer
    %s18 = sadd.s32 1, %s14
  $region7: #{eegnet_pallas.1} parent=0 // loop_footer_branch
    %13 = sbr.rel target = $region3
  $region8: #{eegnet_pallas.1} parent=0 // loop_exit
    _

</llo_original>
